<compile_context>
chip_gen: v7x
topology: tpu7x:2x2x1
jax: 0.10.0
libtpu: 0.0.40
codegen_flags: <defaults>
</compile_context>

<pallas_src>
import math
import functools

import jax
import jax.numpy as jnp
from jax import lax
from jax.experimental import pallas as pl
from jax.experimental.pallas import tpu as pltpu


_EPS = 1e-6                      # RMSNorm eps (matches reference)
_VMEM_LIMIT = 32 * 1024 * 1024   # scoped-VMEM budget, safe on v5e/v6e/v7x


def _pick_gb(g, per_group_bytes, target=1 << 20, min_steps=2):
    """Largest divisor of g whose block fits `target` bytes, preferring >= min_steps
    grid steps (keeps both v7x TensorCores busy)."""
    divs = [d for d in range(1, g + 1) if g % d == 0]
    fit = [d for d in divs if d * per_group_bytes <= target] or [1]
    multi = [d for d in fit if g // d >= min_steps]
    return max(multi) if multi else max(fit)


# ---------------------------------------------------------------------------
# Fused kernel: attention ResBlock + FFN ResBlock on one [Gb, L, C] tile.
# shared_kv=True  -> kv block is [1, Lk, C] shared by every query group in the tile.
# shared_kv=False -> kv block is [Gb, Lk, C], one KV group per query group.
# ---------------------------------------------------------------------------
def _attn_ffn_kernel(xq_ref, kv_ref, wq_ref, wkv_ref, wo_ref, bo_ref, rsa_ref,
                     w1_ref, b1_ref, w2_ref, b2_ref, rsf_ref, out_ref,
                     *, num_heads, head_dim, shared_kv):
    gq, lq, c = xq_ref.shape
    gkv, lk, _ = kv_ref.shape
    hd = num_heads * head_dim
    n = gq * lq

    xq2 = xq_ref[...].reshape(n, c)                 # residual stream (f32)
    kv2 = kv_ref[...].reshape(gkv * lk, c)          # un-normalized memory

    # ---- attention ResBlock: pre-norm on the query side only ----
    var = jnp.mean(xq2 * xq2, axis=-1, keepdims=True)
    qn = xq2 * lax.rsqrt(var + _EPS)

    # bf16 operands for the weight matmuls (f32 accumulation on the MXU).
    q2 = jnp.dot(qn.astype(wq_ref.dtype), wq_ref[...],
                 preferred_element_type=jnp.float32)                 # [n, HD]
    kvp = jnp.dot(kv2.astype(wkv_ref.dtype), wkv_ref[...],
                  preferred_element_type=jnp.float32)                # [gkv*lk, 2*HD]
    k2 = kvp[:, :hd]
    v2 = kvp[:, hd:]

    sm = 1.0 / math.sqrt(head_dim)
    o_heads = []
    if shared_kv:
        # Every query row attends to the same Lk keys -> pure 2-D math.
        for h in range(num_heads):                                   # static unroll
            lo = h * head_dim
            qh = q2[:, lo:lo + head_dim]                             # [n, Dh]
            kh = k2[:, lo:lo + head_dim]                             # [Lk, Dh]
            vh = v2[:, lo:lo + head_dim]
            s = lax.dot_general(qh, kh, (((1,), (1,)), ((), ())),
                                preferred_element_type=jnp.float32) * sm
            s = s - jnp.max(s, axis=-1, keepdims=True)
            p = jnp.exp(s)
            p = p * pl.reciprocal(jnp.sum(p, axis=-1, keepdims=True), approx=True)
            o_heads.append(jnp.dot(p, vh, preferred_element_type=jnp.float32))
        o = jnp.concatenate(o_heads, axis=-1)                        # [n, HD]
    else:
        # Per-group KV: batch over groups (single leading batch dim), unroll heads.
        q3 = q2.reshape(gq, lq, hd)
        k3 = k2.reshape(gkv, lk, hd)
        v3 = v2.reshape(gkv, lk, hd)
        for h in range(num_heads):                                   # static unroll
            lo = h * head_dim
            qh = q3[:, :, lo:lo + head_dim]                          # [G, Lq, Dh]
            kh = k3[:, :, lo:lo + head_dim]                          # [G, Lk, Dh]
            vh = v3[:, :, lo:lo + head_dim]
            s = lax.dot_general(qh, kh, (((2,), (2,)), ((0,), (0,))),
                                preferred_element_type=jnp.float32) * sm  # [G,Lq,Lk]
            s = s - jnp.max(s, axis=-1, keepdims=True)
            p = jnp.exp(s)
            p = p * pl.reciprocal(jnp.sum(p, axis=-1, keepdims=True), approx=True)
            o_heads.append(lax.dot_general(p, vh, (((2,), (1,)), ((0,), (0,))),
                                           preferred_element_type=jnp.float32))
        o = jnp.concatenate(o_heads, axis=-1).reshape(n, hd)         # [n, HD]

    # Single output-projection matmul over all heads.
    attn = jnp.dot(o.astype(wo_ref.dtype), wo_ref[...],
                   preferred_element_type=jnp.float32) + bo_ref[...]
    h1 = xq2 + attn * rsa_ref[...]

    # ---- FFN ResBlock (fused epilogue; Dropout(p=0) is identity) ----
    var2 = jnp.mean(h1 * h1, axis=-1, keepdims=True)
    hn = h1 * lax.rsqrt(var2 + _EPS)
    z = jnp.dot(hn.astype(w1_ref.dtype), w1_ref[...],
                preferred_element_type=jnp.float32) + b1_ref[...]
    z = 0.5 * z * (1.0 + lax.erf(z * (1.0 / math.sqrt(2.0))))        # exact GELU
    y = jnp.dot(z.astype(w2_ref.dtype), w2_ref[...],
                preferred_element_type=jnp.float32) + b2_ref[...]
    h2 = h1 + y * rsf_ref[...]

    out_ref[...] = h2.reshape(gq, lq, c).astype(out_ref.dtype)


def attn_ffn_pass(xq, kv, attn_p, ffn_p, *, shared_kv=False):
    """xq: [G, Lq, C] (query / residual), kv: [Gk, Lk, C] -> [G, Lq, C].
    shared_kv: Gk kv groups, each shared by G/Gk consecutive query groups."""
    g, lq, c = xq.shape
    gk, lk, _ = kv.shape
    wq, wkv, wo, bo, rsa = (attn_p["wq"], attn_p["wkv"], attn_p["wo"],
                            attn_p["bo"], attn_p["rs"])
    w1, b1, w2, b2, rsf = (ffn_p["w1"], ffn_p["b1"], ffn_p["w2"],
                           ffn_p["b2"], ffn_p["rs"])
    num_heads = attn_p["num_heads"]
    hd = wq.shape[1]
    head_dim = hd // num_heads
    fdim = w1.shape[1]

    if shared_kv:
        assert g % gk == 0
        gb_q, gb_kv, steps = g // gk, 1, gk
    else:
        assert g == gk
        gb_q = _pick_gb(g, (lq + lk) * c * 4)
        gb_kv, steps = gb_q, g // gb_q

    kernel = functools.partial(_attn_ffn_kernel, num_heads=num_heads,
                               head_dim=head_dim, shared_kv=shared_kv)
    return pl.pallas_call(
        kernel,
        out_shape=jax.ShapeDtypeStruct((g, lq, c), xq.dtype),
        grid_spec=pltpu.PrefetchScalarGridSpec(
            num_scalar_prefetch=0,
            grid=(steps,),
            in_specs=[
                pl.BlockSpec((gb_q, lq, c), lambda i: (i, 0, 0)),    # query / residual
                pl.BlockSpec((gb_kv, lk, c), lambda i: (i, 0, 0)),   # memory (K,V src)
                pl.BlockSpec((c, hd), lambda i: (0, 0)),             # Wq
                pl.BlockSpec((c, 2 * hd), lambda i: (0, 0)),         # fused [Wk | Wv]
                pl.BlockSpec((hd, c), lambda i: (0, 0)),             # Wo
                pl.BlockSpec((1, c), lambda i: (0, 0)),              # out_proj bias
                pl.BlockSpec((1, c), lambda i: (0, 0)),              # attn ResBlock scale
                pl.BlockSpec((c, fdim), lambda i: (0, 0)),           # W1
                pl.BlockSpec((1, fdim), lambda i: (0, 0)),           # b1
                pl.BlockSpec((fdim, c), lambda i: (0, 0)),           # W2
                pl.BlockSpec((1, c), lambda i: (0, 0)),              # b2
                pl.BlockSpec((1, c), lambda i: (0, 0)),              # ffn ResBlock scale
            ],
            out_specs=pl.BlockSpec((gb_q, lq, c), lambda i: (i, 0, 0)),
        ),
        compiler_params=pltpu.CompilerParams(
            dimension_semantics=("parallel",),
            vmem_limit_bytes=_VMEM_LIMIT),
    )(xq, kv, wq, wkv, wo, bo, rsa, w1, b1, w2, b2, rsf)


# ---------------------------------------------------------------------------
# Standalone FFN ResBlock (only needed when exactly one of 'All0'/'0All' is
# enabled, so one chunk gets the FFN without the fused attention).
# ---------------------------------------------------------------------------
def _ffn_kernel(x_ref, w1_ref, b1_ref, w2_ref, b2_ref, rsf_ref, out_ref):
    g, l, c = x_ref.shape
    x2 = x_ref[...].reshape(g * l, c)
    var = jnp.mean(x2 * x2, axis=-1, keepdims=True)
    xn = x2 * lax.rsqrt(var + _EPS)
    z = jnp.dot(xn.astype(w1_ref.dtype), w1_ref[...],
                preferred_element_type=jnp.float32) + b1_ref[...]
    z = 0.5 * z * (1.0 + lax.erf(z * (1.0 / math.sqrt(2.0))))
    y = jnp.dot(z.astype(w2_ref.dtype), w2_ref[...],
                preferred_element_type=jnp.float32) + b2_ref[...]
    out_ref[...] = (x2 + y * rsf_ref[...]).reshape(g, l, c).astype(out_ref.dtype)


def ffn_pass(x, ffn_p):
    """x: [G, L, C] -> [G, L, C]."""
    g, l, c = x.shape
    w1, b1, w2, b2, rsf = (ffn_p["w1"], ffn_p["b1"], ffn_p["w2"],
                           ffn_p["b2"], ffn_p["rs"])
    fdim = w1.shape[1]
    gb = _pick_gb(g, l * c * 4)
    return pl.pallas_call(
        _ffn_kernel,
        out_shape=jax.ShapeDtypeStruct((g, l, c), x.dtype),
        grid_spec=pltpu.PrefetchScalarGridSpec(
            num_scalar_prefetch=0,
            grid=(g // gb,),
            in_specs=[
                pl.BlockSpec((gb, l, c), lambda i: (i, 0, 0)),
                pl.BlockSpec((c, fdim), lambda i: (0, 0)),
                pl.BlockSpec((1, fdim), lambda i: (0, 0)),
                pl.BlockSpec((fdim, c), lambda i: (0, 0)),
                pl.BlockSpec((1, c), lambda i: (0, 0)),
                pl.BlockSpec((1, c), lambda i: (0, 0)),
            ],
            out_specs=pl.BlockSpec((gb, l, c), lambda i: (i, 0, 0)),
        ),
        compiler_params=pltpu.CompilerParams(
            dimension_semantics=("parallel",),
            vmem_limit_bytes=_VMEM_LIMIT),
    )(x, w1, b1, w2, b2, rsf)


# ---------------------------------------------------------------------------
# BasicBlock forward (wrapper-side layout plumbing mirrors the PyTorch forward).
# ---------------------------------------------------------------------------
def basic_block_forward(x, params, enabled=("F", "T", "All0", "0All")):
    """x: [B, nT, nF, C] -> [B, nT, nF, C].  mem defaults to x (self-attention)."""
    b, nt, nf, c = x.shape
    mem = x
    h = x

    if "F" in enabled:
        p = params["F"]
        flat = h.reshape(b * nt, nf, c)       # h == mem here; one HBM source, read twice
        h = attn_ffn_pass(flat, flat, p["attn"], p["ffn"]).reshape(b, nt, nf, c)

    # transpose(-3, -2): attend along the time axis next
    h = jnp.swapaxes(h, -3, -2)               # [B, nF, nT, C]

    if "T" in enabled:
        p = params["T"]
        mem_t = jnp.swapaxes(mem, -3, -2)     # [B, nF, nT, C]
        h = attn_ffn_pass(h.reshape(b * nf, nt, c),
                          mem_t.reshape(b * nf, nt, c),
                          p["attn"], p["ffn"]).reshape(b, nf, nt, c)

    if ("All0" in enabled) or ("0All" in enabled):
        p = params["A"]
        h0 = h[:, 0:1]                        # [B, 1,    nT, C]
        h1 = h[:, 1:]                         # [B, nF-1, nT, C]
        if nf > 1:
            if "All0" in enabled:
                # Shared-KV mode: one [1, nT, C] KV block per batch element serves all
                # nF-1 query groups -> no materialized 15x broadcast in HBM.
                kv0 = mem[:, :, 0, :]         # == transposed mem[..., 0, :, :]
                h1 = attn_ffn_pass(h1.reshape(b * (nf - 1), nt, c), kv0,
                                   p["attn"], p["ffn"],
                                   shared_kv=True).reshape(b, nf - 1, nt, c)
            else:
                h1 = ffn_pass(h1.reshape(b * (nf - 1), nt, c),
                              p["ffn"]).reshape(b, nf - 1, nt, c)
        if "0All" in enabled:
            # Softmax attention is permutation-invariant in the key set, so the
            # KV can come straight from untransposed mem (no extra transpose).
            kvall = mem.reshape(b, nt * nf, c)
            h0 = attn_ffn_pass(h0.reshape(b, nt, c), kvall,
                               p["attn"], p["ffn"]).reshape(b, 1, nt, c)
        else:
            h0 = ffn_pass(h0.reshape(b, nt, c), p["ffn"]).reshape(b, 1, nt, c)
        h = jnp.concatenate([h0, h1], axis=-3)

    # TODO(synk): optional 'FT' branch uses kernel='positive', which raises
    # NotImplementedError in the reference module, so it is not implemented here.

    h = jnp.swapaxes(h, -3, -2)               # back to [B, nT, nF, C]
    return h


# ---------------------------------------------------------------------------
# Parameter init (same shapes / init families as the PyTorch module; weights
# stored [in, out] bf16 so the kernels use row-major bf16 MXU matmuls).
# ---------------------------------------------------------------------------
def _xavier_uniform(key, shape):
    bound = math.sqrt(6.0 / (shape[0] + shape[1]))
    return jax.random.uniform(key, shape, jnp.float32, -bound, bound)


def _linear_init(key, fan_in, fan_out):
    kw, kb = jax.random.split(key)
    bound = 1.0 / math.sqrt(fan_in)
    w = jax.random.uniform(kw, (fan_in, fan_out), jnp.float32, -bound, bound)
    b = jax.random.uniform(kb, (1, fan_out), jnp.float32, -bound, bound)
    return w, b


def init_attn_params(key, c, num_heads, hidden_factor_attn=1):
    hidden = int(math.ceil(c * hidden_factor_attn))
    head_dim = int(math.ceil(hidden / num_heads))
    hd = head_dim * num_heads
    k1, k2, k3, k4 = jax.random.split(key, 4)
    wq = _xavier_uniform(k1, (c, hd))
    wk = _xavier_uniform(k2, (c, hd))
    wv = _xavier_uniform(k3, (c, hd))
    wo, bo = _linear_init(k4, hd, c)
    return {"wq": wq.astype(jnp.bfloat16),
            "wkv": jnp.concatenate([wk, wv], axis=1).astype(jnp.bfloat16),
            "wo": wo.astype(jnp.bfloat16), "bo": bo,
            "rs": jnp.full((1, c), 0.01, jnp.float32),
            "num_heads": num_heads}


def init_ffn_params(key, c, hidden_factor=2):
    hdim = int(math.ceil(c * hidden_factor))
    k1, k2 = jax.random.split(key)
    w1, b1 = _linear_init(k1, c, hdim)
    w2, b2 = _linear_init(k2, hdim, c)
    return {"w1": w1.astype(jnp.bfloat16), "b1": b1,
            "w2": w2.astype(jnp.bfloat16), "b2": b2,
            "rs": jnp.full((1, c), 0.01, jnp.float32)}


def init_basic_block_params(key, c, num_heads, hidden_factor=2):
    ks = jax.random.split(key, 6)
    return {
        "F": {"attn": init_attn_params(ks[0], c, num_heads),
              "ffn": init_ffn_params(ks[1], c, hidden_factor)},
        "T": {"attn": init_attn_params(ks[2], c, num_heads),
              "ffn": init_ffn_params(ks[3], c, hidden_factor)},
        "A": {"attn": init_attn_params(ks[4], c, num_heads),   # shared by All0 & 0All
              "ffn": init_ffn_params(ks[5], c, hidden_factor)},
    }


if __name__ == "__main__":
    B, nT, nF, C = 2, 8, 16, 32
    num_heads = 4

    key = jax.random.PRNGKey(0)
    kp, kx = jax.random.split(key)
    params = init_basic_block_params(kp, C, num_heads, hidden_factor=2)
    x = jax.random.normal(kx, (B, nT, nF, C), jnp.float32)

    y = basic_block_forward(x, params)
    y = jax.block_until_ready(y)

    assert y.shape == (B, nT, nF, C), y.shape
    assert bool(jnp.all(jnp.isfinite(y)))
    print("KERNEL_OK")
</pallas_src>

<mosaic_0001>
module attributes {stable_mosaic.version = 11 : i64} {
  func.func @_attn_ffn_kernel(%arg0: i32, %arg1: memref<8x16x32xf32, #tpu.memory_space<vmem>>, %arg2: memref<8x16x32xf32, #tpu.memory_space<vmem>>, %arg3: memref<32x32xbf16, #tpu.memory_space<vmem>>, %arg4: memref<32x64xbf16, #tpu.memory_space<vmem>>, %arg5: memref<32x32xbf16, #tpu.memory_space<vmem>>, %arg6: memref<1x32xf32, #tpu.memory_space<vmem>>, %arg7: memref<1x32xf32, #tpu.memory_space<vmem>>, %arg8: memref<32x64xbf16, #tpu.memory_space<vmem>>, %arg9: memref<1x64xf32, #tpu.memory_space<vmem>>, %arg10: memref<64x32xbf16, #tpu.memory_space<vmem>>, %arg11: memref<1x32xf32, #tpu.memory_space<vmem>>, %arg12: memref<1x32xf32, #tpu.memory_space<vmem>>, %arg13: memref<8x16x32xf32, #tpu.memory_space<vmem>>) attributes {dimension_semantics = [#tpu.dimension_semantics<parallel>], iteration_bounds = array<i64: 2>, scalar_prefetch = 0 : i64, scratch_operands = 0 : i64, tpu.core_type = #tpu.core_type<tc>, window_params = [{transform_indices = @transform_0, window_bounds = array<i64: 8, 16, 32>}, {transform_indices = @transform_1, window_bounds = array<i64: 8, 16, 32>}, {pipeline_mode = #tpu.pipeline_mode<synchronous>, transform_indices = @transform_2, window_bounds = array<i64: 32, 32>}, {pipeline_mode = #tpu.pipeline_mode<synchronous>, transform_indices = @transform_3, window_bounds = array<i64: 32, 64>}, {pipeline_mode = #tpu.pipeline_mode<synchronous>, transform_indices = @transform_4, window_bounds = array<i64: 32, 32>}, {pipeline_mode = #tpu.pipeline_mode<synchronous>, transform_indices = @transform_5, window_bounds = array<i64: 1, 32>}, {pipeline_mode = #tpu.pipeline_mode<synchronous>, transform_indices = @transform_6, window_bounds = array<i64: 1, 32>}, {pipeline_mode = #tpu.pipeline_mode<synchronous>, transform_indices = @transform_7, window_bounds = array<i64: 32, 64>}, {pipeline_mode = #tpu.pipeline_mode<synchronous>, transform_indices = @transform_8, window_bounds = array<i64: 1, 64>}, {pipeline_mode = #tpu.pipeline_mode<synchronous>, transform_indices = @transform_9, window_bounds = array<i64: 64, 32>}, {pipeline_mode = #tpu.pipeline_mode<synchronous>, transform_indices = @transform_10, window_bounds = array<i64: 1, 32>}, {pipeline_mode = #tpu.pipeline_mode<synchronous>, transform_indices = @transform_11, window_bounds = array<i64: 1, 32>}, {transform_indices = @transform_12, window_bounds = array<i64: 8, 16, 32>}]} {
    %c0 = arith.constant 0 : index
    %c0_0 = arith.constant 0 : index
    %c0_1 = arith.constant 0 : index
    %0 = vector.load %arg1[%c0, %c0_0, %c0_1] : memref<8x16x32xf32, #tpu.memory_space<vmem>>, vector<8x16x32xf32>
    %1 = vector.shape_cast %0 : vector<8x16x32xf32> to vector<128x32xf32>
    %c0_2 = arith.constant 0 : index
    %c0_3 = arith.constant 0 : index
    %c0_4 = arith.constant 0 : index
    %2 = vector.load %arg2[%c0_2, %c0_3, %c0_4] : memref<8x16x32xf32, #tpu.memory_space<vmem>>, vector<8x16x32xf32>
    %3 = vector.shape_cast %2 : vector<8x16x32xf32> to vector<128x32xf32>
    %4 = arith.mulf %1, %1 : vector<128x32xf32>
    %cst = arith.constant dense<0.000000e+00> : vector<128xf32>
    %5 = vector.multi_reduction <add>, %4, %cst [1] : vector<128x32xf32> to vector<128xf32>
    %6 = vector.shape_cast %5 : vector<128xf32> to vector<128x1xf32>
    %cst_5 = arith.constant 3.200000e+01 : f32
    %7 = vector.broadcast %cst_5 : f32 to vector<128x1xf32>
    %8 = arith.divf %6, %7 : vector<128x1xf32>
    %cst_6 = arith.constant 9.99999997E-7 : f32
    %9 = vector.broadcast %cst_6 : f32 to vector<128x1xf32>
    %10 = arith.addf %8, %9 : vector<128x1xf32>
    %11 = math.rsqrt %10 : vector<128x1xf32>
    %12 = vector.broadcast %11 : vector<128x1xf32> to vector<128x32xf32>
    %13 = arith.mulf %1, %12 : vector<128x32xf32>
    %14 = arith.truncf %13 : vector<128x32xf32> to vector<128x32xbf16>
    %c0_7 = arith.constant 0 : index
    %c0_8 = arith.constant 0 : index
    %15 = vector.load %arg3[%c0_7, %c0_8] : memref<32x32xbf16, #tpu.memory_space<vmem>>, vector<32x32xbf16>
    %cst_9 = arith.constant dense<0.000000e+00> : vector<128x32xf32>
    %16 = tpu.matmul %14, %15, %cst_9 {dimension_numbers = #tpu.dot_dimension_numbers<[1], [0], [0], [1], [0, 0, 1, 1], [], []>} : vector<128x32xbf16>, vector<32x32xbf16>, vector<128x32xf32> -> vector<128x32xf32>
    %17 = arith.truncf %3 : vector<128x32xf32> to vector<128x32xbf16>
    %c0_10 = arith.constant 0 : index
    %c0_11 = arith.constant 0 : index
    %18 = vector.load %arg4[%c0_10, %c0_11] : memref<32x64xbf16, #tpu.memory_space<vmem>>, vector<32x64xbf16>
    %cst_12 = arith.constant dense<0.000000e+00> : vector<128x64xf32>
    %19 = tpu.matmul %17, %18, %cst_12 {dimension_numbers = #tpu.dot_dimension_numbers<[1], [0], [0], [1], [0, 0, 1, 1], [], []>} : vector<128x32xbf16>, vector<32x64xbf16>, vector<128x64xf32> -> vector<128x64xf32>
    %20 = vector.extract_strided_slice %19 {offsets = [0, 0], sizes = [128, 32], strides = [1, 1]} : vector<128x64xf32> to vector<128x32xf32>
    %21 = vector.extract_strided_slice %19 {offsets = [0, 32], sizes = [128, 32], strides = [1, 1]} : vector<128x64xf32> to vector<128x32xf32>
    %22 = vector.shape_cast %16 : vector<128x32xf32> to vector<8x16x32xf32>
    %23 = vector.shape_cast %20 : vector<128x32xf32> to vector<8x16x32xf32>
    %24 = vector.shape_cast %21 : vector<128x32xf32> to vector<8x16x32xf32>
    %25 = vector.extract_strided_slice %22 {offsets = [0, 0, 0], sizes = [8, 16, 8], strides = [1, 1, 1]} : vector<8x16x32xf32> to vector<8x16x8xf32>
    %26 = vector.extract_strided_slice %23 {offsets = [0, 0, 0], sizes = [8, 16, 8], strides = [1, 1, 1]} : vector<8x16x32xf32> to vector<8x16x8xf32>
    %27 = vector.extract_strided_slice %24 {offsets = [0, 0, 0], sizes = [8, 16, 8], strides = [1, 1, 1]} : vector<8x16x32xf32> to vector<8x16x8xf32>
    %cst_13 = arith.constant dense<0.000000e+00> : vector<8x16x16xf32>
    %28 = tpu.matmul %25, %26, %cst_13 {dimension_numbers = #tpu.dot_dimension_numbers<[2], [2], [1], [1], [0, 0, 0, 1, 1, 1], [0], [0]>} : vector<8x16x8xf32>, vector<8x16x8xf32>, vector<8x16x16xf32> -> vector<8x16x16xf32>
    %cst_14 = arith.constant 0.353553385 : f32
    %29 = vector.broadcast %cst_14 : f32 to vector<8x16x16xf32>
    %30 = arith.mulf %28, %29 : vector<8x16x16xf32>
    %cst_15 = arith.constant dense<0xFF800000> : vector<8x16xf32>
    %31 = vector.multi_reduction <maximumf>, %30, %cst_15 [2] : vector<8x16x16xf32> to vector<8x16xf32>
    %32 = vector.shape_cast %31 : vector<8x16xf32> to vector<8x16x1xf32>
    %33 = vector.broadcast %32 : vector<8x16x1xf32> to vector<8x16x16xf32>
    %34 = arith.subf %30, %33 : vector<8x16x16xf32>
    %35 = math.exp %34 : vector<8x16x16xf32>
    %cst_16 = arith.constant dense<0.000000e+00> : vector<8x16xf32>
    %36 = vector.multi_reduction <add>, %35, %cst_16 [2] : vector<8x16x16xf32> to vector<8x16xf32>
    %37 = vector.shape_cast %36 : vector<8x16xf32> to vector<8x16x1xf32>
    %38 = tpu.reciprocal %37 {approx = true} : vector<8x16x1xf32> -> vector<8x16x1xf32>
    %39 = vector.broadcast %38 : vector<8x16x1xf32> to vector<8x16x16xf32>
    %40 = arith.mulf %35, %39 : vector<8x16x16xf32>
    %cst_17 = arith.constant dense<0.000000e+00> : vector<8x16x8xf32>
    %41 = tpu.matmul %40, %27, %cst_17 {dimension_numbers = #tpu.dot_dimension_numbers<[2], [1], [1], [2], [0, 0, 0, 1, 1, 2], [0], [0]>} : vector<8x16x16xf32>, vector<8x16x8xf32>, vector<8x16x8xf32> -> vector<8x16x8xf32>
    %42 = vector.extract_strided_slice %22 {offsets = [0, 0, 8], sizes = [8, 16, 8], strides = [1, 1, 1]} : vector<8x16x32xf32> to vector<8x16x8xf32>
    %43 = vector.extract_strided_slice %23 {offsets = [0, 0, 8], sizes = [8, 16, 8], strides = [1, 1, 1]} : vector<8x16x32xf32> to vector<8x16x8xf32>
    %44 = vector.extract_strided_slice %24 {offsets = [0, 0, 8], sizes = [8, 16, 8], strides = [1, 1, 1]} : vector<8x16x32xf32> to vector<8x16x8xf32>
    %cst_18 = arith.constant dense<0.000000e+00> : vector<8x16x16xf32>
    %45 = tpu.matmul %42, %43, %cst_18 {dimension_numbers = #tpu.dot_dimension_numbers<[2], [2], [1], [1], [0, 0, 0, 1, 1, 1], [0], [0]>} : vector<8x16x8xf32>, vector<8x16x8xf32>, vector<8x16x16xf32> -> vector<8x16x16xf32>
    %cst_19 = arith.constant 0.353553385 : f32
    %46 = vector.broadcast %cst_19 : f32 to vector<8x16x16xf32>
    %47 = arith.mulf %45, %46 : vector<8x16x16xf32>
    %cst_20 = arith.constant dense<0xFF800000> : vector<8x16xf32>
    %48 = vector.multi_reduction <maximumf>, %47, %cst_20 [2] : vector<8x16x16xf32> to vector<8x16xf32>
    %49 = vector.shape_cast %48 : vector<8x16xf32> to vector<8x16x1xf32>
    %50 = vector.broadcast %49 : vector<8x16x1xf32> to vector<8x16x16xf32>
    %51 = arith.subf %47, %50 : vector<8x16x16xf32>
    %52 = math.exp %51 : vector<8x16x16xf32>
    %cst_21 = arith.constant dense<0.000000e+00> : vector<8x16xf32>
    %53 = vector.multi_reduction <add>, %52, %cst_21 [2] : vector<8x16x16xf32> to vector<8x16xf32>
    %54 = vector.shape_cast %53 : vector<8x16xf32> to vector<8x16x1xf32>
    %55 = tpu.reciprocal %54 {approx = true} : vector<8x16x1xf32> -> vector<8x16x1xf32>
    %56 = vector.broadcast %55 : vector<8x16x1xf32> to vector<8x16x16xf32>
    %57 = arith.mulf %52, %56 : vector<8x16x16xf32>
    %cst_22 = arith.constant dense<0.000000e+00> : vector<8x16x8xf32>
    %58 = tpu.matmul %57, %44, %cst_22 {dimension_numbers = #tpu.dot_dimension_numbers<[2], [1], [1], [2], [0, 0, 0, 1, 1, 2], [0], [0]>} : vector<8x16x16xf32>, vector<8x16x8xf32>, vector<8x16x8xf32> -> vector<8x16x8xf32>
    %59 = vector.extract_strided_slice %22 {offsets = [0, 0, 16], sizes = [8, 16, 8], strides = [1, 1, 1]} : vector<8x16x32xf32> to vector<8x16x8xf32>
    %60 = vector.extract_strided_slice %23 {offsets = [0, 0, 16], sizes = [8, 16, 8], strides = [1, 1, 1]} : vector<8x16x32xf32> to vector<8x16x8xf32>
    %61 = vector.extract_strided_slice %24 {offsets = [0, 0, 16], sizes = [8, 16, 8], strides = [1, 1, 1]} : vector<8x16x32xf32> to vector<8x16x8xf32>
    %cst_23 = arith.constant dense<0.000000e+00> : vector<8x16x16xf32>
    %62 = tpu.matmul %59, %60, %cst_23 {dimension_numbers = #tpu.dot_dimension_numbers<[2], [2], [1], [1], [0, 0, 0, 1, 1, 1], [0], [0]>} : vector<8x16x8xf32>, vector<8x16x8xf32>, vector<8x16x16xf32> -> vector<8x16x16xf32>
    %cst_24 = arith.constant 0.353553385 : f32
    %63 = vector.broadcast %cst_24 : f32 to vector<8x16x16xf32>
    %64 = arith.mulf %62, %63 : vector<8x16x16xf32>
    %cst_25 = arith.constant dense<0xFF800000> : vector<8x16xf32>
    %65 = vector.multi_reduction <maximumf>, %64, %cst_25 [2] : vector<8x16x16xf32> to vector<8x16xf32>
    %66 = vector.shape_cast %65 : vector<8x16xf32> to vector<8x16x1xf32>
    %67 = vector.broadcast %66 : vector<8x16x1xf32> to vector<8x16x16xf32>
    %68 = arith.subf %64, %67 : vector<8x16x16xf32>
    %69 = math.exp %68 : vector<8x16x16xf32>
    %cst_26 = arith.constant dense<0.000000e+00> : vector<8x16xf32>
    %70 = vector.multi_reduction <add>, %69, %cst_26 [2] : vector<8x16x16xf32> to vector<8x16xf32>
    %71 = vector.shape_cast %70 : vector<8x16xf32> to vector<8x16x1xf32>
    %72 = tpu.reciprocal %71 {approx = true} : vector<8x16x1xf32> -> vector<8x16x1xf32>
    %73 = vector.broadcast %72 : vector<8x16x1xf32> to vector<8x16x16xf32>
    %74 = arith.mulf %69, %73 : vector<8x16x16xf32>
    %cst_27 = arith.constant dense<0.000000e+00> : vector<8x16x8xf32>
    %75 = tpu.matmul %74, %61, %cst_27 {dimension_numbers = #tpu.dot_dimension_numbers<[2], [1], [1], [2], [0, 0, 0, 1, 1, 2], [0], [0]>} : vector<8x16x16xf32>, vector<8x16x8xf32>, vector<8x16x8xf32> -> vector<8x16x8xf32>
    %76 = vector.extract_strided_slice %22 {offsets = [0, 0, 24], sizes = [8, 16, 8], strides = [1, 1, 1]} : vector<8x16x32xf32> to vector<8x16x8xf32>
    %77 = vector.extract_strided_slice %23 {offsets = [0, 0, 24], sizes = [8, 16, 8], strides = [1, 1, 1]} : vector<8x16x32xf32> to vector<8x16x8xf32>
    %78 = vector.extract_strided_slice %24 {offsets = [0, 0, 24], sizes = [8, 16, 8], strides = [1, 1, 1]} : vector<8x16x32xf32> to vector<8x16x8xf32>
    %cst_28 = arith.constant dense<0.000000e+00> : vector<8x16x16xf32>
    %79 = tpu.matmul %76, %77, %cst_28 {dimension_numbers = #tpu.dot_dimension_numbers<[2], [2], [1], [1], [0, 0, 0, 1, 1, 1], [0], [0]>} : vector<8x16x8xf32>, vector<8x16x8xf32>, vector<8x16x16xf32> -> vector<8x16x16xf32>
    %cst_29 = arith.constant 0.353553385 : f32
    %80 = vector.broadcast %cst_29 : f32 to vector<8x16x16xf32>
    %81 = arith.mulf %79, %80 : vector<8x16x16xf32>
    %cst_30 = arith.constant dense<0xFF800000> : vector<8x16xf32>
    %82 = vector.multi_reduction <maximumf>, %81, %cst_30 [2] : vector<8x16x16xf32> to vector<8x16xf32>
    %83 = vector.shape_cast %82 : vector<8x16xf32> to vector<8x16x1xf32>
    %84 = vector.broadcast %83 : vector<8x16x1xf32> to vector<8x16x16xf32>
    %85 = arith.subf %81, %84 : vector<8x16x16xf32>
    %86 = math.exp %85 : vector<8x16x16xf32>
    %cst_31 = arith.constant dense<0.000000e+00> : vector<8x16xf32>
    %87 = vector.multi_reduction <add>, %86, %cst_31 [2] : vector<8x16x16xf32> to vector<8x16xf32>
    %88 = vector.shape_cast %87 : vector<8x16xf32> to vector<8x16x1xf32>
    %89 = tpu.reciprocal %88 {approx = true} : vector<8x16x1xf32> -> vector<8x16x1xf32>
    %90 = vector.broadcast %89 : vector<8x16x1xf32> to vector<8x16x16xf32>
    %91 = arith.mulf %86, %90 : vector<8x16x16xf32>
    %cst_32 = arith.constant dense<0.000000e+00> : vector<8x16x8xf32>
    %92 = tpu.matmul %91, %78, %cst_32 {dimension_numbers = #tpu.dot_dimension_numbers<[2], [1], [1], [2], [0, 0, 0, 1, 1, 2], [0], [0]>} : vector<8x16x16xf32>, vector<8x16x8xf32>, vector<8x16x8xf32> -> vector<8x16x8xf32>
    %93 = tpu.concatenate %41, %58, %75, %92 in 2 : vector<8x16x8xf32>, vector<8x16x8xf32>, vector<8x16x8xf32>, vector<8x16x8xf32> -> vector<8x16x32xf32>
    %94 = vector.shape_cast %93 : vector<8x16x32xf32> to vector<128x32xf32>
    %95 = arith.truncf %94 : vector<128x32xf32> to vector<128x32xbf16>
    %c0_33 = arith.constant 0 : index
    %c0_34 = arith.constant 0 : index
    %96 = vector.load %arg5[%c0_33, %c0_34] : memref<32x32xbf16, #tpu.memory_space<vmem>>, vector<32x32xbf16>
    %cst_35 = arith.constant dense<0.000000e+00> : vector<128x32xf32>
    %97 = tpu.matmul %95, %96, %cst_35 {dimension_numbers = #tpu.dot_dimension_numbers<[1], [0], [0], [1], [0, 0, 1, 1], [], []>} : vector<128x32xbf16>, vector<32x32xbf16>, vector<128x32xf32> -> vector<128x32xf32>
    %c0_36 = arith.constant 0 : index
    %c0_37 = arith.constant 0 : index
    %98 = vector.load %arg6[%c0_36, %c0_37] : memref<1x32xf32, #tpu.memory_space<vmem>>, vector<1x32xf32>
    %99 = vector.broadcast %98 : vector<1x32xf32> to vector<128x32xf32>
    %100 = arith.addf %97, %99 : vector<128x32xf32>
    %c0_38 = arith.constant 0 : index
    %c0_39 = arith.constant 0 : index
    %101 = vector.load %arg7[%c0_38, %c0_39] : memref<1x32xf32, #tpu.memory_space<vmem>>, vector<1x32xf32>
    %102 = vector.broadcast %101 : vector<1x32xf32> to vector<128x32xf32>
    %103 = arith.mulf %100, %102 : vector<128x32xf32>
    %104 = arith.addf %1, %103 : vector<128x32xf32>
    %105 = arith.mulf %104, %104 : vector<128x32xf32>
    %cst_40 = arith.constant dense<0.000000e+00> : vector<128xf32>
    %106 = vector.multi_reduction <add>, %105, %cst_40 [1] : vector<128x32xf32> to vector<128xf32>
    %107 = vector.shape_cast %106 : vector<128xf32> to vector<128x1xf32>
    %cst_41 = arith.constant 3.200000e+01 : f32
    %108 = vector.broadcast %cst_41 : f32 to vector<128x1xf32>
    %109 = arith.divf %107, %108 : vector<128x1xf32>
    %cst_42 = arith.constant 9.99999997E-7 : f32
    %110 = vector.broadcast %cst_42 : f32 to vector<128x1xf32>
    %111 = arith.addf %109, %110 : vector<128x1xf32>
    %112 = math.rsqrt %111 : vector<128x1xf32>
    %113 = vector.broadcast %112 : vector<128x1xf32> to vector<128x32xf32>
    %114 = arith.mulf %104, %113 : vector<128x32xf32>
    %115 = arith.truncf %114 : vector<128x32xf32> to vector<128x32xbf16>
    %c0_43 = arith.constant 0 : index
    %c0_44 = arith.constant 0 : index
    %116 = vector.load %arg8[%c0_43, %c0_44] : memref<32x64xbf16, #tpu.memory_space<vmem>>, vector<32x64xbf16>
    %cst_45 = arith.constant dense<0.000000e+00> : vector<128x64xf32>
    %117 = tpu.matmul %115, %116, %cst_45 {dimension_numbers = #tpu.dot_dimension_numbers<[1], [0], [0], [1], [0, 0, 1, 1], [], []>} : vector<128x32xbf16>, vector<32x64xbf16>, vector<128x64xf32> -> vector<128x64xf32>
    %c0_46 = arith.constant 0 : index
    %c0_47 = arith.constant 0 : index
    %118 = vector.load %arg9[%c0_46, %c0_47] : memref<1x64xf32, #tpu.memory_space<vmem>>, vector<1x64xf32>
    %119 = vector.broadcast %118 : vector<1x64xf32> to vector<128x64xf32>
    %120 = arith.addf %117, %119 : vector<128x64xf32>
    %cst_48 = arith.constant 5.000000e-01 : f32
    %121 = vector.broadcast %cst_48 : f32 to vector<128x64xf32>
    %122 = arith.mulf %121, %120 : vector<128x64xf32>
    %cst_49 = arith.constant 0.707106769 : f32
    %123 = vector.broadcast %cst_49 : f32 to vector<128x64xf32>
    %124 = arith.mulf %120, %123 : vector<128x64xf32>
    %125 = math.erf %124 : vector<128x64xf32>
    %cst_50 = arith.constant 1.000000e+00 : f32
    %126 = vector.broadcast %cst_50 : f32 to vector<128x64xf32>
    %127 = arith.addf %126, %125 : vector<128x64xf32>
    %128 = arith.mulf %122, %127 : vector<128x64xf32>
    %129 = arith.truncf %128 : vector<128x64xf32> to vector<128x64xbf16>
    %c0_51 = arith.constant 0 : index
    %c0_52 = arith.constant 0 : index
    %130 = vector.load %arg10[%c0_51, %c0_52] : memref<64x32xbf16, #tpu.memory_space<vmem>>, vector<64x32xbf16>
    %cst_53 = arith.constant dense<0.000000e+00> : vector<128x32xf32>
    %131 = tpu.matmul %129, %130, %cst_53 {dimension_numbers = #tpu.dot_dimension_numbers<[1], [0], [0], [1], [0, 0, 1, 1], [], []>} : vector<128x64xbf16>, vector<64x32xbf16>, vector<128x32xf32> -> vector<128x32xf32>
    %c0_54 = arith.constant 0 : index
    %c0_55 = arith.constant 0 : index
    %132 = vector.load %arg11[%c0_54, %c0_55] : memref<1x32xf32, #tpu.memory_space<vmem>>, vector<1x32xf32>
    %133 = vector.broadcast %132 : vector<1x32xf32> to vector<128x32xf32>
    %134 = arith.addf %131, %133 : vector<128x32xf32>
    %c0_56 = arith.constant 0 : index
    %c0_57 = arith.constant 0 : index
    %135 = vector.load %arg12[%c0_56, %c0_57] : memref<1x32xf32, #tpu.memory_space<vmem>>, vector<1x32xf32>
    %136 = vector.broadcast %135 : vector<1x32xf32> to vector<128x32xf32>
    %137 = arith.mulf %134, %136 : vector<128x32xf32>
    %138 = arith.addf %104, %137 : vector<128x32xf32>
    %139 = vector.shape_cast %138 : vector<128x32xf32> to vector<8x16x32xf32>
    %c0_58 = arith.constant 0 : index
    %c0_59 = arith.constant 0 : index
    %c0_60 = arith.constant 0 : index
    %140 = vector.load %arg13[%c0_58, %c0_59, %c0_60] : memref<8x16x32xf32, #tpu.memory_space<vmem>>, vector<8x16x32xf32>
    tpu.vector_store %arg13[%c0_58, %c0_59, %c0_60], %139 {strides = array<i32>} : memref<8x16x32xf32, #tpu.memory_space<vmem>>, vector<8x16x32xf32>,
    return
  }
  func.func @transform_0(%arg0: i32) -> (i32, i32, i32) {
    %c0_i32 = arith.constant 0 : i32
    %c0_i32_0 = arith.constant 0 : i32
    %c0_i32_1 = arith.constant 0 : i32
    return %arg0, %c0_i32, %c0_i32_0 : i32, i32, i32
  }
  func.func @transform_1(%arg0: i32) -> (i32, i32, i32) {
    %c0_i32 = arith.constant 0 : i32
    %c0_i32_0 = arith.constant 0 : i32
    %c0_i32_1 = arith.constant 0 : i32
    return %arg0, %c0_i32, %c0_i32_0 : i32, i32, i32
  }
  func.func @transform_2(%arg0: i32) -> (i32, i32) {
    %c0_i32 = arith.constant 0 : i32
    %c0_i32_0 = arith.constant 0 : i32
    %c0_i32_1 = arith.constant 0 : i32
    return %c0_i32, %c0_i32_0 : i32, i32
  }
  func.func @transform_3(%arg0: i32) -> (i32, i32) {
    %c0_i32 = arith.constant 0 : i32
    %c0_i32_0 = arith.constant 0 : i32
    %c0_i32_1 = arith.constant 0 : i32
    return %c0_i32, %c0_i32_0 : i32, i32
  }
  func.func @transform_4(%arg0: i32) -> (i32, i32) {
    %c0_i32 = arith.constant 0 : i32
    %c0_i32_0 = arith.constant 0 : i32
    %c0_i32_1 = arith.constant 0 : i32
    return %c0_i32, %c0_i32_0 : i32, i32
  }
  func.func @transform_5(%arg0: i32) -> (i32, i32) {
    %c0_i32 = arith.constant 0 : i32
    %c0_i32_0 = arith.constant 0 : i32
    %c0_i32_1 = arith.constant 0 : i32
    return %c0_i32, %c0_i32_0 : i32, i32
  }
  func.func @transform_6(%arg0: i32) -> (i32, i32) {
    %c0_i32 = arith.constant 0 : i32
    %c0_i32_0 = arith.constant 0 : i32
    %c0_i32_1 = arith.constant 0 : i32
    return %c0_i32, %c0_i32_0 : i32, i32
  }
  func.func @transform_7(%arg0: i32) -> (i32, i32) {
    %c0_i32 = arith.constant 0 : i32
    %c0_i32_0 = arith.constant 0 : i32
    %c0_i32_1 = arith.constant 0 : i32
    return %c0_i32, %c0_i32_0 : i32, i32
  }
  func.func @transform_8(%arg0: i32) -> (i32, i32) {
    %c0_i32 = arith.constant 0 : i32
    %c0_i32_0 = arith.constant 0 : i32
    %c0_i32_1 = arith.constant 0 : i32
    return %c0_i32, %c0_i32_0 : i32, i32
  }
  func.func @transform_9(%arg0: i32) -> (i32, i32) {
    %c0_i32 = arith.constant 0 : i32
    %c0_i32_0 = arith.constant 0 : i32
    %c0_i32_1 = arith.constant 0 : i32
    return %c0_i32, %c0_i32_0 : i32, i32
  }
  func.func @transform_10(%arg0: i32) -> (i32, i32) {
    %c0_i32 = arith.constant 0 : i32
    %c0_i32_0 = arith.constant 0 : i32
    %c0_i32_1 = arith.constant 0 : i32
    return %c0_i32, %c0_i32_0 : i32, i32
  }
  func.func @transform_11(%arg0: i32) -> (i32, i32) {
    %c0_i32 = arith.constant 0 : i32
    %c0_i32_0 = arith.constant 0 : i32
    %c0_i32_1 = arith.constant 0 : i32
    return %c0_i32, %c0_i32_0 : i32, i32
  }
  func.func @transform_12(%arg0: i32) -> (i32, i32, i32) {
    %c0_i32 = arith.constant 0 : i32
    %c0_i32_0 = arith.constant 0 : i32
    %c0_i32_1 = arith.constant 0 : i32
    return %arg0, %c0_i32, %c0_i32_0 : i32, i32, i32
  }
}

</mosaic_0001>

<llo_original>
// kernel: tpu_custom_call.1
$region0: #{tpu_custom_call.1}
  #allocation0 [shape = 'u32[]', space=smem, size = 0x4, offset = 0x4, fixed_abs, tag = 'smem constant byte address 0x4 - core index']
  #allocation1 [shape = 'u32[144,128]{1,0:T(1,128)}', space=vmem, size = 0x12000, scoped, tag = 'internal scratch']
  %s0 = inlined_call_operand.hbm [shape: f32[16,16,32], index: 0, kind: input, shape index: {}]
  %s1 = inlined_call_operand.hbm [shape: f32[16,16,32], index: 1, kind: input, shape index: {}]
  %s2 = inlined_call_operand.vmem [shape: bf16[32,32], index: 2, kind: input, shape index: {}]
  %s3 = inlined_call_operand.vmem [shape: bf16[32,64], index: 3, kind: input, shape index: {}]
  %s4 = inlined_call_operand.vmem [shape: bf16[32,32], index: 4, kind: input, shape index: {}]
  %s5 = inlined_call_operand.vmem [shape: f32[1,32], index: 5, kind: input, shape index: {}]
  %s6 = inlined_call_operand.vmem [shape: f32[1,32], index: 6, kind: input, shape index: {}]
  %s7 = inlined_call_operand.hbm [shape: bf16[32,64], index: 7, kind: input, shape index: {}]
  %s8 = inlined_call_operand.vmem [shape: f32[1,64], index: 8, kind: input, shape index: {}]
  %s9 = inlined_call_operand.vmem [shape: bf16[64,32], index: 9, kind: input, shape index: {}]
  %s10 = inlined_call_operand.vmem [shape: f32[1,32], index: 10, kind: input, shape index: {}]
  %s11 = inlined_call_operand.vmem [shape: f32[1,32], index: 11, kind: input, shape index: {}]
  %s12 = inlined_call_operand.hbm [shape: f32[16,16,32], index: 12, kind: output, shape index: {}]
  %s13 = sld [smem:[#allocation0]]
  $region93: #{tpu_custom_call.1} parent=0
    _
  %s15 = ssub.s32 1, %s13
  %s16 = scalar_select 0, %s15, %s13
  $region1: #{tpu_custom_call.1} parent=0
    #allocation2 [shape = 'u8[131072]{0}', space=vmem, size = 0x20000, scoped, tag = 'input window, operand 0']
    #allocation3 [shape = 's32[2]{0}', space=sflag, size = 0x8, scoped, tag = 'scoped memory for tpu_custom_call.1']
    #allocation4 [shape = 's32[2]{0}', space=sflag, size = 0x8, scoped, tag = 'scoped memory for tpu_custom_call.1']
    #allocation5 [shape = 'u8[131072]{0}', space=vmem, size = 0x20000, scoped, tag = 'input window, operand 1']
    #allocation6 [shape = 's32[2]{0}', space=sflag, size = 0x8, scoped, tag = 'scoped memory for tpu_custom_call.1']
    #allocation7 [shape = 'u8[8192]{0}', space=vmem, size = 0x2000, scoped, tag = 'input window, operand 7, single buffered']
    #allocation8 [shape = 'u8[131072]{0}', space=vmem, size = 0x20000, scoped, tag = 'output window, operand 0']
    %17 = vsyncpa [#allocation3], 0
    %s18 = scalar_lea.sflag [#allocation3], 1
    %19 = vsyncpa %s18, 0
    %20 = vsyncpa [#allocation6], 0
    %s21 = scalar_lea.sflag [#allocation6], 1
    %22 = vsyncpa %s21, 0
    %23 = vsyncpa [#allocation4], 0
    %s24 = scalar_lea.sflag [#allocation4], 1
    %25 = vsyncpa %s24, 0
    loop: start=0, step=1, limit=4
    $region2: #{tpu_custom_call.1} parent=1 // loop_pre_header
      _
    $region3: #{tpu_custom_call.1} parent=1 // loop_header
      %s27 = sphi 0, %s31
      %p28 = scmp.ge.s32.totalorder %s27, 4
      %s37 = sphi 0, %s39
      %s40 = sphi 0, %s37
      %s41 = sphi 0, %s40
      %s57 = sphi 0, %s41
      %s63 = sphi 0, %s65
      %s66 = sphi 0, %s63
      %s67 = sphi 0, %s66
      %s83 = sphi 0, %s67
      %s87 = sphi 0, %s87
      %s89 = sphi 0, %s87
      %s90 = sphi 0, %s89
      %s104 = sphi 0, %s90
      %s108 = sphi 0, %s108
      %s110 = sphi 0, %s108
      %s111 = sphi 0, %s110
      %s125 = sphi 0, %s111
      %s129 = sphi 0, %s129
      %s131 = sphi 0, %s129
      %s132 = sphi 0, %s131
      %s146 = sphi 0, %s132
      %s150 = sphi 0, %s150
      %s152 = sphi 0, %s150
      %s153 = sphi 0, %s152
      %s167 = sphi 0, %s153
      %s171 = sphi 0, %s171
      %s173 = sphi 0, %s171
      %s174 = sphi 0, %s173
      %s188 = sphi 0, %s174
      %s192 = sphi 0, %s192
      %s194 = sphi 0, %s192
      %s195 = sphi 0, %s194
      %s209 = sphi 0, %s195
      %s213 = sphi 0, %s213
      %s215 = sphi 0, %s213
      %s216 = sphi 0, %s215
      %s230 = sphi 0, %s216
      %s234 = sphi 0, %s234
      %s236 = sphi 0, %s234
      %s237 = sphi 0, %s236
      %s251 = sphi 0, %s237
      %s255 = sphi 0, %s255
      %s257 = sphi 0, %s255
      %s258 = sphi 0, %s257
      %s272 = sphi 0, %s258
      %s276 = sphi 0, %s276
      %s278 = sphi 0, %s276
      %s279 = sphi 0, %s278
      %s293 = sphi 0, %s279
      %s299 = sphi 0, %s301
      %s302 = sphi 0, %s299
      %s303 = sphi 0, %s302
      %s319 = sphi 0, %s303
    $region4: #{tpu_custom_call.1} parent=1 // loop_header_branch
      %30 = sbr.rel (%p28) target = $region8
    $region5: #{tpu_custom_call.1} parent=1 // loop_body
      %s32 = ssub.s32 %s27, 1
      %s33 = ssub.s32 %s27, 2
      %s34 = sadd.s32 %s27, 1
      %s35 = ssub.s32 %s27, %s34
      %p36 = scmp.eq.s32.totalorder %s35, 0
      %s38 = sadd.s32 %s37, 1
      %s39 = scalar_select %p36, %s37, %s38
      %p42 = pneg %p36
      %p43 = scmp.eq.s32.totalorder %s27, 1
      %p44 = por %p42, %p43
      %p45 = scmp.ne.s32.totalorder %s37, %s40
      %p46 = scmp.eq.s32.totalorder %s27, 0
      %p47 = por %p45, %p46
      %p48 = scmp.ne.s32.totalorder %s37, %s40
      %p49 = scmp.eq.s32.totalorder %s32, 1
      %p50 = por %p48, %p49
      %p51 = scmp.ne.s32.totalorder %s40, %s41
      %p52 = scmp.eq.s32.totalorder %s32, 0
      %p53 = por %p51, %p52
      %p54 = scmp.ne.s32.totalorder %s40, %s41
      %p55 = scmp.eq.s32.totalorder %s33, 1
      %p56 = por %p54, %p55
      %p58 = scmp.ne.s32.totalorder %s41, %s57
      %p59 = scmp.eq.s32.totalorder %s33, 0
      %p60 = por %p58, %p59
      %s61 = ssub.s32 %s27, %s34
      %p62 = scmp.eq.s32.totalorder %s61, 0
      %s64 = sadd.s32 %s63, 1
      %s65 = scalar_select %p62, %s63, %s64
      %p68 = pneg %p62
      %p69 = scmp.eq.s32.totalorder %s27, 1
      %p70 = por %p68, %p69
      %p71 = scmp.ne.s32.totalorder %s63, %s66
      %p72 = scmp.eq.s32.totalorder %s27, 0
      %p73 = por %p71, %p72
      %p74 = scmp.ne.s32.totalorder %s63, %s66
      %p75 = scmp.eq.s32.totalorder %s32, 1
      %p76 = por %p74, %p75
      %p77 = scmp.ne.s32.totalorder %s66, %s67
      %p78 = scmp.eq.s32.totalorder %s32, 0
      %p79 = por %p77, %p78
      %p80 = scmp.ne.s32.totalorder %s66, %s67
      %p81 = scmp.eq.s32.totalorder %s33, 1
      %p82 = por %p80, %p81
      %p84 = scmp.ne.s32.totalorder %s67, %s83
      %p85 = scmp.eq.s32.totalorder %s33, 0
      %p86 = por %p84, %p85
      %s88 = sadd.s32 %s87, 1
      %p91 = scmp.eq.s32.totalorder %s27, 1
      %p92 = scmp.ne.s32.totalorder %s87, %s89
      %p93 = scmp.eq.s32.totalorder %s27, 0
      %p94 = por %p92, %p93
      %p95 = scmp.ne.s32.totalorder %s87, %s89
      %p96 = scmp.eq.s32.totalorder %s32, 1
      %p97 = por %p95, %p96
      %p98 = scmp.ne.s32.totalorder %s89, %s90
      %p99 = scmp.eq.s32.totalorder %s32, 0
      %p100 = por %p98, %p99
      %p101 = scmp.ne.s32.totalorder %s89, %s90
      %p102 = scmp.eq.s32.totalorder %s33, 1
      %p103 = por %p101, %p102
      %p105 = scmp.ne.s32.totalorder %s90, %s104
      %p106 = scmp.eq.s32.totalorder %s33, 0
      %p107 = por %p105, %p106
      %s109 = sadd.s32 %s108, 1
      %p112 = scmp.eq.s32.totalorder %s27, 1
      %p113 = scmp.ne.s32.totalorder %s108, %s110
      %p114 = scmp.eq.s32.totalorder %s27, 0
      %p115 = por %p113, %p114
      %p116 = scmp.ne.s32.totalorder %s108, %s110
      %p117 = scmp.eq.s32.totalorder %s32, 1
      %p118 = por %p116, %p117
      %p119 = scmp.ne.s32.totalorder %s110, %s111
      %p120 = scmp.eq.s32.totalorder %s32, 0
      %p121 = por %p119, %p120
      %p122 = scmp.ne.s32.totalorder %s110, %s111
      %p123 = scmp.eq.s32.totalorder %s33, 1
      %p124 = por %p122, %p123
      %p126 = scmp.ne.s32.totalorder %s111, %s125
      %p127 = scmp.eq.s32.totalorder %s33, 0
      %p128 = por %p126, %p127
      %s130 = sadd.s32 %s129, 1
      %p133 = scmp.eq.s32.totalorder %s27, 1
      %p134 = scmp.ne.s32.totalorder %s129, %s131
      %p135 = scmp.eq.s32.totalorder %s27, 0
      %p136 = por %p134, %p135
      %p137 = scmp.ne.s32.totalorder %s129, %s131
      %p138 = scmp.eq.s32.totalorder %s32, 1
      %p139 = por %p137, %p138
      %p140 = scmp.ne.s32.totalorder %s131, %s132
      %p141 = scmp.eq.s32.totalorder %s32, 0
      %p142 = por %p140, %p141
      %p143 = scmp.ne.s32.totalorder %s131, %s132
      %p144 = scmp.eq.s32.totalorder %s33, 1
      %p145 = por %p143, %p144
      %p147 = scmp.ne.s32.totalorder %s132, %s146
      %p148 = scmp.eq.s32.totalorder %s33, 0
      %p149 = por %p147, %p148
      %s151 = sadd.s32 %s150, 1
      %p154 = scmp.eq.s32.totalorder %s27, 1
      %p155 = scmp.ne.s32.totalorder %s150, %s152
      %p156 = scmp.eq.s32.totalorder %s27, 0
      %p157 = por %p155, %p156
      %p158 = scmp.ne.s32.totalorder %s150, %s152
      %p159 = scmp.eq.s32.totalorder %s32, 1
      %p160 = por %p158, %p159
      %p161 = scmp.ne.s32.totalorder %s152, %s153
      %p162 = scmp.eq.s32.totalorder %s32, 0
      %p163 = por %p161, %p162
      %p164 = scmp.ne.s32.totalorder %s152, %s153
      %p165 = scmp.eq.s32.totalorder %s33, 1
      %p166 = por %p164, %p165
      %p168 = scmp.ne.s32.totalorder %s153, %s167
      %p169 = scmp.eq.s32.totalorder %s33, 0
      %p170 = por %p168, %p169
      %s172 = sadd.s32 %s171, 1
      %p175 = scmp.eq.s32.totalorder %s27, 1
      %p176 = scmp.ne.s32.totalorder %s171, %s173
      %p177 = scmp.eq.s32.totalorder %s27, 0
      %p178 = por %p176, %p177
      %p179 = scmp.ne.s32.totalorder %s171, %s173
      %p180 = scmp.eq.s32.totalorder %s32, 1
      %p181 = por %p179, %p180
      %p182 = scmp.ne.s32.totalorder %s173, %s174
      %p183 = scmp.eq.s32.totalorder %s32, 0
      %p184 = por %p182, %p183
      %p185 = scmp.ne.s32.totalorder %s173, %s174
      %p186 = scmp.eq.s32.totalorder %s33, 1
      %p187 = por %p185, %p186
      %p189 = scmp.ne.s32.totalorder %s174, %s188
      %p190 = scmp.eq.s32.totalorder %s33, 0
      %p191 = por %p189, %p190
      %s193 = sadd.s32 %s192, 1
      %p196 = scmp.eq.s32.totalorder %s27, 1
      %p197 = scmp.ne.s32.totalorder %s192, %s194
      %p198 = scmp.eq.s32.totalorder %s27, 0
      %p199 = por %p197, %p198
      %p200 = scmp.ne.s32.totalorder %s192, %s194
      %p201 = scmp.eq.s32.totalorder %s32, 1
      %p202 = por %p200, %p201
      %p203 = scmp.ne.s32.totalorder %s194, %s195
      %p204 = scmp.eq.s32.totalorder %s32, 0
      %p205 = por %p203, %p204
      %p206 = scmp.ne.s32.totalorder %s194, %s195
      %p207 = scmp.eq.s32.totalorder %s33, 1
      %p208 = por %p206, %p207
      %p210 = scmp.ne.s32.totalorder %s195, %s209
      %p211 = scmp.eq.s32.totalorder %s33, 0
      %p212 = por %p210, %p211
      %s214 = sadd.s32 %s213, 1
      %p217 = scmp.eq.s32.totalorder %s27, 1
      %p218 = scmp.ne.s32.totalorder %s213, %s215
      %p219 = scmp.eq.s32.totalorder %s27, 0
      %p220 = por %p218, %p219
      %p221 = scmp.ne.s32.totalorder %s213, %s215
      %p222 = scmp.eq.s32.totalorder %s32, 1
      %p223 = por %p221, %p222
      %p224 = scmp.ne.s32.totalorder %s215, %s216
      %p225 = scmp.eq.s32.totalorder %s32, 0
      %p226 = por %p224, %p225
      %p227 = scmp.ne.s32.totalorder %s215, %s216
      %p228 = scmp.eq.s32.totalorder %s33, 1
      %p229 = por %p227, %p228
      %p231 = scmp.ne.s32.totalorder %s216, %s230
      %p232 = scmp.eq.s32.totalorder %s33, 0
      %p233 = por %p231, %p232
      %s235 = sadd.s32 %s234, 1
      %p238 = scmp.eq.s32.totalorder %s27, 1
      %p239 = scmp.ne.s32.totalorder %s234, %s236
      %p240 = scmp.eq.s32.totalorder %s27, 0
      %p241 = por %p239, %p240
      %p242 = scmp.ne.s32.totalorder %s234, %s236
      %p243 = scmp.eq.s32.totalorder %s32, 1
      %p244 = por %p242, %p243
      %p245 = scmp.ne.s32.totalorder %s236, %s237
      %p246 = scmp.eq.s32.totalorder %s32, 0
      %p247 = por %p245, %p246
      %p248 = scmp.ne.s32.totalorder %s236, %s237
      %p249 = scmp.eq.s32.totalorder %s33, 1
      %p250 = por %p248, %p249
      %p252 = scmp.ne.s32.totalorder %s237, %s251
      %p253 = scmp.eq.s32.totalorder %s33, 0
      %p254 = por %p252, %p253
      %s256 = sadd.s32 %s255, 1
      %p259 = scmp.eq.s32.totalorder %s27, 1
      %p260 = scmp.ne.s32.totalorder %s255, %s257
      %p261 = scmp.eq.s32.totalorder %s27, 0
      %p262 = por %p260, %p261
      %p263 = scmp.ne.s32.totalorder %s255, %s257
      %p264 = scmp.eq.s32.totalorder %s32, 1
      %p265 = por %p263, %p264
      %p266 = scmp.ne.s32.totalorder %s257, %s258
      %p267 = scmp.eq.s32.totalorder %s32, 0
      %p268 = por %p266, %p267
      %p269 = scmp.ne.s32.totalorder %s257, %s258
      %p270 = scmp.eq.s32.totalorder %s33, 1
      %p271 = por %p269, %p270
      %p273 = scmp.ne.s32.totalorder %s258, %s272
      %p274 = scmp.eq.s32.totalorder %s33, 0
      %p275 = por %p273, %p274
      %s277 = sadd.s32 %s276, 1
      %p280 = scmp.eq.s32.totalorder %s27, 1
      %p281 = scmp.ne.s32.totalorder %s276, %s278
      %p282 = scmp.eq.s32.totalorder %s27, 0
      %p283 = por %p281, %p282
      %p284 = scmp.ne.s32.totalorder %s276, %s278
      %p285 = scmp.eq.s32.totalorder %s32, 1
      %p286 = por %p284, %p285
      %p287 = scmp.ne.s32.totalorder %s278, %s279
      %p288 = scmp.eq.s32.totalorder %s32, 0
      %p289 = por %p287, %p288
      %p290 = scmp.ne.s32.totalorder %s278, %s279
      %p291 = scmp.eq.s32.totalorder %s33, 1
      %p292 = por %p290, %p291
      %p294 = scmp.ne.s32.totalorder %s279, %s293
      %p295 = scmp.eq.s32.totalorder %s33, 0
      %p296 = por %p294, %p295
      %s297 = ssub.s32 %s27, %s34
      %p298 = scmp.eq.s32.totalorder %s297, 0
      %s300 = sadd.s32 %s299, 1
      %s301 = scalar_select %p298, %s299, %s300
      %p304 = pneg %p298
      %p305 = scmp.eq.s32.totalorder %s27, 1
      %p306 = por %p304, %p305
      %p307 = scmp.ne.s32.totalorder %s299, %s302
      %p308 = scmp.eq.s32.totalorder %s27, 0
      %p309 = por %p307, %p308
      %p310 = scmp.ne.s32.totalorder %s299, %s302
      %p311 = scmp.eq.s32.totalorder %s32, 1
      %p312 = por %p310, %p311
      %p313 = scmp.ne.s32.totalorder %s302, %s303
      %p314 = scmp.eq.s32.totalorder %s32, 0
      %p315 = por %p313, %p314
      %p316 = scmp.ne.s32.totalorder %s302, %s303
      %p317 = scmp.eq.s32.totalorder %s33, 1
      %p318 = por %p316, %p317
      %p320 = scmp.ne.s32.totalorder %s303, %s319
      %p321 = scmp.eq.s32.totalorder %s33, 0
      %p322 = por %p320, %p321
      %p323 = scmp.le.s32.totalorder 1, %s27
      %p324 = scmp.lt.s32.totalorder %s27, 3
      %p325 = pnand %p323, %p324
      %p326 = pneg %p325
      // Predicated region
      $region9: #{tpu_custom_call.1} parent=5 // pred_check
        _
      $region10: #{tpu_custom_call.1} parent=5 // pred_check_branch
        %328 = sbr.rel (%p325) target = $region12
      $region11: #{tpu_custom_call.1} parent=5 // pred_region
        %s329 = ssub.s32 %s27, 1
        // Predicated region
        $region13: #{tpu_custom_call.1} parent=11 // pred_check
          %p330 = pneg %p100
        $region14: #{tpu_custom_call.1} parent=11 // pred_check_branch
          %332 = sbr.rel (%p330) target = $region16
        $region15: #{tpu_custom_call.1} parent=11 // pred_region
          _
        $region16: #{tpu_custom_call.1} parent=11 // pred_fallthru
          _
        // Predicated region
        $region17: #{tpu_custom_call.1} parent=11 // pred_check
          %p333 = pneg %p121
        $region18: #{tpu_custom_call.1} parent=11 // pred_check_branch
          %335 = sbr.rel (%p333) target = $region20
        $region19: #{tpu_custom_call.1} parent=11 // pred_region
          _
        $region20: #{tpu_custom_call.1} parent=11 // pred_fallthru
          _
        // Predicated region
        $region21: #{tpu_custom_call.1} parent=11 // pred_check
          %p336 = pneg %p142
        $region22: #{tpu_custom_call.1} parent=11 // pred_check_branch
          %338 = sbr.rel (%p336) target = $region24
        $region23: #{tpu_custom_call.1} parent=11 // pred_region
          _
        $region24: #{tpu_custom_call.1} parent=11 // pred_fallthru
          _
        // Predicated region
        $region25: #{tpu_custom_call.1} parent=11 // pred_check
          %p339 = pneg %p163
        $region26: #{tpu_custom_call.1} parent=11 // pred_check_branch
          %341 = sbr.rel (%p339) target = $region28
        $region27: #{tpu_custom_call.1} parent=11 // pred_region
          _
        $region28: #{tpu_custom_call.1} parent=11 // pred_fallthru
          _
        // Predicated region
        $region29: #{tpu_custom_call.1} parent=11 // pred_check
          %p342 = pneg %p184
        $region30: #{tpu_custom_call.1} parent=11 // pred_check_branch
          %344 = sbr.rel (%p342) target = $region32
        $region31: #{tpu_custom_call.1} parent=11 // pred_region
          _
        $region32: #{tpu_custom_call.1} parent=11 // pred_fallthru
          _
        // Predicated region
        $region33: #{tpu_custom_call.1} parent=11 // pred_check
          %p345 = pneg %p205
        $region34: #{tpu_custom_call.1} parent=11 // pred_check_branch
          %347 = sbr.rel (%p345) target = $region36
        $region35: #{tpu_custom_call.1} parent=11 // pred_region
          %s349 = ssub.s32 256, 256
          %350 = vsyncadd [#allocation6], %s349
          %s351 = sshll.u32 [#allocation7], 4
          %s352 = int_to_ptr.vmem [resolvable:$true] %s351
          %357 = dma.hbm_to_vmem [thread:$0]  %s7, 256, %s352, [#allocation6], 64, 64, 4
        $region36: #{tpu_custom_call.1} parent=11 // pred_fallthru
          _
        // Predicated region
        $region37: #{tpu_custom_call.1} parent=11 // pred_check
          %p358 = pneg %p226
        $region38: #{tpu_custom_call.1} parent=11 // pred_check_branch
          %360 = sbr.rel (%p358) target = $region40
        $region39: #{tpu_custom_call.1} parent=11 // pred_region
          _
        $region40: #{tpu_custom_call.1} parent=11 // pred_fallthru
          _
        // Predicated region
        $region41: #{tpu_custom_call.1} parent=11 // pred_check
          %p361 = pneg %p247
        $region42: #{tpu_custom_call.1} parent=11 // pred_check_branch
          %363 = sbr.rel (%p361) target = $region44
        $region43: #{tpu_custom_call.1} parent=11 // pred_region
          _
        $region44: #{tpu_custom_call.1} parent=11 // pred_fallthru
          _
        // Predicated region
        $region45: #{tpu_custom_call.1} parent=11 // pred_check
          %p364 = pneg %p268
        $region46: #{tpu_custom_call.1} parent=11 // pred_check_branch
          %366 = sbr.rel (%p364) target = $region48
        $region47: #{tpu_custom_call.1} parent=11 // pred_region
          _
        $region48: #{tpu_custom_call.1} parent=11 // pred_fallthru
          _
        // Predicated region
        $region49: #{tpu_custom_call.1} parent=11 // pred_check
          %p367 = pneg %p289
        $region50: #{tpu_custom_call.1} parent=11 // pred_check_branch
          %369 = sbr.rel (%p367) target = $region52
        $region51: #{tpu_custom_call.1} parent=11 // pred_region
          _
        $region52: #{tpu_custom_call.1} parent=11 // pred_fallthru
          _
      $region12: #{tpu_custom_call.1} parent=5 // pred_fallthru
        _
      %p370 = scmp.lt.s32.totalorder %s27, 2
      // Predicated region
      $region53: #{tpu_custom_call.1} parent=5 // pred_check
        %p371 = pneg %p370
      $region54: #{tpu_custom_call.1} parent=5 // pred_check_branch
        %373 = sbr.rel (%p371) target = $region56
      $region55: #{tpu_custom_call.1} parent=5 // pred_region
        // Predicated region
        $region57: #{tpu_custom_call.1} parent=55 // pred_check
          %p374 = pneg %p47
        $region58: #{tpu_custom_call.1} parent=55 // pred_check_branch
          %376 = sbr.rel (%p374) target = $region60
        $region59: #{tpu_custom_call.1} parent=55 // pred_region
          %s377 = sand.u32 %s37, 1
          %s378 = scalar_lea.sflag [#allocation3], %s377
          %s379 = sand.u32 %s37, 1
          %s380 = smul.addr %s379, 128
          %s381 = scalar_lea.vmem [#allocation2], %s380
          %s382 = smul.u32 8, %s27
          %s384 = ssub.s32 2048, 2048
          %385 = vsyncadd %s378, %s384
          %s386 = smul.addr %s382, 2
          %s387 = smul.addr %s386, 128
          %s388 = scalar_lea.hbm %s0, %s387
          %s389 = sshll.u32 %s381, 4
          %s390 = int_to_ptr.vmem [resolvable:$true] %s389
          %395 = dma.hbm_to_vmem [thread:$0]  %s388, 2048, %s390, %s378, 128, 128, 8
        $region60: #{tpu_custom_call.1} parent=55 // pred_fallthru
          _
        // Predicated region
        $region61: #{tpu_custom_call.1} parent=55 // pred_check
          %p396 = pneg %p73
        $region62: #{tpu_custom_call.1} parent=55 // pred_check_branch
          %398 = sbr.rel (%p396) target = $region64
        $region63: #{tpu_custom_call.1} parent=55 // pred_region
          %s399 = sand.u32 %s27, 1
          %s400 = scalar_lea.sflag [#allocation6], %s399
          %s401 = sand.u32 %s63, 1
          %s402 = smul.addr %s401, 128
          %s403 = scalar_lea.vmem [#allocation5], %s402
          %s404 = smul.u32 8, %s27
          %s406 = ssub.s32 2048, 2048
          %407 = vsyncadd %s400, %s406
          %s408 = smul.addr %s404, 2
          %s409 = smul.addr %s408, 128
          %s410 = scalar_lea.hbm %s1, %s409
          %s411 = sshll.u32 %s403, 4
          %s412 = int_to_ptr.vmem [resolvable:$true] %s411
          %417 = dma.hbm_to_vmem [thread:$0]  %s410, 2048, %s412, %s400, 128, 128, 8
        $region64: #{tpu_custom_call.1} parent=55 // pred_fallthru
          _
      $region56: #{tpu_custom_call.1} parent=5 // pred_fallthru
        _
      %p418 = scmp.le.s32.totalorder 1, %s27
      %p419 = scmp.lt.s32.totalorder %s27, 3
      %p420 = pnand %p418, %p419
      %p421 = pneg %p420
      // Predicated region
      $region65: #{tpu_custom_call.1} parent=5 // pred_check
        _
      $region66: #{tpu_custom_call.1} parent=5 // pred_check_branch
        %423 = sbr.rel (%p420) target = $region68
      $region67: #{tpu_custom_call.1} parent=5 // pred_region
        %s424 = ssub.s32 %s27, 1
        %s425 = sand.u32 %s40, 1
        %s426 = scalar_lea.sflag [#allocation3], %s425
        %s427 = sand.u32 %s40, 1
        %s428 = smul.addr %s427, 128
        %s429 = scalar_lea.vmem [#allocation2], %s428
        // Predicated region
        $region69: #{tpu_custom_call.1} parent=67 // pred_check
          %p430 = pneg %p53
        $region70: #{tpu_custom_call.1} parent=67 // pred_check_branch
          %432 = sbr.rel (%p430) target = $region72
        $region71: #{tpu_custom_call.1} parent=67 // pred_region
          %433 = dma.done %s426, 2048
        $region72: #{tpu_custom_call.1} parent=67 // pred_fallthru
          _
        %s434 = sand.u32 %s32, 1
        %s435 = scalar_lea.sflag [#allocation6], %s434
        %s436 = sand.u32 %s66, 1
        %s437 = smul.addr %s436, 128
        %s438 = scalar_lea.vmem [#allocation5], %s437
        // Predicated region
        $region73: #{tpu_custom_call.1} parent=67 // pred_check
          %p439 = pneg %p79
        $region74: #{tpu_custom_call.1} parent=67 // pred_check_branch
          %441 = sbr.rel (%p439) target = $region76
        $region75: #{tpu_custom_call.1} parent=67 // pred_region
          %442 = dma.done %s435, 2048
        $region76: #{tpu_custom_call.1} parent=67 // pred_fallthru
          _
        // Predicated region
        $region77: #{tpu_custom_call.1} parent=67 // pred_check
          %p443 = pneg %p205
        $region78: #{tpu_custom_call.1} parent=67 // pred_check_branch
          %445 = sbr.rel (%p443) target = $region80
        $region79: #{tpu_custom_call.1} parent=67 // pred_region
          %446 = dma.done [#allocation6], 256
        $region80: #{tpu_custom_call.1} parent=67 // pred_fallthru
          _
        %s447 = sand.u32 %s40, 1
        %s448 = scalar_lea.sflag [#allocation3], %s447
        %s449 = sand.u32 %s40, 1
        %s450 = smul.addr %s449, 128
        %s451 = scalar_lea.vmem [#allocation2], %s450
        %p452 = pneg %p53
        %p453 = pneg %p50
        %s454 = sand.u32 %s32, 1
        %s455 = scalar_lea.sflag [#allocation6], %s454
        %s456 = sand.u32 %s66, 1
        %s457 = smul.addr %s456, 128
        %s458 = scalar_lea.vmem [#allocation5], %s457
        %p459 = pneg %p79
        %p460 = pneg %p76
        %p461 = pneg %p100
        %p462 = pneg %p97
        %p463 = pneg %p121
        %p464 = pneg %p118
        %p465 = pneg %p142
        %p466 = pneg %p139
        %p467 = pneg %p163
        %p468 = pneg %p160
        %p469 = pneg %p184
        %p470 = pneg %p181
        %p471 = pneg %p205
        %p472 = pneg %p202
        %p473 = pneg %p226
        %p474 = pneg %p223
        %p475 = pneg %p247
        %p476 = pneg %p244
        %p477 = pneg %p268
        %p478 = pneg %p265
        %p479 = pneg %p289
        %p480 = pneg %p286
        %p481 = pneg %p315
        %p482 = pneg %p312
        %s483 = sand.u32 %s302, 1
        %s484 = scalar_lea.sflag [#allocation4], %s483
        %s485 = sand.u32 %s302, 1
        %s486 = smul.addr %s485, 128
        %s487 = scalar_lea.vmem [#allocation8], %s486
        %s488 = smul.u32 8, %s32
        %s489 = smul.u32 8, %s32
        %s490 = smul.u32 8, %s32
        %v492 = vld [vmem:[%s429] sm:$0xff]
        %v493 = vld [vmem:[%s429 + $0x8] sm:$0xff]
        %v494 = vld [vmem:[%s429 + $0x10] sm:$0xff]
        %v495 = vld [vmem:[%s429 + $0x18] sm:$0xff]
        %v496 = vld [vmem:[%s429 + $0x20] sm:$0xff]
        %v497 = vld [vmem:[%s429 + $0x28] sm:$0xff]
        %v498 = vld [vmem:[%s429 + $0x30] sm:$0xff]
        %v499 = vld [vmem:[%s429 + $0x38] sm:$0xff]
        %v500 = vld [vmem:[%s429 + $0x40] sm:$0xff]
        %v501 = vld [vmem:[%s429 + $0x48] sm:$0xff]
        %v502 = vld [vmem:[%s429 + $0x50] sm:$0xff]
        %v503 = vld [vmem:[%s429 + $0x58] sm:$0xff]
        %v504 = vld [vmem:[%s429 + $0x60] sm:$0xff]
        %v505 = vld [vmem:[%s429 + $0x68] sm:$0xff]
        %v506 = vld [vmem:[%s429 + $0x70] sm:$0xff]
        %v507 = vld [vmem:[%s429 + $0x78] sm:$0xff]
        %v508 = vld [vmem:[%s438] sm:$0xff]
        %v509 = vld [vmem:[%s438 + $0x8] sm:$0xff]
        %v510 = vld [vmem:[%s438 + $0x10] sm:$0xff]
        %v511 = vld [vmem:[%s438 + $0x18] sm:$0xff]
        %v512 = vld [vmem:[%s438 + $0x20] sm:$0xff]
        %v513 = vld [vmem:[%s438 + $0x28] sm:$0xff]
        %v514 = vld [vmem:[%s438 + $0x30] sm:$0xff]
        %v515 = vld [vmem:[%s438 + $0x38] sm:$0xff]
        %v516 = vld [vmem:[%s438 + $0x40] sm:$0xff]
        %v517 = vld [vmem:[%s438 + $0x48] sm:$0xff]
        %v518 = vld [vmem:[%s438 + $0x50] sm:$0xff]
        %v519 = vld [vmem:[%s438 + $0x58] sm:$0xff]
        %v520 = vld [vmem:[%s438 + $0x60] sm:$0xff]
        %v521 = vld [vmem:[%s438 + $0x68] sm:$0xff]
        %v522 = vld [vmem:[%s438 + $0x70] sm:$0xff]
        %v523 = vld [vmem:[%s438 + $0x78] sm:$0xff]
        %v524 = vmul.f32 %v492, %v492
        %v525 = vmul.f32 %v493, %v493
        %v526 = vmul.f32 %v494, %v494
        %v527 = vmul.f32 %v495, %v495
        %v528 = vmul.f32 %v496, %v496
        %v529 = vmul.f32 %v497, %v497
        %v530 = vmul.f32 %v498, %v498
        %v531 = vmul.f32 %v499, %v499
        %v532 = vmul.f32 %v500, %v500
        %v533 = vmul.f32 %v501, %v501
        %v534 = vmul.f32 %v502, %v502
        %v535 = vmul.f32 %v503, %v503
        %v536 = vmul.f32 %v504, %v504
        %v537 = vmul.f32 %v505, %v505
        %v538 = vmul.f32 %v506, %v506
        %v539 = vmul.f32 %v507, %v507
        %vm540 = vcmask 261120
        %v541 = vsel %vm540, %v524, 0.0
        %542 = vadd.xlane.f32.xlu0 %v541
        %v543 = vpop.xlane.xlu0 %542
        %v544 = vsel %vm540, %v525, 0.0
        %545 = vadd.xlane.f32.xlu0 %v544
        %v546 = vpop.xlane.xlu0 %545
        %v547 = vsel %vm540, %v526, 0.0
        %548 = vadd.xlane.f32.xlu0 %v547
        %v549 = vpop.xlane.xlu0 %548
        %v550 = vsel %vm540, %v527, 0.0
        %551 = vadd.xlane.f32.xlu0 %v550
        %v552 = vpop.xlane.xlu0 %551
        %v553 = vsel %vm540, %v528, 0.0
        %554 = vadd.xlane.f32.xlu0 %v553
        %v555 = vpop.xlane.xlu0 %554
        %v556 = vsel %vm540, %v529, 0.0
        %557 = vadd.xlane.f32.xlu0 %v556
        %v558 = vpop.xlane.xlu0 %557
        %v559 = vsel %vm540, %v530, 0.0
        %560 = vadd.xlane.f32.xlu0 %v559
        %v561 = vpop.xlane.xlu0 %560
        %v562 = vsel %vm540, %v531, 0.0
        %563 = vadd.xlane.f32.xlu0 %v562
        %v564 = vpop.xlane.xlu0 %563
        %v565 = vsel %vm540, %v532, 0.0
        %566 = vadd.xlane.f32.xlu0 %v565
        %v567 = vpop.xlane.xlu0 %566
        %v568 = vsel %vm540, %v533, 0.0
        %569 = vadd.xlane.f32.xlu0 %v568
        %v570 = vpop.xlane.xlu0 %569
        %v571 = vsel %vm540, %v534, 0.0
        %572 = vadd.xlane.f32.xlu0 %v571
        %v573 = vpop.xlane.xlu0 %572
        %v574 = vsel %vm540, %v535, 0.0
        %575 = vadd.xlane.f32.xlu0 %v574
        %v576 = vpop.xlane.xlu0 %575
        %v577 = vsel %vm540, %v536, 0.0
        %578 = vadd.xlane.f32.xlu0 %v577
        %v579 = vpop.xlane.xlu0 %578
        %v580 = vsel %vm540, %v537, 0.0
        %581 = vadd.xlane.f32.xlu0 %v580
        %v582 = vpop.xlane.xlu0 %581
        %v583 = vsel %vm540, %v538, 0.0
        %584 = vadd.xlane.f32.xlu0 %v583
        %v585 = vpop.xlane.xlu0 %584
        %v586 = vsel %vm540, %v539, 0.0
        %587 = vadd.xlane.f32.xlu0 %v586
        %v588 = vpop.xlane.xlu0 %587
        %v589 = vrcp.pop 32.0
        %v590 = vmul.f32 %v543, %v589
        %v591 = vmul.f32 %v546, %v589
        %v592 = vmul.f32 %v549, %v589
        %v593 = vmul.f32 %v552, %v589
        %v594 = vmul.f32 %v555, %v589
        %v595 = vmul.f32 %v558, %v589
        %v596 = vmul.f32 %v561, %v589
        %v597 = vmul.f32 %v564, %v589
        %v598 = vmul.f32 %v567, %v589
        %v599 = vmul.f32 %v570, %v589
        %v600 = vmul.f32 %v573, %v589
        %v601 = vmul.f32 %v576, %v589
        %v602 = vmul.f32 %v579, %v589
        %v603 = vmul.f32 %v582, %v589
        %v604 = vmul.f32 %v585, %v589
        %v605 = vmul.f32 %v588, %v589
        %v606 = vadd.f32 %v590, 1e-06
        %v607 = vadd.f32 %v591, 1e-06
        %v608 = vadd.f32 %v592, 1e-06
        %v609 = vadd.f32 %v593, 1e-06
        %v610 = vadd.f32 %v594, 1e-06
        %v611 = vadd.f32 %v595, 1e-06
        %v612 = vadd.f32 %v596, 1e-06
        %v613 = vadd.f32 %v597, 1e-06
        %v614 = vadd.f32 %v598, 1e-06
        %v615 = vadd.f32 %v599, 1e-06
        %v616 = vadd.f32 %v600, 1e-06
        %v617 = vadd.f32 %v601, 1e-06
        %v618 = vadd.f32 %v602, 1e-06
        %v619 = vadd.f32 %v603, 1e-06
        %v620 = vadd.f32 %v604, 1e-06
        %v621 = vadd.f32 %v605, 1e-06
        %v622 = vrsqrt.pop %v606
        %v623 = vrsqrt.pop %v607
        %v624 = vrsqrt.pop %v608
        %v625 = vrsqrt.pop %v609
        %v626 = vrsqrt.pop %v610
        %v627 = vrsqrt.pop %v611
        %v628 = vrsqrt.pop %v612
        %v629 = vrsqrt.pop %v613
        %v630 = vrsqrt.pop %v614
        %v631 = vrsqrt.pop %v615
        %v632 = vrsqrt.pop %v616
        %v633 = vrsqrt.pop %v617
        %v634 = vrsqrt.pop %v618
        %v635 = vrsqrt.pop %v619
        %v636 = vrsqrt.pop %v620
        %v637 = vrsqrt.pop %v621
        %v638 = vmul.f32 %v492, %v622
        %v639 = vmul.f32 %v493, %v623
        %v640 = vmul.f32 %v494, %v624
        %v641 = vmul.f32 %v495, %v625
        %v642 = vmul.f32 %v496, %v626
        %v643 = vmul.f32 %v497, %v627
        %v644 = vmul.f32 %v498, %v628
        %v645 = vmul.f32 %v499, %v629
        %v646 = vmul.f32 %v500, %v630
        %v647 = vmul.f32 %v501, %v631
        %v648 = vmul.f32 %v502, %v632
        %v649 = vmul.f32 %v503, %v633
        %v650 = vmul.f32 %v504, %v634
        %v651 = vmul.f32 %v505, %v635
        %v652 = vmul.f32 %v506, %v636
        %v653 = vmul.f32 %v507, %v637
        %v654 = vpack.c.bf16 %v639, %v638
        %v655 = vpack.c.bf16 %v641, %v640
        %v656 = vpack.c.bf16 %v643, %v642
        %v657 = vpack.c.bf16 %v645, %v644
        %v658 = vpack.c.bf16 %v647, %v646
        %v659 = vpack.c.bf16 %v649, %v648
        %v660 = vpack.c.bf16 %v651, %v650
        %v661 = vpack.c.bf16 %v653, %v652
        %v662 = vld [vmem:[%s2] sm:$0xf]
        %v663 = vld [vmem:[%s2 + $0x4] sm:$0xf]
        %v664 = vld [vmem:[%s2 + $0x8] sm:$0xf]
        %v665 = vld [vmem:[%s2 + $0xc] sm:$0xf]
        %v670 = vunpack.c.l.b16 %v662
        %v671 = vunpack.c.l.b16 %v663
        %v672 = vunpack.c.l.b16 %v664
        %v673 = vunpack.c.l.b16 %v665
        %v674 = vpack.c.b16 %v671, %v670
        %v675 = vpack.c.b16 %v673, %v672
        %v679 = vsel %vm540, %v654, 0
        %v682 = vsel %vm540, %v655, 0
        %v685 = vsel %vm540, %v656, 0
        %v688 = vsel %vm540, %v657, 0
        %v691 = vsel %vm540, %v658, 0
        %v694 = vsel %vm540, %v659, 0
        %v697 = vsel %vm540, %v660, 0
        %v700 = vsel %vm540, %v661, 0
        %702 = vmatprep.subr.bf16.mxu0 0
        %703 = vmatpush1.bf16.msra.mxu0 %v674
        %704 = vmatprep.subr.bf16.mxu0 0
        %705 = vmatpush1.bf16.msra.mxu0 %v675
        %706 = vmatprep.subr.bf16.mxu0 0
        %707 = vmatpush1.bf16.msra.mxu0 0
        %708 = vmatprep.subr.bf16.mxu0 0
        %709 = vmatpush1.bf16.msra.mxu0 0
        %710 = vmatprep.subr.bf16.mxu0 0
        %711 = vmatpush1.bf16.msra.mxu0 0
        %712 = vmatprep.subr.bf16.mxu0 0
        %713 = vmatpush1.bf16.msra.mxu0 0
        %714 = vmatprep.subr.bf16.mxu0 0
        %715 = vmatpush1.bf16.msra.mxu0 0
        %716 = vmatprep.subr.bf16.mxu0 0
        %717 = vmatpush1.bf16.msra.mxu0 0
        %718 = vmatprep.subr.bf16.mxu0 0
        %719 = vmatpush1.bf16.msra.mxu0 0
        %720 = vmatprep.subr.bf16.mxu0 0
        %721 = vmatpush1.bf16.msra.mxu0 0
        %722 = vmatprep.subr.bf16.mxu0 0
        %723 = vmatpush1.bf16.msra.mxu0 0
        %724 = vmatprep.subr.bf16.mxu0 0
        %725 = vmatpush1.bf16.msra.mxu0 0
        %726 = vmatprep.subr.bf16.mxu0 0
        %727 = vmatpush1.bf16.msra.mxu0 0
        %728 = vmatprep.subr.bf16.mxu0 0
        %729 = vmatpush1.bf16.msra.mxu0 0
        %730 = vmatprep.subr.bf16.mxu0 0
        %731 = vmatpush1.bf16.msra.mxu0 0
        %732 = vmatprep.subr.bf16.mxu0 0
        %733 = vmatpush1.bf16.msra.mxu0 0
        %734 = vmatprep.mubr.bf16.mxu0 0
        %735 = vmatmul.mubr.bf16.gmra.mrb[0].mxu0 %v679
        %v736 = vpop.f32.mrb[0].mxu0
        %v737 = vadd.f32 0.0, %v736
        %v738 = vpop.f32.mrb[0].mxu0
        %v739 = vpop.f32.mrb[0].mxu0
        %v740 = vadd.f32 0.0, %v739
        %v741 = vpop.f32.mrb[0].mxu0
        %742 = vmatprep.mubr.bf16.mxu0 0
        %743 = vmatmul.mubr.bf16.gmra.mrb[0].mxu0 %v682
        %v744 = vpop.f32.mrb[0].mxu0
        %v745 = vadd.f32 0.0, %v744
        %v746 = vpop.f32.mrb[0].mxu0
        %v747 = vpop.f32.mrb[0].mxu0
        %v748 = vadd.f32 0.0, %v747
        %v749 = vpop.f32.mrb[0].mxu0
        %750 = vmatprep.mubr.bf16.mxu0 0
        %751 = vmatmul.mubr.bf16.gmra.mrb[0].mxu0 %v685
        %v752 = vpop.f32.mrb[0].mxu0
        %v753 = vadd.f32 0.0, %v752
        %v754 = vpop.f32.mrb[0].mxu0
        %v755 = vpop.f32.mrb[0].mxu0
        %v756 = vadd.f32 0.0, %v755
        %v757 = vpop.f32.mrb[0].mxu0
        %758 = vmatprep.mubr.bf16.mxu0 0
        %759 = vmatmul.mubr.bf16.gmra.mrb[0].mxu0 %v688
        %v760 = vpop.f32.mrb[0].mxu0
        %v761 = vadd.f32 0.0, %v760
        %v762 = vpop.f32.mrb[0].mxu0
        %v763 = vpop.f32.mrb[0].mxu0
        %v764 = vadd.f32 0.0, %v763
        %v765 = vpop.f32.mrb[0].mxu0
        %766 = vmatprep.mubr.bf16.mxu0 0
        %767 = vmatmul.mubr.bf16.gmra.mrb[0].mxu0 %v691
        %v768 = vpop.f32.mrb[0].mxu0
        %v769 = vadd.f32 0.0, %v768
        %v770 = vpop.f32.mrb[0].mxu0
        %v771 = vpop.f32.mrb[0].mxu0
        %v772 = vadd.f32 0.0, %v771
        %v773 = vpop.f32.mrb[0].mxu0
        %774 = vmatprep.mubr.bf16.mxu0 0
        %775 = vmatmul.mubr.bf16.gmra.mrb[0].mxu0 %v694
        %v776 = vpop.f32.mrb[0].mxu0
        %v777 = vadd.f32 0.0, %v776
        %v778 = vpop.f32.mrb[0].mxu0
        %v779 = vpop.f32.mrb[0].mxu0
        %v780 = vadd.f32 0.0, %v779
        %v781 = vpop.f32.mrb[0].mxu0
        %782 = vmatprep.mubr.bf16.mxu0 0
        %783 = vmatmul.mubr.bf16.gmra.mrb[0].mxu0 %v697
        %v784 = vpop.f32.mrb[0].mxu0
        %v785 = vadd.f32 0.0, %v784
        %v786 = vpop.f32.mrb[0].mxu0
        %v787 = vpop.f32.mrb[0].mxu0
        %v788 = vadd.f32 0.0, %v787
        %v789 = vpop.f32.mrb[0].mxu0
        %790 = vmatprep.mubr.bf16.mxu0 0
        %791 = vmatmul.mubr.bf16.gmra.mrb[0].mxu0 %v700
        %v792 = vpop.f32.mrb[0].mxu0
        %v793 = vadd.f32 0.0, %v792
        %v794 = vpop.f32.mrb[0].mxu0
        %v795 = vpop.f32.mrb[0].mxu0
        %v796 = vadd.f32 0.0, %v795
        %v797 = vpop.f32.mrb[0].mxu0
        %798 = vdwg.mxu0
        %v799 = vpack.c.bf16 %v509, %v508
        %v800 = vpack.c.bf16 %v511, %v510
        %v801 = vpack.c.bf16 %v513, %v512
        %v802 = vpack.c.bf16 %v515, %v514
        %v803 = vpack.c.bf16 %v517, %v516
        %v804 = vpack.c.bf16 %v519, %v518
        %v805 = vpack.c.bf16 %v521, %v520
        %v806 = vpack.c.bf16 %v523, %v522
        %v807 = vld [vmem:[%s3] sm:$0xf]
        %v808 = vld [vmem:[%s3 + $0x4] sm:$0xf]
        %v809 = vld [vmem:[%s3 + $0x8] sm:$0xf]
        %v810 = vld [vmem:[%s3 + $0xc] sm:$0xf]
        %v815 = vunpack.c.l.b16 %v807
        %v816 = vunpack.c.l.b16 %v808
        %v817 = vunpack.c.l.b16 %v809
        %v818 = vunpack.c.l.b16 %v810
        %v819 = vpack.c.b16 %v816, %v815
        %v820 = vpack.c.b16 %v818, %v817
        %v824 = vsel %vm540, %v799, 0
        %v827 = vsel %vm540, %v800, 0
        %v830 = vsel %vm540, %v801, 0
        %v833 = vsel %vm540, %v802, 0
        %v836 = vsel %vm540, %v803, 0
        %v839 = vsel %vm540, %v804, 0
        %v842 = vsel %vm540, %v805, 0
        %v845 = vsel %vm540, %v806, 0
        %847 = vmatprep.subr.bf16.mxu0 0
        %848 = vmatpush1.bf16.msra.mxu0 %v819
        %849 = vmatprep.subr.bf16.mxu0 0
        %850 = vmatpush1.bf16.msra.mxu0 %v820
        %851 = vmatprep.subr.bf16.mxu0 0
        %852 = vmatpush1.bf16.msra.mxu0 0
        %853 = vmatprep.subr.bf16.mxu0 0
        %854 = vmatpush1.bf16.msra.mxu0 0
        %855 = vmatprep.subr.bf16.mxu0 0
        %856 = vmatpush1.bf16.msra.mxu0 0
        %857 = vmatprep.subr.bf16.mxu0 0
        %858 = vmatpush1.bf16.msra.mxu0 0
        %859 = vmatprep.subr.bf16.mxu0 0
        %860 = vmatpush1.bf16.msra.mxu0 0
        %861 = vmatprep.subr.bf16.mxu0 0
        %862 = vmatpush1.bf16.msra.mxu0 0
        %863 = vmatprep.subr.bf16.mxu0 0
        %864 = vmatpush1.bf16.msra.mxu0 0
        %865 = vmatprep.subr.bf16.mxu0 0
        %866 = vmatpush1.bf16.msra.mxu0 0
        %867 = vmatprep.subr.bf16.mxu0 0
        %868 = vmatpush1.bf16.msra.mxu0 0
        %869 = vmatprep.subr.bf16.mxu0 0
        %870 = vmatpush1.bf16.msra.mxu0 0
        %871 = vmatprep.subr.bf16.mxu0 0
        %872 = vmatpush1.bf16.msra.mxu0 0
        %873 = vmatprep.subr.bf16.mxu0 0
        %874 = vmatpush1.bf16.msra.mxu0 0
        %875 = vmatprep.subr.bf16.mxu0 0
        %876 = vmatpush1.bf16.msra.mxu0 0
        %877 = vmatprep.subr.bf16.mxu0 0
        %878 = vmatpush1.bf16.msra.mxu0 0
        %879 = vmatprep.mubr.bf16.mxu0 0
        %880 = vmatmul.mubr.bf16.gmra.mrb[0].mxu0 %v824
        %v881 = vpop.f32.mrb[0].mxu0
        %v882 = vadd.f32 0.0, %v881
        %v883 = vpop.f32.mrb[0].mxu0
        %v884 = vpop.f32.mrb[0].mxu0
        %v885 = vadd.f32 0.0, %v884
        %v886 = vpop.f32.mrb[0].mxu0
        %887 = vmatprep.mubr.bf16.mxu0 0
        %888 = vmatmul.mubr.bf16.gmra.mrb[0].mxu0 %v827
        %v889 = vpop.f32.mrb[0].mxu0
        %v890 = vadd.f32 0.0, %v889
        %v891 = vpop.f32.mrb[0].mxu0
        %v892 = vpop.f32.mrb[0].mxu0
        %v893 = vadd.f32 0.0, %v892
        %v894 = vpop.f32.mrb[0].mxu0
        %895 = vmatprep.mubr.bf16.mxu0 0
        %896 = vmatmul.mubr.bf16.gmra.mrb[0].mxu0 %v830
        %v897 = vpop.f32.mrb[0].mxu0
        %v898 = vadd.f32 0.0, %v897
        %v899 = vpop.f32.mrb[0].mxu0
        %v900 = vpop.f32.mrb[0].mxu0
        %v901 = vadd.f32 0.0, %v900
        %v902 = vpop.f32.mrb[0].mxu0
        %903 = vmatprep.mubr.bf16.mxu0 0
        %904 = vmatmul.mubr.bf16.gmra.mrb[0].mxu0 %v833
        %v905 = vpop.f32.mrb[0].mxu0
        %v906 = vadd.f32 0.0, %v905
        %v907 = vpop.f32.mrb[0].mxu0
        %v908 = vpop.f32.mrb[0].mxu0
        %v909 = vadd.f32 0.0, %v908
        %v910 = vpop.f32.mrb[0].mxu0
        %911 = vmatprep.mubr.bf16.mxu0 0
        %912 = vmatmul.mubr.bf16.gmra.mrb[0].mxu0 %v836
        %v913 = vpop.f32.mrb[0].mxu0
        %v914 = vadd.f32 0.0, %v913
        %v915 = vpop.f32.mrb[0].mxu0
        %v916 = vpop.f32.mrb[0].mxu0
        %v917 = vadd.f32 0.0, %v916
        %v918 = vpop.f32.mrb[0].mxu0
        %919 = vmatprep.mubr.bf16.mxu0 0
        %920 = vmatmul.mubr.bf16.gmra.mrb[0].mxu0 %v839
        %v921 = vpop.f32.mrb[0].mxu0
        %v922 = vadd.f32 0.0, %v921
        %v923 = vpop.f32.mrb[0].mxu0
        %v924 = vpop.f32.mrb[0].mxu0
        %v925 = vadd.f32 0.0, %v924
        %v926 = vpop.f32.mrb[0].mxu0
        %927 = vmatprep.mubr.bf16.mxu0 0
        %928 = vmatmul.mubr.bf16.gmra.mrb[0].mxu0 %v842
        %v929 = vpop.f32.mrb[0].mxu0
        %v930 = vadd.f32 0.0, %v929
        %v931 = vpop.f32.mrb[0].mxu0
        %v932 = vpop.f32.mrb[0].mxu0
        %v933 = vadd.f32 0.0, %v932
        %v934 = vpop.f32.mrb[0].mxu0
        %935 = vmatprep.mubr.bf16.mxu0 0
        %936 = vmatmul.mubr.bf16.gmra.mrb[0].mxu0 %v845
        %v937 = vpop.f32.mrb[0].mxu0
        %v938 = vadd.f32 0.0, %v937
        %v939 = vpop.f32.mrb[0].mxu0
        %v940 = vpop.f32.mrb[0].mxu0
        %v941 = vadd.f32 0.0, %v940
        %v942 = vpop.f32.mrb[0].mxu0
        %943 = vdwg.mxu0
        %vm944 = vcmask 64512
        %v946 = vsel %vm944, %v737, 0
        %v949 = vsel %vm944, %v740, 0
        %v952 = vsel %vm944, %v882, 0
        %v955 = vsel %vm944, %v885, 0
        %957 = vmatprep.subr.mxu0 0.0
        %958 = vmatpush1.xpose.msra.mxu0 %v952
        %959 = vmatprep.subr.mxu0 0.0
        %960 = vmatpush1.xpose.msra.mxu0 %v955
        %961 = vmatprep.subr.mxu0 0.0
        %962 = vmatpush1.xpose.msra.mxu0 0.0
        %963 = vmatprep.subr.mxu0 0.0
        %964 = vmatpush1.xpose.msra.mxu0 0.0
        %965 = vmatprep.subr.mxu0 0.0
        %966 = vmatpush1.xpose.msra.mxu0 0.0
        %967 = vmatprep.subr.mxu0 0.0
        %968 = vmatpush1.xpose.msra.mxu0 0.0
        %969 = vmatprep.subr.mxu0 0.0
        %970 = vmatpush1.xpose.msra.mxu0 0.0
        %971 = vmatprep.subr.mxu0 0.0
        %972 = vmatpush1.xpose.msra.mxu0 0.0
        %973 = vmatprep.subr.mxu0 0.0
        %974 = vmatpush1.xpose.msra.mxu0 0.0
        %975 = vmatprep.subr.mxu0 0.0
        %976 = vmatpush1.xpose.msra.mxu0 0.0
        %977 = vmatprep.subr.mxu0 0.0
        %978 = vmatpush1.xpose.msra.mxu0 0.0
        %979 = vmatprep.subr.mxu0 0.0
        %980 = vmatpush1.xpose.msra.mxu0 0.0
        %981 = vmatprep.subr.mxu0 0.0
        %982 = vmatpush1.xpose.msra.mxu0 0.0
        %983 = vmatprep.subr.mxu0 0.0
        %984 = vmatpush1.xpose.msra.mxu0 0.0
        %985 = vmatprep.subr.mxu0 0.0
        %986 = vmatpush1.xpose.msra.mxu0 0.0
        %987 = vmatprep.subr.mxu0 0.0
        %988 = vmatpush1.xpose.msra.mxu0 0.0
        %989 = vmatprep.subr.mxu0 0.0
        %990 = vmatpush1.xpose.msra.mxu0 0.0
        %991 = vmatprep.subr.mxu0 0.0
        %992 = vmatpush1.xpose.msra.mxu0 0.0
        %993 = vmatprep.subr.mxu0 0.0
        %994 = vmatpush1.xpose.msra.mxu0 0.0
        %995 = vmatprep.subr.mxu0 0.0
        %996 = vmatpush1.xpose.msra.mxu0 0.0
        %997 = vmatprep.subr.mxu0 0.0
        %998 = vmatpush1.xpose.msra.mxu0 0.0
        %999 = vmatprep.subr.mxu0 0.0
        %1000 = vmatpush1.xpose.msra.mxu0 0.0
        %1001 = vmatprep.subr.mxu0 0.0
        %1002 = vmatpush1.xpose.msra.mxu0 0.0
        %1003 = vmatprep.subr.mxu0 0.0
        %1004 = vmatpush1.xpose.msra.mxu0 0.0
        %1005 = vmatprep.subr.mxu0 0.0
        %1006 = vmatpush1.xpose.msra.mxu0 0.0
        %1007 = vmatprep.subr.mxu0 0.0
        %1008 = vmatpush1.xpose.msra.mxu0 0.0
        %1009 = vmatprep.subr.mxu0 0.0
        %1010 = vmatpush1.xpose.msra.mxu0 0.0
        %1011 = vmatprep.subr.mxu0 0.0
        %1012 = vmatpush1.xpose.msra.mxu0 0.0
        %1013 = vmatprep.subr.mxu0 0.0
        %1014 = vmatpush1.xpose.msra.mxu0 0.0
        %1015 = vmatprep.subr.mxu0 0.0
        %1016 = vmatpush1.xpose.msra.mxu0 0.0
        %1017 = vmatprep.subr.mxu0 0.0
        %1018 = vmatpush1.xpose.msra.mxu0 0.0
        %1019 = vmatprep.subr.mxu0 0.0
        %1020 = vmatpush1.xpose.msra.mxu0 0.0
        %1021 = vmatprep.mubr.f32.mxu0 0.0
        %1022 = vmatmul.mubr.f32.gmra.mrb[0].mxu0 %v946
        %v1023 = vpop.f32.mrb[0].mxu0
        %v1024 = vadd.f32 0.0, %v1023
        %v1025 = vpop.f32.mrb[0].mxu0
        %1026 = vmatprep.mubr.f32.mxu0 0.0
        %1027 = vmatmul.mubr.f32.gmra.mrb[0].mxu0 %v949
        %v1028 = vpop.f32.mrb[0].mxu0
        %v1029 = vadd.f32 0.0, %v1028
        %v1030 = vpop.f32.mrb[0].mxu0
        %1031 = vdwg.mxu0
        %v1033 = vsel %vm944, %v745, 0
        %v1036 = vsel %vm944, %v748, 0
        %v1039 = vsel %vm944, %v890, 0
        %v1042 = vsel %vm944, %v893, 0
        %1044 = vmatprep.subr.mxu0 0.0
        %1045 = vmatpush1.xpose.msra.mxu0 %v1039
        %1046 = vmatprep.subr.mxu0 0.0
        %1047 = vmatpush1.xpose.msra.mxu0 %v1042
        %1048 = vmatprep.subr.mxu0 0.0
        %1049 = vmatpush1.xpose.msra.mxu0 0.0
        %1050 = vmatprep.subr.mxu0 0.0
        %1051 = vmatpush1.xpose.msra.mxu0 0.0
        %1052 = vmatprep.subr.mxu0 0.0
        %1053 = vmatpush1.xpose.msra.mxu0 0.0
        %1054 = vmatprep.subr.mxu0 0.0
        %1055 = vmatpush1.xpose.msra.mxu0 0.0
        %1056 = vmatprep.subr.mxu0 0.0
        %1057 = vmatpush1.xpose.msra.mxu0 0.0
        %1058 = vmatprep.subr.mxu0 0.0
        %1059 = vmatpush1.xpose.msra.mxu0 0.0
        %1060 = vmatprep.subr.mxu0 0.0
        %1061 = vmatpush1.xpose.msra.mxu0 0.0
        %1062 = vmatprep.subr.mxu0 0.0
        %1063 = vmatpush1.xpose.msra.mxu0 0.0
        %1064 = vmatprep.subr.mxu0 0.0
        %1065 = vmatpush1.xpose.msra.mxu0 0.0
        %1066 = vmatprep.subr.mxu0 0.0
        %1067 = vmatpush1.xpose.msra.mxu0 0.0
        %1068 = vmatprep.subr.mxu0 0.0
        %1069 = vmatpush1.xpose.msra.mxu0 0.0
        %1070 = vmatprep.subr.mxu0 0.0
        %1071 = vmatpush1.xpose.msra.mxu0 0.0
        %1072 = vmatprep.subr.mxu0 0.0
        %1073 = vmatpush1.xpose.msra.mxu0 0.0
        %1074 = vmatprep.subr.mxu0 0.0
        %1075 = vmatpush1.xpose.msra.mxu0 0.0
        %1076 = vmatprep.subr.mxu0 0.0
        %1077 = vmatpush1.xpose.msra.mxu0 0.0
        %1078 = vmatprep.subr.mxu0 0.0
        %1079 = vmatpush1.xpose.msra.mxu0 0.0
        %1080 = vmatprep.subr.mxu0 0.0
        %1081 = vmatpush1.xpose.msra.mxu0 0.0
        %1082 = vmatprep.subr.mxu0 0.0
        %1083 = vmatpush1.xpose.msra.mxu0 0.0
        %1084 = vmatprep.subr.mxu0 0.0
        %1085 = vmatpush1.xpose.msra.mxu0 0.0
        %1086 = vmatprep.subr.mxu0 0.0
        %1087 = vmatpush1.xpose.msra.mxu0 0.0
        %1088 = vmatprep.subr.mxu0 0.0
        %1089 = vmatpush1.xpose.msra.mxu0 0.0
        %1090 = vmatprep.subr.mxu0 0.0
        %1091 = vmatpush1.xpose.msra.mxu0 0.0
        %1092 = vmatprep.subr.mxu0 0.0
        %1093 = vmatpush1.xpose.msra.mxu0 0.0
        %1094 = vmatprep.subr.mxu0 0.0
        %1095 = vmatpush1.xpose.msra.mxu0 0.0
        %1096 = vmatprep.subr.mxu0 0.0
        %1097 = vmatpush1.xpose.msra.mxu0 0.0
        %1098 = vmatprep.subr.mxu0 0.0
        %1099 = vmatpush1.xpose.msra.mxu0 0.0
        %1100 = vmatprep.subr.mxu0 0.0
        %1101 = vmatpush1.xpose.msra.mxu0 0.0
        %1102 = vmatprep.subr.mxu0 0.0
        %1103 = vmatpush1.xpose.msra.mxu0 0.0
        %1104 = vmatprep.subr.mxu0 0.0
        %1105 = vmatpush1.xpose.msra.mxu0 0.0
        %1106 = vmatprep.subr.mxu0 0.0
        %1107 = vmatpush1.xpose.msra.mxu0 0.0
        %1108 = vmatprep.mubr.f32.mxu0 0.0
        %1109 = vmatmul.mubr.f32.gmra.mrb[0].mxu0 %v1033
        %v1110 = vpop.f32.mrb[0].mxu0
        %v1111 = vadd.f32 0.0, %v1110
        %v1112 = vpop.f32.mrb[0].mxu0
        %1113 = vmatprep.mubr.f32.mxu0 0.0
        %1114 = vmatmul.mubr.f32.gmra.mrb[0].mxu0 %v1036
        %v1115 = vpop.f32.mrb[0].mxu0
        %v1116 = vadd.f32 0.0, %v1115
        %v1117 = vpop.f32.mrb[0].mxu0
        %1118 = vdwg.mxu0
        %v1120 = vsel %vm944, %v753, 0
        %v1123 = vsel %vm944, %v756, 0
        %v1126 = vsel %vm944, %v898, 0
        %v1129 = vsel %vm944, %v901, 0
        %1131 = vmatprep.subr.mxu0 0.0
        %1132 = vmatpush1.xpose.msra.mxu0 %v1126
        %1133 = vmatprep.subr.mxu0 0.0
        %1134 = vmatpush1.xpose.msra.mxu0 %v1129
        %1135 = vmatprep.subr.mxu0 0.0
        %1136 = vmatpush1.xpose.msra.mxu0 0.0
        %1137 = vmatprep.subr.mxu0 0.0
        %1138 = vmatpush1.xpose.msra.mxu0 0.0
        %1139 = vmatprep.subr.mxu0 0.0
        %1140 = vmatpush1.xpose.msra.mxu0 0.0
        %1141 = vmatprep.subr.mxu0 0.0
        %1142 = vmatpush1.xpose.msra.mxu0 0.0
        %1143 = vmatprep.subr.mxu0 0.0
        %1144 = vmatpush1.xpose.msra.mxu0 0.0
        %1145 = vmatprep.subr.mxu0 0.0
        %1146 = vmatpush1.xpose.msra.mxu0 0.0
        %1147 = vmatprep.subr.mxu0 0.0
        %1148 = vmatpush1.xpose.msra.mxu0 0.0
        %1149 = vmatprep.subr.mxu0 0.0
        %1150 = vmatpush1.xpose.msra.mxu0 0.0
        %1151 = vmatprep.subr.mxu0 0.0
        %1152 = vmatpush1.xpose.msra.mxu0 0.0
        %1153 = vmatprep.subr.mxu0 0.0
        %1154 = vmatpush1.xpose.msra.mxu0 0.0
        %1155 = vmatprep.subr.mxu0 0.0
        %1156 = vmatpush1.xpose.msra.mxu0 0.0
        %1157 = vmatprep.subr.mxu0 0.0
        %1158 = vmatpush1.xpose.msra.mxu0 0.0
        %1159 = vmatprep.subr.mxu0 0.0
        %1160 = vmatpush1.xpose.msra.mxu0 0.0
        %1161 = vmatprep.subr.mxu0 0.0
        %1162 = vmatpush1.xpose.msra.mxu0 0.0
        %1163 = vmatprep.subr.mxu0 0.0
        %1164 = vmatpush1.xpose.msra.mxu0 0.0
        %1165 = vmatprep.subr.mxu0 0.0
        %1166 = vmatpush1.xpose.msra.mxu0 0.0
        %1167 = vmatprep.subr.mxu0 0.0
        %1168 = vmatpush1.xpose.msra.mxu0 0.0
        %1169 = vmatprep.subr.mxu0 0.0
        %1170 = vmatpush1.xpose.msra.mxu0 0.0
        %1171 = vmatprep.subr.mxu0 0.0
        %1172 = vmatpush1.xpose.msra.mxu0 0.0
        %1173 = vmatprep.subr.mxu0 0.0
        %1174 = vmatpush1.xpose.msra.mxu0 0.0
        %1175 = vmatprep.subr.mxu0 0.0
        %1176 = vmatpush1.xpose.msra.mxu0 0.0
        %1177 = vmatprep.subr.mxu0 0.0
        %1178 = vmatpush1.xpose.msra.mxu0 0.0
        %1179 = vmatprep.subr.mxu0 0.0
        %1180 = vmatpush1.xpose.msra.mxu0 0.0
        %1181 = vmatprep.subr.mxu0 0.0
        %1182 = vmatpush1.xpose.msra.mxu0 0.0
        %1183 = vmatprep.subr.mxu0 0.0
        %1184 = vmatpush1.xpose.msra.mxu0 0.0
        %1185 = vmatprep.subr.mxu0 0.0
        %1186 = vmatpush1.xpose.msra.mxu0 0.0
        %1187 = vmatprep.subr.mxu0 0.0
        %1188 = vmatpush1.xpose.msra.mxu0 0.0
        %1189 = vmatprep.subr.mxu0 0.0
        %1190 = vmatpush1.xpose.msra.mxu0 0.0
        %1191 = vmatprep.subr.mxu0 0.0
        %1192 = vmatpush1.xpose.msra.mxu0 0.0
        %1193 = vmatprep.subr.mxu0 0.0
        %1194 = vmatpush1.xpose.msra.mxu0 0.0
        %1195 = vmatprep.mubr.f32.mxu0 0.0
        %1196 = vmatmul.mubr.f32.gmra.mrb[0].mxu0 %v1120
        %v1197 = vpop.f32.mrb[0].mxu0
        %v1198 = vadd.f32 0.0, %v1197
        %v1199 = vpop.f32.mrb[0].mxu0
        %1200 = vmatprep.mubr.f32.mxu0 0.0
        %1201 = vmatmul.mubr.f32.gmra.mrb[0].mxu0 %v1123
        %v1202 = vpop.f32.mrb[0].mxu0
        %v1203 = vadd.f32 0.0, %v1202
        %v1204 = vpop.f32.mrb[0].mxu0
        %1205 = vdwg.mxu0
        %v1207 = vsel %vm944, %v761, 0
        %v1210 = vsel %vm944, %v764, 0
        %v1213 = vsel %vm944, %v906, 0
        %v1216 = vsel %vm944, %v909, 0
        %1218 = vmatprep.subr.mxu0 0.0
        %1219 = vmatpush1.xpose.msra.mxu0 %v1213
        %1220 = vmatprep.subr.mxu0 0.0
        %1221 = vmatpush1.xpose.msra.mxu0 %v1216
        %1222 = vmatprep.subr.mxu0 0.0
        %1223 = vmatpush1.xpose.msra.mxu0 0.0
        %1224 = vmatprep.subr.mxu0 0.0
        %1225 = vmatpush1.xpose.msra.mxu0 0.0
        %1226 = vmatprep.subr.mxu0 0.0
        %1227 = vmatpush1.xpose.msra.mxu0 0.0
        %1228 = vmatprep.subr.mxu0 0.0
        %1229 = vmatpush1.xpose.msra.mxu0 0.0
        %1230 = vmatprep.subr.mxu0 0.0
        %1231 = vmatpush1.xpose.msra.mxu0 0.0
        %1232 = vmatprep.subr.mxu0 0.0
        %1233 = vmatpush1.xpose.msra.mxu0 0.0
        %1234 = vmatprep.subr.mxu0 0.0
        %1235 = vmatpush1.xpose.msra.mxu0 0.0
        %1236 = vmatprep.subr.mxu0 0.0
        %1237 = vmatpush1.xpose.msra.mxu0 0.0
        %1238 = vmatprep.subr.mxu0 0.0
        %1239 = vmatpush1.xpose.msra.mxu0 0.0
        %1240 = vmatprep.subr.mxu0 0.0
        %1241 = vmatpush1.xpose.msra.mxu0 0.0
        %1242 = vmatprep.subr.mxu0 0.0
        %1243 = vmatpush1.xpose.msra.mxu0 0.0
        %1244 = vmatprep.subr.mxu0 0.0
        %1245 = vmatpush1.xpose.msra.mxu0 0.0
        %1246 = vmatprep.subr.mxu0 0.0
        %1247 = vmatpush1.xpose.msra.mxu0 0.0
        %1248 = vmatprep.subr.mxu0 0.0
        %1249 = vmatpush1.xpose.msra.mxu0 0.0
        %1250 = vmatprep.subr.mxu0 0.0
        %1251 = vmatpush1.xpose.msra.mxu0 0.0
        %1252 = vmatprep.subr.mxu0 0.0
        %1253 = vmatpush1.xpose.msra.mxu0 0.0
        %1254 = vmatprep.subr.mxu0 0.0
        %1255 = vmatpush1.xpose.msra.mxu0 0.0
        %1256 = vmatprep.subr.mxu0 0.0
        %1257 = vmatpush1.xpose.msra.mxu0 0.0
        %1258 = vmatprep.subr.mxu0 0.0
        %1259 = vmatpush1.xpose.msra.mxu0 0.0
        %1260 = vmatprep.subr.mxu0 0.0
        %1261 = vmatpush1.xpose.msra.mxu0 0.0
        %1262 = vmatprep.subr.mxu0 0.0
        %1263 = vmatpush1.xpose.msra.mxu0 0.0
        %1264 = vmatprep.subr.mxu0 0.0
        %1265 = vmatpush1.xpose.msra.mxu0 0.0
        %1266 = vmatprep.subr.mxu0 0.0
        %1267 = vmatpush1.xpose.msra.mxu0 0.0
        %1268 = vmatprep.subr.mxu0 0.0
        %1269 = vmatpush1.xpose.msra.mxu0 0.0
        %1270 = vmatprep.subr.mxu0 0.0
        %1271 = vmatpush1.xpose.msra.mxu0 0.0
        %1272 = vmatprep.subr.mxu0 0.0
        %1273 = vmatpush1.xpose.msra.mxu0 0.0
        %1274 = vmatprep.subr.mxu0 0.0
        %1275 = vmatpush1.xpose.msra.mxu0 0.0
        %1276 = vmatprep.subr.mxu0 0.0
        %1277 = vmatpush1.xpose.msra.mxu0 0.0
        %1278 = vmatprep.subr.mxu0 0.0
        %1279 = vmatpush1.xpose.msra.mxu0 0.0
        %1280 = vmatprep.subr.mxu0 0.0
        %1281 = vmatpush1.xpose.msra.mxu0 0.0
        %1282 = vmatprep.mubr.f32.mxu0 0.0
        %1283 = vmatmul.mubr.f32.gmra.mrb[0].mxu0 %v1207
        %v1284 = vpop.f32.mrb[0].mxu0
        %v1285 = vadd.f32 0.0, %v1284
        %v1286 = vpop.f32.mrb[0].mxu0
        %1287 = vmatprep.mubr.f32.mxu0 0.0
        %1288 = vmatmul.mubr.f32.gmra.mrb[0].mxu0 %v1210
        %v1289 = vpop.f32.mrb[0].mxu0
        %v1290 = vadd.f32 0.0, %v1289
        %v1291 = vpop.f32.mrb[0].mxu0
        %1292 = vdwg.mxu0
        %v1294 = vsel %vm944, %v769, 0
        %v1297 = vsel %vm944, %v772, 0
        %v1300 = vsel %vm944, %v914, 0
        %v1303 = vsel %vm944, %v917, 0
        %1305 = vmatprep.subr.mxu0 0.0
        %1306 = vmatpush1.xpose.msra.mxu0 %v1300
        %1307 = vmatprep.subr.mxu0 0.0
        %1308 = vmatpush1.xpose.msra.mxu0 %v1303
        %1309 = vmatprep.subr.mxu0 0.0
        %1310 = vmatpush1.xpose.msra.mxu0 0.0
        %1311 = vmatprep.subr.mxu0 0.0
        %1312 = vmatpush1.xpose.msra.mxu0 0.0
        %1313 = vmatprep.subr.mxu0 0.0
        %1314 = vmatpush1.xpose.msra.mxu0 0.0
        %1315 = vmatprep.subr.mxu0 0.0
        %1316 = vmatpush1.xpose.msra.mxu0 0.0
        %1317 = vmatprep.subr.mxu0 0.0
        %1318 = vmatpush1.xpose.msra.mxu0 0.0
        %1319 = vmatprep.subr.mxu0 0.0
        %1320 = vmatpush1.xpose.msra.mxu0 0.0
        %1321 = vmatprep.subr.mxu0 0.0
        %1322 = vmatpush1.xpose.msra.mxu0 0.0
        %1323 = vmatprep.subr.mxu0 0.0
        %1324 = vmatpush1.xpose.msra.mxu0 0.0
        %1325 = vmatprep.subr.mxu0 0.0
        %1326 = vmatpush1.xpose.msra.mxu0 0.0
        %1327 = vmatprep.subr.mxu0 0.0
        %1328 = vmatpush1.xpose.msra.mxu0 0.0
        %1329 = vmatprep.subr.mxu0 0.0
        %1330 = vmatpush1.xpose.msra.mxu0 0.0
        %1331 = vmatprep.subr.mxu0 0.0
        %1332 = vmatpush1.xpose.msra.mxu0 0.0
        %1333 = vmatprep.subr.mxu0 0.0
        %1334 = vmatpush1.xpose.msra.mxu0 0.0
        %1335 = vmatprep.subr.mxu0 0.0
        %1336 = vmatpush1.xpose.msra.mxu0 0.0
        %1337 = vmatprep.subr.mxu0 0.0
        %1338 = vmatpush1.xpose.msra.mxu0 0.0
        %1339 = vmatprep.subr.mxu0 0.0
        %1340 = vmatpush1.xpose.msra.mxu0 0.0
        %1341 = vmatprep.subr.mxu0 0.0
        %1342 = vmatpush1.xpose.msra.mxu0 0.0
        %1343 = vmatprep.subr.mxu0 0.0
        %1344 = vmatpush1.xpose.msra.mxu0 0.0
        %1345 = vmatprep.subr.mxu0 0.0
        %1346 = vmatpush1.xpose.msra.mxu0 0.0
        %1347 = vmatprep.subr.mxu0 0.0
        %1348 = vmatpush1.xpose.msra.mxu0 0.0
        %1349 = vmatprep.subr.mxu0 0.0
        %1350 = vmatpush1.xpose.msra.mxu0 0.0
        %1351 = vmatprep.subr.mxu0 0.0
        %1352 = vmatpush1.xpose.msra.mxu0 0.0
        %1353 = vmatprep.subr.mxu0 0.0
        %1354 = vmatpush1.xpose.msra.mxu0 0.0
        %1355 = vmatprep.subr.mxu0 0.0
        %1356 = vmatpush1.xpose.msra.mxu0 0.0
        %1357 = vmatprep.subr.mxu0 0.0
        %1358 = vmatpush1.xpose.msra.mxu0 0.0
        %1359 = vmatprep.subr.mxu0 0.0
        %1360 = vmatpush1.xpose.msra.mxu0 0.0
        %1361 = vmatprep.subr.mxu0 0.0
        %1362 = vmatpush1.xpose.msra.mxu0 0.0
        %1363 = vmatprep.subr.mxu0 0.0
        %1364 = vmatpush1.xpose.msra.mxu0 0.0
        %1365 = vmatprep.subr.mxu0 0.0
        %1366 = vmatpush1.xpose.msra.mxu0 0.0
        %1367 = vmatprep.subr.mxu0 0.0
        %1368 = vmatpush1.xpose.msra.mxu0 0.0
        %1369 = vmatprep.mubr.f32.mxu0 0.0
        %1370 = vmatmul.mubr.f32.gmra.mrb[0].mxu0 %v1294
        %v1371 = vpop.f32.mrb[0].mxu0
        %v1372 = vadd.f32 0.0, %v1371
        %v1373 = vpop.f32.mrb[0].mxu0
        %1374 = vmatprep.mubr.f32.mxu0 0.0
        %1375 = vmatmul.mubr.f32.gmra.mrb[0].mxu0 %v1297
        %v1376 = vpop.f32.mrb[0].mxu0
        %v1377 = vadd.f32 0.0, %v1376
        %v1378 = vpop.f32.mrb[0].mxu0
        %1379 = vdwg.mxu0
        %v1381 = vsel %vm944, %v777, 0
        %v1384 = vsel %vm944, %v780, 0
        %v1387 = vsel %vm944, %v922, 0
        %v1390 = vsel %vm944, %v925, 0
        %1392 = vmatprep.subr.mxu0 0.0
        %1393 = vmatpush1.xpose.msra.mxu0 %v1387
        %1394 = vmatprep.subr.mxu0 0.0
        %1395 = vmatpush1.xpose.msra.mxu0 %v1390
        %1396 = vmatprep.subr.mxu0 0.0
        %1397 = vmatpush1.xpose.msra.mxu0 0.0
        %1398 = vmatprep.subr.mxu0 0.0
        %1399 = vmatpush1.xpose.msra.mxu0 0.0
        %1400 = vmatprep.subr.mxu0 0.0
        %1401 = vmatpush1.xpose.msra.mxu0 0.0
        %1402 = vmatprep.subr.mxu0 0.0
        %1403 = vmatpush1.xpose.msra.mxu0 0.0
        %1404 = vmatprep.subr.mxu0 0.0
        %1405 = vmatpush1.xpose.msra.mxu0 0.0
        %1406 = vmatprep.subr.mxu0 0.0
        %1407 = vmatpush1.xpose.msra.mxu0 0.0
        %1408 = vmatprep.subr.mxu0 0.0
        %1409 = vmatpush1.xpose.msra.mxu0 0.0
        %1410 = vmatprep.subr.mxu0 0.0
        %1411 = vmatpush1.xpose.msra.mxu0 0.0
        %1412 = vmatprep.subr.mxu0 0.0
        %1413 = vmatpush1.xpose.msra.mxu0 0.0
        %1414 = vmatprep.subr.mxu0 0.0
        %1415 = vmatpush1.xpose.msra.mxu0 0.0
        %1416 = vmatprep.subr.mxu0 0.0
        %1417 = vmatpush1.xpose.msra.mxu0 0.0
        %1418 = vmatprep.subr.mxu0 0.0
        %1419 = vmatpush1.xpose.msra.mxu0 0.0
        %1420 = vmatprep.subr.mxu0 0.0
        %1421 = vmatpush1.xpose.msra.mxu0 0.0
        %1422 = vmatprep.subr.mxu0 0.0
        %1423 = vmatpush1.xpose.msra.mxu0 0.0
        %1424 = vmatprep.subr.mxu0 0.0
        %1425 = vmatpush1.xpose.msra.mxu0 0.0
        %1426 = vmatprep.subr.mxu0 0.0
        %1427 = vmatpush1.xpose.msra.mxu0 0.0
        %1428 = vmatprep.subr.mxu0 0.0
        %1429 = vmatpush1.xpose.msra.mxu0 0.0
        %1430 = vmatprep.subr.mxu0 0.0
        %1431 = vmatpush1.xpose.msra.mxu0 0.0
        %1432 = vmatprep.subr.mxu0 0.0
        %1433 = vmatpush1.xpose.msra.mxu0 0.0
        %1434 = vmatprep.subr.mxu0 0.0
        %1435 = vmatpush1.xpose.msra.mxu0 0.0
        %1436 = vmatprep.subr.mxu0 0.0
        %1437 = vmatpush1.xpose.msra.mxu0 0.0
        %1438 = vmatprep.subr.mxu0 0.0
        %1439 = vmatpush1.xpose.msra.mxu0 0.0
        %1440 = vmatprep.subr.mxu0 0.0
        %1441 = vmatpush1.xpose.msra.mxu0 0.0
        %1442 = vmatprep.subr.mxu0 0.0
        %1443 = vmatpush1.xpose.msra.mxu0 0.0
        %1444 = vmatprep.subr.mxu0 0.0
        %1445 = vmatpush1.xpose.msra.mxu0 0.0
        %1446 = vmatprep.subr.mxu0 0.0
        %1447 = vmatpush1.xpose.msra.mxu0 0.0
        %1448 = vmatprep.subr.mxu0 0.0
        %1449 = vmatpush1.xpose.msra.mxu0 0.0
        %1450 = vmatprep.subr.mxu0 0.0
        %1451 = vmatpush1.xpose.msra.mxu0 0.0
        %1452 = vmatprep.subr.mxu0 0.0
        %1453 = vmatpush1.xpose.msra.mxu0 0.0
        %1454 = vmatprep.subr.mxu0 0.0
        %1455 = vmatpush1.xpose.msra.mxu0 0.0
        %1456 = vmatprep.mubr.f32.mxu0 0.0
        %1457 = vmatmul.mubr.f32.gmra.mrb[0].mxu0 %v1381
        %v1458 = vpop.f32.mrb[0].mxu0
        %v1459 = vadd.f32 0.0, %v1458
        %v1460 = vpop.f32.mrb[0].mxu0
        %1461 = vmatprep.mubr.f32.mxu0 0.0
        %1462 = vmatmul.mubr.f32.gmra.mrb[0].mxu0 %v1384
        %v1463 = vpop.f32.mrb[0].mxu0
        %v1464 = vadd.f32 0.0, %v1463
        %v1465 = vpop.f32.mrb[0].mxu0
        %1466 = vdwg.mxu0
        %v1468 = vsel %vm944, %v785, 0
        %v1471 = vsel %vm944, %v788, 0
        %v1474 = vsel %vm944, %v930, 0
        %v1477 = vsel %vm944, %v933, 0
        %1479 = vmatprep.subr.mxu0 0.0
        %1480 = vmatpush1.xpose.msra.mxu0 %v1474
        %1481 = vmatprep.subr.mxu0 0.0
        %1482 = vmatpush1.xpose.msra.mxu0 %v1477
        %1483 = vmatprep.subr.mxu0 0.0
        %1484 = vmatpush1.xpose.msra.mxu0 0.0
        %1485 = vmatprep.subr.mxu0 0.0
        %1486 = vmatpush1.xpose.msra.mxu0 0.0
        %1487 = vmatprep.subr.mxu0 0.0
        %1488 = vmatpush1.xpose.msra.mxu0 0.0
        %1489 = vmatprep.subr.mxu0 0.0
        %1490 = vmatpush1.xpose.msra.mxu0 0.0
        %1491 = vmatprep.subr.mxu0 0.0
        %1492 = vmatpush1.xpose.msra.mxu0 0.0
        %1493 = vmatprep.subr.mxu0 0.0
        %1494 = vmatpush1.xpose.msra.mxu0 0.0
        %1495 = vmatprep.subr.mxu0 0.0
        %1496 = vmatpush1.xpose.msra.mxu0 0.0
        %1497 = vmatprep.subr.mxu0 0.0
        %1498 = vmatpush1.xpose.msra.mxu0 0.0
        %1499 = vmatprep.subr.mxu0 0.0
        %1500 = vmatpush1.xpose.msra.mxu0 0.0
        %1501 = vmatprep.subr.mxu0 0.0
        %1502 = vmatpush1.xpose.msra.mxu0 0.0
        %1503 = vmatprep.subr.mxu0 0.0
        %1504 = vmatpush1.xpose.msra.mxu0 0.0
        %1505 = vmatprep.subr.mxu0 0.0
        %1506 = vmatpush1.xpose.msra.mxu0 0.0
        %1507 = vmatprep.subr.mxu0 0.0
        %1508 = vmatpush1.xpose.msra.mxu0 0.0
        %1509 = vmatprep.subr.mxu0 0.0
        %1510 = vmatpush1.xpose.msra.mxu0 0.0
        %1511 = vmatprep.subr.mxu0 0.0
        %1512 = vmatpush1.xpose.msra.mxu0 0.0
        %1513 = vmatprep.subr.mxu0 0.0
        %1514 = vmatpush1.xpose.msra.mxu0 0.0
        %1515 = vmatprep.subr.mxu0 0.0
        %1516 = vmatpush1.xpose.msra.mxu0 0.0
        %1517 = vmatprep.subr.mxu0 0.0
        %1518 = vmatpush1.xpose.msra.mxu0 0.0
        %1519 = vmatprep.subr.mxu0 0.0
        %1520 = vmatpush1.xpose.msra.mxu0 0.0
        %1521 = vmatprep.subr.mxu0 0.0
        %1522 = vmatpush1.xpose.msra.mxu0 0.0
        %1523 = vmatprep.subr.mxu0 0.0
        %1524 = vmatpush1.xpose.msra.mxu0 0.0
        %1525 = vmatprep.subr.mxu0 0.0
        %1526 = vmatpush1.xpose.msra.mxu0 0.0
        %1527 = vmatprep.subr.mxu0 0.0
        %1528 = vmatpush1.xpose.msra.mxu0 0.0
        %1529 = vmatprep.subr.mxu0 0.0
        %1530 = vmatpush1.xpose.msra.mxu0 0.0
        %1531 = vmatprep.subr.mxu0 0.0
        %1532 = vmatpush1.xpose.msra.mxu0 0.0
        %1533 = vmatprep.subr.mxu0 0.0
        %1534 = vmatpush1.xpose.msra.mxu0 0.0
        %1535 = vmatprep.subr.mxu0 0.0
        %1536 = vmatpush1.xpose.msra.mxu0 0.0
        %1537 = vmatprep.subr.mxu0 0.0
        %1538 = vmatpush1.xpose.msra.mxu0 0.0
        %1539 = vmatprep.subr.mxu0 0.0
        %1540 = vmatpush1.xpose.msra.mxu0 0.0
        %1541 = vmatprep.subr.mxu0 0.0
        %1542 = vmatpush1.xpose.msra.mxu0 0.0
        %1543 = vmatprep.mubr.f32.mxu0 0.0
        %1544 = vmatmul.mubr.f32.gmra.mrb[0].mxu0 %v1468
        %v1545 = vpop.f32.mrb[0].mxu0
        %v1546 = vadd.f32 0.0, %v1545
        %v1547 = vpop.f32.mrb[0].mxu0
        %1548 = vmatprep.mubr.f32.mxu0 0.0
        %1549 = vmatmul.mubr.f32.gmra.mrb[0].mxu0 %v1471
        %v1550 = vpop.f32.mrb[0].mxu0
        %v1551 = vadd.f32 0.0, %v1550
        %v1552 = vpop.f32.mrb[0].mxu0
        %1553 = vdwg.mxu0
        %v1555 = vsel %vm944, %v793, 0
        %v1558 = vsel %vm944, %v796, 0
        %v1561 = vsel %vm944, %v938, 0
        %v1564 = vsel %vm944, %v941, 0
        %1566 = vmatprep.subr.mxu0 0.0
        %1567 = vmatpush1.xpose.msra.mxu0 %v1561
        %1568 = vmatprep.subr.mxu0 0.0
        %1569 = vmatpush1.xpose.msra.mxu0 %v1564
        %1570 = vmatprep.subr.mxu0 0.0
        %1571 = vmatpush1.xpose.msra.mxu0 0.0
        %1572 = vmatprep.subr.mxu0 0.0
        %1573 = vmatpush1.xpose.msra.mxu0 0.0
        %1574 = vmatprep.subr.mxu0 0.0
        %1575 = vmatpush1.xpose.msra.mxu0 0.0
        %1576 = vmatprep.subr.mxu0 0.0
        %1577 = vmatpush1.xpose.msra.mxu0 0.0
        %1578 = vmatprep.subr.mxu0 0.0
        %1579 = vmatpush1.xpose.msra.mxu0 0.0
        %1580 = vmatprep.subr.mxu0 0.0
        %1581 = vmatpush1.xpose.msra.mxu0 0.0
        %1582 = vmatprep.subr.mxu0 0.0
        %1583 = vmatpush1.xpose.msra.mxu0 0.0
        %1584 = vmatprep.subr.mxu0 0.0
        %1585 = vmatpush1.xpose.msra.mxu0 0.0
        %1586 = vmatprep.subr.mxu0 0.0
        %1587 = vmatpush1.xpose.msra.mxu0 0.0
        %1588 = vmatprep.subr.mxu0 0.0
        %1589 = vmatpush1.xpose.msra.mxu0 0.0
        %1590 = vmatprep.subr.mxu0 0.0
        %1591 = vmatpush1.xpose.msra.mxu0 0.0
        %1592 = vmatprep.subr.mxu0 0.0
        %1593 = vmatpush1.xpose.msra.mxu0 0.0
        %1594 = vmatprep.subr.mxu0 0.0
        %1595 = vmatpush1.xpose.msra.mxu0 0.0
        %1596 = vmatprep.subr.mxu0 0.0
        %1597 = vmatpush1.xpose.msra.mxu0 0.0
        %1598 = vmatprep.subr.mxu0 0.0
        %1599 = vmatpush1.xpose.msra.mxu0 0.0
        %1600 = vmatprep.subr.mxu0 0.0
        %1601 = vmatpush1.xpose.msra.mxu0 0.0
        %1602 = vmatprep.subr.mxu0 0.0
        %1603 = vmatpush1.xpose.msra.mxu0 0.0
        %1604 = vmatprep.subr.mxu0 0.0
        %1605 = vmatpush1.xpose.msra.mxu0 0.0
        %1606 = vmatprep.subr.mxu0 0.0
        %1607 = vmatpush1.xpose.msra.mxu0 0.0
        %1608 = vmatprep.subr.mxu0 0.0
        %1609 = vmatpush1.xpose.msra.mxu0 0.0
        %1610 = vmatprep.subr.mxu0 0.0
        %1611 = vmatpush1.xpose.msra.mxu0 0.0
        %1612 = vmatprep.subr.mxu0 0.0
        %1613 = vmatpush1.xpose.msra.mxu0 0.0
        %1614 = vmatprep.subr.mxu0 0.0
        %1615 = vmatpush1.xpose.msra.mxu0 0.0
        %1616 = vmatprep.subr.mxu0 0.0
        %1617 = vmatpush1.xpose.msra.mxu0 0.0
        %1618 = vmatprep.subr.mxu0 0.0
        %1619 = vmatpush1.xpose.msra.mxu0 0.0
        %1620 = vmatprep.subr.mxu0 0.0
        %1621 = vmatpush1.xpose.msra.mxu0 0.0
        %1622 = vmatprep.subr.mxu0 0.0
        %1623 = vmatpush1.xpose.msra.mxu0 0.0
        %1624 = vmatprep.subr.mxu0 0.0
        %1625 = vmatpush1.xpose.msra.mxu0 0.0
        %1626 = vmatprep.subr.mxu0 0.0
        %1627 = vmatpush1.xpose.msra.mxu0 0.0
        %1628 = vmatprep.subr.mxu0 0.0
        %1629 = vmatpush1.xpose.msra.mxu0 0.0
        %1630 = vmatprep.mubr.f32.mxu0 0.0
        %1631 = vmatmul.mubr.f32.gmra.mrb[0].mxu0 %v1555
        %v1632 = vpop.f32.mrb[0].mxu0
        %v1633 = vadd.f32 0.0, %v1632
        %v1634 = vpop.f32.mrb[0].mxu0
        %1635 = vmatprep.mubr.f32.mxu0 0.0
        %1636 = vmatmul.mubr.f32.gmra.mrb[0].mxu0 %v1558
        %v1637 = vpop.f32.mrb[0].mxu0
        %v1638 = vadd.f32 0.0, %v1637
        %v1639 = vpop.f32.mrb[0].mxu0
        %1640 = vdwg.mxu0
        %v1641 = vmul.f32 %v1024, 0.35355338
        %v1642 = vmul.f32 %v1029, 0.35355338
        %v1643 = vmul.f32 %v1111, 0.35355338
        %v1644 = vmul.f32 %v1116, 0.35355338
        %v1645 = vmul.f32 %v1198, 0.35355338
        %v1646 = vmul.f32 %v1203, 0.35355338
        %v1647 = vmul.f32 %v1285, 0.35355338
        %v1648 = vmul.f32 %v1290, 0.35355338
        %v1649 = vmul.f32 %v1372, 0.35355338
        %v1650 = vmul.f32 %v1377, 0.35355338
        %v1651 = vmul.f32 %v1459, 0.35355338
        %v1652 = vmul.f32 %v1464, 0.35355338
        %v1653 = vmul.f32 %v1546, 0.35355338
        %v1654 = vmul.f32 %v1551, 0.35355338
        %v1655 = vmul.f32 %v1633, 0.35355338
        %v1656 = vmul.f32 %v1638, 0.35355338
        %vm1657 = vcmask 130048
        %v1658 = vsel %vm1657, %v1641, -inf
        %1659 = vmax.xlane.f32.xlu0 %v1658
        %v1660 = vpop.xlane.xlu0 %1659
        %v1661 = vsel %vm1657, %v1642, -inf
        %1662 = vmax.xlane.f32.xlu0 %v1661
        %v1663 = vpop.xlane.xlu0 %1662
        %v1664 = vsel %vm1657, %v1643, -inf
        %1665 = vmax.xlane.f32.xlu0 %v1664
        %v1666 = vpop.xlane.xlu0 %1665
        %v1667 = vsel %vm1657, %v1644, -inf
        %1668 = vmax.xlane.f32.xlu0 %v1667
        %v1669 = vpop.xlane.xlu0 %1668
        %v1670 = vsel %vm1657, %v1645, -inf
        %1671 = vmax.xlane.f32.xlu0 %v1670
        %v1672 = vpop.xlane.xlu0 %1671
        %v1673 = vsel %vm1657, %v1646, -inf
        %1674 = vmax.xlane.f32.xlu0 %v1673
        %v1675 = vpop.xlane.xlu0 %1674
        %v1676 = vsel %vm1657, %v1647, -inf
        %1677 = vmax.xlane.f32.xlu0 %v1676
        %v1678 = vpop.xlane.xlu0 %1677
        %v1679 = vsel %vm1657, %v1648, -inf
        %1680 = vmax.xlane.f32.xlu0 %v1679
        %v1681 = vpop.xlane.xlu0 %1680
        %v1682 = vsel %vm1657, %v1649, -inf
        %1683 = vmax.xlane.f32.xlu0 %v1682
        %v1684 = vpop.xlane.xlu0 %1683
        %v1685 = vsel %vm1657, %v1650, -inf
        %1686 = vmax.xlane.f32.xlu0 %v1685
        %v1687 = vpop.xlane.xlu0 %1686
        %v1688 = vsel %vm1657, %v1651, -inf
        %1689 = vmax.xlane.f32.xlu0 %v1688
        %v1690 = vpop.xlane.xlu0 %1689
        %v1691 = vsel %vm1657, %v1652, -inf
        %1692 = vmax.xlane.f32.xlu0 %v1691
        %v1693 = vpop.xlane.xlu0 %1692
        %v1694 = vsel %vm1657, %v1653, -inf
        %1695 = vmax.xlane.f32.xlu0 %v1694
        %v1696 = vpop.xlane.xlu0 %1695
        %v1697 = vsel %vm1657, %v1654, -inf
        %1698 = vmax.xlane.f32.xlu0 %v1697
        %v1699 = vpop.xlane.xlu0 %1698
        %v1700 = vsel %vm1657, %v1655, -inf
        %1701 = vmax.xlane.f32.xlu0 %v1700
        %v1702 = vpop.xlane.xlu0 %1701
        %v1703 = vsel %vm1657, %v1656, -inf
        %1704 = vmax.xlane.f32.xlu0 %v1703
        %v1705 = vpop.xlane.xlu0 %1704
        %v1706 = vsub.f32 %v1641, %v1660
        %v1707 = vsub.f32 %v1642, %v1663
        %v1708 = vsub.f32 %v1643, %v1666
        %v1709 = vsub.f32 %v1644, %v1669
        %v1710 = vsub.f32 %v1645, %v1672
        %v1711 = vsub.f32 %v1646, %v1675
        %v1712 = vsub.f32 %v1647, %v1678
        %v1713 = vsub.f32 %v1648, %v1681
        %v1714 = vsub.f32 %v1649, %v1684
        %v1715 = vsub.f32 %v1650, %v1687
        %v1716 = vsub.f32 %v1651, %v1690
        %v1717 = vsub.f32 %v1652, %v1693
        %v1718 = vsub.f32 %v1653, %v1696
        %v1719 = vsub.f32 %v1654, %v1699
        %v1720 = vsub.f32 %v1655, %v1702
        %v1721 = vsub.f32 %v1656, %v1705
        %v1722 = vmul.f32 %v1706, 1.442695
        %v1723 = vpow.pop %v1722
        %v1724 = vmul.f32 %v1707, 1.442695
        %v1725 = vpow.pop %v1724
        %v1726 = vmul.f32 %v1708, 1.442695
        %v1727 = vpow.pop %v1726
        %v1728 = vmul.f32 %v1709, 1.442695
        %v1729 = vpow.pop %v1728
        %v1730 = vmul.f32 %v1710, 1.442695
        %v1731 = vpow.pop %v1730
        %v1732 = vmul.f32 %v1711, 1.442695
        %v1733 = vpow.pop %v1732
        %v1734 = vmul.f32 %v1712, 1.442695
        %v1735 = vpow.pop %v1734
        %v1736 = vmul.f32 %v1713, 1.442695
        %v1737 = vpow.pop %v1736
        %v1738 = vmul.f32 %v1714, 1.442695
        %v1739 = vpow.pop %v1738
        %v1740 = vmul.f32 %v1715, 1.442695
        %v1741 = vpow.pop %v1740
        %v1742 = vmul.f32 %v1716, 1.442695
        %v1743 = vpow.pop %v1742
        %v1744 = vmul.f32 %v1717, 1.442695
        %v1745 = vpow.pop %v1744
        %v1746 = vmul.f32 %v1718, 1.442695
        %v1747 = vpow.pop %v1746
        %v1748 = vmul.f32 %v1719, 1.442695
        %v1749 = vpow.pop %v1748
        %v1750 = vmul.f32 %v1720, 1.442695
        %v1751 = vpow.pop %v1750
        %v1752 = vmul.f32 %v1721, 1.442695
        %v1753 = vpow.pop %v1752
        %v1754 = vsel %vm1657, %v1723, 0.0
        %1755 = vadd.xlane.f32.xlu0 %v1754
        %v1756 = vpop.xlane.xlu0 %1755
        %v1757 = vsel %vm1657, %v1725, 0.0
        %1758 = vadd.xlane.f32.xlu0 %v1757
        %v1759 = vpop.xlane.xlu0 %1758
        %v1760 = vsel %vm1657, %v1727, 0.0
        %1761 = vadd.xlane.f32.xlu0 %v1760
        %v1762 = vpop.xlane.xlu0 %1761
        %v1763 = vsel %vm1657, %v1729, 0.0
        %1764 = vadd.xlane.f32.xlu0 %v1763
        %v1765 = vpop.xlane.xlu0 %1764
        %v1766 = vsel %vm1657, %v1731, 0.0
        %1767 = vadd.xlane.f32.xlu0 %v1766
        %v1768 = vpop.xlane.xlu0 %1767
        %v1769 = vsel %vm1657, %v1733, 0.0
        %1770 = vadd.xlane.f32.xlu0 %v1769
        %v1771 = vpop.xlane.xlu0 %1770
        %v1772 = vsel %vm1657, %v1735, 0.0
        %1773 = vadd.xlane.f32.xlu0 %v1772
        %v1774 = vpop.xlane.xlu0 %1773
        %v1775 = vsel %vm1657, %v1737, 0.0
        %1776 = vadd.xlane.f32.xlu0 %v1775
        %v1777 = vpop.xlane.xlu0 %1776
        %v1778 = vsel %vm1657, %v1739, 0.0
        %1779 = vadd.xlane.f32.xlu0 %v1778
        %v1780 = vpop.xlane.xlu0 %1779
        %v1781 = vsel %vm1657, %v1741, 0.0
        %1782 = vadd.xlane.f32.xlu0 %v1781
        %v1783 = vpop.xlane.xlu0 %1782
        %v1784 = vsel %vm1657, %v1743, 0.0
        %1785 = vadd.xlane.f32.xlu0 %v1784
        %v1786 = vpop.xlane.xlu0 %1785
        %v1787 = vsel %vm1657, %v1745, 0.0
        %1788 = vadd.xlane.f32.xlu0 %v1787
        %v1789 = vpop.xlane.xlu0 %1788
        %v1790 = vsel %vm1657, %v1747, 0.0
        %1791 = vadd.xlane.f32.xlu0 %v1790
        %v1792 = vpop.xlane.xlu0 %1791
        %v1793 = vsel %vm1657, %v1749, 0.0
        %1794 = vadd.xlane.f32.xlu0 %v1793
        %v1795 = vpop.xlane.xlu0 %1794
        %v1796 = vsel %vm1657, %v1751, 0.0
        %1797 = vadd.xlane.f32.xlu0 %v1796
        %v1798 = vpop.xlane.xlu0 %1797
        %v1799 = vsel %vm1657, %v1753, 0.0
        %1800 = vadd.xlane.f32.xlu0 %v1799
        %v1801 = vpop.xlane.xlu0 %1800
        %v1802 = vrcp.pop %v1756
        %v1803 = vrcp.pop %v1759
        %v1804 = vrcp.pop %v1762
        %v1805 = vrcp.pop %v1765
        %v1806 = vrcp.pop %v1768
        %v1807 = vrcp.pop %v1771
        %v1808 = vrcp.pop %v1774
        %v1809 = vrcp.pop %v1777
        %v1810 = vrcp.pop %v1780
        %v1811 = vrcp.pop %v1783
        %v1812 = vrcp.pop %v1786
        %v1813 = vrcp.pop %v1789
        %v1814 = vrcp.pop %v1792
        %v1815 = vrcp.pop %v1795
        %v1816 = vrcp.pop %v1798
        %v1817 = vrcp.pop %v1801
        %v1818 = vmul.f32 %v1723, %v1802
        %v1819 = vmul.f32 %v1725, %v1803
        %v1820 = vmul.f32 %v1727, %v1804
        %v1821 = vmul.f32 %v1729, %v1805
        %v1822 = vmul.f32 %v1731, %v1806
        %v1823 = vmul.f32 %v1733, %v1807
        %v1824 = vmul.f32 %v1735, %v1808
        %v1825 = vmul.f32 %v1737, %v1809
        %v1826 = vmul.f32 %v1739, %v1810
        %v1827 = vmul.f32 %v1741, %v1811
        %v1828 = vmul.f32 %v1743, %v1812
        %v1829 = vmul.f32 %v1745, %v1813
        %v1830 = vmul.f32 %v1747, %v1814
        %v1831 = vmul.f32 %v1749, %v1815
        %v1832 = vmul.f32 %v1751, %v1816
        %v1833 = vmul.f32 %v1753, %v1817
        %1834 = vrot.lane.b32.xlu0 %v882, 96
        %v1835 = vpop.permute.xlu0 %1834
        %1836 = vrot.lane.b32.xlu0 %v885, 96
        %v1837 = vpop.permute.xlu0 %1836
        %v1841 = vsel %vm1657, %v1818, 0
        %v1844 = vsel %vm1657, %v1819, 0
        %1846 = vmatprep.subr.mxu0 0.0
        %1847 = vmatpush1.msra.mxu0 %v1835
        %1848 = vmatprep.subr.mxu0 0.0
        %1849 = vmatpush1.msra.mxu0 %v1837
        %1850 = vmatprep.subr.mxu0 0.0
        %1851 = vmatpush1.msra.mxu0 0.0
        %1852 = vmatprep.subr.mxu0 0.0
        %1853 = vmatpush1.msra.mxu0 0.0
        %1854 = vmatprep.subr.mxu0 0.0
        %1855 = vmatpush1.msra.mxu0 0.0
        %1856 = vmatprep.subr.mxu0 0.0
        %1857 = vmatpush1.msra.mxu0 0.0
        %1858 = vmatprep.subr.mxu0 0.0
        %1859 = vmatpush1.msra.mxu0 0.0
        %1860 = vmatprep.subr.mxu0 0.0
        %1861 = vmatpush1.msra.mxu0 0.0
        %1862 = vmatprep.subr.mxu0 0.0
        %1863 = vmatpush1.msra.mxu0 0.0
        %1864 = vmatprep.subr.mxu0 0.0
        %1865 = vmatpush1.msra.mxu0 0.0
        %1866 = vmatprep.subr.mxu0 0.0
        %1867 = vmatpush1.msra.mxu0 0.0
        %1868 = vmatprep.subr.mxu0 0.0
        %1869 = vmatpush1.msra.mxu0 0.0
        %1870 = vmatprep.subr.mxu0 0.0
        %1871 = vmatpush1.msra.mxu0 0.0
        %1872 = vmatprep.subr.mxu0 0.0
        %1873 = vmatpush1.msra.mxu0 0.0
        %1874 = vmatprep.subr.mxu0 0.0
        %1875 = vmatpush1.msra.mxu0 0.0
        %1876 = vmatprep.subr.mxu0 0.0
        %1877 = vmatpush1.msra.mxu0 0.0
        %1878 = vmatprep.subr.mxu0 0.0
        %1879 = vmatpush1.msra.mxu0 0.0
        %1880 = vmatprep.subr.mxu0 0.0
        %1881 = vmatpush1.msra.mxu0 0.0
        %1882 = vmatprep.subr.mxu0 0.0
        %1883 = vmatpush1.msra.mxu0 0.0
        %1884 = vmatprep.subr.mxu0 0.0
        %1885 = vmatpush1.msra.mxu0 0.0
        %1886 = vmatprep.subr.mxu0 0.0
        %1887 = vmatpush1.msra.mxu0 0.0
        %1888 = vmatprep.subr.mxu0 0.0
        %1889 = vmatpush1.msra.mxu0 0.0
        %1890 = vmatprep.subr.mxu0 0.0
        %1891 = vmatpush1.msra.mxu0 0.0
        %1892 = vmatprep.subr.mxu0 0.0
        %1893 = vmatpush1.msra.mxu0 0.0
        %1894 = vmatprep.subr.mxu0 0.0
        %1895 = vmatpush1.msra.mxu0 0.0
        %1896 = vmatprep.subr.mxu0 0.0
        %1897 = vmatpush1.msra.mxu0 0.0
        %1898 = vmatprep.subr.mxu0 0.0
        %1899 = vmatpush1.msra.mxu0 0.0
        %1900 = vmatprep.subr.mxu0 0.0
        %1901 = vmatpush1.msra.mxu0 0.0
        %1902 = vmatprep.subr.mxu0 0.0
        %1903 = vmatpush1.msra.mxu0 0.0
        %1904 = vmatprep.subr.mxu0 0.0
        %1905 = vmatpush1.msra.mxu0 0.0
        %1906 = vmatprep.subr.mxu0 0.0
        %1907 = vmatpush1.msra.mxu0 0.0
        %1908 = vmatprep.subr.mxu0 0.0
        %1909 = vmatpush1.msra.mxu0 0.0
        %1910 = vmatprep.mubr.f32.mxu0 0.0
        %1911 = vmatmul.mubr.f32.gmra.mrb[0].mxu0 %v1841
        %v1912 = vpop.f32.mrb[0].mxu0
        %v1913 = vadd.f32 0.0, %v1912
        %v1914 = vpop.f32.mrb[0].mxu0
        %1915 = vmatprep.mubr.f32.mxu0 0.0
        %1916 = vmatmul.mubr.f32.gmra.mrb[0].mxu0 %v1844
        %v1917 = vpop.f32.mrb[0].mxu0
        %v1918 = vadd.f32 0.0, %v1917
        %v1919 = vpop.f32.mrb[0].mxu0
        %1920 = vdwg.mxu0
        %1921 = vrot.lane.b32.xlu0 %v890, 96
        %v1922 = vpop.permute.xlu0 %1921
        %1923 = vrot.lane.b32.xlu0 %v893, 96
        %v1924 = vpop.permute.xlu0 %1923
        %v1928 = vsel %vm1657, %v1820, 0
        %v1931 = vsel %vm1657, %v1821, 0
        %1933 = vmatprep.subr.mxu0 0.0
        %1934 = vmatpush1.msra.mxu0 %v1922
        %1935 = vmatprep.subr.mxu0 0.0
        %1936 = vmatpush1.msra.mxu0 %v1924
        %1937 = vmatprep.subr.mxu0 0.0
        %1938 = vmatpush1.msra.mxu0 0.0
        %1939 = vmatprep.subr.mxu0 0.0
        %1940 = vmatpush1.msra.mxu0 0.0
        %1941 = vmatprep.subr.mxu0 0.0
        %1942 = vmatpush1.msra.mxu0 0.0
        %1943 = vmatprep.subr.mxu0 0.0
        %1944 = vmatpush1.msra.mxu0 0.0
        %1945 = vmatprep.subr.mxu0 0.0
        %1946 = vmatpush1.msra.mxu0 0.0
        %1947 = vmatprep.subr.mxu0 0.0
        %1948 = vmatpush1.msra.mxu0 0.0
        %1949 = vmatprep.subr.mxu0 0.0
        %1950 = vmatpush1.msra.mxu0 0.0
        %1951 = vmatprep.subr.mxu0 0.0
        %1952 = vmatpush1.msra.mxu0 0.0
        %1953 = vmatprep.subr.mxu0 0.0
        %1954 = vmatpush1.msra.mxu0 0.0
        %1955 = vmatprep.subr.mxu0 0.0
        %1956 = vmatpush1.msra.mxu0 0.0
        %1957 = vmatprep.subr.mxu0 0.0
        %1958 = vmatpush1.msra.mxu0 0.0
        %1959 = vmatprep.subr.mxu0 0.0
        %1960 = vmatpush1.msra.mxu0 0.0
        %1961 = vmatprep.subr.mxu0 0.0
        %1962 = vmatpush1.msra.mxu0 0.0
        %1963 = vmatprep.subr.mxu0 0.0
        %1964 = vmatpush1.msra.mxu0 0.0
        %1965 = vmatprep.subr.mxu0 0.0
        %1966 = vmatpush1.msra.mxu0 0.0
        %1967 = vmatprep.subr.mxu0 0.0
        %1968 = vmatpush1.msra.mxu0 0.0
        %1969 = vmatprep.subr.mxu0 0.0
        %1970 = vmatpush1.msra.mxu0 0.0
        %1971 = vmatprep.subr.mxu0 0.0
        %1972 = vmatpush1.msra.mxu0 0.0
        %1973 = vmatprep.subr.mxu0 0.0
        %1974 = vmatpush1.msra.mxu0 0.0
        %1975 = vmatprep.subr.mxu0 0.0
        %1976 = vmatpush1.msra.mxu0 0.0
        %1977 = vmatprep.subr.mxu0 0.0
        %1978 = vmatpush1.msra.mxu0 0.0
        %1979 = vmatprep.subr.mxu0 0.0
        %1980 = vmatpush1.msra.mxu0 0.0
        %1981 = vmatprep.subr.mxu0 0.0
        %1982 = vmatpush1.msra.mxu0 0.0
        %1983 = vmatprep.subr.mxu0 0.0
        %1984 = vmatpush1.msra.mxu0 0.0
        %1985 = vmatprep.subr.mxu0 0.0
        %1986 = vmatpush1.msra.mxu0 0.0
        %1987 = vmatprep.subr.mxu0 0.0
        %1988 = vmatpush1.msra.mxu0 0.0
        %1989 = vmatprep.subr.mxu0 0.0
        %1990 = vmatpush1.msra.mxu0 0.0
        %1991 = vmatprep.subr.mxu0 0.0
        %1992 = vmatpush1.msra.mxu0 0.0
        %1993 = vmatprep.subr.mxu0 0.0
        %1994 = vmatpush1.msra.mxu0 0.0
        %1995 = vmatprep.subr.mxu0 0.0
        %1996 = vmatpush1.msra.mxu0 0.0
        %1997 = vmatprep.mubr.f32.mxu0 0.0
        %1998 = vmatmul.mubr.f32.gmra.mrb[0].mxu0 %v1928
        %v1999 = vpop.f32.mrb[0].mxu0
        %v2000 = vadd.f32 0.0, %v1999
        %v2001 = vpop.f32.mrb[0].mxu0
        %2002 = vmatprep.mubr.f32.mxu0 0.0
        %2003 = vmatmul.mubr.f32.gmra.mrb[0].mxu0 %v1931
        %v2004 = vpop.f32.mrb[0].mxu0
        %v2005 = vadd.f32 0.0, %v2004
        %v2006 = vpop.f32.mrb[0].mxu0
        %2007 = vdwg.mxu0
        %2008 = vrot.lane.b32.xlu0 %v898, 96
        %v2009 = vpop.permute.xlu0 %2008
        %2010 = vrot.lane.b32.xlu0 %v901, 96
        %v2011 = vpop.permute.xlu0 %2010
        %v2015 = vsel %vm1657, %v1822, 0
        %v2018 = vsel %vm1657, %v1823, 0
        %2020 = vmatprep.subr.mxu0 0.0
        %2021 = vmatpush1.msra.mxu0 %v2009
        %2022 = vmatprep.subr.mxu0 0.0
        %2023 = vmatpush1.msra.mxu0 %v2011
        %2024 = vmatprep.subr.mxu0 0.0
        %2025 = vmatpush1.msra.mxu0 0.0
        %2026 = vmatprep.subr.mxu0 0.0
        %2027 = vmatpush1.msra.mxu0 0.0
        %2028 = vmatprep.subr.mxu0 0.0
        %2029 = vmatpush1.msra.mxu0 0.0
        %2030 = vmatprep.subr.mxu0 0.0
        %2031 = vmatpush1.msra.mxu0 0.0
        %2032 = vmatprep.subr.mxu0 0.0
        %2033 = vmatpush1.msra.mxu0 0.0
        %2034 = vmatprep.subr.mxu0 0.0
        %2035 = vmatpush1.msra.mxu0 0.0
        %2036 = vmatprep.subr.mxu0 0.0
        %2037 = vmatpush1.msra.mxu0 0.0
        %2038 = vmatprep.subr.mxu0 0.0
        %2039 = vmatpush1.msra.mxu0 0.0
        %2040 = vmatprep.subr.mxu0 0.0
        %2041 = vmatpush1.msra.mxu0 0.0
        %2042 = vmatprep.subr.mxu0 0.0
        %2043 = vmatpush1.msra.mxu0 0.0
        %2044 = vmatprep.subr.mxu0 0.0
        %2045 = vmatpush1.msra.mxu0 0.0
        %2046 = vmatprep.subr.mxu0 0.0
        %2047 = vmatpush1.msra.mxu0 0.0
        %2048 = vmatprep.subr.mxu0 0.0
        %2049 = vmatpush1.msra.mxu0 0.0
        %2050 = vmatprep.subr.mxu0 0.0
        %2051 = vmatpush1.msra.mxu0 0.0
        %2052 = vmatprep.subr.mxu0 0.0
        %2053 = vmatpush1.msra.mxu0 0.0
        %2054 = vmatprep.subr.mxu0 0.0
        %2055 = vmatpush1.msra.mxu0 0.0
        %2056 = vmatprep.subr.mxu0 0.0
        %2057 = vmatpush1.msra.mxu0 0.0
        %2058 = vmatprep.subr.mxu0 0.0
        %2059 = vmatpush1.msra.mxu0 0.0
        %2060 = vmatprep.subr.mxu0 0.0
        %2061 = vmatpush1.msra.mxu0 0.0
        %2062 = vmatprep.subr.mxu0 0.0
        %2063 = vmatpush1.msra.mxu0 0.0
        %2064 = vmatprep.subr.mxu0 0.0
        %2065 = vmatpush1.msra.mxu0 0.0
        %2066 = vmatprep.subr.mxu0 0.0
        %2067 = vmatpush1.msra.mxu0 0.0
        %2068 = vmatprep.subr.mxu0 0.0
        %2069 = vmatpush1.msra.mxu0 0.0
        %2070 = vmatprep.subr.mxu0 0.0
        %2071 = vmatpush1.msra.mxu0 0.0
        %2072 = vmatprep.subr.mxu0 0.0
        %2073 = vmatpush1.msra.mxu0 0.0
        %2074 = vmatprep.subr.mxu0 0.0
        %2075 = vmatpush1.msra.mxu0 0.0
        %2076 = vmatprep.subr.mxu0 0.0
        %2077 = vmatpush1.msra.mxu0 0.0
        %2078 = vmatprep.subr.mxu0 0.0
        %2079 = vmatpush1.msra.mxu0 0.0
        %2080 = vmatprep.subr.mxu0 0.0
        %2081 = vmatpush1.msra.mxu0 0.0
        %2082 = vmatprep.subr.mxu0 0.0
        %2083 = vmatpush1.msra.mxu0 0.0
        %2084 = vmatprep.mubr.f32.mxu0 0.0
        %2085 = vmatmul.mubr.f32.gmra.mrb[0].mxu0 %v2015
        %v2086 = vpop.f32.mrb[0].mxu0
        %v2087 = vadd.f32 0.0, %v2086
        %v2088 = vpop.f32.mrb[0].mxu0
        %2089 = vmatprep.mubr.f32.mxu0 0.0
        %2090 = vmatmul.mubr.f32.gmra.mrb[0].mxu0 %v2018
        %v2091 = vpop.f32.mrb[0].mxu0
        %v2092 = vadd.f32 0.0, %v2091
        %v2093 = vpop.f32.mrb[0].mxu0
        %2094 = vdwg.mxu0
        %2095 = vrot.lane.b32.xlu0 %v906, 96
        %v2096 = vpop.permute.xlu0 %2095
        %2097 = vrot.lane.b32.xlu0 %v909, 96
        %v2098 = vpop.permute.xlu0 %2097
        %v2102 = vsel %vm1657, %v1824, 0
        %v2105 = vsel %vm1657, %v1825, 0
        %2107 = vmatprep.subr.mxu0 0.0
        %2108 = vmatpush1.msra.mxu0 %v2096
        %2109 = vmatprep.subr.mxu0 0.0
        %2110 = vmatpush1.msra.mxu0 %v2098
        %2111 = vmatprep.subr.mxu0 0.0
        %2112 = vmatpush1.msra.mxu0 0.0
        %2113 = vmatprep.subr.mxu0 0.0
        %2114 = vmatpush1.msra.mxu0 0.0
        %2115 = vmatprep.subr.mxu0 0.0
        %2116 = vmatpush1.msra.mxu0 0.0
        %2117 = vmatprep.subr.mxu0 0.0
        %2118 = vmatpush1.msra.mxu0 0.0
        %2119 = vmatprep.subr.mxu0 0.0
        %2120 = vmatpush1.msra.mxu0 0.0
        %2121 = vmatprep.subr.mxu0 0.0
        %2122 = vmatpush1.msra.mxu0 0.0
        %2123 = vmatprep.subr.mxu0 0.0
        %2124 = vmatpush1.msra.mxu0 0.0
        %2125 = vmatprep.subr.mxu0 0.0
        %2126 = vmatpush1.msra.mxu0 0.0
        %2127 = vmatprep.subr.mxu0 0.0
        %2128 = vmatpush1.msra.mxu0 0.0
        %2129 = vmatprep.subr.mxu0 0.0
        %2130 = vmatpush1.msra.mxu0 0.0
        %2131 = vmatprep.subr.mxu0 0.0
        %2132 = vmatpush1.msra.mxu0 0.0
        %2133 = vmatprep.subr.mxu0 0.0
        %2134 = vmatpush1.msra.mxu0 0.0
        %2135 = vmatprep.subr.mxu0 0.0
        %2136 = vmatpush1.msra.mxu0 0.0
        %2137 = vmatprep.subr.mxu0 0.0
        %2138 = vmatpush1.msra.mxu0 0.0
        %2139 = vmatprep.subr.mxu0 0.0
        %2140 = vmatpush1.msra.mxu0 0.0
        %2141 = vmatprep.subr.mxu0 0.0
        %2142 = vmatpush1.msra.mxu0 0.0
        %2143 = vmatprep.subr.mxu0 0.0
        %2144 = vmatpush1.msra.mxu0 0.0
        %2145 = vmatprep.subr.mxu0 0.0
        %2146 = vmatpush1.msra.mxu0 0.0
        %2147 = vmatprep.subr.mxu0 0.0
        %2148 = vmatpush1.msra.mxu0 0.0
        %2149 = vmatprep.subr.mxu0 0.0
        %2150 = vmatpush1.msra.mxu0 0.0
        %2151 = vmatprep.subr.mxu0 0.0
        %2152 = vmatpush1.msra.mxu0 0.0
        %2153 = vmatprep.subr.mxu0 0.0
        %2154 = vmatpush1.msra.mxu0 0.0
        %2155 = vmatprep.subr.mxu0 0.0
        %2156 = vmatpush1.msra.mxu0 0.0
        %2157 = vmatprep.subr.mxu0 0.0
        %2158 = vmatpush1.msra.mxu0 0.0
        %2159 = vmatprep.subr.mxu0 0.0
        %2160 = vmatpush1.msra.mxu0 0.0
        %2161 = vmatprep.subr.mxu0 0.0
        %2162 = vmatpush1.msra.mxu0 0.0
        %2163 = vmatprep.subr.mxu0 0.0
        %2164 = vmatpush1.msra.mxu0 0.0
        %2165 = vmatprep.subr.mxu0 0.0
        %2166 = vmatpush1.msra.mxu0 0.0
        %2167 = vmatprep.subr.mxu0 0.0
        %2168 = vmatpush1.msra.mxu0 0.0
        %2169 = vmatprep.subr.mxu0 0.0
        %2170 = vmatpush1.msra.mxu0 0.0
        %2171 = vmatprep.mubr.f32.mxu0 0.0
        %2172 = vmatmul.mubr.f32.gmra.mrb[0].mxu0 %v2102
        %v2173 = vpop.f32.mrb[0].mxu0
        %v2174 = vadd.f32 0.0, %v2173
        %v2175 = vpop.f32.mrb[0].mxu0
        %2176 = vmatprep.mubr.f32.mxu0 0.0
        %2177 = vmatmul.mubr.f32.gmra.mrb[0].mxu0 %v2105
        %v2178 = vpop.f32.mrb[0].mxu0
        %v2179 = vadd.f32 0.0, %v2178
        %v2180 = vpop.f32.mrb[0].mxu0
        %2181 = vdwg.mxu0
        %2182 = vrot.lane.b32.xlu0 %v914, 96
        %v2183 = vpop.permute.xlu0 %2182
        %2184 = vrot.lane.b32.xlu0 %v917, 96
        %v2185 = vpop.permute.xlu0 %2184
        %v2189 = vsel %vm1657, %v1826, 0
        %v2192 = vsel %vm1657, %v1827, 0
        %2194 = vmatprep.subr.mxu0 0.0
        %2195 = vmatpush1.msra.mxu0 %v2183
        %2196 = vmatprep.subr.mxu0 0.0
        %2197 = vmatpush1.msra.mxu0 %v2185
        %2198 = vmatprep.subr.mxu0 0.0
        %2199 = vmatpush1.msra.mxu0 0.0
        %2200 = vmatprep.subr.mxu0 0.0
        %2201 = vmatpush1.msra.mxu0 0.0
        %2202 = vmatprep.subr.mxu0 0.0
        %2203 = vmatpush1.msra.mxu0 0.0
        %2204 = vmatprep.subr.mxu0 0.0
        %2205 = vmatpush1.msra.mxu0 0.0
        %2206 = vmatprep.subr.mxu0 0.0
        %2207 = vmatpush1.msra.mxu0 0.0
        %2208 = vmatprep.subr.mxu0 0.0
        %2209 = vmatpush1.msra.mxu0 0.0
        %2210 = vmatprep.subr.mxu0 0.0
        %2211 = vmatpush1.msra.mxu0 0.0
        %2212 = vmatprep.subr.mxu0 0.0
        %2213 = vmatpush1.msra.mxu0 0.0
        %2214 = vmatprep.subr.mxu0 0.0
        %2215 = vmatpush1.msra.mxu0 0.0
        %2216 = vmatprep.subr.mxu0 0.0
        %2217 = vmatpush1.msra.mxu0 0.0
        %2218 = vmatprep.subr.mxu0 0.0
        %2219 = vmatpush1.msra.mxu0 0.0
        %2220 = vmatprep.subr.mxu0 0.0
        %2221 = vmatpush1.msra.mxu0 0.0
        %2222 = vmatprep.subr.mxu0 0.0
        %2223 = vmatpush1.msra.mxu0 0.0
        %2224 = vmatprep.subr.mxu0 0.0
        %2225 = vmatpush1.msra.mxu0 0.0
        %2226 = vmatprep.subr.mxu0 0.0
        %2227 = vmatpush1.msra.mxu0 0.0
        %2228 = vmatprep.subr.mxu0 0.0
        %2229 = vmatpush1.msra.mxu0 0.0
        %2230 = vmatprep.subr.mxu0 0.0
        %2231 = vmatpush1.msra.mxu0 0.0
        %2232 = vmatprep.subr.mxu0 0.0
        %2233 = vmatpush1.msra.mxu0 0.0
        %2234 = vmatprep.subr.mxu0 0.0
        %2235 = vmatpush1.msra.mxu0 0.0
        %2236 = vmatprep.subr.mxu0 0.0
        %2237 = vmatpush1.msra.mxu0 0.0
        %2238 = vmatprep.subr.mxu0 0.0
        %2239 = vmatpush1.msra.mxu0 0.0
        %2240 = vmatprep.subr.mxu0 0.0
        %2241 = vmatpush1.msra.mxu0 0.0
        %2242 = vmatprep.subr.mxu0 0.0
        %2243 = vmatpush1.msra.mxu0 0.0
        %2244 = vmatprep.subr.mxu0 0.0
        %2245 = vmatpush1.msra.mxu0 0.0
        %2246 = vmatprep.subr.mxu0 0.0
        %2247 = vmatpush1.msra.mxu0 0.0
        %2248 = vmatprep.subr.mxu0 0.0
        %2249 = vmatpush1.msra.mxu0 0.0
        %2250 = vmatprep.subr.mxu0 0.0
        %2251 = vmatpush1.msra.mxu0 0.0
        %2252 = vmatprep.subr.mxu0 0.0
        %2253 = vmatpush1.msra.mxu0 0.0
        %2254 = vmatprep.subr.mxu0 0.0
        %2255 = vmatpush1.msra.mxu0 0.0
        %2256 = vmatprep.subr.mxu0 0.0
        %2257 = vmatpush1.msra.mxu0 0.0
        %2258 = vmatprep.mubr.f32.mxu0 0.0
        %2259 = vmatmul.mubr.f32.gmra.mrb[0].mxu0 %v2189
        %v2260 = vpop.f32.mrb[0].mxu0
        %v2261 = vadd.f32 0.0, %v2260
        %v2262 = vpop.f32.mrb[0].mxu0
        %2263 = vmatprep.mubr.f32.mxu0 0.0
        %2264 = vmatmul.mubr.f32.gmra.mrb[0].mxu0 %v2192
        %v2265 = vpop.f32.mrb[0].mxu0
        %v2266 = vadd.f32 0.0, %v2265
        %v2267 = vpop.f32.mrb[0].mxu0
        %2268 = vdwg.mxu0
        %2269 = vrot.lane.b32.xlu0 %v922, 96
        %v2270 = vpop.permute.xlu0 %2269
        %2271 = vrot.lane.b32.xlu0 %v925, 96
        %v2272 = vpop.permute.xlu0 %2271
        %v2276 = vsel %vm1657, %v1828, 0
        %v2279 = vsel %vm1657, %v1829, 0
        %2281 = vmatprep.subr.mxu0 0.0
        %2282 = vmatpush1.msra.mxu0 %v2270
        %2283 = vmatprep.subr.mxu0 0.0
        %2284 = vmatpush1.msra.mxu0 %v2272
        %2285 = vmatprep.subr.mxu0 0.0
        %2286 = vmatpush1.msra.mxu0 0.0
        %2287 = vmatprep.subr.mxu0 0.0
        %2288 = vmatpush1.msra.mxu0 0.0
        %2289 = vmatprep.subr.mxu0 0.0
        %2290 = vmatpush1.msra.mxu0 0.0
        %2291 = vmatprep.subr.mxu0 0.0
        %2292 = vmatpush1.msra.mxu0 0.0
        %2293 = vmatprep.subr.mxu0 0.0
        %2294 = vmatpush1.msra.mxu0 0.0
        %2295 = vmatprep.subr.mxu0 0.0
        %2296 = vmatpush1.msra.mxu0 0.0
        %2297 = vmatprep.subr.mxu0 0.0
        %2298 = vmatpush1.msra.mxu0 0.0
        %2299 = vmatprep.subr.mxu0 0.0
        %2300 = vmatpush1.msra.mxu0 0.0
        %2301 = vmatprep.subr.mxu0 0.0
        %2302 = vmatpush1.msra.mxu0 0.0
        %2303 = vmatprep.subr.mxu0 0.0
        %2304 = vmatpush1.msra.mxu0 0.0
        %2305 = vmatprep.subr.mxu0 0.0
        %2306 = vmatpush1.msra.mxu0 0.0
        %2307 = vmatprep.subr.mxu0 0.0
        %2308 = vmatpush1.msra.mxu0 0.0
        %2309 = vmatprep.subr.mxu0 0.0
        %2310 = vmatpush1.msra.mxu0 0.0
        %2311 = vmatprep.subr.mxu0 0.0
        %2312 = vmatpush1.msra.mxu0 0.0
        %2313 = vmatprep.subr.mxu0 0.0
        %2314 = vmatpush1.msra.mxu0 0.0
        %2315 = vmatprep.subr.mxu0 0.0
        %2316 = vmatpush1.msra.mxu0 0.0
        %2317 = vmatprep.subr.mxu0 0.0
        %2318 = vmatpush1.msra.mxu0 0.0
        %2319 = vmatprep.subr.mxu0 0.0
        %2320 = vmatpush1.msra.mxu0 0.0
        %2321 = vmatprep.subr.mxu0 0.0
        %2322 = vmatpush1.msra.mxu0 0.0
        %2323 = vmatprep.subr.mxu0 0.0
        %2324 = vmatpush1.msra.mxu0 0.0
        %2325 = vmatprep.subr.mxu0 0.0
        %2326 = vmatpush1.msra.mxu0 0.0
        %2327 = vmatprep.subr.mxu0 0.0
        %2328 = vmatpush1.msra.mxu0 0.0
        %2329 = vmatprep.subr.mxu0 0.0
        %2330 = vmatpush1.msra.mxu0 0.0
        %2331 = vmatprep.subr.mxu0 0.0
        %2332 = vmatpush1.msra.mxu0 0.0
        %2333 = vmatprep.subr.mxu0 0.0
        %2334 = vmatpush1.msra.mxu0 0.0
        %2335 = vmatprep.subr.mxu0 0.0
        %2336 = vmatpush1.msra.mxu0 0.0
        %2337 = vmatprep.subr.mxu0 0.0
        %2338 = vmatpush1.msra.mxu0 0.0
        %2339 = vmatprep.subr.mxu0 0.0
        %2340 = vmatpush1.msra.mxu0 0.0
        %2341 = vmatprep.subr.mxu0 0.0
        %2342 = vmatpush1.msra.mxu0 0.0
        %2343 = vmatprep.subr.mxu0 0.0
        %2344 = vmatpush1.msra.mxu0 0.0
        %2345 = vmatprep.mubr.f32.mxu0 0.0
        %2346 = vmatmul.mubr.f32.gmra.mrb[0].mxu0 %v2276
        %v2347 = vpop.f32.mrb[0].mxu0
        %v2348 = vadd.f32 0.0, %v2347
        %v2349 = vpop.f32.mrb[0].mxu0
        %2350 = vmatprep.mubr.f32.mxu0 0.0
        %2351 = vmatmul.mubr.f32.gmra.mrb[0].mxu0 %v2279
        %v2352 = vpop.f32.mrb[0].mxu0
        %v2353 = vadd.f32 0.0, %v2352
        %v2354 = vpop.f32.mrb[0].mxu0
        %2355 = vdwg.mxu0
        %2356 = vrot.lane.b32.xlu0 %v930, 96
        %v2357 = vpop.permute.xlu0 %2356
        %2358 = vrot.lane.b32.xlu0 %v933, 96
        %v2359 = vpop.permute.xlu0 %2358
        %v2363 = vsel %vm1657, %v1830, 0
        %v2366 = vsel %vm1657, %v1831, 0
        %2368 = vmatprep.subr.mxu0 0.0
        %2369 = vmatpush1.msra.mxu0 %v2357
        %2370 = vmatprep.subr.mxu0 0.0
        %2371 = vmatpush1.msra.mxu0 %v2359
        %2372 = vmatprep.subr.mxu0 0.0
        %2373 = vmatpush1.msra.mxu0 0.0
        %2374 = vmatprep.subr.mxu0 0.0
        %2375 = vmatpush1.msra.mxu0 0.0
        %2376 = vmatprep.subr.mxu0 0.0
        %2377 = vmatpush1.msra.mxu0 0.0
        %2378 = vmatprep.subr.mxu0 0.0
        %2379 = vmatpush1.msra.mxu0 0.0
        %2380 = vmatprep.subr.mxu0 0.0
        %2381 = vmatpush1.msra.mxu0 0.0
        %2382 = vmatprep.subr.mxu0 0.0
        %2383 = vmatpush1.msra.mxu0 0.0
        %2384 = vmatprep.subr.mxu0 0.0
        %2385 = vmatpush1.msra.mxu0 0.0
        %2386 = vmatprep.subr.mxu0 0.0
        %2387 = vmatpush1.msra.mxu0 0.0
        %2388 = vmatprep.subr.mxu0 0.0
        %2389 = vmatpush1.msra.mxu0 0.0
        %2390 = vmatprep.subr.mxu0 0.0
        %2391 = vmatpush1.msra.mxu0 0.0
        %2392 = vmatprep.subr.mxu0 0.0
        %2393 = vmatpush1.msra.mxu0 0.0
        %2394 = vmatprep.subr.mxu0 0.0
        %2395 = vmatpush1.msra.mxu0 0.0
        %2396 = vmatprep.subr.mxu0 0.0
        %2397 = vmatpush1.msra.mxu0 0.0
        %2398 = vmatprep.subr.mxu0 0.0
        %2399 = vmatpush1.msra.mxu0 0.0
        %2400 = vmatprep.subr.mxu0 0.0
        %2401 = vmatpush1.msra.mxu0 0.0
        %2402 = vmatprep.subr.mxu0 0.0
        %2403 = vmatpush1.msra.mxu0 0.0
        %2404 = vmatprep.subr.mxu0 0.0
        %2405 = vmatpush1.msra.mxu0 0.0
        %2406 = vmatprep.subr.mxu0 0.0
        %2407 = vmatpush1.msra.mxu0 0.0
        %2408 = vmatprep.subr.mxu0 0.0
        %2409 = vmatpush1.msra.mxu0 0.0
        %2410 = vmatprep.subr.mxu0 0.0
        %2411 = vmatpush1.msra.mxu0 0.0
        %2412 = vmatprep.subr.mxu0 0.0
        %2413 = vmatpush1.msra.mxu0 0.0
        %2414 = vmatprep.subr.mxu0 0.0
        %2415 = vmatpush1.msra.mxu0 0.0
        %2416 = vmatprep.subr.mxu0 0.0
        %2417 = vmatpush1.msra.mxu0 0.0
        %2418 = vmatprep.subr.mxu0 0.0
        %2419 = vmatpush1.msra.mxu0 0.0
        %2420 = vmatprep.subr.mxu0 0.0
        %2421 = vmatpush1.msra.mxu0 0.0
        %2422 = vmatprep.subr.mxu0 0.0
        %2423 = vmatpush1.msra.mxu0 0.0
        %2424 = vmatprep.subr.mxu0 0.0
        %2425 = vmatpush1.msra.mxu0 0.0
        %2426 = vmatprep.subr.mxu0 0.0
        %2427 = vmatpush1.msra.mxu0 0.0
        %2428 = vmatprep.subr.mxu0 0.0
        %2429 = vmatpush1.msra.mxu0 0.0
        %2430 = vmatprep.subr.mxu0 0.0
        %2431 = vmatpush1.msra.mxu0 0.0
        %2432 = vmatprep.mubr.f32.mxu0 0.0
        %2433 = vmatmul.mubr.f32.gmra.mrb[0].mxu0 %v2363
        %v2434 = vpop.f32.mrb[0].mxu0
        %v2435 = vadd.f32 0.0, %v2434
        %v2436 = vpop.f32.mrb[0].mxu0
        %2437 = vmatprep.mubr.f32.mxu0 0.0
        %2438 = vmatmul.mubr.f32.gmra.mrb[0].mxu0 %v2366
        %v2439 = vpop.f32.mrb[0].mxu0
        %v2440 = vadd.f32 0.0, %v2439
        %v2441 = vpop.f32.mrb[0].mxu0
        %2442 = vdwg.mxu0
        %2443 = vrot.lane.b32.xlu0 %v938, 96
        %v2444 = vpop.permute.xlu0 %2443
        %2445 = vrot.lane.b32.xlu0 %v941, 96
        %v2446 = vpop.permute.xlu0 %2445
        %v2450 = vsel %vm1657, %v1832, 0
        %v2453 = vsel %vm1657, %v1833, 0
        %2455 = vmatprep.subr.mxu0 0.0
        %2456 = vmatpush1.msra.mxu0 %v2444
        %2457 = vmatprep.subr.mxu0 0.0
        %2458 = vmatpush1.msra.mxu0 %v2446
        %2459 = vmatprep.subr.mxu0 0.0
        %2460 = vmatpush1.msra.mxu0 0.0
        %2461 = vmatprep.subr.mxu0 0.0
        %2462 = vmatpush1.msra.mxu0 0.0
        %2463 = vmatprep.subr.mxu0 0.0
        %2464 = vmatpush1.msra.mxu0 0.0
        %2465 = vmatprep.subr.mxu0 0.0
        %2466 = vmatpush1.msra.mxu0 0.0
        %2467 = vmatprep.subr.mxu0 0.0
        %2468 = vmatpush1.msra.mxu0 0.0
        %2469 = vmatprep.subr.mxu0 0.0
        %2470 = vmatpush1.msra.mxu0 0.0
        %2471 = vmatprep.subr.mxu0 0.0
        %2472 = vmatpush1.msra.mxu0 0.0
        %2473 = vmatprep.subr.mxu0 0.0
        %2474 = vmatpush1.msra.mxu0 0.0
        %2475 = vmatprep.subr.mxu0 0.0
        %2476 = vmatpush1.msra.mxu0 0.0
        %2477 = vmatprep.subr.mxu0 0.0
        %2478 = vmatpush1.msra.mxu0 0.0
        %2479 = vmatprep.subr.mxu0 0.0
        %2480 = vmatpush1.msra.mxu0 0.0
        %2481 = vmatprep.subr.mxu0 0.0
        %2482 = vmatpush1.msra.mxu0 0.0
        %2483 = vmatprep.subr.mxu0 0.0
        %2484 = vmatpush1.msra.mxu0 0.0
        %2485 = vmatprep.subr.mxu0 0.0
        %2486 = vmatpush1.msra.mxu0 0.0
        %2487 = vmatprep.subr.mxu0 0.0
        %2488 = vmatpush1.msra.mxu0 0.0
        %2489 = vmatprep.subr.mxu0 0.0
        %2490 = vmatpush1.msra.mxu0 0.0
        %2491 = vmatprep.subr.mxu0 0.0
        %2492 = vmatpush1.msra.mxu0 0.0
        %2493 = vmatprep.subr.mxu0 0.0
        %2494 = vmatpush1.msra.mxu0 0.0
        %2495 = vmatprep.subr.mxu0 0.0
        %2496 = vmatpush1.msra.mxu0 0.0
        %2497 = vmatprep.subr.mxu0 0.0
        %2498 = vmatpush1.msra.mxu0 0.0
        %2499 = vmatprep.subr.mxu0 0.0
        %2500 = vmatpush1.msra.mxu0 0.0
        %2501 = vmatprep.subr.mxu0 0.0
        %2502 = vmatpush1.msra.mxu0 0.0
        %2503 = vmatprep.subr.mxu0 0.0
        %2504 = vmatpush1.msra.mxu0 0.0
        %2505 = vmatprep.subr.mxu0 0.0
        %2506 = vmatpush1.msra.mxu0 0.0
        %2507 = vmatprep.subr.mxu0 0.0
        %2508 = vmatpush1.msra.mxu0 0.0
        %2509 = vmatprep.subr.mxu0 0.0
        %2510 = vmatpush1.msra.mxu0 0.0
        %2511 = vmatprep.subr.mxu0 0.0
        %2512 = vmatpush1.msra.mxu0 0.0
        %2513 = vmatprep.subr.mxu0 0.0
        %2514 = vmatpush1.msra.mxu0 0.0
        %2515 = vmatprep.subr.mxu0 0.0
        %2516 = vmatpush1.msra.mxu0 0.0
        %2517 = vmatprep.subr.mxu0 0.0
        %2518 = vmatpush1.msra.mxu0 0.0
        %2519 = vmatprep.mubr.f32.mxu0 0.0
        %2520 = vmatmul.mubr.f32.gmra.mrb[0].mxu0 %v2450
        %v2521 = vpop.f32.mrb[0].mxu0
        %v2522 = vadd.f32 0.0, %v2521
        %v2523 = vpop.f32.mrb[0].mxu0
        %2524 = vmatprep.mubr.f32.mxu0 0.0
        %2525 = vmatmul.mubr.f32.gmra.mrb[0].mxu0 %v2453
        %v2526 = vpop.f32.mrb[0].mxu0
        %v2527 = vadd.f32 0.0, %v2526
        %v2528 = vpop.f32.mrb[0].mxu0
        %2529 = vdwg.mxu0
        %2530 = vrot.lane.b32.xlu0 %v737, 120
        %v2531 = vpop.permute.xlu0 %2530
        %2532 = vrot.lane.b32.xlu0 %v740, 120
        %v2533 = vpop.permute.xlu0 %2532
        %2534 = vrot.lane.b32.xlu0 %v882, 120
        %v2535 = vpop.permute.xlu0 %2534
        %2536 = vrot.lane.b32.xlu0 %v885, 120
        %v2537 = vpop.permute.xlu0 %2536
        %v2538 = vsel %vm944, %v2531, 0
        %v2540 = vsel %vm944, %v2533, 0
        %v2542 = vsel %vm944, %v2535, 0
        %v2544 = vsel %vm944, %v2537, 0
        %2546 = vmatprep.subr.mxu0 0.0
        %2547 = vmatpush1.xpose.msra.mxu0 %v2542
        %2548 = vmatprep.subr.mxu0 0.0
        %2549 = vmatpush1.xpose.msra.mxu0 %v2544
        %2550 = vmatprep.subr.mxu0 0.0
        %2551 = vmatpush1.xpose.msra.mxu0 0.0
        %2552 = vmatprep.subr.mxu0 0.0
        %2553 = vmatpush1.xpose.msra.mxu0 0.0
        %2554 = vmatprep.subr.mxu0 0.0
        %2555 = vmatpush1.xpose.msra.mxu0 0.0
        %2556 = vmatprep.subr.mxu0 0.0
        %2557 = vmatpush1.xpose.msra.mxu0 0.0
        %2558 = vmatprep.subr.mxu0 0.0
        %2559 = vmatpush1.xpose.msra.mxu0 0.0
        %2560 = vmatprep.subr.mxu0 0.0
        %2561 = vmatpush1.xpose.msra.mxu0 0.0
        %2562 = vmatprep.subr.mxu0 0.0
        %2563 = vmatpush1.xpose.msra.mxu0 0.0
        %2564 = vmatprep.subr.mxu0 0.0
        %2565 = vmatpush1.xpose.msra.mxu0 0.0
        %2566 = vmatprep.subr.mxu0 0.0
        %2567 = vmatpush1.xpose.msra.mxu0 0.0
        %2568 = vmatprep.subr.mxu0 0.0
        %2569 = vmatpush1.xpose.msra.mxu0 0.0
        %2570 = vmatprep.subr.mxu0 0.0
        %2571 = vmatpush1.xpose.msra.mxu0 0.0
        %2572 = vmatprep.subr.mxu0 0.0
        %2573 = vmatpush1.xpose.msra.mxu0 0.0
        %2574 = vmatprep.subr.mxu0 0.0
        %2575 = vmatpush1.xpose.msra.mxu0 0.0
        %2576 = vmatprep.subr.mxu0 0.0
        %2577 = vmatpush1.xpose.msra.mxu0 0.0
        %2578 = vmatprep.subr.mxu0 0.0
        %2579 = vmatpush1.xpose.msra.mxu0 0.0
        %2580 = vmatprep.subr.mxu0 0.0
        %2581 = vmatpush1.xpose.msra.mxu0 0.0
        %2582 = vmatprep.subr.mxu0 0.0
        %2583 = vmatpush1.xpose.msra.mxu0 0.0
        %2584 = vmatprep.subr.mxu0 0.0
        %2585 = vmatpush1.xpose.msra.mxu0 0.0
        %2586 = vmatprep.subr.mxu0 0.0
        %2587 = vmatpush1.xpose.msra.mxu0 0.0
        %2588 = vmatprep.subr.mxu0 0.0
        %2589 = vmatpush1.xpose.msra.mxu0 0.0
        %2590 = vmatprep.subr.mxu0 0.0
        %2591 = vmatpush1.xpose.msra.mxu0 0.0
        %2592 = vmatprep.subr.mxu0 0.0
        %2593 = vmatpush1.xpose.msra.mxu0 0.0
        %2594 = vmatprep.subr.mxu0 0.0
        %2595 = vmatpush1.xpose.msra.mxu0 0.0
        %2596 = vmatprep.subr.mxu0 0.0
        %2597 = vmatpush1.xpose.msra.mxu0 0.0
        %2598 = vmatprep.subr.mxu0 0.0
        %2599 = vmatpush1.xpose.msra.mxu0 0.0
        %2600 = vmatprep.subr.mxu0 0.0
        %2601 = vmatpush1.xpose.msra.mxu0 0.0
        %2602 = vmatprep.subr.mxu0 0.0
        %2603 = vmatpush1.xpose.msra.mxu0 0.0
        %2604 = vmatprep.subr.mxu0 0.0
        %2605 = vmatpush1.xpose.msra.mxu0 0.0
        %2606 = vmatprep.subr.mxu0 0.0
        %2607 = vmatpush1.xpose.msra.mxu0 0.0
        %2608 = vmatprep.subr.mxu0 0.0
        %2609 = vmatpush1.xpose.msra.mxu0 0.0
        %2610 = vmatprep.mubr.f32.mxu0 0.0
        %2611 = vmatmul.mubr.f32.gmra.mrb[0].mxu0 %v2538
        %v2612 = vpop.f32.mrb[0].mxu0
        %v2613 = vadd.f32 0.0, %v2612
        %v2614 = vpop.f32.mrb[0].mxu0
        %2615 = vmatprep.mubr.f32.mxu0 0.0
        %2616 = vmatmul.mubr.f32.gmra.mrb[0].mxu0 %v2540
        %v2617 = vpop.f32.mrb[0].mxu0
        %v2618 = vadd.f32 0.0, %v2617
        %v2619 = vpop.f32.mrb[0].mxu0
        %2620 = vdwg.mxu0
        %2621 = vrot.lane.b32.xlu0 %v745, 120
        %v2622 = vpop.permute.xlu0 %2621
        %2623 = vrot.lane.b32.xlu0 %v748, 120
        %v2624 = vpop.permute.xlu0 %2623
        %2625 = vrot.lane.b32.xlu0 %v890, 120
        %v2626 = vpop.permute.xlu0 %2625
        %2627 = vrot.lane.b32.xlu0 %v893, 120
        %v2628 = vpop.permute.xlu0 %2627
        %v2629 = vsel %vm944, %v2622, 0
        %v2631 = vsel %vm944, %v2624, 0
        %v2633 = vsel %vm944, %v2626, 0
        %v2635 = vsel %vm944, %v2628, 0
        %2637 = vmatprep.subr.mxu0 0.0
        %2638 = vmatpush1.xpose.msra.mxu0 %v2633
        %2639 = vmatprep.subr.mxu0 0.0
        %2640 = vmatpush1.xpose.msra.mxu0 %v2635
        %2641 = vmatprep.subr.mxu0 0.0
        %2642 = vmatpush1.xpose.msra.mxu0 0.0
        %2643 = vmatprep.subr.mxu0 0.0
        %2644 = vmatpush1.xpose.msra.mxu0 0.0
        %2645 = vmatprep.subr.mxu0 0.0
        %2646 = vmatpush1.xpose.msra.mxu0 0.0
        %2647 = vmatprep.subr.mxu0 0.0
        %2648 = vmatpush1.xpose.msra.mxu0 0.0
        %2649 = vmatprep.subr.mxu0 0.0
        %2650 = vmatpush1.xpose.msra.mxu0 0.0
        %2651 = vmatprep.subr.mxu0 0.0
        %2652 = vmatpush1.xpose.msra.mxu0 0.0
        %2653 = vmatprep.subr.mxu0 0.0
        %2654 = vmatpush1.xpose.msra.mxu0 0.0
        %2655 = vmatprep.subr.mxu0 0.0
        %2656 = vmatpush1.xpose.msra.mxu0 0.0
        %2657 = vmatprep.subr.mxu0 0.0
        %2658 = vmatpush1.xpose.msra.mxu0 0.0
        %2659 = vmatprep.subr.mxu0 0.0
        %2660 = vmatpush1.xpose.msra.mxu0 0.0
        %2661 = vmatprep.subr.mxu0 0.0
        %2662 = vmatpush1.xpose.msra.mxu0 0.0
        %2663 = vmatprep.subr.mxu0 0.0
        %2664 = vmatpush1.xpose.msra.mxu0 0.0
        %2665 = vmatprep.subr.mxu0 0.0
        %2666 = vmatpush1.xpose.msra.mxu0 0.0
        %2667 = vmatprep.subr.mxu0 0.0
        %2668 = vmatpush1.xpose.msra.mxu0 0.0
        %2669 = vmatprep.subr.mxu0 0.0
        %2670 = vmatpush1.xpose.msra.mxu0 0.0
        %2671 = vmatprep.subr.mxu0 0.0
        %2672 = vmatpush1.xpose.msra.mxu0 0.0
        %2673 = vmatprep.subr.mxu0 0.0
        %2674 = vmatpush1.xpose.msra.mxu0 0.0
        %2675 = vmatprep.subr.mxu0 0.0
        %2676 = vmatpush1.xpose.msra.mxu0 0.0
        %2677 = vmatprep.subr.mxu0 0.0
        %2678 = vmatpush1.xpose.msra.mxu0 0.0
        %2679 = vmatprep.subr.mxu0 0.0
        %2680 = vmatpush1.xpose.msra.mxu0 0.0
        %2681 = vmatprep.subr.mxu0 0.0
        %2682 = vmatpush1.xpose.msra.mxu0 0.0
        %2683 = vmatprep.subr.mxu0 0.0
        %2684 = vmatpush1.xpose.msra.mxu0 0.0
        %2685 = vmatprep.subr.mxu0 0.0
        %2686 = vmatpush1.xpose.msra.mxu0 0.0
        %2687 = vmatprep.subr.mxu0 0.0
        %2688 = vmatpush1.xpose.msra.mxu0 0.0
        %2689 = vmatprep.subr.mxu0 0.0
        %2690 = vmatpush1.xpose.msra.mxu0 0.0
        %2691 = vmatprep.subr.mxu0 0.0
        %2692 = vmatpush1.xpose.msra.mxu0 0.0
        %2693 = vmatprep.subr.mxu0 0.0
        %2694 = vmatpush1.xpose.msra.mxu0 0.0
        %2695 = vmatprep.subr.mxu0 0.0
        %2696 = vmatpush1.xpose.msra.mxu0 0.0
        %2697 = vmatprep.subr.mxu0 0.0
        %2698 = vmatpush1.xpose.msra.mxu0 0.0
        %2699 = vmatprep.subr.mxu0 0.0
        %2700 = vmatpush1.xpose.msra.mxu0 0.0
        %2701 = vmatprep.mubr.f32.mxu0 0.0
        %2702 = vmatmul.mubr.f32.gmra.mrb[0].mxu0 %v2629
        %v2703 = vpop.f32.mrb[0].mxu0
        %v2704 = vadd.f32 0.0, %v2703
        %v2705 = vpop.f32.mrb[0].mxu0
        %2706 = vmatprep.mubr.f32.mxu0 0.0
        %2707 = vmatmul.mubr.f32.gmra.mrb[0].mxu0 %v2631
        %v2708 = vpop.f32.mrb[0].mxu0
        %v2709 = vadd.f32 0.0, %v2708
        %v2710 = vpop.f32.mrb[0].mxu0
        %2711 = vdwg.mxu0
        %2712 = vrot.lane.b32.xlu0 %v753, 120
        %v2713 = vpop.permute.xlu0 %2712
        %2714 = vrot.lane.b32.xlu0 %v756, 120
        %v2715 = vpop.permute.xlu0 %2714
        %2716 = vrot.lane.b32.xlu0 %v898, 120
        %v2717 = vpop.permute.xlu0 %2716
        %2718 = vrot.lane.b32.xlu0 %v901, 120
        %v2719 = vpop.permute.xlu0 %2718
        %v2720 = vsel %vm944, %v2713, 0
        %v2722 = vsel %vm944, %v2715, 0
        %v2724 = vsel %vm944, %v2717, 0
        %v2726 = vsel %vm944, %v2719, 0
        %2728 = vmatprep.subr.mxu0 0.0
        %2729 = vmatpush1.xpose.msra.mxu0 %v2724
        %2730 = vmatprep.subr.mxu0 0.0
        %2731 = vmatpush1.xpose.msra.mxu0 %v2726
        %2732 = vmatprep.subr.mxu0 0.0
        %2733 = vmatpush1.xpose.msra.mxu0 0.0
        %2734 = vmatprep.subr.mxu0 0.0
        %2735 = vmatpush1.xpose.msra.mxu0 0.0
        %2736 = vmatprep.subr.mxu0 0.0
        %2737 = vmatpush1.xpose.msra.mxu0 0.0
        %2738 = vmatprep.subr.mxu0 0.0
        %2739 = vmatpush1.xpose.msra.mxu0 0.0
        %2740 = vmatprep.subr.mxu0 0.0
        %2741 = vmatpush1.xpose.msra.mxu0 0.0
        %2742 = vmatprep.subr.mxu0 0.0
        %2743 = vmatpush1.xpose.msra.mxu0 0.0
        %2744 = vmatprep.subr.mxu0 0.0
        %2745 = vmatpush1.xpose.msra.mxu0 0.0
        %2746 = vmatprep.subr.mxu0 0.0
        %2747 = vmatpush1.xpose.msra.mxu0 0.0
        %2748 = vmatprep.subr.mxu0 0.0
        %2749 = vmatpush1.xpose.msra.mxu0 0.0
        %2750 = vmatprep.subr.mxu0 0.0
        %2751 = vmatpush1.xpose.msra.mxu0 0.0
        %2752 = vmatprep.subr.mxu0 0.0
        %2753 = vmatpush1.xpose.msra.mxu0 0.0
        %2754 = vmatprep.subr.mxu0 0.0
        %2755 = vmatpush1.xpose.msra.mxu0 0.0
        %2756 = vmatprep.subr.mxu0 0.0
        %2757 = vmatpush1.xpose.msra.mxu0 0.0
        %2758 = vmatprep.subr.mxu0 0.0
        %2759 = vmatpush1.xpose.msra.mxu0 0.0
        %2760 = vmatprep.subr.mxu0 0.0
        %2761 = vmatpush1.xpose.msra.mxu0 0.0
        %2762 = vmatprep.subr.mxu0 0.0
        %2763 = vmatpush1.xpose.msra.mxu0 0.0
        %2764 = vmatprep.subr.mxu0 0.0
        %2765 = vmatpush1.xpose.msra.mxu0 0.0
        %2766 = vmatprep.subr.mxu0 0.0
        %2767 = vmatpush1.xpose.msra.mxu0 0.0
        %2768 = vmatprep.subr.mxu0 0.0
        %2769 = vmatpush1.xpose.msra.mxu0 0.0
        %2770 = vmatprep.subr.mxu0 0.0
        %2771 = vmatpush1.xpose.msra.mxu0 0.0
        %2772 = vmatprep.subr.mxu0 0.0
        %2773 = vmatpush1.xpose.msra.mxu0 0.0
        %2774 = vmatprep.subr.mxu0 0.0
        %2775 = vmatpush1.xpose.msra.mxu0 0.0
        %2776 = vmatprep.subr.mxu0 0.0
        %2777 = vmatpush1.xpose.msra.mxu0 0.0
        %2778 = vmatprep.subr.mxu0 0.0
        %2779 = vmatpush1.xpose.msra.mxu0 0.0
        %2780 = vmatprep.subr.mxu0 0.0
        %2781 = vmatpush1.xpose.msra.mxu0 0.0
        %2782 = vmatprep.subr.mxu0 0.0
        %2783 = vmatpush1.xpose.msra.mxu0 0.0
        %2784 = vmatprep.subr.mxu0 0.0
        %2785 = vmatpush1.xpose.msra.mxu0 0.0
        %2786 = vmatprep.subr.mxu0 0.0
        %2787 = vmatpush1.xpose.msra.mxu0 0.0
        %2788 = vmatprep.subr.mxu0 0.0
        %2789 = vmatpush1.xpose.msra.mxu0 0.0
        %2790 = vmatprep.subr.mxu0 0.0
        %2791 = vmatpush1.xpose.msra.mxu0 0.0
        %2792 = vmatprep.mubr.f32.mxu0 0.0
        %2793 = vmatmul.mubr.f32.gmra.mrb[0].mxu0 %v2720
        %v2794 = vpop.f32.mrb[0].mxu0
        %v2795 = vadd.f32 0.0, %v2794
        %v2796 = vpop.f32.mrb[0].mxu0
        %2797 = vmatprep.mubr.f32.mxu0 0.0
        %2798 = vmatmul.mubr.f32.gmra.mrb[0].mxu0 %v2722
        %v2799 = vpop.f32.mrb[0].mxu0
        %v2800 = vadd.f32 0.0, %v2799
        %v2801 = vpop.f32.mrb[0].mxu0
        %2802 = vdwg.mxu0
        %2803 = vrot.lane.b32.xlu0 %v761, 120
        %v2804 = vpop.permute.xlu0 %2803
        %2805 = vrot.lane.b32.xlu0 %v764, 120
        %v2806 = vpop.permute.xlu0 %2805
        %2807 = vrot.lane.b32.xlu0 %v906, 120
        %v2808 = vpop.permute.xlu0 %2807
        %2809 = vrot.lane.b32.xlu0 %v909, 120
        %v2810 = vpop.permute.xlu0 %2809
        %v2811 = vsel %vm944, %v2804, 0
        %v2813 = vsel %vm944, %v2806, 0
        %v2815 = vsel %vm944, %v2808, 0
        %v2817 = vsel %vm944, %v2810, 0
        %2819 = vmatprep.subr.mxu0 0.0
        %2820 = vmatpush1.xpose.msra.mxu0 %v2815
        %2821 = vmatprep.subr.mxu0 0.0
        %2822 = vmatpush1.xpose.msra.mxu0 %v2817
        %2823 = vmatprep.subr.mxu0 0.0
        %2824 = vmatpush1.xpose.msra.mxu0 0.0
        %2825 = vmatprep.subr.mxu0 0.0
        %2826 = vmatpush1.xpose.msra.mxu0 0.0
        %2827 = vmatprep.subr.mxu0 0.0
        %2828 = vmatpush1.xpose.msra.mxu0 0.0
        %2829 = vmatprep.subr.mxu0 0.0
        %2830 = vmatpush1.xpose.msra.mxu0 0.0
        %2831 = vmatprep.subr.mxu0 0.0
        %2832 = vmatpush1.xpose.msra.mxu0 0.0
        %2833 = vmatprep.subr.mxu0 0.0
        %2834 = vmatpush1.xpose.msra.mxu0 0.0
        %2835 = vmatprep.subr.mxu0 0.0
        %2836 = vmatpush1.xpose.msra.mxu0 0.0
        %2837 = vmatprep.subr.mxu0 0.0
        %2838 = vmatpush1.xpose.msra.mxu0 0.0
        %2839 = vmatprep.subr.mxu0 0.0
        %2840 = vmatpush1.xpose.msra.mxu0 0.0
        %2841 = vmatprep.subr.mxu0 0.0
        %2842 = vmatpush1.xpose.msra.mxu0 0.0
        %2843 = vmatprep.subr.mxu0 0.0
        %2844 = vmatpush1.xpose.msra.mxu0 0.0
        %2845 = vmatprep.subr.mxu0 0.0
        %2846 = vmatpush1.xpose.msra.mxu0 0.0
        %2847 = vmatprep.subr.mxu0 0.0
        %2848 = vmatpush1.xpose.msra.mxu0 0.0
        %2849 = vmatprep.subr.mxu0 0.0
        %2850 = vmatpush1.xpose.msra.mxu0 0.0
        %2851 = vmatprep.subr.mxu0 0.0
        %2852 = vmatpush1.xpose.msra.mxu0 0.0
        %2853 = vmatprep.subr.mxu0 0.0
        %2854 = vmatpush1.xpose.msra.mxu0 0.0
        %2855 = vmatprep.subr.mxu0 0.0
        %2856 = vmatpush1.xpose.msra.mxu0 0.0
        %2857 = vmatprep.subr.mxu0 0.0
        %2858 = vmatpush1.xpose.msra.mxu0 0.0
        %2859 = vmatprep.subr.mxu0 0.0
        %2860 = vmatpush1.xpose.msra.mxu0 0.0
        %2861 = vmatprep.subr.mxu0 0.0
        %2862 = vmatpush1.xpose.msra.mxu0 0.0
        %2863 = vmatprep.subr.mxu0 0.0
        %2864 = vmatpush1.xpose.msra.mxu0 0.0
        %2865 = vmatprep.subr.mxu0 0.0
        %2866 = vmatpush1.xpose.msra.mxu0 0.0
        %2867 = vmatprep.subr.mxu0 0.0
        %2868 = vmatpush1.xpose.msra.mxu0 0.0
        %2869 = vmatprep.subr.mxu0 0.0
        %2870 = vmatpush1.xpose.msra.mxu0 0.0
        %2871 = vmatprep.subr.mxu0 0.0
        %2872 = vmatpush1.xpose.msra.mxu0 0.0
        %2873 = vmatprep.subr.mxu0 0.0
        %2874 = vmatpush1.xpose.msra.mxu0 0.0
        %2875 = vmatprep.subr.mxu0 0.0
        %2876 = vmatpush1.xpose.msra.mxu0 0.0
        %2877 = vmatprep.subr.mxu0 0.0
        %2878 = vmatpush1.xpose.msra.mxu0 0.0
        %2879 = vmatprep.subr.mxu0 0.0
        %2880 = vmatpush1.xpose.msra.mxu0 0.0
        %2881 = vmatprep.subr.mxu0 0.0
        %2882 = vmatpush1.xpose.msra.mxu0 0.0
        %2883 = vmatprep.mubr.f32.mxu0 0.0
        %2884 = vmatmul.mubr.f32.gmra.mrb[0].mxu0 %v2811
        %v2885 = vpop.f32.mrb[0].mxu0
        %v2886 = vadd.f32 0.0, %v2885
        %v2887 = vpop.f32.mrb[0].mxu0
        %2888 = vmatprep.mubr.f32.mxu0 0.0
        %2889 = vmatmul.mubr.f32.gmra.mrb[0].mxu0 %v2813
        %v2890 = vpop.f32.mrb[0].mxu0
        %v2891 = vadd.f32 0.0, %v2890
        %v2892 = vpop.f32.mrb[0].mxu0
        %2893 = vdwg.mxu0
        %2894 = vrot.lane.b32.xlu0 %v769, 120
        %v2895 = vpop.permute.xlu0 %2894
        %2896 = vrot.lane.b32.xlu0 %v772, 120
        %v2897 = vpop.permute.xlu0 %2896
        %2898 = vrot.lane.b32.xlu0 %v914, 120
        %v2899 = vpop.permute.xlu0 %2898
        %2900 = vrot.lane.b32.xlu0 %v917, 120
        %v2901 = vpop.permute.xlu0 %2900
        %v2902 = vsel %vm944, %v2895, 0
        %v2904 = vsel %vm944, %v2897, 0
        %v2906 = vsel %vm944, %v2899, 0
        %v2908 = vsel %vm944, %v2901, 0
        %2910 = vmatprep.subr.mxu0 0.0
        %2911 = vmatpush1.xpose.msra.mxu0 %v2906
        %2912 = vmatprep.subr.mxu0 0.0
        %2913 = vmatpush1.xpose.msra.mxu0 %v2908
        %2914 = vmatprep.subr.mxu0 0.0
        %2915 = vmatpush1.xpose.msra.mxu0 0.0
        %2916 = vmatprep.subr.mxu0 0.0
        %2917 = vmatpush1.xpose.msra.mxu0 0.0
        %2918 = vmatprep.subr.mxu0 0.0
        %2919 = vmatpush1.xpose.msra.mxu0 0.0
        %2920 = vmatprep.subr.mxu0 0.0
        %2921 = vmatpush1.xpose.msra.mxu0 0.0
        %2922 = vmatprep.subr.mxu0 0.0
        %2923 = vmatpush1.xpose.msra.mxu0 0.0
        %2924 = vmatprep.subr.mxu0 0.0
        %2925 = vmatpush1.xpose.msra.mxu0 0.0
        %2926 = vmatprep.subr.mxu0 0.0
        %2927 = vmatpush1.xpose.msra.mxu0 0.0
        %2928 = vmatprep.subr.mxu0 0.0
        %2929 = vmatpush1.xpose.msra.mxu0 0.0
        %2930 = vmatprep.subr.mxu0 0.0
        %2931 = vmatpush1.xpose.msra.mxu0 0.0
        %2932 = vmatprep.subr.mxu0 0.0
        %2933 = vmatpush1.xpose.msra.mxu0 0.0
        %2934 = vmatprep.subr.mxu0 0.0
        %2935 = vmatpush1.xpose.msra.mxu0 0.0
        %2936 = vmatprep.subr.mxu0 0.0
        %2937 = vmatpush1.xpose.msra.mxu0 0.0
        %2938 = vmatprep.subr.mxu0 0.0
        %2939 = vmatpush1.xpose.msra.mxu0 0.0
        %2940 = vmatprep.subr.mxu0 0.0
        %2941 = vmatpush1.xpose.msra.mxu0 0.0
        %2942 = vmatprep.subr.mxu0 0.0
        %2943 = vmatpush1.xpose.msra.mxu0 0.0
        %2944 = vmatprep.subr.mxu0 0.0
        %2945 = vmatpush1.xpose.msra.mxu0 0.0
        %2946 = vmatprep.subr.mxu0 0.0
        %2947 = vmatpush1.xpose.msra.mxu0 0.0
        %2948 = vmatprep.subr.mxu0 0.0
        %2949 = vmatpush1.xpose.msra.mxu0 0.0
        %2950 = vmatprep.subr.mxu0 0.0
        %2951 = vmatpush1.xpose.msra.mxu0 0.0
        %2952 = vmatprep.subr.mxu0 0.0
        %2953 = vmatpush1.xpose.msra.mxu0 0.0
        %2954 = vmatprep.subr.mxu0 0.0
        %2955 = vmatpush1.xpose.msra.mxu0 0.0
        %2956 = vmatprep.subr.mxu0 0.0
        %2957 = vmatpush1.xpose.msra.mxu0 0.0
        %2958 = vmatprep.subr.mxu0 0.0
        %2959 = vmatpush1.xpose.msra.mxu0 0.0
        %2960 = vmatprep.subr.mxu0 0.0
        %2961 = vmatpush1.xpose.msra.mxu0 0.0
        %2962 = vmatprep.subr.mxu0 0.0
        %2963 = vmatpush1.xpose.msra.mxu0 0.0
        %2964 = vmatprep.subr.mxu0 0.0
        %2965 = vmatpush1.xpose.msra.mxu0 0.0
        %2966 = vmatprep.subr.mxu0 0.0
        %2967 = vmatpush1.xpose.msra.mxu0 0.0
        %2968 = vmatprep.subr.mxu0 0.0
        %2969 = vmatpush1.xpose.msra.mxu0 0.0
        %2970 = vmatprep.subr.mxu0 0.0
        %2971 = vmatpush1.xpose.msra.mxu0 0.0
        %2972 = vmatprep.subr.mxu0 0.0
        %2973 = vmatpush1.xpose.msra.mxu0 0.0
        %2974 = vmatprep.mubr.f32.mxu0 0.0
        %2975 = vmatmul.mubr.f32.gmra.mrb[0].mxu0 %v2902
        %v2976 = vpop.f32.mrb[0].mxu0
        %v2977 = vadd.f32 0.0, %v2976
        %v2978 = vpop.f32.mrb[0].mxu0
        %2979 = vmatprep.mubr.f32.mxu0 0.0
        %2980 = vmatmul.mubr.f32.gmra.mrb[0].mxu0 %v2904
        %v2981 = vpop.f32.mrb[0].mxu0
        %v2982 = vadd.f32 0.0, %v2981
        %v2983 = vpop.f32.mrb[0].mxu0
        %2984 = vdwg.mxu0
        %2985 = vrot.lane.b32.xlu0 %v777, 120
        %v2986 = vpop.permute.xlu0 %2985
        %2987 = vrot.lane.b32.xlu0 %v780, 120
        %v2988 = vpop.permute.xlu0 %2987
        %2989 = vrot.lane.b32.xlu0 %v922, 120
        %v2990 = vpop.permute.xlu0 %2989
        %2991 = vrot.lane.b32.xlu0 %v925, 120
        %v2992 = vpop.permute.xlu0 %2991
        %v2993 = vsel %vm944, %v2986, 0
        %v2995 = vsel %vm944, %v2988, 0
        %v2997 = vsel %vm944, %v2990, 0
        %v2999 = vsel %vm944, %v2992, 0
        %3001 = vmatprep.subr.mxu0 0.0
        %3002 = vmatpush1.xpose.msra.mxu0 %v2997
        %3003 = vmatprep.subr.mxu0 0.0
        %3004 = vmatpush1.xpose.msra.mxu0 %v2999
        %3005 = vmatprep.subr.mxu0 0.0
        %3006 = vmatpush1.xpose.msra.mxu0 0.0
        %3007 = vmatprep.subr.mxu0 0.0
        %3008 = vmatpush1.xpose.msra.mxu0 0.0
        %3009 = vmatprep.subr.mxu0 0.0
        %3010 = vmatpush1.xpose.msra.mxu0 0.0
        %3011 = vmatprep.subr.mxu0 0.0
        %3012 = vmatpush1.xpose.msra.mxu0 0.0
        %3013 = vmatprep.subr.mxu0 0.0
        %3014 = vmatpush1.xpose.msra.mxu0 0.0
        %3015 = vmatprep.subr.mxu0 0.0
        %3016 = vmatpush1.xpose.msra.mxu0 0.0
        %3017 = vmatprep.subr.mxu0 0.0
        %3018 = vmatpush1.xpose.msra.mxu0 0.0
        %3019 = vmatprep.subr.mxu0 0.0
        %3020 = vmatpush1.xpose.msra.mxu0 0.0
        %3021 = vmatprep.subr.mxu0 0.0
        %3022 = vmatpush1.xpose.msra.mxu0 0.0
        %3023 = vmatprep.subr.mxu0 0.0
        %3024 = vmatpush1.xpose.msra.mxu0 0.0
        %3025 = vmatprep.subr.mxu0 0.0
        %3026 = vmatpush1.xpose.msra.mxu0 0.0
        %3027 = vmatprep.subr.mxu0 0.0
        %3028 = vmatpush1.xpose.msra.mxu0 0.0
        %3029 = vmatprep.subr.mxu0 0.0
        %3030 = vmatpush1.xpose.msra.mxu0 0.0
        %3031 = vmatprep.subr.mxu0 0.0
        %3032 = vmatpush1.xpose.msra.mxu0 0.0
        %3033 = vmatprep.subr.mxu0 0.0
        %3034 = vmatpush1.xpose.msra.mxu0 0.0
        %3035 = vmatprep.subr.mxu0 0.0
        %3036 = vmatpush1.xpose.msra.mxu0 0.0
        %3037 = vmatprep.subr.mxu0 0.0
        %3038 = vmatpush1.xpose.msra.mxu0 0.0
        %3039 = vmatprep.subr.mxu0 0.0
        %3040 = vmatpush1.xpose.msra.mxu0 0.0
        %3041 = vmatprep.subr.mxu0 0.0
        %3042 = vmatpush1.xpose.msra.mxu0 0.0
        %3043 = vmatprep.subr.mxu0 0.0
        %3044 = vmatpush1.xpose.msra.mxu0 0.0
        %3045 = vmatprep.subr.mxu0 0.0
        %3046 = vmatpush1.xpose.msra.mxu0 0.0
        %3047 = vmatprep.subr.mxu0 0.0
        %3048 = vmatpush1.xpose.msra.mxu0 0.0
        %3049 = vmatprep.subr.mxu0 0.0
        %3050 = vmatpush1.xpose.msra.mxu0 0.0
        %3051 = vmatprep.subr.mxu0 0.0
        %3052 = vmatpush1.xpose.msra.mxu0 0.0
        %3053 = vmatprep.subr.mxu0 0.0
        %3054 = vmatpush1.xpose.msra.mxu0 0.0
        %3055 = vmatprep.subr.mxu0 0.0
        %3056 = vmatpush1.xpose.msra.mxu0 0.0
        %3057 = vmatprep.subr.mxu0 0.0
        %3058 = vmatpush1.xpose.msra.mxu0 0.0
        %3059 = vmatprep.subr.mxu0 0.0
        %3060 = vmatpush1.xpose.msra.mxu0 0.0
        %3061 = vmatprep.subr.mxu0 0.0
        %3062 = vmatpush1.xpose.msra.mxu0 0.0
        %3063 = vmatprep.subr.mxu0 0.0
        %3064 = vmatpush1.xpose.msra.mxu0 0.0
        %3065 = vmatprep.mubr.f32.mxu0 0.0
        %3066 = vmatmul.mubr.f32.gmra.mrb[0].mxu0 %v2993
        %v3067 = vpop.f32.mrb[0].mxu0
        %v3068 = vadd.f32 0.0, %v3067
        %v3069 = vpop.f32.mrb[0].mxu0
        %3070 = vmatprep.mubr.f32.mxu0 0.0
        %3071 = vmatmul.mubr.f32.gmra.mrb[0].mxu0 %v2995
        %v3072 = vpop.f32.mrb[0].mxu0
        %v3073 = vadd.f32 0.0, %v3072
        %v3074 = vpop.f32.mrb[0].mxu0
        %3075 = vdwg.mxu0
        %3076 = vrot.lane.b32.xlu0 %v785, 120
        %v3077 = vpop.permute.xlu0 %3076
        %3078 = vrot.lane.b32.xlu0 %v788, 120
        %v3079 = vpop.permute.xlu0 %3078
        %3080 = vrot.lane.b32.xlu0 %v930, 120
        %v3081 = vpop.permute.xlu0 %3080
        %3082 = vrot.lane.b32.xlu0 %v933, 120
        %v3083 = vpop.permute.xlu0 %3082
        %v3084 = vsel %vm944, %v3077, 0
        %v3086 = vsel %vm944, %v3079, 0
        %v3088 = vsel %vm944, %v3081, 0
        %v3090 = vsel %vm944, %v3083, 0
        %3092 = vmatprep.subr.mxu0 0.0
        %3093 = vmatpush1.xpose.msra.mxu0 %v3088
        %3094 = vmatprep.subr.mxu0 0.0
        %3095 = vmatpush1.xpose.msra.mxu0 %v3090
        %3096 = vmatprep.subr.mxu0 0.0
        %3097 = vmatpush1.xpose.msra.mxu0 0.0
        %3098 = vmatprep.subr.mxu0 0.0
        %3099 = vmatpush1.xpose.msra.mxu0 0.0
        %3100 = vmatprep.subr.mxu0 0.0
        %3101 = vmatpush1.xpose.msra.mxu0 0.0
        %3102 = vmatprep.subr.mxu0 0.0
        %3103 = vmatpush1.xpose.msra.mxu0 0.0
        %3104 = vmatprep.subr.mxu0 0.0
        %3105 = vmatpush1.xpose.msra.mxu0 0.0
        %3106 = vmatprep.subr.mxu0 0.0
        %3107 = vmatpush1.xpose.msra.mxu0 0.0
        %3108 = vmatprep.subr.mxu0 0.0
        %3109 = vmatpush1.xpose.msra.mxu0 0.0
        %3110 = vmatprep.subr.mxu0 0.0
        %3111 = vmatpush1.xpose.msra.mxu0 0.0
        %3112 = vmatprep.subr.mxu0 0.0
        %3113 = vmatpush1.xpose.msra.mxu0 0.0
        %3114 = vmatprep.subr.mxu0 0.0
        %3115 = vmatpush1.xpose.msra.mxu0 0.0
        %3116 = vmatprep.subr.mxu0 0.0
        %3117 = vmatpush1.xpose.msra.mxu0 0.0
        %3118 = vmatprep.subr.mxu0 0.0
        %3119 = vmatpush1.xpose.msra.mxu0 0.0
        %3120 = vmatprep.subr.mxu0 0.0
        %3121 = vmatpush1.xpose.msra.mxu0 0.0
        %3122 = vmatprep.subr.mxu0 0.0
        %3123 = vmatpush1.xpose.msra.mxu0 0.0
        %3124 = vmatprep.subr.mxu0 0.0
        %3125 = vmatpush1.xpose.msra.mxu0 0.0
        %3126 = vmatprep.subr.mxu0 0.0
        %3127 = vmatpush1.xpose.msra.mxu0 0.0
        %3128 = vmatprep.subr.mxu0 0.0
        %3129 = vmatpush1.xpose.msra.mxu0 0.0
        %3130 = vmatprep.subr.mxu0 0.0
        %3131 = vmatpush1.xpose.msra.mxu0 0.0
        %3132 = vmatprep.subr.mxu0 0.0
        %3133 = vmatpush1.xpose.msra.mxu0 0.0
        %3134 = vmatprep.subr.mxu0 0.0
        %3135 = vmatpush1.xpose.msra.mxu0 0.0
        %3136 = vmatprep.subr.mxu0 0.0
        %3137 = vmatpush1.xpose.msra.mxu0 0.0
        %3138 = vmatprep.subr.mxu0 0.0
        %3139 = vmatpush1.xpose.msra.mxu0 0.0
        %3140 = vmatprep.subr.mxu0 0.0
        %3141 = vmatpush1.xpose.msra.mxu0 0.0
        %3142 = vmatprep.subr.mxu0 0.0
        %3143 = vmatpush1.xpose.msra.mxu0 0.0
        %3144 = vmatprep.subr.mxu0 0.0
        %3145 = vmatpush1.xpose.msra.mxu0 0.0
        %3146 = vmatprep.subr.mxu0 0.0
        %3147 = vmatpush1.xpose.msra.mxu0 0.0
        %3148 = vmatprep.subr.mxu0 0.0
        %3149 = vmatpush1.xpose.msra.mxu0 0.0
        %3150 = vmatprep.subr.mxu0 0.0
        %3151 = vmatpush1.xpose.msra.mxu0 0.0
        %3152 = vmatprep.subr.mxu0 0.0
        %3153 = vmatpush1.xpose.msra.mxu0 0.0
        %3154 = vmatprep.subr.mxu0 0.0
        %3155 = vmatpush1.xpose.msra.mxu0 0.0
        %3156 = vmatprep.mubr.f32.mxu0 0.0
        %3157 = vmatmul.mubr.f32.gmra.mrb[0].mxu0 %v3084
        %v3158 = vpop.f32.mrb[0].mxu0
        %v3159 = vadd.f32 0.0, %v3158
        %v3160 = vpop.f32.mrb[0].mxu0
        %3161 = vmatprep.mubr.f32.mxu0 0.0
        %3162 = vmatmul.mubr.f32.gmra.mrb[0].mxu0 %v3086
        %v3163 = vpop.f32.mrb[0].mxu0
        %v3164 = vadd.f32 0.0, %v3163
        %v3165 = vpop.f32.mrb[0].mxu0
        %3166 = vdwg.mxu0
        %3167 = vrot.lane.b32.xlu0 %v793, 120
        %v3168 = vpop.permute.xlu0 %3167
        %3169 = vrot.lane.b32.xlu0 %v796, 120
        %v3170 = vpop.permute.xlu0 %3169
        %3171 = vrot.lane.b32.xlu0 %v938, 120
        %v3172 = vpop.permute.xlu0 %3171
        %3173 = vrot.lane.b32.xlu0 %v941, 120
        %v3174 = vpop.permute.xlu0 %3173
        %v3175 = vsel %vm944, %v3168, 0
        %v3177 = vsel %vm944, %v3170, 0
        %v3179 = vsel %vm944, %v3172, 0
        %v3181 = vsel %vm944, %v3174, 0
        %3183 = vmatprep.subr.mxu0 0.0
        %3184 = vmatpush1.xpose.msra.mxu0 %v3179
        %3185 = vmatprep.subr.mxu0 0.0
        %3186 = vmatpush1.xpose.msra.mxu0 %v3181
        %3187 = vmatprep.subr.mxu0 0.0
        %3188 = vmatpush1.xpose.msra.mxu0 0.0
        %3189 = vmatprep.subr.mxu0 0.0
        %3190 = vmatpush1.xpose.msra.mxu0 0.0
        %3191 = vmatprep.subr.mxu0 0.0
        %3192 = vmatpush1.xpose.msra.mxu0 0.0
        %3193 = vmatprep.subr.mxu0 0.0
        %3194 = vmatpush1.xpose.msra.mxu0 0.0
        %3195 = vmatprep.subr.mxu0 0.0
        %3196 = vmatpush1.xpose.msra.mxu0 0.0
        %3197 = vmatprep.subr.mxu0 0.0
        %3198 = vmatpush1.xpose.msra.mxu0 0.0
        %3199 = vmatprep.subr.mxu0 0.0
        %3200 = vmatpush1.xpose.msra.mxu0 0.0
        %3201 = vmatprep.subr.mxu0 0.0
        %3202 = vmatpush1.xpose.msra.mxu0 0.0
        %3203 = vmatprep.subr.mxu0 0.0
        %3204 = vmatpush1.xpose.msra.mxu0 0.0
        %3205 = vmatprep.subr.mxu0 0.0
        %3206 = vmatpush1.xpose.msra.mxu0 0.0
        %3207 = vmatprep.subr.mxu0 0.0
        %3208 = vmatpush1.xpose.msra.mxu0 0.0
        %3209 = vmatprep.subr.mxu0 0.0
        %3210 = vmatpush1.xpose.msra.mxu0 0.0
        %3211 = vmatprep.subr.mxu0 0.0
        %3212 = vmatpush1.xpose.msra.mxu0 0.0
        %3213 = vmatprep.subr.mxu0 0.0
        %3214 = vmatpush1.xpose.msra.mxu0 0.0
        %3215 = vmatprep.subr.mxu0 0.0
        %3216 = vmatpush1.xpose.msra.mxu0 0.0
        %3217 = vmatprep.subr.mxu0 0.0
        %3218 = vmatpush1.xpose.msra.mxu0 0.0
        %3219 = vmatprep.subr.mxu0 0.0
        %3220 = vmatpush1.xpose.msra.mxu0 0.0
        %3221 = vmatprep.subr.mxu0 0.0
        %3222 = vmatpush1.xpose.msra.mxu0 0.0
        %3223 = vmatprep.subr.mxu0 0.0
        %3224 = vmatpush1.xpose.msra.mxu0 0.0
        %3225 = vmatprep.subr.mxu0 0.0
        %3226 = vmatpush1.xpose.msra.mxu0 0.0
        %3227 = vmatprep.subr.mxu0 0.0
        %3228 = vmatpush1.xpose.msra.mxu0 0.0
        %3229 = vmatprep.subr.mxu0 0.0
        %3230 = vmatpush1.xpose.msra.mxu0 0.0
        %3231 = vmatprep.subr.mxu0 0.0
        %3232 = vmatpush1.xpose.msra.mxu0 0.0
        %3233 = vmatprep.subr.mxu0 0.0
        %3234 = vmatpush1.xpose.msra.mxu0 0.0
        %3235 = vmatprep.subr.mxu0 0.0
        %3236 = vmatpush1.xpose.msra.mxu0 0.0
        %3237 = vmatprep.subr.mxu0 0.0
        %3238 = vmatpush1.xpose.msra.mxu0 0.0
        %3239 = vmatprep.subr.mxu0 0.0
        %3240 = vmatpush1.xpose.msra.mxu0 0.0
        %3241 = vmatprep.subr.mxu0 0.0
        %3242 = vmatpush1.xpose.msra.mxu0 0.0
        %3243 = vmatprep.subr.mxu0 0.0
        %3244 = vmatpush1.xpose.msra.mxu0 0.0
        %3245 = vmatprep.subr.mxu0 0.0
        %3246 = vmatpush1.xpose.msra.mxu0 0.0
        %3247 = vmatprep.mubr.f32.mxu0 0.0
        %3248 = vmatmul.mubr.f32.gmra.mrb[0].mxu0 %v3175
        %v3249 = vpop.f32.mrb[0].mxu0
        %v3250 = vadd.f32 0.0, %v3249
        %v3251 = vpop.f32.mrb[0].mxu0
        %3252 = vmatprep.mubr.f32.mxu0 0.0
        %3253 = vmatmul.mubr.f32.gmra.mrb[0].mxu0 %v3177
        %v3254 = vpop.f32.mrb[0].mxu0
        %v3255 = vadd.f32 0.0, %v3254
        %v3256 = vpop.f32.mrb[0].mxu0
        %3257 = vdwg.mxu0
        %v3258 = vmul.f32 %v2613, 0.35355338
        %v3259 = vmul.f32 %v2618, 0.35355338
        %v3260 = vmul.f32 %v2704, 0.35355338
        %v3261 = vmul.f32 %v2709, 0.35355338
        %v3262 = vmul.f32 %v2795, 0.35355338
        %v3263 = vmul.f32 %v2800, 0.35355338
        %v3264 = vmul.f32 %v2886, 0.35355338
        %v3265 = vmul.f32 %v2891, 0.35355338
        %v3266 = vmul.f32 %v2977, 0.35355338
        %v3267 = vmul.f32 %v2982, 0.35355338
        %v3268 = vmul.f32 %v3068, 0.35355338
        %v3269 = vmul.f32 %v3073, 0.35355338
        %v3270 = vmul.f32 %v3159, 0.35355338
        %v3271 = vmul.f32 %v3164, 0.35355338
        %v3272 = vmul.f32 %v3250, 0.35355338
        %v3273 = vmul.f32 %v3255, 0.35355338
        %v3274 = vsel %vm1657, %v3258, -inf
        %3275 = vmax.xlane.f32.xlu0 %v3274
        %v3276 = vpop.xlane.xlu0 %3275
        %v3277 = vsel %vm1657, %v3259, -inf
        %3278 = vmax.xlane.f32.xlu0 %v3277
        %v3279 = vpop.xlane.xlu0 %3278
        %v3280 = vsel %vm1657, %v3260, -inf
        %3281 = vmax.xlane.f32.xlu0 %v3280
        %v3282 = vpop.xlane.xlu0 %3281
        %v3283 = vsel %vm1657, %v3261, -inf
        %3284 = vmax.xlane.f32.xlu0 %v3283
        %v3285 = vpop.xlane.xlu0 %3284
        %v3286 = vsel %vm1657, %v3262, -inf
        %3287 = vmax.xlane.f32.xlu0 %v3286
        %v3288 = vpop.xlane.xlu0 %3287
        %v3289 = vsel %vm1657, %v3263, -inf
        %3290 = vmax.xlane.f32.xlu0 %v3289
        %v3291 = vpop.xlane.xlu0 %3290
        %v3292 = vsel %vm1657, %v3264, -inf
        %3293 = vmax.xlane.f32.xlu0 %v3292
        %v3294 = vpop.xlane.xlu0 %3293
        %v3295 = vsel %vm1657, %v3265, -inf
        %3296 = vmax.xlane.f32.xlu0 %v3295
        %v3297 = vpop.xlane.xlu0 %3296
        %v3298 = vsel %vm1657, %v3266, -inf
        %3299 = vmax.xlane.f32.xlu0 %v3298
        %v3300 = vpop.xlane.xlu0 %3299
        %v3301 = vsel %vm1657, %v3267, -inf
        %3302 = vmax.xlane.f32.xlu0 %v3301
        %v3303 = vpop.xlane.xlu0 %3302
        %v3304 = vsel %vm1657, %v3268, -inf
        %3305 = vmax.xlane.f32.xlu0 %v3304
        %v3306 = vpop.xlane.xlu0 %3305
        %v3307 = vsel %vm1657, %v3269, -inf
        %3308 = vmax.xlane.f32.xlu0 %v3307
        %v3309 = vpop.xlane.xlu0 %3308
        %v3310 = vsel %vm1657, %v3270, -inf
        %3311 = vmax.xlane.f32.xlu0 %v3310
        %v3312 = vpop.xlane.xlu0 %3311
        %v3313 = vsel %vm1657, %v3271, -inf
        %3314 = vmax.xlane.f32.xlu0 %v3313
        %v3315 = vpop.xlane.xlu0 %3314
        %v3316 = vsel %vm1657, %v3272, -inf
        %3317 = vmax.xlane.f32.xlu0 %v3316
        %v3318 = vpop.xlane.xlu0 %3317
        %v3319 = vsel %vm1657, %v3273, -inf
        %3320 = vmax.xlane.f32.xlu0 %v3319
        %v3321 = vpop.xlane.xlu0 %3320
        %v3322 = vsub.f32 %v3258, %v3276
        %v3323 = vsub.f32 %v3259, %v3279
        %v3324 = vsub.f32 %v3260, %v3282
        %v3325 = vsub.f32 %v3261, %v3285
        %v3326 = vsub.f32 %v3262, %v3288
        %v3327 = vsub.f32 %v3263, %v3291
        %v3328 = vsub.f32 %v3264, %v3294
        %v3329 = vsub.f32 %v3265, %v3297
        %v3330 = vsub.f32 %v3266, %v3300
        %v3331 = vsub.f32 %v3267, %v3303
        %v3332 = vsub.f32 %v3268, %v3306
        %v3333 = vsub.f32 %v3269, %v3309
        %v3334 = vsub.f32 %v3270, %v3312
        %v3335 = vsub.f32 %v3271, %v3315
        %v3336 = vsub.f32 %v3272, %v3318
        %v3337 = vsub.f32 %v3273, %v3321
        %v3338 = vmul.f32 %v3322, 1.442695
        %v3339 = vpow.pop %v3338
        %v3340 = vmul.f32 %v3323, 1.442695
        %v3341 = vpow.pop %v3340
        %v3342 = vmul.f32 %v3324, 1.442695
        %v3343 = vpow.pop %v3342
        %v3344 = vmul.f32 %v3325, 1.442695
        %v3345 = vpow.pop %v3344
        %v3346 = vmul.f32 %v3326, 1.442695
        %v3347 = vpow.pop %v3346
        %v3348 = vmul.f32 %v3327, 1.442695
        %v3349 = vpow.pop %v3348
        %v3350 = vmul.f32 %v3328, 1.442695
        %v3351 = vpow.pop %v3350
        %v3352 = vmul.f32 %v3329, 1.442695
        %v3353 = vpow.pop %v3352
        %v3354 = vmul.f32 %v3330, 1.442695
        %v3355 = vpow.pop %v3354
        %v3356 = vmul.f32 %v3331, 1.442695
        %v3357 = vpow.pop %v3356
        %v3358 = vmul.f32 %v3332, 1.442695
        %v3359 = vpow.pop %v3358
        %v3360 = vmul.f32 %v3333, 1.442695
        %v3361 = vpow.pop %v3360
        %v3362 = vmul.f32 %v3334, 1.442695
        %v3363 = vpow.pop %v3362
        %v3364 = vmul.f32 %v3335, 1.442695
        %v3365 = vpow.pop %v3364
        %v3366 = vmul.f32 %v3336, 1.442695
        %v3367 = vpow.pop %v3366
        %v3368 = vmul.f32 %v3337, 1.442695
        %v3369 = vpow.pop %v3368
        %v3370 = vsel %vm1657, %v3339, 0.0
        %3371 = vadd.xlane.f32.xlu0 %v3370
        %v3372 = vpop.xlane.xlu0 %3371
        %v3373 = vsel %vm1657, %v3341, 0.0
        %3374 = vadd.xlane.f32.xlu0 %v3373
        %v3375 = vpop.xlane.xlu0 %3374
        %v3376 = vsel %vm1657, %v3343, 0.0
        %3377 = vadd.xlane.f32.xlu0 %v3376
        %v3378 = vpop.xlane.xlu0 %3377
        %v3379 = vsel %vm1657, %v3345, 0.0
        %3380 = vadd.xlane.f32.xlu0 %v3379
        %v3381 = vpop.xlane.xlu0 %3380
        %v3382 = vsel %vm1657, %v3347, 0.0
        %3383 = vadd.xlane.f32.xlu0 %v3382
        %v3384 = vpop.xlane.xlu0 %3383
        %v3385 = vsel %vm1657, %v3349, 0.0
        %3386 = vadd.xlane.f32.xlu0 %v3385
        %v3387 = vpop.xlane.xlu0 %3386
        %v3388 = vsel %vm1657, %v3351, 0.0
        %3389 = vadd.xlane.f32.xlu0 %v3388
        %v3390 = vpop.xlane.xlu0 %3389
        %v3391 = vsel %vm1657, %v3353, 0.0
        %3392 = vadd.xlane.f32.xlu0 %v3391
        %v3393 = vpop.xlane.xlu0 %3392
        %v3394 = vsel %vm1657, %v3355, 0.0
        %3395 = vadd.xlane.f32.xlu0 %v3394
        %v3396 = vpop.xlane.xlu0 %3395
        %v3397 = vsel %vm1657, %v3357, 0.0
        %3398 = vadd.xlane.f32.xlu0 %v3397
        %v3399 = vpop.xlane.xlu0 %3398
        %v3400 = vsel %vm1657, %v3359, 0.0
        %3401 = vadd.xlane.f32.xlu0 %v3400
        %v3402 = vpop.xlane.xlu0 %3401
        %v3403 = vsel %vm1657, %v3361, 0.0
        %3404 = vadd.xlane.f32.xlu0 %v3403
        %v3405 = vpop.xlane.xlu0 %3404
        %v3406 = vsel %vm1657, %v3363, 0.0
        %3407 = vadd.xlane.f32.xlu0 %v3406
        %v3408 = vpop.xlane.xlu0 %3407
        %v3409 = vsel %vm1657, %v3365, 0.0
        %3410 = vadd.xlane.f32.xlu0 %v3409
        %v3411 = vpop.xlane.xlu0 %3410
        %v3412 = vsel %vm1657, %v3367, 0.0
        %3413 = vadd.xlane.f32.xlu0 %v3412
        %v3414 = vpop.xlane.xlu0 %3413
        %v3415 = vsel %vm1657, %v3369, 0.0
        %3416 = vadd.xlane.f32.xlu0 %v3415
        %v3417 = vpop.xlane.xlu0 %3416
        %v3418 = vrcp.pop %v3372
        %v3419 = vrcp.pop %v3375
        %v3420 = vrcp.pop %v3378
        %v3421 = vrcp.pop %v3381
        %v3422 = vrcp.pop %v3384
        %v3423 = vrcp.pop %v3387
        %v3424 = vrcp.pop %v3390
        %v3425 = vrcp.pop %v3393
        %v3426 = vrcp.pop %v3396
        %v3427 = vrcp.pop %v3399
        %v3428 = vrcp.pop %v3402
        %v3429 = vrcp.pop %v3405
        %v3430 = vrcp.pop %v3408
        %v3431 = vrcp.pop %v3411
        %v3432 = vrcp.pop %v3414
        %v3433 = vrcp.pop %v3417
        %v3434 = vmul.f32 %v3339, %v3418
        %v3435 = vmul.f32 %v3341, %v3419
        %v3436 = vmul.f32 %v3343, %v3420
        %v3437 = vmul.f32 %v3345, %v3421
        %v3438 = vmul.f32 %v3347, %v3422
        %v3439 = vmul.f32 %v3349, %v3423
        %v3440 = vmul.f32 %v3351, %v3424
        %v3441 = vmul.f32 %v3353, %v3425
        %v3442 = vmul.f32 %v3355, %v3426
        %v3443 = vmul.f32 %v3357, %v3427
        %v3444 = vmul.f32 %v3359, %v3428
        %v3445 = vmul.f32 %v3361, %v3429
        %v3446 = vmul.f32 %v3363, %v3430
        %v3447 = vmul.f32 %v3365, %v3431
        %v3448 = vmul.f32 %v3367, %v3432
        %v3449 = vmul.f32 %v3369, %v3433
        %3450 = vrot.lane.b32.xlu0 %v882, 88
        %v3451 = vpop.permute.xlu0 %3450
        %3452 = vrot.lane.b32.xlu0 %v885, 88
        %v3453 = vpop.permute.xlu0 %3452
        %v3457 = vsel %vm1657, %v3434, 0
        %v3460 = vsel %vm1657, %v3435, 0
        %3462 = vmatprep.subr.mxu0 0.0
        %3463 = vmatpush1.msra.mxu0 %v3451
        %3464 = vmatprep.subr.mxu0 0.0
        %3465 = vmatpush1.msra.mxu0 %v3453
        %3466 = vmatprep.subr.mxu0 0.0
        %3467 = vmatpush1.msra.mxu0 0.0
        %3468 = vmatprep.subr.mxu0 0.0
        %3469 = vmatpush1.msra.mxu0 0.0
        %3470 = vmatprep.subr.mxu0 0.0
        %3471 = vmatpush1.msra.mxu0 0.0
        %3472 = vmatprep.subr.mxu0 0.0
        %3473 = vmatpush1.msra.mxu0 0.0
        %3474 = vmatprep.subr.mxu0 0.0
        %3475 = vmatpush1.msra.mxu0 0.0
        %3476 = vmatprep.subr.mxu0 0.0
        %3477 = vmatpush1.msra.mxu0 0.0
        %3478 = vmatprep.subr.mxu0 0.0
        %3479 = vmatpush1.msra.mxu0 0.0
        %3480 = vmatprep.subr.mxu0 0.0
        %3481 = vmatpush1.msra.mxu0 0.0
        %3482 = vmatprep.subr.mxu0 0.0
        %3483 = vmatpush1.msra.mxu0 0.0
        %3484 = vmatprep.subr.mxu0 0.0
        %3485 = vmatpush1.msra.mxu0 0.0
        %3486 = vmatprep.subr.mxu0 0.0
        %3487 = vmatpush1.msra.mxu0 0.0
        %3488 = vmatprep.subr.mxu0 0.0
        %3489 = vmatpush1.msra.mxu0 0.0
        %3490 = vmatprep.subr.mxu0 0.0
        %3491 = vmatpush1.msra.mxu0 0.0
        %3492 = vmatprep.subr.mxu0 0.0
        %3493 = vmatpush1.msra.mxu0 0.0
        %3494 = vmatprep.subr.mxu0 0.0
        %3495 = vmatpush1.msra.mxu0 0.0
        %3496 = vmatprep.subr.mxu0 0.0
        %3497 = vmatpush1.msra.mxu0 0.0
        %3498 = vmatprep.subr.mxu0 0.0
        %3499 = vmatpush1.msra.mxu0 0.0
        %3500 = vmatprep.subr.mxu0 0.0
        %3501 = vmatpush1.msra.mxu0 0.0
        %3502 = vmatprep.subr.mxu0 0.0
        %3503 = vmatpush1.msra.mxu0 0.0
        %3504 = vmatprep.subr.mxu0 0.0
        %3505 = vmatpush1.msra.mxu0 0.0
        %3506 = vmatprep.subr.mxu0 0.0
        %3507 = vmatpush1.msra.mxu0 0.0
        %3508 = vmatprep.subr.mxu0 0.0
        %3509 = vmatpush1.msra.mxu0 0.0
        %3510 = vmatprep.subr.mxu0 0.0
        %3511 = vmatpush1.msra.mxu0 0.0
        %3512 = vmatprep.subr.mxu0 0.0
        %3513 = vmatpush1.msra.mxu0 0.0
        %3514 = vmatprep.subr.mxu0 0.0
        %3515 = vmatpush1.msra.mxu0 0.0
        %3516 = vmatprep.subr.mxu0 0.0
        %3517 = vmatpush1.msra.mxu0 0.0
        %3518 = vmatprep.subr.mxu0 0.0
        %3519 = vmatpush1.msra.mxu0 0.0
        %3520 = vmatprep.subr.mxu0 0.0
        %3521 = vmatpush1.msra.mxu0 0.0
        %3522 = vmatprep.subr.mxu0 0.0
        %3523 = vmatpush1.msra.mxu0 0.0
        %3524 = vmatprep.subr.mxu0 0.0
        %3525 = vmatpush1.msra.mxu0 0.0
        %3526 = vmatprep.mubr.f32.mxu0 0.0
        %3527 = vmatmul.mubr.f32.gmra.mrb[0].mxu0 %v3457
        %v3528 = vpop.f32.mrb[0].mxu0
        %v3529 = vadd.f32 0.0, %v3528
        %v3530 = vpop.f32.mrb[0].mxu0
        %3531 = vmatprep.mubr.f32.mxu0 0.0
        %3532 = vmatmul.mubr.f32.gmra.mrb[0].mxu0 %v3460
        %v3533 = vpop.f32.mrb[0].mxu0
        %v3534 = vadd.f32 0.0, %v3533
        %v3535 = vpop.f32.mrb[0].mxu0
        %3536 = vdwg.mxu0
        %3537 = vrot.lane.b32.xlu0 %v890, 88
        %v3538 = vpop.permute.xlu0 %3537
        %3539 = vrot.lane.b32.xlu0 %v893, 88
        %v3540 = vpop.permute.xlu0 %3539
        %v3544 = vsel %vm1657, %v3436, 0
        %v3547 = vsel %vm1657, %v3437, 0
        %3549 = vmatprep.subr.mxu0 0.0
        %3550 = vmatpush1.msra.mxu0 %v3538
        %3551 = vmatprep.subr.mxu0 0.0
        %3552 = vmatpush1.msra.mxu0 %v3540
        %3553 = vmatprep.subr.mxu0 0.0
        %3554 = vmatpush1.msra.mxu0 0.0
        %3555 = vmatprep.subr.mxu0 0.0
        %3556 = vmatpush1.msra.mxu0 0.0
        %3557 = vmatprep.subr.mxu0 0.0
        %3558 = vmatpush1.msra.mxu0 0.0
        %3559 = vmatprep.subr.mxu0 0.0
        %3560 = vmatpush1.msra.mxu0 0.0
        %3561 = vmatprep.subr.mxu0 0.0
        %3562 = vmatpush1.msra.mxu0 0.0
        %3563 = vmatprep.subr.mxu0 0.0
        %3564 = vmatpush1.msra.mxu0 0.0
        %3565 = vmatprep.subr.mxu0 0.0
        %3566 = vmatpush1.msra.mxu0 0.0
        %3567 = vmatprep.subr.mxu0 0.0
        %3568 = vmatpush1.msra.mxu0 0.0
        %3569 = vmatprep.subr.mxu0 0.0
        %3570 = vmatpush1.msra.mxu0 0.0
        %3571 = vmatprep.subr.mxu0 0.0
        %3572 = vmatpush1.msra.mxu0 0.0
        %3573 = vmatprep.subr.mxu0 0.0
        %3574 = vmatpush1.msra.mxu0 0.0
        %3575 = vmatprep.subr.mxu0 0.0
        %3576 = vmatpush1.msra.mxu0 0.0
        %3577 = vmatprep.subr.mxu0 0.0
        %3578 = vmatpush1.msra.mxu0 0.0
        %3579 = vmatprep.subr.mxu0 0.0
        %3580 = vmatpush1.msra.mxu0 0.0
        %3581 = vmatprep.subr.mxu0 0.0
        %3582 = vmatpush1.msra.mxu0 0.0
        %3583 = vmatprep.subr.mxu0 0.0
        %3584 = vmatpush1.msra.mxu0 0.0
        %3585 = vmatprep.subr.mxu0 0.0
        %3586 = vmatpush1.msra.mxu0 0.0
        %3587 = vmatprep.subr.mxu0 0.0
        %3588 = vmatpush1.msra.mxu0 0.0
        %3589 = vmatprep.subr.mxu0 0.0
        %3590 = vmatpush1.msra.mxu0 0.0
        %3591 = vmatprep.subr.mxu0 0.0
        %3592 = vmatpush1.msra.mxu0 0.0
        %3593 = vmatprep.subr.mxu0 0.0
        %3594 = vmatpush1.msra.mxu0 0.0
        %3595 = vmatprep.subr.mxu0 0.0
        %3596 = vmatpush1.msra.mxu0 0.0
        %3597 = vmatprep.subr.mxu0 0.0
        %3598 = vmatpush1.msra.mxu0 0.0
        %3599 = vmatprep.subr.mxu0 0.0
        %3600 = vmatpush1.msra.mxu0 0.0
        %3601 = vmatprep.subr.mxu0 0.0
        %3602 = vmatpush1.msra.mxu0 0.0
        %3603 = vmatprep.subr.mxu0 0.0
        %3604 = vmatpush1.msra.mxu0 0.0
        %3605 = vmatprep.subr.mxu0 0.0
        %3606 = vmatpush1.msra.mxu0 0.0
        %3607 = vmatprep.subr.mxu0 0.0
        %3608 = vmatpush1.msra.mxu0 0.0
        %3609 = vmatprep.subr.mxu0 0.0
        %3610 = vmatpush1.msra.mxu0 0.0
        %3611 = vmatprep.subr.mxu0 0.0
        %3612 = vmatpush1.msra.mxu0 0.0
        %3613 = vmatprep.mubr.f32.mxu0 0.0
        %3614 = vmatmul.mubr.f32.gmra.mrb[0].mxu0 %v3544
        %v3615 = vpop.f32.mrb[0].mxu0
        %v3616 = vadd.f32 0.0, %v3615
        %v3617 = vpop.f32.mrb[0].mxu0
        %3618 = vmatprep.mubr.f32.mxu0 0.0
        %3619 = vmatmul.mubr.f32.gmra.mrb[0].mxu0 %v3547
        %v3620 = vpop.f32.mrb[0].mxu0
        %v3621 = vadd.f32 0.0, %v3620
        %v3622 = vpop.f32.mrb[0].mxu0
        %3623 = vdwg.mxu0
        %3624 = vrot.lane.b32.xlu0 %v898, 88
        %v3625 = vpop.permute.xlu0 %3624
        %3626 = vrot.lane.b32.xlu0 %v901, 88
        %v3627 = vpop.permute.xlu0 %3626
        %v3631 = vsel %vm1657, %v3438, 0
        %v3634 = vsel %vm1657, %v3439, 0
        %3636 = vmatprep.subr.mxu0 0.0
        %3637 = vmatpush1.msra.mxu0 %v3625
        %3638 = vmatprep.subr.mxu0 0.0
        %3639 = vmatpush1.msra.mxu0 %v3627
        %3640 = vmatprep.subr.mxu0 0.0
        %3641 = vmatpush1.msra.mxu0 0.0
        %3642 = vmatprep.subr.mxu0 0.0
        %3643 = vmatpush1.msra.mxu0 0.0
        %3644 = vmatprep.subr.mxu0 0.0
        %3645 = vmatpush1.msra.mxu0 0.0
        %3646 = vmatprep.subr.mxu0 0.0
        %3647 = vmatpush1.msra.mxu0 0.0
        %3648 = vmatprep.subr.mxu0 0.0
        %3649 = vmatpush1.msra.mxu0 0.0
        %3650 = vmatprep.subr.mxu0 0.0
        %3651 = vmatpush1.msra.mxu0 0.0
        %3652 = vmatprep.subr.mxu0 0.0
        %3653 = vmatpush1.msra.mxu0 0.0
        %3654 = vmatprep.subr.mxu0 0.0
        %3655 = vmatpush1.msra.mxu0 0.0
        %3656 = vmatprep.subr.mxu0 0.0
        %3657 = vmatpush1.msra.mxu0 0.0
        %3658 = vmatprep.subr.mxu0 0.0
        %3659 = vmatpush1.msra.mxu0 0.0
        %3660 = vmatprep.subr.mxu0 0.0
        %3661 = vmatpush1.msra.mxu0 0.0
        %3662 = vmatprep.subr.mxu0 0.0
        %3663 = vmatpush1.msra.mxu0 0.0
        %3664 = vmatprep.subr.mxu0 0.0
        %3665 = vmatpush1.msra.mxu0 0.0
        %3666 = vmatprep.subr.mxu0 0.0
        %3667 = vmatpush1.msra.mxu0 0.0
        %3668 = vmatprep.subr.mxu0 0.0
        %3669 = vmatpush1.msra.mxu0 0.0
        %3670 = vmatprep.subr.mxu0 0.0
        %3671 = vmatpush1.msra.mxu0 0.0
        %3672 = vmatprep.subr.mxu0 0.0
        %3673 = vmatpush1.msra.mxu0 0.0
        %3674 = vmatprep.subr.mxu0 0.0
        %3675 = vmatpush1.msra.mxu0 0.0
        %3676 = vmatprep.subr.mxu0 0.0
        %3677 = vmatpush1.msra.mxu0 0.0
        %3678 = vmatprep.subr.mxu0 0.0
        %3679 = vmatpush1.msra.mxu0 0.0
        %3680 = vmatprep.subr.mxu0 0.0
        %3681 = vmatpush1.msra.mxu0 0.0
        %3682 = vmatprep.subr.mxu0 0.0
        %3683 = vmatpush1.msra.mxu0 0.0
        %3684 = vmatprep.subr.mxu0 0.0
        %3685 = vmatpush1.msra.mxu0 0.0
        %3686 = vmatprep.subr.mxu0 0.0
        %3687 = vmatpush1.msra.mxu0 0.0
        %3688 = vmatprep.subr.mxu0 0.0
        %3689 = vmatpush1.msra.mxu0 0.0
        %3690 = vmatprep.subr.mxu0 0.0
        %3691 = vmatpush1.msra.mxu0 0.0
        %3692 = vmatprep.subr.mxu0 0.0
        %3693 = vmatpush1.msra.mxu0 0.0
        %3694 = vmatprep.subr.mxu0 0.0
        %3695 = vmatpush1.msra.mxu0 0.0
        %3696 = vmatprep.subr.mxu0 0.0
        %3697 = vmatpush1.msra.mxu0 0.0
        %3698 = vmatprep.subr.mxu0 0.0
        %3699 = vmatpush1.msra.mxu0 0.0
        %3700 = vmatprep.mubr.f32.mxu0 0.0
        %3701 = vmatmul.mubr.f32.gmra.mrb[0].mxu0 %v3631
        %v3702 = vpop.f32.mrb[0].mxu0
        %v3703 = vadd.f32 0.0, %v3702
        %v3704 = vpop.f32.mrb[0].mxu0
        %3705 = vmatprep.mubr.f32.mxu0 0.0
        %3706 = vmatmul.mubr.f32.gmra.mrb[0].mxu0 %v3634
        %v3707 = vpop.f32.mrb[0].mxu0
        %v3708 = vadd.f32 0.0, %v3707
        %v3709 = vpop.f32.mrb[0].mxu0
        %3710 = vdwg.mxu0
        %3711 = vrot.lane.b32.xlu0 %v906, 88
        %v3712 = vpop.permute.xlu0 %3711
        %3713 = vrot.lane.b32.xlu0 %v909, 88
        %v3714 = vpop.permute.xlu0 %3713
        %v3718 = vsel %vm1657, %v3440, 0
        %v3721 = vsel %vm1657, %v3441, 0
        %3723 = vmatprep.subr.mxu0 0.0
        %3724 = vmatpush1.msra.mxu0 %v3712
        %3725 = vmatprep.subr.mxu0 0.0
        %3726 = vmatpush1.msra.mxu0 %v3714
        %3727 = vmatprep.subr.mxu0 0.0
        %3728 = vmatpush1.msra.mxu0 0.0
        %3729 = vmatprep.subr.mxu0 0.0
        %3730 = vmatpush1.msra.mxu0 0.0
        %3731 = vmatprep.subr.mxu0 0.0
        %3732 = vmatpush1.msra.mxu0 0.0
        %3733 = vmatprep.subr.mxu0 0.0
        %3734 = vmatpush1.msra.mxu0 0.0
        %3735 = vmatprep.subr.mxu0 0.0
        %3736 = vmatpush1.msra.mxu0 0.0
        %3737 = vmatprep.subr.mxu0 0.0
        %3738 = vmatpush1.msra.mxu0 0.0
        %3739 = vmatprep.subr.mxu0 0.0
        %3740 = vmatpush1.msra.mxu0 0.0
        %3741 = vmatprep.subr.mxu0 0.0
        %3742 = vmatpush1.msra.mxu0 0.0
        %3743 = vmatprep.subr.mxu0 0.0
        %3744 = vmatpush1.msra.mxu0 0.0
        %3745 = vmatprep.subr.mxu0 0.0
        %3746 = vmatpush1.msra.mxu0 0.0
        %3747 = vmatprep.subr.mxu0 0.0
        %3748 = vmatpush1.msra.mxu0 0.0
        %3749 = vmatprep.subr.mxu0 0.0
        %3750 = vmatpush1.msra.mxu0 0.0
        %3751 = vmatprep.subr.mxu0 0.0
        %3752 = vmatpush1.msra.mxu0 0.0
        %3753 = vmatprep.subr.mxu0 0.0
        %3754 = vmatpush1.msra.mxu0 0.0
        %3755 = vmatprep.subr.mxu0 0.0
        %3756 = vmatpush1.msra.mxu0 0.0
        %3757 = vmatprep.subr.mxu0 0.0
        %3758 = vmatpush1.msra.mxu0 0.0
        %3759 = vmatprep.subr.mxu0 0.0
        %3760 = vmatpush1.msra.mxu0 0.0
        %3761 = vmatprep.subr.mxu0 0.0
        %3762 = vmatpush1.msra.mxu0 0.0
        %3763 = vmatprep.subr.mxu0 0.0
        %3764 = vmatpush1.msra.mxu0 0.0
        %3765 = vmatprep.subr.mxu0 0.0
        %3766 = vmatpush1.msra.mxu0 0.0
        %3767 = vmatprep.subr.mxu0 0.0
        %3768 = vmatpush1.msra.mxu0 0.0
        %3769 = vmatprep.subr.mxu0 0.0
        %3770 = vmatpush1.msra.mxu0 0.0
        %3771 = vmatprep.subr.mxu0 0.0
        %3772 = vmatpush1.msra.mxu0 0.0
        %3773 = vmatprep.subr.mxu0 0.0
        %3774 = vmatpush1.msra.mxu0 0.0
        %3775 = vmatprep.subr.mxu0 0.0
        %3776 = vmatpush1.msra.mxu0 0.0
        %3777 = vmatprep.subr.mxu0 0.0
        %3778 = vmatpush1.msra.mxu0 0.0
        %3779 = vmatprep.subr.mxu0 0.0
        %3780 = vmatpush1.msra.mxu0 0.0
        %3781 = vmatprep.subr.mxu0 0.0
        %3782 = vmatpush1.msra.mxu0 0.0
        %3783 = vmatprep.subr.mxu0 0.0
        %3784 = vmatpush1.msra.mxu0 0.0
        %3785 = vmatprep.subr.mxu0 0.0
        %3786 = vmatpush1.msra.mxu0 0.0
        %3787 = vmatprep.mubr.f32.mxu0 0.0
        %3788 = vmatmul.mubr.f32.gmra.mrb[0].mxu0 %v3718
        %v3789 = vpop.f32.mrb[0].mxu0
        %v3790 = vadd.f32 0.0, %v3789
        %v3791 = vpop.f32.mrb[0].mxu0
        %3792 = vmatprep.mubr.f32.mxu0 0.0
        %3793 = vmatmul.mubr.f32.gmra.mrb[0].mxu0 %v3721
        %v3794 = vpop.f32.mrb[0].mxu0
        %v3795 = vadd.f32 0.0, %v3794
        %v3796 = vpop.f32.mrb[0].mxu0
        %3797 = vdwg.mxu0
        %3798 = vrot.lane.b32.xlu0 %v914, 88
        %v3799 = vpop.permute.xlu0 %3798
        %3800 = vrot.lane.b32.xlu0 %v917, 88
        %v3801 = vpop.permute.xlu0 %3800
        %v3805 = vsel %vm1657, %v3442, 0
        %v3808 = vsel %vm1657, %v3443, 0
        %3810 = vmatprep.subr.mxu0 0.0
        %3811 = vmatpush1.msra.mxu0 %v3799
        %3812 = vmatprep.subr.mxu0 0.0
        %3813 = vmatpush1.msra.mxu0 %v3801
        %3814 = vmatprep.subr.mxu0 0.0
        %3815 = vmatpush1.msra.mxu0 0.0
        %3816 = vmatprep.subr.mxu0 0.0
        %3817 = vmatpush1.msra.mxu0 0.0
        %3818 = vmatprep.subr.mxu0 0.0
        %3819 = vmatpush1.msra.mxu0 0.0
        %3820 = vmatprep.subr.mxu0 0.0
        %3821 = vmatpush1.msra.mxu0 0.0
        %3822 = vmatprep.subr.mxu0 0.0
        %3823 = vmatpush1.msra.mxu0 0.0
        %3824 = vmatprep.subr.mxu0 0.0
        %3825 = vmatpush1.msra.mxu0 0.0
        %3826 = vmatprep.subr.mxu0 0.0
        %3827 = vmatpush1.msra.mxu0 0.0
        %3828 = vmatprep.subr.mxu0 0.0
        %3829 = vmatpush1.msra.mxu0 0.0
        %3830 = vmatprep.subr.mxu0 0.0
        %3831 = vmatpush1.msra.mxu0 0.0
        %3832 = vmatprep.subr.mxu0 0.0
        %3833 = vmatpush1.msra.mxu0 0.0
        %3834 = vmatprep.subr.mxu0 0.0
        %3835 = vmatpush1.msra.mxu0 0.0
        %3836 = vmatprep.subr.mxu0 0.0
        %3837 = vmatpush1.msra.mxu0 0.0
        %3838 = vmatprep.subr.mxu0 0.0
        %3839 = vmatpush1.msra.mxu0 0.0
        %3840 = vmatprep.subr.mxu0 0.0
        %3841 = vmatpush1.msra.mxu0 0.0
        %3842 = vmatprep.subr.mxu0 0.0
        %3843 = vmatpush1.msra.mxu0 0.0
        %3844 = vmatprep.subr.mxu0 0.0
        %3845 = vmatpush1.msra.mxu0 0.0
        %3846 = vmatprep.subr.mxu0 0.0
        %3847 = vmatpush1.msra.mxu0 0.0
        %3848 = vmatprep.subr.mxu0 0.0
        %3849 = vmatpush1.msra.mxu0 0.0
        %3850 = vmatprep.subr.mxu0 0.0
        %3851 = vmatpush1.msra.mxu0 0.0
        %3852 = vmatprep.subr.mxu0 0.0
        %3853 = vmatpush1.msra.mxu0 0.0
        %3854 = vmatprep.subr.mxu0 0.0
        %3855 = vmatpush1.msra.mxu0 0.0
        %3856 = vmatprep.subr.mxu0 0.0
        %3857 = vmatpush1.msra.mxu0 0.0
        %3858 = vmatprep.subr.mxu0 0.0
        %3859 = vmatpush1.msra.mxu0 0.0
        %3860 = vmatprep.subr.mxu0 0.0
        %3861 = vmatpush1.msra.mxu0 0.0
        %3862 = vmatprep.subr.mxu0 0.0
        %3863 = vmatpush1.msra.mxu0 0.0
        %3864 = vmatprep.subr.mxu0 0.0
        %3865 = vmatpush1.msra.mxu0 0.0
        %3866 = vmatprep.subr.mxu0 0.0
        %3867 = vmatpush1.msra.mxu0 0.0
        %3868 = vmatprep.subr.mxu0 0.0
        %3869 = vmatpush1.msra.mxu0 0.0
        %3870 = vmatprep.subr.mxu0 0.0
        %3871 = vmatpush1.msra.mxu0 0.0
        %3872 = vmatprep.subr.mxu0 0.0
        %3873 = vmatpush1.msra.mxu0 0.0
        %3874 = vmatprep.mubr.f32.mxu0 0.0
        %3875 = vmatmul.mubr.f32.gmra.mrb[0].mxu0 %v3805
        %v3876 = vpop.f32.mrb[0].mxu0
        %v3877 = vadd.f32 0.0, %v3876
        %v3878 = vpop.f32.mrb[0].mxu0
        %3879 = vmatprep.mubr.f32.mxu0 0.0
        %3880 = vmatmul.mubr.f32.gmra.mrb[0].mxu0 %v3808
        %v3881 = vpop.f32.mrb[0].mxu0
        %v3882 = vadd.f32 0.0, %v3881
        %v3883 = vpop.f32.mrb[0].mxu0
        %3884 = vdwg.mxu0
        %3885 = vrot.lane.b32.xlu0 %v922, 88
        %v3886 = vpop.permute.xlu0 %3885
        %3887 = vrot.lane.b32.xlu0 %v925, 88
        %v3888 = vpop.permute.xlu0 %3887
        %v3892 = vsel %vm1657, %v3444, 0
        %v3895 = vsel %vm1657, %v3445, 0
        %3897 = vmatprep.subr.mxu0 0.0
        %3898 = vmatpush1.msra.mxu0 %v3886
        %3899 = vmatprep.subr.mxu0 0.0
        %3900 = vmatpush1.msra.mxu0 %v3888
        %3901 = vmatprep.subr.mxu0 0.0
        %3902 = vmatpush1.msra.mxu0 0.0
        %3903 = vmatprep.subr.mxu0 0.0
        %3904 = vmatpush1.msra.mxu0 0.0
        %3905 = vmatprep.subr.mxu0 0.0
        %3906 = vmatpush1.msra.mxu0 0.0
        %3907 = vmatprep.subr.mxu0 0.0
        %3908 = vmatpush1.msra.mxu0 0.0
        %3909 = vmatprep.subr.mxu0 0.0
        %3910 = vmatpush1.msra.mxu0 0.0
        %3911 = vmatprep.subr.mxu0 0.0
        %3912 = vmatpush1.msra.mxu0 0.0
        %3913 = vmatprep.subr.mxu0 0.0
        %3914 = vmatpush1.msra.mxu0 0.0
        %3915 = vmatprep.subr.mxu0 0.0
        %3916 = vmatpush1.msra.mxu0 0.0
        %3917 = vmatprep.subr.mxu0 0.0
        %3918 = vmatpush1.msra.mxu0 0.0
        %3919 = vmatprep.subr.mxu0 0.0
        %3920 = vmatpush1.msra.mxu0 0.0
        %3921 = vmatprep.subr.mxu0 0.0
        %3922 = vmatpush1.msra.mxu0 0.0
        %3923 = vmatprep.subr.mxu0 0.0
        %3924 = vmatpush1.msra.mxu0 0.0
        %3925 = vmatprep.subr.mxu0 0.0
        %3926 = vmatpush1.msra.mxu0 0.0
        %3927 = vmatprep.subr.mxu0 0.0
        %3928 = vmatpush1.msra.mxu0 0.0
        %3929 = vmatprep.subr.mxu0 0.0
        %3930 = vmatpush1.msra.mxu0 0.0
        %3931 = vmatprep.subr.mxu0 0.0
        %3932 = vmatpush1.msra.mxu0 0.0
        %3933 = vmatprep.subr.mxu0 0.0
        %3934 = vmatpush1.msra.mxu0 0.0
        %3935 = vmatprep.subr.mxu0 0.0
        %3936 = vmatpush1.msra.mxu0 0.0
        %3937 = vmatprep.subr.mxu0 0.0
        %3938 = vmatpush1.msra.mxu0 0.0
        %3939 = vmatprep.subr.mxu0 0.0
        %3940 = vmatpush1.msra.mxu0 0.0
        %3941 = vmatprep.subr.mxu0 0.0
        %3942 = vmatpush1.msra.mxu0 0.0
        %3943 = vmatprep.subr.mxu0 0.0
        %3944 = vmatpush1.msra.mxu0 0.0
        %3945 = vmatprep.subr.mxu0 0.0
        %3946 = vmatpush1.msra.mxu0 0.0
        %3947 = vmatprep.subr.mxu0 0.0
        %3948 = vmatpush1.msra.mxu0 0.0
        %3949 = vmatprep.subr.mxu0 0.0
        %3950 = vmatpush1.msra.mxu0 0.0
        %3951 = vmatprep.subr.mxu0 0.0
        %3952 = vmatpush1.msra.mxu0 0.0
        %3953 = vmatprep.subr.mxu0 0.0
        %3954 = vmatpush1.msra.mxu0 0.0
        %3955 = vmatprep.subr.mxu0 0.0
        %3956 = vmatpush1.msra.mxu0 0.0
        %3957 = vmatprep.subr.mxu0 0.0
        %3958 = vmatpush1.msra.mxu0 0.0
        %3959 = vmatprep.subr.mxu0 0.0
        %3960 = vmatpush1.msra.mxu0 0.0
        %3961 = vmatprep.mubr.f32.mxu0 0.0
        %3962 = vmatmul.mubr.f32.gmra.mrb[0].mxu0 %v3892
        %v3963 = vpop.f32.mrb[0].mxu0
        %v3964 = vadd.f32 0.0, %v3963
        %v3965 = vpop.f32.mrb[0].mxu0
        %3966 = vmatprep.mubr.f32.mxu0 0.0
        %3967 = vmatmul.mubr.f32.gmra.mrb[0].mxu0 %v3895
        %v3968 = vpop.f32.mrb[0].mxu0
        %v3969 = vadd.f32 0.0, %v3968
        %v3970 = vpop.f32.mrb[0].mxu0
        %3971 = vdwg.mxu0
        %3972 = vrot.lane.b32.xlu0 %v930, 88
        %v3973 = vpop.permute.xlu0 %3972
        %3974 = vrot.lane.b32.xlu0 %v933, 88
        %v3975 = vpop.permute.xlu0 %3974
        %v3979 = vsel %vm1657, %v3446, 0
        %v3982 = vsel %vm1657, %v3447, 0
        %3984 = vmatprep.subr.mxu0 0.0
        %3985 = vmatpush1.msra.mxu0 %v3973
        %3986 = vmatprep.subr.mxu0 0.0
        %3987 = vmatpush1.msra.mxu0 %v3975
        %3988 = vmatprep.subr.mxu0 0.0
        %3989 = vmatpush1.msra.mxu0 0.0
        %3990 = vmatprep.subr.mxu0 0.0
        %3991 = vmatpush1.msra.mxu0 0.0
        %3992 = vmatprep.subr.mxu0 0.0
        %3993 = vmatpush1.msra.mxu0 0.0
        %3994 = vmatprep.subr.mxu0 0.0
        %3995 = vmatpush1.msra.mxu0 0.0
        %3996 = vmatprep.subr.mxu0 0.0
        %3997 = vmatpush1.msra.mxu0 0.0
        %3998 = vmatprep.subr.mxu0 0.0
        %3999 = vmatpush1.msra.mxu0 0.0
        %4000 = vmatprep.subr.mxu0 0.0
        %4001 = vmatpush1.msra.mxu0 0.0
        %4002 = vmatprep.subr.mxu0 0.0
        %4003 = vmatpush1.msra.mxu0 0.0
        %4004 = vmatprep.subr.mxu0 0.0
        %4005 = vmatpush1.msra.mxu0 0.0
        %4006 = vmatprep.subr.mxu0 0.0
        %4007 = vmatpush1.msra.mxu0 0.0
        %4008 = vmatprep.subr.mxu0 0.0
        %4009 = vmatpush1.msra.mxu0 0.0
        %4010 = vmatprep.subr.mxu0 0.0
        %4011 = vmatpush1.msra.mxu0 0.0
        %4012 = vmatprep.subr.mxu0 0.0
        %4013 = vmatpush1.msra.mxu0 0.0
        %4014 = vmatprep.subr.mxu0 0.0
        %4015 = vmatpush1.msra.mxu0 0.0
        %4016 = vmatprep.subr.mxu0 0.0
        %4017 = vmatpush1.msra.mxu0 0.0
        %4018 = vmatprep.subr.mxu0 0.0
        %4019 = vmatpush1.msra.mxu0 0.0
        %4020 = vmatprep.subr.mxu0 0.0
        %4021 = vmatpush1.msra.mxu0 0.0
        %4022 = vmatprep.subr.mxu0 0.0
        %4023 = vmatpush1.msra.mxu0 0.0
        %4024 = vmatprep.subr.mxu0 0.0
        %4025 = vmatpush1.msra.mxu0 0.0
        %4026 = vmatprep.subr.mxu0 0.0
        %4027 = vmatpush1.msra.mxu0 0.0
        %4028 = vmatprep.subr.mxu0 0.0
        %4029 = vmatpush1.msra.mxu0 0.0
        %4030 = vmatprep.subr.mxu0 0.0
        %4031 = vmatpush1.msra.mxu0 0.0
        %4032 = vmatprep.subr.mxu0 0.0
        %4033 = vmatpush1.msra.mxu0 0.0
        %4034 = vmatprep.subr.mxu0 0.0
        %4035 = vmatpush1.msra.mxu0 0.0
        %4036 = vmatprep.subr.mxu0 0.0
        %4037 = vmatpush1.msra.mxu0 0.0
        %4038 = vmatprep.subr.mxu0 0.0
        %4039 = vmatpush1.msra.mxu0 0.0
        %4040 = vmatprep.subr.mxu0 0.0
        %4041 = vmatpush1.msra.mxu0 0.0
        %4042 = vmatprep.subr.mxu0 0.0
        %4043 = vmatpush1.msra.mxu0 0.0
        %4044 = vmatprep.subr.mxu0 0.0
        %4045 = vmatpush1.msra.mxu0 0.0
        %4046 = vmatprep.subr.mxu0 0.0
        %4047 = vmatpush1.msra.mxu0 0.0
        %4048 = vmatprep.mubr.f32.mxu0 0.0
        %4049 = vmatmul.mubr.f32.gmra.mrb[0].mxu0 %v3979
        %v4050 = vpop.f32.mrb[0].mxu0
        %v4051 = vadd.f32 0.0, %v4050
        %v4052 = vpop.f32.mrb[0].mxu0
        %4053 = vmatprep.mubr.f32.mxu0 0.0
        %4054 = vmatmul.mubr.f32.gmra.mrb[0].mxu0 %v3982
        %v4055 = vpop.f32.mrb[0].mxu0
        %v4056 = vadd.f32 0.0, %v4055
        %v4057 = vpop.f32.mrb[0].mxu0
        %4058 = vdwg.mxu0
        %4059 = vrot.lane.b32.xlu0 %v938, 88
        %v4060 = vpop.permute.xlu0 %4059
        %4061 = vrot.lane.b32.xlu0 %v941, 88
        %v4062 = vpop.permute.xlu0 %4061
        %v4066 = vsel %vm1657, %v3448, 0
        %v4069 = vsel %vm1657, %v3449, 0
        %4071 = vmatprep.subr.mxu0 0.0
        %4072 = vmatpush1.msra.mxu0 %v4060
        %4073 = vmatprep.subr.mxu0 0.0
        %4074 = vmatpush1.msra.mxu0 %v4062
        %4075 = vmatprep.subr.mxu0 0.0
        %4076 = vmatpush1.msra.mxu0 0.0
        %4077 = vmatprep.subr.mxu0 0.0
        %4078 = vmatpush1.msra.mxu0 0.0
        %4079 = vmatprep.subr.mxu0 0.0
        %4080 = vmatpush1.msra.mxu0 0.0
        %4081 = vmatprep.subr.mxu0 0.0
        %4082 = vmatpush1.msra.mxu0 0.0
        %4083 = vmatprep.subr.mxu0 0.0
        %4084 = vmatpush1.msra.mxu0 0.0
        %4085 = vmatprep.subr.mxu0 0.0
        %4086 = vmatpush1.msra.mxu0 0.0
        %4087 = vmatprep.subr.mxu0 0.0
        %4088 = vmatpush1.msra.mxu0 0.0
        %4089 = vmatprep.subr.mxu0 0.0
        %4090 = vmatpush1.msra.mxu0 0.0
        %4091 = vmatprep.subr.mxu0 0.0
        %4092 = vmatpush1.msra.mxu0 0.0
        %4093 = vmatprep.subr.mxu0 0.0
        %4094 = vmatpush1.msra.mxu0 0.0
        %4095 = vmatprep.subr.mxu0 0.0
        %4096 = vmatpush1.msra.mxu0 0.0
        %4097 = vmatprep.subr.mxu0 0.0
        %4098 = vmatpush1.msra.mxu0 0.0
        %4099 = vmatprep.subr.mxu0 0.0
        %4100 = vmatpush1.msra.mxu0 0.0
        %4101 = vmatprep.subr.mxu0 0.0
        %4102 = vmatpush1.msra.mxu0 0.0
        %4103 = vmatprep.subr.mxu0 0.0
        %4104 = vmatpush1.msra.mxu0 0.0
        %4105 = vmatprep.subr.mxu0 0.0
        %4106 = vmatpush1.msra.mxu0 0.0
        %4107 = vmatprep.subr.mxu0 0.0
        %4108 = vmatpush1.msra.mxu0 0.0
        %4109 = vmatprep.subr.mxu0 0.0
        %4110 = vmatpush1.msra.mxu0 0.0
        %4111 = vmatprep.subr.mxu0 0.0
        %4112 = vmatpush1.msra.mxu0 0.0
        %4113 = vmatprep.subr.mxu0 0.0
        %4114 = vmatpush1.msra.mxu0 0.0
        %4115 = vmatprep.subr.mxu0 0.0
        %4116 = vmatpush1.msra.mxu0 0.0
        %4117 = vmatprep.subr.mxu0 0.0
        %4118 = vmatpush1.msra.mxu0 0.0
        %4119 = vmatprep.subr.mxu0 0.0
        %4120 = vmatpush1.msra.mxu0 0.0
        %4121 = vmatprep.subr.mxu0 0.0
        %4122 = vmatpush1.msra.mxu0 0.0
        %4123 = vmatprep.subr.mxu0 0.0
        %4124 = vmatpush1.msra.mxu0 0.0
        %4125 = vmatprep.subr.mxu0 0.0
        %4126 = vmatpush1.msra.mxu0 0.0
        %4127 = vmatprep.subr.mxu0 0.0
        %4128 = vmatpush1.msra.mxu0 0.0
        %4129 = vmatprep.subr.mxu0 0.0
        %4130 = vmatpush1.msra.mxu0 0.0
        %4131 = vmatprep.subr.mxu0 0.0
        %4132 = vmatpush1.msra.mxu0 0.0
        %4133 = vmatprep.subr.mxu0 0.0
        %4134 = vmatpush1.msra.mxu0 0.0
        %4135 = vmatprep.mubr.f32.mxu0 0.0
        %4136 = vmatmul.mubr.f32.gmra.mrb[0].mxu0 %v4066
        %v4137 = vpop.f32.mrb[0].mxu0
        %v4138 = vadd.f32 0.0, %v4137
        %v4139 = vpop.f32.mrb[0].mxu0
        %4140 = vmatprep.mubr.f32.mxu0 0.0
        %4141 = vmatmul.mubr.f32.gmra.mrb[0].mxu0 %v4069
        %v4142 = vpop.f32.mrb[0].mxu0
        %v4143 = vadd.f32 0.0, %v4142
        %v4144 = vpop.f32.mrb[0].mxu0
        %4145 = vdwg.mxu0
        %4146 = vrot.lane.b32.xlu0 %v737, 112
        %v4147 = vpop.permute.xlu0 %4146
        %4148 = vrot.lane.b32.xlu0 %v740, 112
        %v4149 = vpop.permute.xlu0 %4148
        %4150 = vrot.lane.b32.xlu0 %v882, 112
        %v4151 = vpop.permute.xlu0 %4150
        %4152 = vrot.lane.b32.xlu0 %v885, 112
        %v4153 = vpop.permute.xlu0 %4152
        %v4154 = vsel %vm944, %v4147, 0
        %v4156 = vsel %vm944, %v4149, 0
        %v4158 = vsel %vm944, %v4151, 0
        %v4160 = vsel %vm944, %v4153, 0
        %4162 = vmatprep.subr.mxu0 0.0
        %4163 = vmatpush1.xpose.msra.mxu0 %v4158
        %4164 = vmatprep.subr.mxu0 0.0
        %4165 = vmatpush1.xpose.msra.mxu0 %v4160
        %4166 = vmatprep.subr.mxu0 0.0
        %4167 = vmatpush1.xpose.msra.mxu0 0.0
        %4168 = vmatprep.subr.mxu0 0.0
        %4169 = vmatpush1.xpose.msra.mxu0 0.0
        %4170 = vmatprep.subr.mxu0 0.0
        %4171 = vmatpush1.xpose.msra.mxu0 0.0
        %4172 = vmatprep.subr.mxu0 0.0
        %4173 = vmatpush1.xpose.msra.mxu0 0.0
        %4174 = vmatprep.subr.mxu0 0.0
        %4175 = vmatpush1.xpose.msra.mxu0 0.0
        %4176 = vmatprep.subr.mxu0 0.0
        %4177 = vmatpush1.xpose.msra.mxu0 0.0
        %4178 = vmatprep.subr.mxu0 0.0
        %4179 = vmatpush1.xpose.msra.mxu0 0.0
        %4180 = vmatprep.subr.mxu0 0.0
        %4181 = vmatpush1.xpose.msra.mxu0 0.0
        %4182 = vmatprep.subr.mxu0 0.0
        %4183 = vmatpush1.xpose.msra.mxu0 0.0
        %4184 = vmatprep.subr.mxu0 0.0
        %4185 = vmatpush1.xpose.msra.mxu0 0.0
        %4186 = vmatprep.subr.mxu0 0.0
        %4187 = vmatpush1.xpose.msra.mxu0 0.0
        %4188 = vmatprep.subr.mxu0 0.0
        %4189 = vmatpush1.xpose.msra.mxu0 0.0
        %4190 = vmatprep.subr.mxu0 0.0
        %4191 = vmatpush1.xpose.msra.mxu0 0.0
        %4192 = vmatprep.subr.mxu0 0.0
        %4193 = vmatpush1.xpose.msra.mxu0 0.0
        %4194 = vmatprep.subr.mxu0 0.0
        %4195 = vmatpush1.xpose.msra.mxu0 0.0
        %4196 = vmatprep.subr.mxu0 0.0
        %4197 = vmatpush1.xpose.msra.mxu0 0.0
        %4198 = vmatprep.subr.mxu0 0.0
        %4199 = vmatpush1.xpose.msra.mxu0 0.0
        %4200 = vmatprep.subr.mxu0 0.0
        %4201 = vmatpush1.xpose.msra.mxu0 0.0
        %4202 = vmatprep.subr.mxu0 0.0
        %4203 = vmatpush1.xpose.msra.mxu0 0.0
        %4204 = vmatprep.subr.mxu0 0.0
        %4205 = vmatpush1.xpose.msra.mxu0 0.0
        %4206 = vmatprep.subr.mxu0 0.0
        %4207 = vmatpush1.xpose.msra.mxu0 0.0
        %4208 = vmatprep.subr.mxu0 0.0
        %4209 = vmatpush1.xpose.msra.mxu0 0.0
        %4210 = vmatprep.subr.mxu0 0.0
        %4211 = vmatpush1.xpose.msra.mxu0 0.0
        %4212 = vmatprep.subr.mxu0 0.0
        %4213 = vmatpush1.xpose.msra.mxu0 0.0
        %4214 = vmatprep.subr.mxu0 0.0
        %4215 = vmatpush1.xpose.msra.mxu0 0.0
        %4216 = vmatprep.subr.mxu0 0.0
        %4217 = vmatpush1.xpose.msra.mxu0 0.0
        %4218 = vmatprep.subr.mxu0 0.0
        %4219 = vmatpush1.xpose.msra.mxu0 0.0
        %4220 = vmatprep.subr.mxu0 0.0
        %4221 = vmatpush1.xpose.msra.mxu0 0.0
        %4222 = vmatprep.subr.mxu0 0.0
        %4223 = vmatpush1.xpose.msra.mxu0 0.0
        %4224 = vmatprep.subr.mxu0 0.0
        %4225 = vmatpush1.xpose.msra.mxu0 0.0
        %4226 = vmatprep.mubr.f32.mxu0 0.0
        %4227 = vmatmul.mubr.f32.gmra.mrb[0].mxu0 %v4154
        %v4228 = vpop.f32.mrb[0].mxu0
        %v4229 = vadd.f32 0.0, %v4228
        %v4230 = vpop.f32.mrb[0].mxu0
        %4231 = vmatprep.mubr.f32.mxu0 0.0
        %4232 = vmatmul.mubr.f32.gmra.mrb[0].mxu0 %v4156
        %v4233 = vpop.f32.mrb[0].mxu0
        %v4234 = vadd.f32 0.0, %v4233
        %v4235 = vpop.f32.mrb[0].mxu0
        %4236 = vdwg.mxu0
        %4237 = vrot.lane.b32.xlu0 %v745, 112
        %v4238 = vpop.permute.xlu0 %4237
        %4239 = vrot.lane.b32.xlu0 %v748, 112
        %v4240 = vpop.permute.xlu0 %4239
        %4241 = vrot.lane.b32.xlu0 %v890, 112
        %v4242 = vpop.permute.xlu0 %4241
        %4243 = vrot.lane.b32.xlu0 %v893, 112
        %v4244 = vpop.permute.xlu0 %4243
        %v4245 = vsel %vm944, %v4238, 0
        %v4247 = vsel %vm944, %v4240, 0
        %v4249 = vsel %vm944, %v4242, 0
        %v4251 = vsel %vm944, %v4244, 0
        %4253 = vmatprep.subr.mxu0 0.0
        %4254 = vmatpush1.xpose.msra.mxu0 %v4249
        %4255 = vmatprep.subr.mxu0 0.0
        %4256 = vmatpush1.xpose.msra.mxu0 %v4251
        %4257 = vmatprep.subr.mxu0 0.0
        %4258 = vmatpush1.xpose.msra.mxu0 0.0
        %4259 = vmatprep.subr.mxu0 0.0
        %4260 = vmatpush1.xpose.msra.mxu0 0.0
        %4261 = vmatprep.subr.mxu0 0.0
        %4262 = vmatpush1.xpose.msra.mxu0 0.0
        %4263 = vmatprep.subr.mxu0 0.0
        %4264 = vmatpush1.xpose.msra.mxu0 0.0
        %4265 = vmatprep.subr.mxu0 0.0
        %4266 = vmatpush1.xpose.msra.mxu0 0.0
        %4267 = vmatprep.subr.mxu0 0.0
        %4268 = vmatpush1.xpose.msra.mxu0 0.0
        %4269 = vmatprep.subr.mxu0 0.0
        %4270 = vmatpush1.xpose.msra.mxu0 0.0
        %4271 = vmatprep.subr.mxu0 0.0
        %4272 = vmatpush1.xpose.msra.mxu0 0.0
        %4273 = vmatprep.subr.mxu0 0.0
        %4274 = vmatpush1.xpose.msra.mxu0 0.0
        %4275 = vmatprep.subr.mxu0 0.0
        %4276 = vmatpush1.xpose.msra.mxu0 0.0
        %4277 = vmatprep.subr.mxu0 0.0
        %4278 = vmatpush1.xpose.msra.mxu0 0.0
        %4279 = vmatprep.subr.mxu0 0.0
        %4280 = vmatpush1.xpose.msra.mxu0 0.0
        %4281 = vmatprep.subr.mxu0 0.0
        %4282 = vmatpush1.xpose.msra.mxu0 0.0
        %4283 = vmatprep.subr.mxu0 0.0
        %4284 = vmatpush1.xpose.msra.mxu0 0.0
        %4285 = vmatprep.subr.mxu0 0.0
        %4286 = vmatpush1.xpose.msra.mxu0 0.0
        %4287 = vmatprep.subr.mxu0 0.0
        %4288 = vmatpush1.xpose.msra.mxu0 0.0
        %4289 = vmatprep.subr.mxu0 0.0
        %4290 = vmatpush1.xpose.msra.mxu0 0.0
        %4291 = vmatprep.subr.mxu0 0.0
        %4292 = vmatpush1.xpose.msra.mxu0 0.0
        %4293 = vmatprep.subr.mxu0 0.0
        %4294 = vmatpush1.xpose.msra.mxu0 0.0
        %4295 = vmatprep.subr.mxu0 0.0
        %4296 = vmatpush1.xpose.msra.mxu0 0.0
        %4297 = vmatprep.subr.mxu0 0.0
        %4298 = vmatpush1.xpose.msra.mxu0 0.0
        %4299 = vmatprep.subr.mxu0 0.0
        %4300 = vmatpush1.xpose.msra.mxu0 0.0
        %4301 = vmatprep.subr.mxu0 0.0
        %4302 = vmatpush1.xpose.msra.mxu0 0.0
        %4303 = vmatprep.subr.mxu0 0.0
        %4304 = vmatpush1.xpose.msra.mxu0 0.0
        %4305 = vmatprep.subr.mxu0 0.0
        %4306 = vmatpush1.xpose.msra.mxu0 0.0
        %4307 = vmatprep.subr.mxu0 0.0
        %4308 = vmatpush1.xpose.msra.mxu0 0.0
        %4309 = vmatprep.subr.mxu0 0.0
        %4310 = vmatpush1.xpose.msra.mxu0 0.0
        %4311 = vmatprep.subr.mxu0 0.0
        %4312 = vmatpush1.xpose.msra.mxu0 0.0
        %4313 = vmatprep.subr.mxu0 0.0
        %4314 = vmatpush1.xpose.msra.mxu0 0.0
        %4315 = vmatprep.subr.mxu0 0.0
        %4316 = vmatpush1.xpose.msra.mxu0 0.0
        %4317 = vmatprep.mubr.f32.mxu0 0.0
        %4318 = vmatmul.mubr.f32.gmra.mrb[0].mxu0 %v4245
        %v4319 = vpop.f32.mrb[0].mxu0
        %v4320 = vadd.f32 0.0, %v4319
        %v4321 = vpop.f32.mrb[0].mxu0
        %4322 = vmatprep.mubr.f32.mxu0 0.0
        %4323 = vmatmul.mubr.f32.gmra.mrb[0].mxu0 %v4247
        %v4324 = vpop.f32.mrb[0].mxu0
        %v4325 = vadd.f32 0.0, %v4324
        %v4326 = vpop.f32.mrb[0].mxu0
        %4327 = vdwg.mxu0
        %4328 = vrot.lane.b32.xlu0 %v753, 112
        %v4329 = vpop.permute.xlu0 %4328
        %4330 = vrot.lane.b32.xlu0 %v756, 112
        %v4331 = vpop.permute.xlu0 %4330
        %4332 = vrot.lane.b32.xlu0 %v898, 112
        %v4333 = vpop.permute.xlu0 %4332
        %4334 = vrot.lane.b32.xlu0 %v901, 112
        %v4335 = vpop.permute.xlu0 %4334
        %v4336 = vsel %vm944, %v4329, 0
        %v4338 = vsel %vm944, %v4331, 0
        %v4340 = vsel %vm944, %v4333, 0
        %v4342 = vsel %vm944, %v4335, 0
        %4344 = vmatprep.subr.mxu0 0.0
        %4345 = vmatpush1.xpose.msra.mxu0 %v4340
        %4346 = vmatprep.subr.mxu0 0.0
        %4347 = vmatpush1.xpose.msra.mxu0 %v4342
        %4348 = vmatprep.subr.mxu0 0.0
        %4349 = vmatpush1.xpose.msra.mxu0 0.0
        %4350 = vmatprep.subr.mxu0 0.0
        %4351 = vmatpush1.xpose.msra.mxu0 0.0
        %4352 = vmatprep.subr.mxu0 0.0
        %4353 = vmatpush1.xpose.msra.mxu0 0.0
        %4354 = vmatprep.subr.mxu0 0.0
        %4355 = vmatpush1.xpose.msra.mxu0 0.0
        %4356 = vmatprep.subr.mxu0 0.0
        %4357 = vmatpush1.xpose.msra.mxu0 0.0
        %4358 = vmatprep.subr.mxu0 0.0
        %4359 = vmatpush1.xpose.msra.mxu0 0.0
        %4360 = vmatprep.subr.mxu0 0.0
        %4361 = vmatpush1.xpose.msra.mxu0 0.0
        %4362 = vmatprep.subr.mxu0 0.0
        %4363 = vmatpush1.xpose.msra.mxu0 0.0
        %4364 = vmatprep.subr.mxu0 0.0
        %4365 = vmatpush1.xpose.msra.mxu0 0.0
        %4366 = vmatprep.subr.mxu0 0.0
        %4367 = vmatpush1.xpose.msra.mxu0 0.0
        %4368 = vmatprep.subr.mxu0 0.0
        %4369 = vmatpush1.xpose.msra.mxu0 0.0
        %4370 = vmatprep.subr.mxu0 0.0
        %4371 = vmatpush1.xpose.msra.mxu0 0.0
        %4372 = vmatprep.subr.mxu0 0.0
        %4373 = vmatpush1.xpose.msra.mxu0 0.0
        %4374 = vmatprep.subr.mxu0 0.0
        %4375 = vmatpush1.xpose.msra.mxu0 0.0
        %4376 = vmatprep.subr.mxu0 0.0
        %4377 = vmatpush1.xpose.msra.mxu0 0.0
        %4378 = vmatprep.subr.mxu0 0.0
        %4379 = vmatpush1.xpose.msra.mxu0 0.0
        %4380 = vmatprep.subr.mxu0 0.0
        %4381 = vmatpush1.xpose.msra.mxu0 0.0
        %4382 = vmatprep.subr.mxu0 0.0
        %4383 = vmatpush1.xpose.msra.mxu0 0.0
        %4384 = vmatprep.subr.mxu0 0.0
        %4385 = vmatpush1.xpose.msra.mxu0 0.0
        %4386 = vmatprep.subr.mxu0 0.0
        %4387 = vmatpush1.xpose.msra.mxu0 0.0
        %4388 = vmatprep.subr.mxu0 0.0
        %4389 = vmatpush1.xpose.msra.mxu0 0.0
        %4390 = vmatprep.subr.mxu0 0.0
        %4391 = vmatpush1.xpose.msra.mxu0 0.0
        %4392 = vmatprep.subr.mxu0 0.0
        %4393 = vmatpush1.xpose.msra.mxu0 0.0
        %4394 = vmatprep.subr.mxu0 0.0
        %4395 = vmatpush1.xpose.msra.mxu0 0.0
        %4396 = vmatprep.subr.mxu0 0.0
        %4397 = vmatpush1.xpose.msra.mxu0 0.0
        %4398 = vmatprep.subr.mxu0 0.0
        %4399 = vmatpush1.xpose.msra.mxu0 0.0
        %4400 = vmatprep.subr.mxu0 0.0
        %4401 = vmatpush1.xpose.msra.mxu0 0.0
        %4402 = vmatprep.subr.mxu0 0.0
        %4403 = vmatpush1.xpose.msra.mxu0 0.0
        %4404 = vmatprep.subr.mxu0 0.0
        %4405 = vmatpush1.xpose.msra.mxu0 0.0
        %4406 = vmatprep.subr.mxu0 0.0
        %4407 = vmatpush1.xpose.msra.mxu0 0.0
        %4408 = vmatprep.mubr.f32.mxu0 0.0
        %4409 = vmatmul.mubr.f32.gmra.mrb[0].mxu0 %v4336
        %v4410 = vpop.f32.mrb[0].mxu0
        %v4411 = vadd.f32 0.0, %v4410
        %v4412 = vpop.f32.mrb[0].mxu0
        %4413 = vmatprep.mubr.f32.mxu0 0.0
        %4414 = vmatmul.mubr.f32.gmra.mrb[0].mxu0 %v4338
        %v4415 = vpop.f32.mrb[0].mxu0
        %v4416 = vadd.f32 0.0, %v4415
        %v4417 = vpop.f32.mrb[0].mxu0
        %4418 = vdwg.mxu0
        %4419 = vrot.lane.b32.xlu0 %v761, 112
        %v4420 = vpop.permute.xlu0 %4419
        %4421 = vrot.lane.b32.xlu0 %v764, 112
        %v4422 = vpop.permute.xlu0 %4421
        %4423 = vrot.lane.b32.xlu0 %v906, 112
        %v4424 = vpop.permute.xlu0 %4423
        %4425 = vrot.lane.b32.xlu0 %v909, 112
        %v4426 = vpop.permute.xlu0 %4425
        %v4427 = vsel %vm944, %v4420, 0
        %v4429 = vsel %vm944, %v4422, 0
        %v4431 = vsel %vm944, %v4424, 0
        %v4433 = vsel %vm944, %v4426, 0
        %4435 = vmatprep.subr.mxu0 0.0
        %4436 = vmatpush1.xpose.msra.mxu0 %v4431
        %4437 = vmatprep.subr.mxu0 0.0
        %4438 = vmatpush1.xpose.msra.mxu0 %v4433
        %4439 = vmatprep.subr.mxu0 0.0
        %4440 = vmatpush1.xpose.msra.mxu0 0.0
        %4441 = vmatprep.subr.mxu0 0.0
        %4442 = vmatpush1.xpose.msra.mxu0 0.0
        %4443 = vmatprep.subr.mxu0 0.0
        %4444 = vmatpush1.xpose.msra.mxu0 0.0
        %4445 = vmatprep.subr.mxu0 0.0
        %4446 = vmatpush1.xpose.msra.mxu0 0.0
        %4447 = vmatprep.subr.mxu0 0.0
        %4448 = vmatpush1.xpose.msra.mxu0 0.0
        %4449 = vmatprep.subr.mxu0 0.0
        %4450 = vmatpush1.xpose.msra.mxu0 0.0
        %4451 = vmatprep.subr.mxu0 0.0
        %4452 = vmatpush1.xpose.msra.mxu0 0.0
        %4453 = vmatprep.subr.mxu0 0.0
        %4454 = vmatpush1.xpose.msra.mxu0 0.0
        %4455 = vmatprep.subr.mxu0 0.0
        %4456 = vmatpush1.xpose.msra.mxu0 0.0
        %4457 = vmatprep.subr.mxu0 0.0
        %4458 = vmatpush1.xpose.msra.mxu0 0.0
        %4459 = vmatprep.subr.mxu0 0.0
        %4460 = vmatpush1.xpose.msra.mxu0 0.0
        %4461 = vmatprep.subr.mxu0 0.0
        %4462 = vmatpush1.xpose.msra.mxu0 0.0
        %4463 = vmatprep.subr.mxu0 0.0
        %4464 = vmatpush1.xpose.msra.mxu0 0.0
        %4465 = vmatprep.subr.mxu0 0.0
        %4466 = vmatpush1.xpose.msra.mxu0 0.0
        %4467 = vmatprep.subr.mxu0 0.0
        %4468 = vmatpush1.xpose.msra.mxu0 0.0
        %4469 = vmatprep.subr.mxu0 0.0
        %4470 = vmatpush1.xpose.msra.mxu0 0.0
        %4471 = vmatprep.subr.mxu0 0.0
        %4472 = vmatpush1.xpose.msra.mxu0 0.0
        %4473 = vmatprep.subr.mxu0 0.0
        %4474 = vmatpush1.xpose.msra.mxu0 0.0
        %4475 = vmatprep.subr.mxu0 0.0
        %4476 = vmatpush1.xpose.msra.mxu0 0.0
        %4477 = vmatprep.subr.mxu0 0.0
        %4478 = vmatpush1.xpose.msra.mxu0 0.0
        %4479 = vmatprep.subr.mxu0 0.0
        %4480 = vmatpush1.xpose.msra.mxu0 0.0
        %4481 = vmatprep.subr.mxu0 0.0
        %4482 = vmatpush1.xpose.msra.mxu0 0.0
        %4483 = vmatprep.subr.mxu0 0.0
        %4484 = vmatpush1.xpose.msra.mxu0 0.0
        %4485 = vmatprep.subr.mxu0 0.0
        %4486 = vmatpush1.xpose.msra.mxu0 0.0
        %4487 = vmatprep.subr.mxu0 0.0
        %4488 = vmatpush1.xpose.msra.mxu0 0.0
        %4489 = vmatprep.subr.mxu0 0.0
        %4490 = vmatpush1.xpose.msra.mxu0 0.0
        %4491 = vmatprep.subr.mxu0 0.0
        %4492 = vmatpush1.xpose.msra.mxu0 0.0
        %4493 = vmatprep.subr.mxu0 0.0
        %4494 = vmatpush1.xpose.msra.mxu0 0.0
        %4495 = vmatprep.subr.mxu0 0.0
        %4496 = vmatpush1.xpose.msra.mxu0 0.0
        %4497 = vmatprep.subr.mxu0 0.0
        %4498 = vmatpush1.xpose.msra.mxu0 0.0
        %4499 = vmatprep.mubr.f32.mxu0 0.0
        %4500 = vmatmul.mubr.f32.gmra.mrb[0].mxu0 %v4427
        %v4501 = vpop.f32.mrb[0].mxu0
        %v4502 = vadd.f32 0.0, %v4501
        %v4503 = vpop.f32.mrb[0].mxu0
        %4504 = vmatprep.mubr.f32.mxu0 0.0
        %4505 = vmatmul.mubr.f32.gmra.mrb[0].mxu0 %v4429
        %v4506 = vpop.f32.mrb[0].mxu0
        %v4507 = vadd.f32 0.0, %v4506
        %v4508 = vpop.f32.mrb[0].mxu0
        %4509 = vdwg.mxu0
        %4510 = vrot.lane.b32.xlu0 %v769, 112
        %v4511 = vpop.permute.xlu0 %4510
        %4512 = vrot.lane.b32.xlu0 %v772, 112
        %v4513 = vpop.permute.xlu0 %4512
        %4514 = vrot.lane.b32.xlu0 %v914, 112
        %v4515 = vpop.permute.xlu0 %4514
        %4516 = vrot.lane.b32.xlu0 %v917, 112
        %v4517 = vpop.permute.xlu0 %4516
        %v4518 = vsel %vm944, %v4511, 0
        %v4520 = vsel %vm944, %v4513, 0
        %v4522 = vsel %vm944, %v4515, 0
        %v4524 = vsel %vm944, %v4517, 0
        %4526 = vmatprep.subr.mxu0 0.0
        %4527 = vmatpush1.xpose.msra.mxu0 %v4522
        %4528 = vmatprep.subr.mxu0 0.0
        %4529 = vmatpush1.xpose.msra.mxu0 %v4524
        %4530 = vmatprep.subr.mxu0 0.0
        %4531 = vmatpush1.xpose.msra.mxu0 0.0
        %4532 = vmatprep.subr.mxu0 0.0
        %4533 = vmatpush1.xpose.msra.mxu0 0.0
        %4534 = vmatprep.subr.mxu0 0.0
        %4535 = vmatpush1.xpose.msra.mxu0 0.0
        %4536 = vmatprep.subr.mxu0 0.0
        %4537 = vmatpush1.xpose.msra.mxu0 0.0
        %4538 = vmatprep.subr.mxu0 0.0
        %4539 = vmatpush1.xpose.msra.mxu0 0.0
        %4540 = vmatprep.subr.mxu0 0.0
        %4541 = vmatpush1.xpose.msra.mxu0 0.0
        %4542 = vmatprep.subr.mxu0 0.0
        %4543 = vmatpush1.xpose.msra.mxu0 0.0
        %4544 = vmatprep.subr.mxu0 0.0
        %4545 = vmatpush1.xpose.msra.mxu0 0.0
        %4546 = vmatprep.subr.mxu0 0.0
        %4547 = vmatpush1.xpose.msra.mxu0 0.0
        %4548 = vmatprep.subr.mxu0 0.0
        %4549 = vmatpush1.xpose.msra.mxu0 0.0
        %4550 = vmatprep.subr.mxu0 0.0
        %4551 = vmatpush1.xpose.msra.mxu0 0.0
        %4552 = vmatprep.subr.mxu0 0.0
        %4553 = vmatpush1.xpose.msra.mxu0 0.0
        %4554 = vmatprep.subr.mxu0 0.0
        %4555 = vmatpush1.xpose.msra.mxu0 0.0
        %4556 = vmatprep.subr.mxu0 0.0
        %4557 = vmatpush1.xpose.msra.mxu0 0.0
        %4558 = vmatprep.subr.mxu0 0.0
        %4559 = vmatpush1.xpose.msra.mxu0 0.0
        %4560 = vmatprep.subr.mxu0 0.0
        %4561 = vmatpush1.xpose.msra.mxu0 0.0
        %4562 = vmatprep.subr.mxu0 0.0
        %4563 = vmatpush1.xpose.msra.mxu0 0.0
        %4564 = vmatprep.subr.mxu0 0.0
        %4565 = vmatpush1.xpose.msra.mxu0 0.0
        %4566 = vmatprep.subr.mxu0 0.0
        %4567 = vmatpush1.xpose.msra.mxu0 0.0
        %4568 = vmatprep.subr.mxu0 0.0
        %4569 = vmatpush1.xpose.msra.mxu0 0.0
        %4570 = vmatprep.subr.mxu0 0.0
        %4571 = vmatpush1.xpose.msra.mxu0 0.0
        %4572 = vmatprep.subr.mxu0 0.0
        %4573 = vmatpush1.xpose.msra.mxu0 0.0
        %4574 = vmatprep.subr.mxu0 0.0
        %4575 = vmatpush1.xpose.msra.mxu0 0.0
        %4576 = vmatprep.subr.mxu0 0.0
        %4577 = vmatpush1.xpose.msra.mxu0 0.0
        %4578 = vmatprep.subr.mxu0 0.0
        %4579 = vmatpush1.xpose.msra.mxu0 0.0
        %4580 = vmatprep.subr.mxu0 0.0
        %4581 = vmatpush1.xpose.msra.mxu0 0.0
        %4582 = vmatprep.subr.mxu0 0.0
        %4583 = vmatpush1.xpose.msra.mxu0 0.0
        %4584 = vmatprep.subr.mxu0 0.0
        %4585 = vmatpush1.xpose.msra.mxu0 0.0
        %4586 = vmatprep.subr.mxu0 0.0
        %4587 = vmatpush1.xpose.msra.mxu0 0.0
        %4588 = vmatprep.subr.mxu0 0.0
        %4589 = vmatpush1.xpose.msra.mxu0 0.0
        %4590 = vmatprep.mubr.f32.mxu0 0.0
        %4591 = vmatmul.mubr.f32.gmra.mrb[0].mxu0 %v4518
        %v4592 = vpop.f32.mrb[0].mxu0
        %v4593 = vadd.f32 0.0, %v4592
        %v4594 = vpop.f32.mrb[0].mxu0
        %4595 = vmatprep.mubr.f32.mxu0 0.0
        %4596 = vmatmul.mubr.f32.gmra.mrb[0].mxu0 %v4520
        %v4597 = vpop.f32.mrb[0].mxu0
        %v4598 = vadd.f32 0.0, %v4597
        %v4599 = vpop.f32.mrb[0].mxu0
        %4600 = vdwg.mxu0
        %4601 = vrot.lane.b32.xlu0 %v777, 112
        %v4602 = vpop.permute.xlu0 %4601
        %4603 = vrot.lane.b32.xlu0 %v780, 112
        %v4604 = vpop.permute.xlu0 %4603
        %4605 = vrot.lane.b32.xlu0 %v922, 112
        %v4606 = vpop.permute.xlu0 %4605
        %4607 = vrot.lane.b32.xlu0 %v925, 112
        %v4608 = vpop.permute.xlu0 %4607
        %v4609 = vsel %vm944, %v4602, 0
        %v4611 = vsel %vm944, %v4604, 0
        %v4613 = vsel %vm944, %v4606, 0
        %v4615 = vsel %vm944, %v4608, 0
        %4617 = vmatprep.subr.mxu0 0.0
        %4618 = vmatpush1.xpose.msra.mxu0 %v4613
        %4619 = vmatprep.subr.mxu0 0.0
        %4620 = vmatpush1.xpose.msra.mxu0 %v4615
        %4621 = vmatprep.subr.mxu0 0.0
        %4622 = vmatpush1.xpose.msra.mxu0 0.0
        %4623 = vmatprep.subr.mxu0 0.0
        %4624 = vmatpush1.xpose.msra.mxu0 0.0
        %4625 = vmatprep.subr.mxu0 0.0
        %4626 = vmatpush1.xpose.msra.mxu0 0.0
        %4627 = vmatprep.subr.mxu0 0.0
        %4628 = vmatpush1.xpose.msra.mxu0 0.0
        %4629 = vmatprep.subr.mxu0 0.0
        %4630 = vmatpush1.xpose.msra.mxu0 0.0
        %4631 = vmatprep.subr.mxu0 0.0
        %4632 = vmatpush1.xpose.msra.mxu0 0.0
        %4633 = vmatprep.subr.mxu0 0.0
        %4634 = vmatpush1.xpose.msra.mxu0 0.0
        %4635 = vmatprep.subr.mxu0 0.0
        %4636 = vmatpush1.xpose.msra.mxu0 0.0
        %4637 = vmatprep.subr.mxu0 0.0
        %4638 = vmatpush1.xpose.msra.mxu0 0.0
        %4639 = vmatprep.subr.mxu0 0.0
        %4640 = vmatpush1.xpose.msra.mxu0 0.0
        %4641 = vmatprep.subr.mxu0 0.0
        %4642 = vmatpush1.xpose.msra.mxu0 0.0
        %4643 = vmatprep.subr.mxu0 0.0
        %4644 = vmatpush1.xpose.msra.mxu0 0.0
        %4645 = vmatprep.subr.mxu0 0.0
        %4646 = vmatpush1.xpose.msra.mxu0 0.0
        %4647 = vmatprep.subr.mxu0 0.0
        %4648 = vmatpush1.xpose.msra.mxu0 0.0
        %4649 = vmatprep.subr.mxu0 0.0
        %4650 = vmatpush1.xpose.msra.mxu0 0.0
        %4651 = vmatprep.subr.mxu0 0.0
        %4652 = vmatpush1.xpose.msra.mxu0 0.0
        %4653 = vmatprep.subr.mxu0 0.0
        %4654 = vmatpush1.xpose.msra.mxu0 0.0
        %4655 = vmatprep.subr.mxu0 0.0
        %4656 = vmatpush1.xpose.msra.mxu0 0.0
        %4657 = vmatprep.subr.mxu0 0.0
        %4658 = vmatpush1.xpose.msra.mxu0 0.0
        %4659 = vmatprep.subr.mxu0 0.0
        %4660 = vmatpush1.xpose.msra.mxu0 0.0
        %4661 = vmatprep.subr.mxu0 0.0
        %4662 = vmatpush1.xpose.msra.mxu0 0.0
        %4663 = vmatprep.subr.mxu0 0.0
        %4664 = vmatpush1.xpose.msra.mxu0 0.0
        %4665 = vmatprep.subr.mxu0 0.0
        %4666 = vmatpush1.xpose.msra.mxu0 0.0
        %4667 = vmatprep.subr.mxu0 0.0
        %4668 = vmatpush1.xpose.msra.mxu0 0.0
        %4669 = vmatprep.subr.mxu0 0.0
        %4670 = vmatpush1.xpose.msra.mxu0 0.0
        %4671 = vmatprep.subr.mxu0 0.0
        %4672 = vmatpush1.xpose.msra.mxu0 0.0
        %4673 = vmatprep.subr.mxu0 0.0
        %4674 = vmatpush1.xpose.msra.mxu0 0.0
        %4675 = vmatprep.subr.mxu0 0.0
        %4676 = vmatpush1.xpose.msra.mxu0 0.0
        %4677 = vmatprep.subr.mxu0 0.0
        %4678 = vmatpush1.xpose.msra.mxu0 0.0
        %4679 = vmatprep.subr.mxu0 0.0
        %4680 = vmatpush1.xpose.msra.mxu0 0.0
        %4681 = vmatprep.mubr.f32.mxu0 0.0
        %4682 = vmatmul.mubr.f32.gmra.mrb[0].mxu0 %v4609
        %v4683 = vpop.f32.mrb[0].mxu0
        %v4684 = vadd.f32 0.0, %v4683
        %v4685 = vpop.f32.mrb[0].mxu0
        %4686 = vmatprep.mubr.f32.mxu0 0.0
        %4687 = vmatmul.mubr.f32.gmra.mrb[0].mxu0 %v4611
        %v4688 = vpop.f32.mrb[0].mxu0
        %v4689 = vadd.f32 0.0, %v4688
        %v4690 = vpop.f32.mrb[0].mxu0
        %4691 = vdwg.mxu0
        %4692 = vrot.lane.b32.xlu0 %v785, 112
        %v4693 = vpop.permute.xlu0 %4692
        %4694 = vrot.lane.b32.xlu0 %v788, 112
        %v4695 = vpop.permute.xlu0 %4694
        %4696 = vrot.lane.b32.xlu0 %v930, 112
        %v4697 = vpop.permute.xlu0 %4696
        %4698 = vrot.lane.b32.xlu0 %v933, 112
        %v4699 = vpop.permute.xlu0 %4698
        %v4700 = vsel %vm944, %v4693, 0
        %v4702 = vsel %vm944, %v4695, 0
        %v4704 = vsel %vm944, %v4697, 0
        %v4706 = vsel %vm944, %v4699, 0
        %4708 = vmatprep.subr.mxu0 0.0
        %4709 = vmatpush1.xpose.msra.mxu0 %v4704
        %4710 = vmatprep.subr.mxu0 0.0
        %4711 = vmatpush1.xpose.msra.mxu0 %v4706
        %4712 = vmatprep.subr.mxu0 0.0
        %4713 = vmatpush1.xpose.msra.mxu0 0.0
        %4714 = vmatprep.subr.mxu0 0.0
        %4715 = vmatpush1.xpose.msra.mxu0 0.0
        %4716 = vmatprep.subr.mxu0 0.0
        %4717 = vmatpush1.xpose.msra.mxu0 0.0
        %4718 = vmatprep.subr.mxu0 0.0
        %4719 = vmatpush1.xpose.msra.mxu0 0.0
        %4720 = vmatprep.subr.mxu0 0.0
        %4721 = vmatpush1.xpose.msra.mxu0 0.0
        %4722 = vmatprep.subr.mxu0 0.0
        %4723 = vmatpush1.xpose.msra.mxu0 0.0
        %4724 = vmatprep.subr.mxu0 0.0
        %4725 = vmatpush1.xpose.msra.mxu0 0.0
        %4726 = vmatprep.subr.mxu0 0.0
        %4727 = vmatpush1.xpose.msra.mxu0 0.0
        %4728 = vmatprep.subr.mxu0 0.0
        %4729 = vmatpush1.xpose.msra.mxu0 0.0
        %4730 = vmatprep.subr.mxu0 0.0
        %4731 = vmatpush1.xpose.msra.mxu0 0.0
        %4732 = vmatprep.subr.mxu0 0.0
        %4733 = vmatpush1.xpose.msra.mxu0 0.0
        %4734 = vmatprep.subr.mxu0 0.0
        %4735 = vmatpush1.xpose.msra.mxu0 0.0
        %4736 = vmatprep.subr.mxu0 0.0
        %4737 = vmatpush1.xpose.msra.mxu0 0.0
        %4738 = vmatprep.subr.mxu0 0.0
        %4739 = vmatpush1.xpose.msra.mxu0 0.0
        %4740 = vmatprep.subr.mxu0 0.0
        %4741 = vmatpush1.xpose.msra.mxu0 0.0
        %4742 = vmatprep.subr.mxu0 0.0
        %4743 = vmatpush1.xpose.msra.mxu0 0.0
        %4744 = vmatprep.subr.mxu0 0.0
        %4745 = vmatpush1.xpose.msra.mxu0 0.0
        %4746 = vmatprep.subr.mxu0 0.0
        %4747 = vmatpush1.xpose.msra.mxu0 0.0
        %4748 = vmatprep.subr.mxu0 0.0
        %4749 = vmatpush1.xpose.msra.mxu0 0.0
        %4750 = vmatprep.subr.mxu0 0.0
        %4751 = vmatpush1.xpose.msra.mxu0 0.0
        %4752 = vmatprep.subr.mxu0 0.0
        %4753 = vmatpush1.xpose.msra.mxu0 0.0
        %4754 = vmatprep.subr.mxu0 0.0
        %4755 = vmatpush1.xpose.msra.mxu0 0.0
        %4756 = vmatprep.subr.mxu0 0.0
        %4757 = vmatpush1.xpose.msra.mxu0 0.0
        %4758 = vmatprep.subr.mxu0 0.0
        %4759 = vmatpush1.xpose.msra.mxu0 0.0
        %4760 = vmatprep.subr.mxu0 0.0
        %4761 = vmatpush1.xpose.msra.mxu0 0.0
        %4762 = vmatprep.subr.mxu0 0.0
        %4763 = vmatpush1.xpose.msra.mxu0 0.0
        %4764 = vmatprep.subr.mxu0 0.0
        %4765 = vmatpush1.xpose.msra.mxu0 0.0
        %4766 = vmatprep.subr.mxu0 0.0
        %4767 = vmatpush1.xpose.msra.mxu0 0.0
        %4768 = vmatprep.subr.mxu0 0.0
        %4769 = vmatpush1.xpose.msra.mxu0 0.0
        %4770 = vmatprep.subr.mxu0 0.0
        %4771 = vmatpush1.xpose.msra.mxu0 0.0
        %4772 = vmatprep.mubr.f32.mxu0 0.0
        %4773 = vmatmul.mubr.f32.gmra.mrb[0].mxu0 %v4700
        %v4774 = vpop.f32.mrb[0].mxu0
        %v4775 = vadd.f32 0.0, %v4774
        %v4776 = vpop.f32.mrb[0].mxu0
        %4777 = vmatprep.mubr.f32.mxu0 0.0
        %4778 = vmatmul.mubr.f32.gmra.mrb[0].mxu0 %v4702
        %v4779 = vpop.f32.mrb[0].mxu0
        %v4780 = vadd.f32 0.0, %v4779
        %v4781 = vpop.f32.mrb[0].mxu0
        %4782 = vdwg.mxu0
        %4783 = vrot.lane.b32.xlu0 %v793, 112
        %v4784 = vpop.permute.xlu0 %4783
        %4785 = vrot.lane.b32.xlu0 %v796, 112
        %v4786 = vpop.permute.xlu0 %4785
        %4787 = vrot.lane.b32.xlu0 %v938, 112
        %v4788 = vpop.permute.xlu0 %4787
        %4789 = vrot.lane.b32.xlu0 %v941, 112
        %v4790 = vpop.permute.xlu0 %4789
        %v4791 = vsel %vm944, %v4784, 0
        %v4793 = vsel %vm944, %v4786, 0
        %v4795 = vsel %vm944, %v4788, 0
        %v4797 = vsel %vm944, %v4790, 0
        %4799 = vmatprep.subr.mxu0 0.0
        %4800 = vmatpush1.xpose.msra.mxu0 %v4795
        %4801 = vmatprep.subr.mxu0 0.0
        %4802 = vmatpush1.xpose.msra.mxu0 %v4797
        %4803 = vmatprep.subr.mxu0 0.0
        %4804 = vmatpush1.xpose.msra.mxu0 0.0
        %4805 = vmatprep.subr.mxu0 0.0
        %4806 = vmatpush1.xpose.msra.mxu0 0.0
        %4807 = vmatprep.subr.mxu0 0.0
        %4808 = vmatpush1.xpose.msra.mxu0 0.0
        %4809 = vmatprep.subr.mxu0 0.0
        %4810 = vmatpush1.xpose.msra.mxu0 0.0
        %4811 = vmatprep.subr.mxu0 0.0
        %4812 = vmatpush1.xpose.msra.mxu0 0.0
        %4813 = vmatprep.subr.mxu0 0.0
        %4814 = vmatpush1.xpose.msra.mxu0 0.0
        %4815 = vmatprep.subr.mxu0 0.0
        %4816 = vmatpush1.xpose.msra.mxu0 0.0
        %4817 = vmatprep.subr.mxu0 0.0
        %4818 = vmatpush1.xpose.msra.mxu0 0.0
        %4819 = vmatprep.subr.mxu0 0.0
        %4820 = vmatpush1.xpose.msra.mxu0 0.0
        %4821 = vmatprep.subr.mxu0 0.0
        %4822 = vmatpush1.xpose.msra.mxu0 0.0
        %4823 = vmatprep.subr.mxu0 0.0
        %4824 = vmatpush1.xpose.msra.mxu0 0.0
        %4825 = vmatprep.subr.mxu0 0.0
        %4826 = vmatpush1.xpose.msra.mxu0 0.0
        %4827 = vmatprep.subr.mxu0 0.0
        %4828 = vmatpush1.xpose.msra.mxu0 0.0
        %4829 = vmatprep.subr.mxu0 0.0
        %4830 = vmatpush1.xpose.msra.mxu0 0.0
        %4831 = vmatprep.subr.mxu0 0.0
        %4832 = vmatpush1.xpose.msra.mxu0 0.0
        %4833 = vmatprep.subr.mxu0 0.0
        %4834 = vmatpush1.xpose.msra.mxu0 0.0
        %4835 = vmatprep.subr.mxu0 0.0
        %4836 = vmatpush1.xpose.msra.mxu0 0.0
        %4837 = vmatprep.subr.mxu0 0.0
        %4838 = vmatpush1.xpose.msra.mxu0 0.0
        %4839 = vmatprep.subr.mxu0 0.0
        %4840 = vmatpush1.xpose.msra.mxu0 0.0
        %4841 = vmatprep.subr.mxu0 0.0
        %4842 = vmatpush1.xpose.msra.mxu0 0.0
        %4843 = vmatprep.subr.mxu0 0.0
        %4844 = vmatpush1.xpose.msra.mxu0 0.0
        %4845 = vmatprep.subr.mxu0 0.0
        %4846 = vmatpush1.xpose.msra.mxu0 0.0
        %4847 = vmatprep.subr.mxu0 0.0
        %4848 = vmatpush1.xpose.msra.mxu0 0.0
        %4849 = vmatprep.subr.mxu0 0.0
        %4850 = vmatpush1.xpose.msra.mxu0 0.0
        %4851 = vmatprep.subr.mxu0 0.0
        %4852 = vmatpush1.xpose.msra.mxu0 0.0
        %4853 = vmatprep.subr.mxu0 0.0
        %4854 = vmatpush1.xpose.msra.mxu0 0.0
        %4855 = vmatprep.subr.mxu0 0.0
        %4856 = vmatpush1.xpose.msra.mxu0 0.0
        %4857 = vmatprep.subr.mxu0 0.0
        %4858 = vmatpush1.xpose.msra.mxu0 0.0
        %4859 = vmatprep.subr.mxu0 0.0
        %4860 = vmatpush1.xpose.msra.mxu0 0.0
        %4861 = vmatprep.subr.mxu0 0.0
        %4862 = vmatpush1.xpose.msra.mxu0 0.0
        %4863 = vmatprep.mubr.f32.mxu0 0.0
        %4864 = vmatmul.mubr.f32.gmra.mrb[0].mxu0 %v4791
        %v4865 = vpop.f32.mrb[0].mxu0
        %v4866 = vadd.f32 0.0, %v4865
        %v4867 = vpop.f32.mrb[0].mxu0
        %4868 = vmatprep.mubr.f32.mxu0 0.0
        %4869 = vmatmul.mubr.f32.gmra.mrb[0].mxu0 %v4793
        %v4870 = vpop.f32.mrb[0].mxu0
        %v4871 = vadd.f32 0.0, %v4870
        %v4872 = vpop.f32.mrb[0].mxu0
        %4873 = vdwg.mxu0
        %v4874 = vmul.f32 %v4229, 0.35355338
        %v4875 = vmul.f32 %v4234, 0.35355338
        %v4876 = vmul.f32 %v4320, 0.35355338
        %v4877 = vmul.f32 %v4325, 0.35355338
        %v4878 = vmul.f32 %v4411, 0.35355338
        %v4879 = vmul.f32 %v4416, 0.35355338
        %v4880 = vmul.f32 %v4502, 0.35355338
        %v4881 = vmul.f32 %v4507, 0.35355338
        %v4882 = vmul.f32 %v4593, 0.35355338
        %v4883 = vmul.f32 %v4598, 0.35355338
        %v4884 = vmul.f32 %v4684, 0.35355338
        %v4885 = vmul.f32 %v4689, 0.35355338
        %v4886 = vmul.f32 %v4775, 0.35355338
        %v4887 = vmul.f32 %v4780, 0.35355338
        %v4888 = vmul.f32 %v4866, 0.35355338
        %v4889 = vmul.f32 %v4871, 0.35355338
        %v4890 = vsel %vm1657, %v4874, -inf
        %4891 = vmax.xlane.f32.xlu0 %v4890
        %v4892 = vpop.xlane.xlu0 %4891
        %v4893 = vsel %vm1657, %v4875, -inf
        %4894 = vmax.xlane.f32.xlu0 %v4893
        %v4895 = vpop.xlane.xlu0 %4894
        %v4896 = vsel %vm1657, %v4876, -inf
        %4897 = vmax.xlane.f32.xlu0 %v4896
        %v4898 = vpop.xlane.xlu0 %4897
        %v4899 = vsel %vm1657, %v4877, -inf
        %4900 = vmax.xlane.f32.xlu0 %v4899
        %v4901 = vpop.xlane.xlu0 %4900
        %v4902 = vsel %vm1657, %v4878, -inf
        %4903 = vmax.xlane.f32.xlu0 %v4902
        %v4904 = vpop.xlane.xlu0 %4903
        %v4905 = vsel %vm1657, %v4879, -inf
        %4906 = vmax.xlane.f32.xlu0 %v4905
        %v4907 = vpop.xlane.xlu0 %4906
        %v4908 = vsel %vm1657, %v4880, -inf
        %4909 = vmax.xlane.f32.xlu0 %v4908
        %v4910 = vpop.xlane.xlu0 %4909
        %v4911 = vsel %vm1657, %v4881, -inf
        %4912 = vmax.xlane.f32.xlu0 %v4911
        %v4913 = vpop.xlane.xlu0 %4912
        %v4914 = vsel %vm1657, %v4882, -inf
        %4915 = vmax.xlane.f32.xlu0 %v4914
        %v4916 = vpop.xlane.xlu0 %4915
        %v4917 = vsel %vm1657, %v4883, -inf
        %4918 = vmax.xlane.f32.xlu0 %v4917
        %v4919 = vpop.xlane.xlu0 %4918
        %v4920 = vsel %vm1657, %v4884, -inf
        %4921 = vmax.xlane.f32.xlu0 %v4920
        %v4922 = vpop.xlane.xlu0 %4921
        %v4923 = vsel %vm1657, %v4885, -inf
        %4924 = vmax.xlane.f32.xlu0 %v4923
        %v4925 = vpop.xlane.xlu0 %4924
        %v4926 = vsel %vm1657, %v4886, -inf
        %4927 = vmax.xlane.f32.xlu0 %v4926
        %v4928 = vpop.xlane.xlu0 %4927
        %v4929 = vsel %vm1657, %v4887, -inf
        %4930 = vmax.xlane.f32.xlu0 %v4929
        %v4931 = vpop.xlane.xlu0 %4930
        %v4932 = vsel %vm1657, %v4888, -inf
        %4933 = vmax.xlane.f32.xlu0 %v4932
        %v4934 = vpop.xlane.xlu0 %4933
        %v4935 = vsel %vm1657, %v4889, -inf
        %4936 = vmax.xlane.f32.xlu0 %v4935
        %v4937 = vpop.xlane.xlu0 %4936
        %v4938 = vsub.f32 %v4874, %v4892
        %v4939 = vsub.f32 %v4875, %v4895
        %v4940 = vsub.f32 %v4876, %v4898
        %v4941 = vsub.f32 %v4877, %v4901
        %v4942 = vsub.f32 %v4878, %v4904
        %v4943 = vsub.f32 %v4879, %v4907
        %v4944 = vsub.f32 %v4880, %v4910
        %v4945 = vsub.f32 %v4881, %v4913
        %v4946 = vsub.f32 %v4882, %v4916
        %v4947 = vsub.f32 %v4883, %v4919
        %v4948 = vsub.f32 %v4884, %v4922
        %v4949 = vsub.f32 %v4885, %v4925
        %v4950 = vsub.f32 %v4886, %v4928
        %v4951 = vsub.f32 %v4887, %v4931
        %v4952 = vsub.f32 %v4888, %v4934
        %v4953 = vsub.f32 %v4889, %v4937
        %v4954 = vmul.f32 %v4938, 1.442695
        %v4955 = vpow.pop %v4954
        %v4956 = vmul.f32 %v4939, 1.442695
        %v4957 = vpow.pop %v4956
        %v4958 = vmul.f32 %v4940, 1.442695
        %v4959 = vpow.pop %v4958
        %v4960 = vmul.f32 %v4941, 1.442695
        %v4961 = vpow.pop %v4960
        %v4962 = vmul.f32 %v4942, 1.442695
        %v4963 = vpow.pop %v4962
        %v4964 = vmul.f32 %v4943, 1.442695
        %v4965 = vpow.pop %v4964
        %v4966 = vmul.f32 %v4944, 1.442695
        %v4967 = vpow.pop %v4966
        %v4968 = vmul.f32 %v4945, 1.442695
        %v4969 = vpow.pop %v4968
        %v4970 = vmul.f32 %v4946, 1.442695
        %v4971 = vpow.pop %v4970
        %v4972 = vmul.f32 %v4947, 1.442695
        %v4973 = vpow.pop %v4972
        %v4974 = vmul.f32 %v4948, 1.442695
        %v4975 = vpow.pop %v4974
        %v4976 = vmul.f32 %v4949, 1.442695
        %v4977 = vpow.pop %v4976
        %v4978 = vmul.f32 %v4950, 1.442695
        %v4979 = vpow.pop %v4978
        %v4980 = vmul.f32 %v4951, 1.442695
        %v4981 = vpow.pop %v4980
        %v4982 = vmul.f32 %v4952, 1.442695
        %v4983 = vpow.pop %v4982
        %v4984 = vmul.f32 %v4953, 1.442695
        %v4985 = vpow.pop %v4984
        %v4986 = vsel %vm1657, %v4955, 0.0
        %4987 = vadd.xlane.f32.xlu0 %v4986
        %v4988 = vpop.xlane.xlu0 %4987
        %v4989 = vsel %vm1657, %v4957, 0.0
        %4990 = vadd.xlane.f32.xlu0 %v4989
        %v4991 = vpop.xlane.xlu0 %4990
        %v4992 = vsel %vm1657, %v4959, 0.0
        %4993 = vadd.xlane.f32.xlu0 %v4992
        %v4994 = vpop.xlane.xlu0 %4993
        %v4995 = vsel %vm1657, %v4961, 0.0
        %4996 = vadd.xlane.f32.xlu0 %v4995
        %v4997 = vpop.xlane.xlu0 %4996
        %v4998 = vsel %vm1657, %v4963, 0.0
        %4999 = vadd.xlane.f32.xlu0 %v4998
        %v5000 = vpop.xlane.xlu0 %4999
        %v5001 = vsel %vm1657, %v4965, 0.0
        %5002 = vadd.xlane.f32.xlu0 %v5001
        %v5003 = vpop.xlane.xlu0 %5002
        %v5004 = vsel %vm1657, %v4967, 0.0
        %5005 = vadd.xlane.f32.xlu0 %v5004
        %v5006 = vpop.xlane.xlu0 %5005
        %v5007 = vsel %vm1657, %v4969, 0.0
        %5008 = vadd.xlane.f32.xlu0 %v5007
        %v5009 = vpop.xlane.xlu0 %5008
        %v5010 = vsel %vm1657, %v4971, 0.0
        %5011 = vadd.xlane.f32.xlu0 %v5010
        %v5012 = vpop.xlane.xlu0 %5011
        %v5013 = vsel %vm1657, %v4973, 0.0
        %5014 = vadd.xlane.f32.xlu0 %v5013
        %v5015 = vpop.xlane.xlu0 %5014
        %v5016 = vsel %vm1657, %v4975, 0.0
        %5017 = vadd.xlane.f32.xlu0 %v5016
        %v5018 = vpop.xlane.xlu0 %5017
        %v5019 = vsel %vm1657, %v4977, 0.0
        %5020 = vadd.xlane.f32.xlu0 %v5019
        %v5021 = vpop.xlane.xlu0 %5020
        %v5022 = vsel %vm1657, %v4979, 0.0
        %5023 = vadd.xlane.f32.xlu0 %v5022
        %v5024 = vpop.xlane.xlu0 %5023
        %v5025 = vsel %vm1657, %v4981, 0.0
        %5026 = vadd.xlane.f32.xlu0 %v5025
        %v5027 = vpop.xlane.xlu0 %5026
        %v5028 = vsel %vm1657, %v4983, 0.0
        %5029 = vadd.xlane.f32.xlu0 %v5028
        %v5030 = vpop.xlane.xlu0 %5029
        %v5031 = vsel %vm1657, %v4985, 0.0
        %5032 = vadd.xlane.f32.xlu0 %v5031
        %v5033 = vpop.xlane.xlu0 %5032
        %v5034 = vrcp.pop %v4988
        %v5035 = vrcp.pop %v4991
        %v5036 = vrcp.pop %v4994
        %v5037 = vrcp.pop %v4997
        %v5038 = vrcp.pop %v5000
        %v5039 = vrcp.pop %v5003
        %v5040 = vrcp.pop %v5006
        %v5041 = vrcp.pop %v5009
        %v5042 = vrcp.pop %v5012
        %v5043 = vrcp.pop %v5015
        %v5044 = vrcp.pop %v5018
        %v5045 = vrcp.pop %v5021
        %v5046 = vrcp.pop %v5024
        %v5047 = vrcp.pop %v5027
        %v5048 = vrcp.pop %v5030
        %v5049 = vrcp.pop %v5033
        %v5050 = vmul.f32 %v4955, %v5034
        %v5051 = vmul.f32 %v4957, %v5035
        %v5052 = vmul.f32 %v4959, %v5036
        %v5053 = vmul.f32 %v4961, %v5037
        %v5054 = vmul.f32 %v4963, %v5038
        %v5055 = vmul.f32 %v4965, %v5039
        %v5056 = vmul.f32 %v4967, %v5040
        %v5057 = vmul.f32 %v4969, %v5041
        %v5058 = vmul.f32 %v4971, %v5042
        %v5059 = vmul.f32 %v4973, %v5043
        %v5060 = vmul.f32 %v4975, %v5044
        %v5061 = vmul.f32 %v4977, %v5045
        %v5062 = vmul.f32 %v4979, %v5046
        %v5063 = vmul.f32 %v4981, %v5047
        %v5064 = vmul.f32 %v4983, %v5048
        %v5065 = vmul.f32 %v4985, %v5049
        %5066 = vrot.lane.b32.xlu0 %v882, 80
        %v5067 = vpop.permute.xlu0 %5066
        %5068 = vrot.lane.b32.xlu0 %v885, 80
        %v5069 = vpop.permute.xlu0 %5068
        %v5073 = vsel %vm1657, %v5050, 0
        %v5076 = vsel %vm1657, %v5051, 0
        %5078 = vmatprep.subr.mxu0 0.0
        %5079 = vmatpush1.msra.mxu0 %v5067
        %5080 = vmatprep.subr.mxu0 0.0
        %5081 = vmatpush1.msra.mxu0 %v5069
        %5082 = vmatprep.subr.mxu0 0.0
        %5083 = vmatpush1.msra.mxu0 0.0
        %5084 = vmatprep.subr.mxu0 0.0
        %5085 = vmatpush1.msra.mxu0 0.0
        %5086 = vmatprep.subr.mxu0 0.0
        %5087 = vmatpush1.msra.mxu0 0.0
        %5088 = vmatprep.subr.mxu0 0.0
        %5089 = vmatpush1.msra.mxu0 0.0
        %5090 = vmatprep.subr.mxu0 0.0
        %5091 = vmatpush1.msra.mxu0 0.0
        %5092 = vmatprep.subr.mxu0 0.0
        %5093 = vmatpush1.msra.mxu0 0.0
        %5094 = vmatprep.subr.mxu0 0.0
        %5095 = vmatpush1.msra.mxu0 0.0
        %5096 = vmatprep.subr.mxu0 0.0
        %5097 = vmatpush1.msra.mxu0 0.0
        %5098 = vmatprep.subr.mxu0 0.0
        %5099 = vmatpush1.msra.mxu0 0.0
        %5100 = vmatprep.subr.mxu0 0.0
        %5101 = vmatpush1.msra.mxu0 0.0
        %5102 = vmatprep.subr.mxu0 0.0
        %5103 = vmatpush1.msra.mxu0 0.0
        %5104 = vmatprep.subr.mxu0 0.0
        %5105 = vmatpush1.msra.mxu0 0.0
        %5106 = vmatprep.subr.mxu0 0.0
        %5107 = vmatpush1.msra.mxu0 0.0
        %5108 = vmatprep.subr.mxu0 0.0
        %5109 = vmatpush1.msra.mxu0 0.0
        %5110 = vmatprep.subr.mxu0 0.0
        %5111 = vmatpush1.msra.mxu0 0.0
        %5112 = vmatprep.subr.mxu0 0.0
        %5113 = vmatpush1.msra.mxu0 0.0
        %5114 = vmatprep.subr.mxu0 0.0
        %5115 = vmatpush1.msra.mxu0 0.0
        %5116 = vmatprep.subr.mxu0 0.0
        %5117 = vmatpush1.msra.mxu0 0.0
        %5118 = vmatprep.subr.mxu0 0.0
        %5119 = vmatpush1.msra.mxu0 0.0
        %5120 = vmatprep.subr.mxu0 0.0
        %5121 = vmatpush1.msra.mxu0 0.0
        %5122 = vmatprep.subr.mxu0 0.0
        %5123 = vmatpush1.msra.mxu0 0.0
        %5124 = vmatprep.subr.mxu0 0.0
        %5125 = vmatpush1.msra.mxu0 0.0
        %5126 = vmatprep.subr.mxu0 0.0
        %5127 = vmatpush1.msra.mxu0 0.0
        %5128 = vmatprep.subr.mxu0 0.0
        %5129 = vmatpush1.msra.mxu0 0.0
        %5130 = vmatprep.subr.mxu0 0.0
        %5131 = vmatpush1.msra.mxu0 0.0
        %5132 = vmatprep.subr.mxu0 0.0
        %5133 = vmatpush1.msra.mxu0 0.0
        %5134 = vmatprep.subr.mxu0 0.0
        %5135 = vmatpush1.msra.mxu0 0.0
        %5136 = vmatprep.subr.mxu0 0.0
        %5137 = vmatpush1.msra.mxu0 0.0
        %5138 = vmatprep.subr.mxu0 0.0
        %5139 = vmatpush1.msra.mxu0 0.0
        %5140 = vmatprep.subr.mxu0 0.0
        %5141 = vmatpush1.msra.mxu0 0.0
        %5142 = vmatprep.mubr.f32.mxu0 0.0
        %5143 = vmatmul.mubr.f32.gmra.mrb[0].mxu0 %v5073
        %v5144 = vpop.f32.mrb[0].mxu0
        %v5145 = vadd.f32 0.0, %v5144
        %v5146 = vpop.f32.mrb[0].mxu0
        %5147 = vmatprep.mubr.f32.mxu0 0.0
        %5148 = vmatmul.mubr.f32.gmra.mrb[0].mxu0 %v5076
        %v5149 = vpop.f32.mrb[0].mxu0
        %v5150 = vadd.f32 0.0, %v5149
        %v5151 = vpop.f32.mrb[0].mxu0
        %5152 = vdwg.mxu0
        %5153 = vrot.lane.b32.xlu0 %v890, 80
        %v5154 = vpop.permute.xlu0 %5153
        %5155 = vrot.lane.b32.xlu0 %v893, 80
        %v5156 = vpop.permute.xlu0 %5155
        %v5160 = vsel %vm1657, %v5052, 0
        %v5163 = vsel %vm1657, %v5053, 0
        %5165 = vmatprep.subr.mxu0 0.0
        %5166 = vmatpush1.msra.mxu0 %v5154
        %5167 = vmatprep.subr.mxu0 0.0
        %5168 = vmatpush1.msra.mxu0 %v5156
        %5169 = vmatprep.subr.mxu0 0.0
        %5170 = vmatpush1.msra.mxu0 0.0
        %5171 = vmatprep.subr.mxu0 0.0
        %5172 = vmatpush1.msra.mxu0 0.0
        %5173 = vmatprep.subr.mxu0 0.0
        %5174 = vmatpush1.msra.mxu0 0.0
        %5175 = vmatprep.subr.mxu0 0.0
        %5176 = vmatpush1.msra.mxu0 0.0
        %5177 = vmatprep.subr.mxu0 0.0
        %5178 = vmatpush1.msra.mxu0 0.0
        %5179 = vmatprep.subr.mxu0 0.0
        %5180 = vmatpush1.msra.mxu0 0.0
        %5181 = vmatprep.subr.mxu0 0.0
        %5182 = vmatpush1.msra.mxu0 0.0
        %5183 = vmatprep.subr.mxu0 0.0
        %5184 = vmatpush1.msra.mxu0 0.0
        %5185 = vmatprep.subr.mxu0 0.0
        %5186 = vmatpush1.msra.mxu0 0.0
        %5187 = vmatprep.subr.mxu0 0.0
        %5188 = vmatpush1.msra.mxu0 0.0
        %5189 = vmatprep.subr.mxu0 0.0
        %5190 = vmatpush1.msra.mxu0 0.0
        %5191 = vmatprep.subr.mxu0 0.0
        %5192 = vmatpush1.msra.mxu0 0.0
        %5193 = vmatprep.subr.mxu0 0.0
        %5194 = vmatpush1.msra.mxu0 0.0
        %5195 = vmatprep.subr.mxu0 0.0
        %5196 = vmatpush1.msra.mxu0 0.0
        %5197 = vmatprep.subr.mxu0 0.0
        %5198 = vmatpush1.msra.mxu0 0.0
        %5199 = vmatprep.subr.mxu0 0.0
        %5200 = vmatpush1.msra.mxu0 0.0
        %5201 = vmatprep.subr.mxu0 0.0
        %5202 = vmatpush1.msra.mxu0 0.0
        %5203 = vmatprep.subr.mxu0 0.0
        %5204 = vmatpush1.msra.mxu0 0.0
        %5205 = vmatprep.subr.mxu0 0.0
        %5206 = vmatpush1.msra.mxu0 0.0
        %5207 = vmatprep.subr.mxu0 0.0
        %5208 = vmatpush1.msra.mxu0 0.0
        %5209 = vmatprep.subr.mxu0 0.0
        %5210 = vmatpush1.msra.mxu0 0.0
        %5211 = vmatprep.subr.mxu0 0.0
        %5212 = vmatpush1.msra.mxu0 0.0
        %5213 = vmatprep.subr.mxu0 0.0
        %5214 = vmatpush1.msra.mxu0 0.0
        %5215 = vmatprep.subr.mxu0 0.0
        %5216 = vmatpush1.msra.mxu0 0.0
        %5217 = vmatprep.subr.mxu0 0.0
        %5218 = vmatpush1.msra.mxu0 0.0
        %5219 = vmatprep.subr.mxu0 0.0
        %5220 = vmatpush1.msra.mxu0 0.0
        %5221 = vmatprep.subr.mxu0 0.0
        %5222 = vmatpush1.msra.mxu0 0.0
        %5223 = vmatprep.subr.mxu0 0.0
        %5224 = vmatpush1.msra.mxu0 0.0
        %5225 = vmatprep.subr.mxu0 0.0
        %5226 = vmatpush1.msra.mxu0 0.0
        %5227 = vmatprep.subr.mxu0 0.0
        %5228 = vmatpush1.msra.mxu0 0.0
        %5229 = vmatprep.mubr.f32.mxu0 0.0
        %5230 = vmatmul.mubr.f32.gmra.mrb[0].mxu0 %v5160
        %v5231 = vpop.f32.mrb[0].mxu0
        %v5232 = vadd.f32 0.0, %v5231
        %v5233 = vpop.f32.mrb[0].mxu0
        %5234 = vmatprep.mubr.f32.mxu0 0.0
        %5235 = vmatmul.mubr.f32.gmra.mrb[0].mxu0 %v5163
        %v5236 = vpop.f32.mrb[0].mxu0
        %v5237 = vadd.f32 0.0, %v5236
        %v5238 = vpop.f32.mrb[0].mxu0
        %5239 = vdwg.mxu0
        %5240 = vrot.lane.b32.xlu0 %v898, 80
        %v5241 = vpop.permute.xlu0 %5240
        %5242 = vrot.lane.b32.xlu0 %v901, 80
        %v5243 = vpop.permute.xlu0 %5242
        %v5247 = vsel %vm1657, %v5054, 0
        %v5250 = vsel %vm1657, %v5055, 0
        %5252 = vmatprep.subr.mxu0 0.0
        %5253 = vmatpush1.msra.mxu0 %v5241
        %5254 = vmatprep.subr.mxu0 0.0
        %5255 = vmatpush1.msra.mxu0 %v5243
        %5256 = vmatprep.subr.mxu0 0.0
        %5257 = vmatpush1.msra.mxu0 0.0
        %5258 = vmatprep.subr.mxu0 0.0
        %5259 = vmatpush1.msra.mxu0 0.0
        %5260 = vmatprep.subr.mxu0 0.0
        %5261 = vmatpush1.msra.mxu0 0.0
        %5262 = vmatprep.subr.mxu0 0.0
        %5263 = vmatpush1.msra.mxu0 0.0
        %5264 = vmatprep.subr.mxu0 0.0
        %5265 = vmatpush1.msra.mxu0 0.0
        %5266 = vmatprep.subr.mxu0 0.0
        %5267 = vmatpush1.msra.mxu0 0.0
        %5268 = vmatprep.subr.mxu0 0.0
        %5269 = vmatpush1.msra.mxu0 0.0
        %5270 = vmatprep.subr.mxu0 0.0
        %5271 = vmatpush1.msra.mxu0 0.0
        %5272 = vmatprep.subr.mxu0 0.0
        %5273 = vmatpush1.msra.mxu0 0.0
        %5274 = vmatprep.subr.mxu0 0.0
        %5275 = vmatpush1.msra.mxu0 0.0
        %5276 = vmatprep.subr.mxu0 0.0
        %5277 = vmatpush1.msra.mxu0 0.0
        %5278 = vmatprep.subr.mxu0 0.0
        %5279 = vmatpush1.msra.mxu0 0.0
        %5280 = vmatprep.subr.mxu0 0.0
        %5281 = vmatpush1.msra.mxu0 0.0
        %5282 = vmatprep.subr.mxu0 0.0
        %5283 = vmatpush1.msra.mxu0 0.0
        %5284 = vmatprep.subr.mxu0 0.0
        %5285 = vmatpush1.msra.mxu0 0.0
        %5286 = vmatprep.subr.mxu0 0.0
        %5287 = vmatpush1.msra.mxu0 0.0
        %5288 = vmatprep.subr.mxu0 0.0
        %5289 = vmatpush1.msra.mxu0 0.0
        %5290 = vmatprep.subr.mxu0 0.0
        %5291 = vmatpush1.msra.mxu0 0.0
        %5292 = vmatprep.subr.mxu0 0.0
        %5293 = vmatpush1.msra.mxu0 0.0
        %5294 = vmatprep.subr.mxu0 0.0
        %5295 = vmatpush1.msra.mxu0 0.0
        %5296 = vmatprep.subr.mxu0 0.0
        %5297 = vmatpush1.msra.mxu0 0.0
        %5298 = vmatprep.subr.mxu0 0.0
        %5299 = vmatpush1.msra.mxu0 0.0
        %5300 = vmatprep.subr.mxu0 0.0
        %5301 = vmatpush1.msra.mxu0 0.0
        %5302 = vmatprep.subr.mxu0 0.0
        %5303 = vmatpush1.msra.mxu0 0.0
        %5304 = vmatprep.subr.mxu0 0.0
        %5305 = vmatpush1.msra.mxu0 0.0
        %5306 = vmatprep.subr.mxu0 0.0
        %5307 = vmatpush1.msra.mxu0 0.0
        %5308 = vmatprep.subr.mxu0 0.0
        %5309 = vmatpush1.msra.mxu0 0.0
        %5310 = vmatprep.subr.mxu0 0.0
        %5311 = vmatpush1.msra.mxu0 0.0
        %5312 = vmatprep.subr.mxu0 0.0
        %5313 = vmatpush1.msra.mxu0 0.0
        %5314 = vmatprep.subr.mxu0 0.0
        %5315 = vmatpush1.msra.mxu0 0.0
        %5316 = vmatprep.mubr.f32.mxu0 0.0
        %5317 = vmatmul.mubr.f32.gmra.mrb[0].mxu0 %v5247
        %v5318 = vpop.f32.mrb[0].mxu0
        %v5319 = vadd.f32 0.0, %v5318
        %v5320 = vpop.f32.mrb[0].mxu0
        %5321 = vmatprep.mubr.f32.mxu0 0.0
        %5322 = vmatmul.mubr.f32.gmra.mrb[0].mxu0 %v5250
        %v5323 = vpop.f32.mrb[0].mxu0
        %v5324 = vadd.f32 0.0, %v5323
        %v5325 = vpop.f32.mrb[0].mxu0
        %5326 = vdwg.mxu0
        %5327 = vrot.lane.b32.xlu0 %v906, 80
        %v5328 = vpop.permute.xlu0 %5327
        %5329 = vrot.lane.b32.xlu0 %v909, 80
        %v5330 = vpop.permute.xlu0 %5329
        %v5334 = vsel %vm1657, %v5056, 0
        %v5337 = vsel %vm1657, %v5057, 0
        %5339 = vmatprep.subr.mxu0 0.0
        %5340 = vmatpush1.msra.mxu0 %v5328
        %5341 = vmatprep.subr.mxu0 0.0
        %5342 = vmatpush1.msra.mxu0 %v5330
        %5343 = vmatprep.subr.mxu0 0.0
        %5344 = vmatpush1.msra.mxu0 0.0
        %5345 = vmatprep.subr.mxu0 0.0
        %5346 = vmatpush1.msra.mxu0 0.0
        %5347 = vmatprep.subr.mxu0 0.0
        %5348 = vmatpush1.msra.mxu0 0.0
        %5349 = vmatprep.subr.mxu0 0.0
        %5350 = vmatpush1.msra.mxu0 0.0
        %5351 = vmatprep.subr.mxu0 0.0
        %5352 = vmatpush1.msra.mxu0 0.0
        %5353 = vmatprep.subr.mxu0 0.0
        %5354 = vmatpush1.msra.mxu0 0.0
        %5355 = vmatprep.subr.mxu0 0.0
        %5356 = vmatpush1.msra.mxu0 0.0
        %5357 = vmatprep.subr.mxu0 0.0
        %5358 = vmatpush1.msra.mxu0 0.0
        %5359 = vmatprep.subr.mxu0 0.0
        %5360 = vmatpush1.msra.mxu0 0.0
        %5361 = vmatprep.subr.mxu0 0.0
        %5362 = vmatpush1.msra.mxu0 0.0
        %5363 = vmatprep.subr.mxu0 0.0
        %5364 = vmatpush1.msra.mxu0 0.0
        %5365 = vmatprep.subr.mxu0 0.0
        %5366 = vmatpush1.msra.mxu0 0.0
        %5367 = vmatprep.subr.mxu0 0.0
        %5368 = vmatpush1.msra.mxu0 0.0
        %5369 = vmatprep.subr.mxu0 0.0
        %5370 = vmatpush1.msra.mxu0 0.0
        %5371 = vmatprep.subr.mxu0 0.0
        %5372 = vmatpush1.msra.mxu0 0.0
        %5373 = vmatprep.subr.mxu0 0.0
        %5374 = vmatpush1.msra.mxu0 0.0
        %5375 = vmatprep.subr.mxu0 0.0
        %5376 = vmatpush1.msra.mxu0 0.0
        %5377 = vmatprep.subr.mxu0 0.0
        %5378 = vmatpush1.msra.mxu0 0.0
        %5379 = vmatprep.subr.mxu0 0.0
        %5380 = vmatpush1.msra.mxu0 0.0
        %5381 = vmatprep.subr.mxu0 0.0
        %5382 = vmatpush1.msra.mxu0 0.0
        %5383 = vmatprep.subr.mxu0 0.0
        %5384 = vmatpush1.msra.mxu0 0.0
        %5385 = vmatprep.subr.mxu0 0.0
        %5386 = vmatpush1.msra.mxu0 0.0
        %5387 = vmatprep.subr.mxu0 0.0
        %5388 = vmatpush1.msra.mxu0 0.0
        %5389 = vmatprep.subr.mxu0 0.0
        %5390 = vmatpush1.msra.mxu0 0.0
        %5391 = vmatprep.subr.mxu0 0.0
        %5392 = vmatpush1.msra.mxu0 0.0
        %5393 = vmatprep.subr.mxu0 0.0
        %5394 = vmatpush1.msra.mxu0 0.0
        %5395 = vmatprep.subr.mxu0 0.0
        %5396 = vmatpush1.msra.mxu0 0.0
        %5397 = vmatprep.subr.mxu0 0.0
        %5398 = vmatpush1.msra.mxu0 0.0
        %5399 = vmatprep.subr.mxu0 0.0
        %5400 = vmatpush1.msra.mxu0 0.0
        %5401 = vmatprep.subr.mxu0 0.0
        %5402 = vmatpush1.msra.mxu0 0.0
        %5403 = vmatprep.mubr.f32.mxu0 0.0
        %5404 = vmatmul.mubr.f32.gmra.mrb[0].mxu0 %v5334
        %v5405 = vpop.f32.mrb[0].mxu0
        %v5406 = vadd.f32 0.0, %v5405
        %v5407 = vpop.f32.mrb[0].mxu0
        %5408 = vmatprep.mubr.f32.mxu0 0.0
        %5409 = vmatmul.mubr.f32.gmra.mrb[0].mxu0 %v5337
        %v5410 = vpop.f32.mrb[0].mxu0
        %v5411 = vadd.f32 0.0, %v5410
        %v5412 = vpop.f32.mrb[0].mxu0
        %5413 = vdwg.mxu0
        %5414 = vrot.lane.b32.xlu0 %v914, 80
        %v5415 = vpop.permute.xlu0 %5414
        %5416 = vrot.lane.b32.xlu0 %v917, 80
        %v5417 = vpop.permute.xlu0 %5416
        %v5421 = vsel %vm1657, %v5058, 0
        %v5424 = vsel %vm1657, %v5059, 0
        %5426 = vmatprep.subr.mxu0 0.0
        %5427 = vmatpush1.msra.mxu0 %v5415
        %5428 = vmatprep.subr.mxu0 0.0
        %5429 = vmatpush1.msra.mxu0 %v5417
        %5430 = vmatprep.subr.mxu0 0.0
        %5431 = vmatpush1.msra.mxu0 0.0
        %5432 = vmatprep.subr.mxu0 0.0
        %5433 = vmatpush1.msra.mxu0 0.0
        %5434 = vmatprep.subr.mxu0 0.0
        %5435 = vmatpush1.msra.mxu0 0.0
        %5436 = vmatprep.subr.mxu0 0.0
        %5437 = vmatpush1.msra.mxu0 0.0
        %5438 = vmatprep.subr.mxu0 0.0
        %5439 = vmatpush1.msra.mxu0 0.0
        %5440 = vmatprep.subr.mxu0 0.0
        %5441 = vmatpush1.msra.mxu0 0.0
        %5442 = vmatprep.subr.mxu0 0.0
        %5443 = vmatpush1.msra.mxu0 0.0
        %5444 = vmatprep.subr.mxu0 0.0
        %5445 = vmatpush1.msra.mxu0 0.0
        %5446 = vmatprep.subr.mxu0 0.0
        %5447 = vmatpush1.msra.mxu0 0.0
        %5448 = vmatprep.subr.mxu0 0.0
        %5449 = vmatpush1.msra.mxu0 0.0
        %5450 = vmatprep.subr.mxu0 0.0
        %5451 = vmatpush1.msra.mxu0 0.0
        %5452 = vmatprep.subr.mxu0 0.0
        %5453 = vmatpush1.msra.mxu0 0.0
        %5454 = vmatprep.subr.mxu0 0.0
        %5455 = vmatpush1.msra.mxu0 0.0
        %5456 = vmatprep.subr.mxu0 0.0
        %5457 = vmatpush1.msra.mxu0 0.0
        %5458 = vmatprep.subr.mxu0 0.0
        %5459 = vmatpush1.msra.mxu0 0.0
        %5460 = vmatprep.subr.mxu0 0.0
        %5461 = vmatpush1.msra.mxu0 0.0
        %5462 = vmatprep.subr.mxu0 0.0
        %5463 = vmatpush1.msra.mxu0 0.0
        %5464 = vmatprep.subr.mxu0 0.0
        %5465 = vmatpush1.msra.mxu0 0.0
        %5466 = vmatprep.subr.mxu0 0.0
        %5467 = vmatpush1.msra.mxu0 0.0
        %5468 = vmatprep.subr.mxu0 0.0
        %5469 = vmatpush1.msra.mxu0 0.0
        %5470 = vmatprep.subr.mxu0 0.0
        %5471 = vmatpush1.msra.mxu0 0.0
        %5472 = vmatprep.subr.mxu0 0.0
        %5473 = vmatpush1.msra.mxu0 0.0
        %5474 = vmatprep.subr.mxu0 0.0
        %5475 = vmatpush1.msra.mxu0 0.0
        %5476 = vmatprep.subr.mxu0 0.0
        %5477 = vmatpush1.msra.mxu0 0.0
        %5478 = vmatprep.subr.mxu0 0.0
        %5479 = vmatpush1.msra.mxu0 0.0
        %5480 = vmatprep.subr.mxu0 0.0
        %5481 = vmatpush1.msra.mxu0 0.0
        %5482 = vmatprep.subr.mxu0 0.0
        %5483 = vmatpush1.msra.mxu0 0.0
        %5484 = vmatprep.subr.mxu0 0.0
        %5485 = vmatpush1.msra.mxu0 0.0
        %5486 = vmatprep.subr.mxu0 0.0
        %5487 = vmatpush1.msra.mxu0 0.0
        %5488 = vmatprep.subr.mxu0 0.0
        %5489 = vmatpush1.msra.mxu0 0.0
        %5490 = vmatprep.mubr.f32.mxu0 0.0
        %5491 = vmatmul.mubr.f32.gmra.mrb[0].mxu0 %v5421
        %v5492 = vpop.f32.mrb[0].mxu0
        %v5493 = vadd.f32 0.0, %v5492
        %v5494 = vpop.f32.mrb[0].mxu0
        %5495 = vmatprep.mubr.f32.mxu0 0.0
        %5496 = vmatmul.mubr.f32.gmra.mrb[0].mxu0 %v5424
        %v5497 = vpop.f32.mrb[0].mxu0
        %v5498 = vadd.f32 0.0, %v5497
        %v5499 = vpop.f32.mrb[0].mxu0
        %5500 = vdwg.mxu0
        %5501 = vrot.lane.b32.xlu0 %v922, 80
        %v5502 = vpop.permute.xlu0 %5501
        %5503 = vrot.lane.b32.xlu0 %v925, 80
        %v5504 = vpop.permute.xlu0 %5503
        %v5508 = vsel %vm1657, %v5060, 0
        %v5511 = vsel %vm1657, %v5061, 0
        %5513 = vmatprep.subr.mxu0 0.0
        %5514 = vmatpush1.msra.mxu0 %v5502
        %5515 = vmatprep.subr.mxu0 0.0
        %5516 = vmatpush1.msra.mxu0 %v5504
        %5517 = vmatprep.subr.mxu0 0.0
        %5518 = vmatpush1.msra.mxu0 0.0
        %5519 = vmatprep.subr.mxu0 0.0
        %5520 = vmatpush1.msra.mxu0 0.0
        %5521 = vmatprep.subr.mxu0 0.0
        %5522 = vmatpush1.msra.mxu0 0.0
        %5523 = vmatprep.subr.mxu0 0.0
        %5524 = vmatpush1.msra.mxu0 0.0
        %5525 = vmatprep.subr.mxu0 0.0
        %5526 = vmatpush1.msra.mxu0 0.0
        %5527 = vmatprep.subr.mxu0 0.0
        %5528 = vmatpush1.msra.mxu0 0.0
        %5529 = vmatprep.subr.mxu0 0.0
        %5530 = vmatpush1.msra.mxu0 0.0
        %5531 = vmatprep.subr.mxu0 0.0
        %5532 = vmatpush1.msra.mxu0 0.0
        %5533 = vmatprep.subr.mxu0 0.0
        %5534 = vmatpush1.msra.mxu0 0.0
        %5535 = vmatprep.subr.mxu0 0.0
        %5536 = vmatpush1.msra.mxu0 0.0
        %5537 = vmatprep.subr.mxu0 0.0
        %5538 = vmatpush1.msra.mxu0 0.0
        %5539 = vmatprep.subr.mxu0 0.0
        %5540 = vmatpush1.msra.mxu0 0.0
        %5541 = vmatprep.subr.mxu0 0.0
        %5542 = vmatpush1.msra.mxu0 0.0
        %5543 = vmatprep.subr.mxu0 0.0
        %5544 = vmatpush1.msra.mxu0 0.0
        %5545 = vmatprep.subr.mxu0 0.0
        %5546 = vmatpush1.msra.mxu0 0.0
        %5547 = vmatprep.subr.mxu0 0.0
        %5548 = vmatpush1.msra.mxu0 0.0
        %5549 = vmatprep.subr.mxu0 0.0
        %5550 = vmatpush1.msra.mxu0 0.0
        %5551 = vmatprep.subr.mxu0 0.0
        %5552 = vmatpush1.msra.mxu0 0.0
        %5553 = vmatprep.subr.mxu0 0.0
        %5554 = vmatpush1.msra.mxu0 0.0
        %5555 = vmatprep.subr.mxu0 0.0
        %5556 = vmatpush1.msra.mxu0 0.0
        %5557 = vmatprep.subr.mxu0 0.0
        %5558 = vmatpush1.msra.mxu0 0.0
        %5559 = vmatprep.subr.mxu0 0.0
        %5560 = vmatpush1.msra.mxu0 0.0
        %5561 = vmatprep.subr.mxu0 0.0
        %5562 = vmatpush1.msra.mxu0 0.0
        %5563 = vmatprep.subr.mxu0 0.0
        %5564 = vmatpush1.msra.mxu0 0.0
        %5565 = vmatprep.subr.mxu0 0.0
        %5566 = vmatpush1.msra.mxu0 0.0
        %5567 = vmatprep.subr.mxu0 0.0
        %5568 = vmatpush1.msra.mxu0 0.0
        %5569 = vmatprep.subr.mxu0 0.0
        %5570 = vmatpush1.msra.mxu0 0.0
        %5571 = vmatprep.subr.mxu0 0.0
        %5572 = vmatpush1.msra.mxu0 0.0
        %5573 = vmatprep.subr.mxu0 0.0
        %5574 = vmatpush1.msra.mxu0 0.0
        %5575 = vmatprep.subr.mxu0 0.0
        %5576 = vmatpush1.msra.mxu0 0.0
        %5577 = vmatprep.mubr.f32.mxu0 0.0
        %5578 = vmatmul.mubr.f32.gmra.mrb[0].mxu0 %v5508
        %v5579 = vpop.f32.mrb[0].mxu0
        %v5580 = vadd.f32 0.0, %v5579
        %v5581 = vpop.f32.mrb[0].mxu0
        %5582 = vmatprep.mubr.f32.mxu0 0.0
        %5583 = vmatmul.mubr.f32.gmra.mrb[0].mxu0 %v5511
        %v5584 = vpop.f32.mrb[0].mxu0
        %v5585 = vadd.f32 0.0, %v5584
        %v5586 = vpop.f32.mrb[0].mxu0
        %5587 = vdwg.mxu0
        %5588 = vrot.lane.b32.xlu0 %v930, 80
        %v5589 = vpop.permute.xlu0 %5588
        %5590 = vrot.lane.b32.xlu0 %v933, 80
        %v5591 = vpop.permute.xlu0 %5590
        %v5595 = vsel %vm1657, %v5062, 0
        %v5598 = vsel %vm1657, %v5063, 0
        %5600 = vmatprep.subr.mxu0 0.0
        %5601 = vmatpush1.msra.mxu0 %v5589
        %5602 = vmatprep.subr.mxu0 0.0
        %5603 = vmatpush1.msra.mxu0 %v5591
        %5604 = vmatprep.subr.mxu0 0.0
        %5605 = vmatpush1.msra.mxu0 0.0
        %5606 = vmatprep.subr.mxu0 0.0
        %5607 = vmatpush1.msra.mxu0 0.0
        %5608 = vmatprep.subr.mxu0 0.0
        %5609 = vmatpush1.msra.mxu0 0.0
        %5610 = vmatprep.subr.mxu0 0.0
        %5611 = vmatpush1.msra.mxu0 0.0
        %5612 = vmatprep.subr.mxu0 0.0
        %5613 = vmatpush1.msra.mxu0 0.0
        %5614 = vmatprep.subr.mxu0 0.0
        %5615 = vmatpush1.msra.mxu0 0.0
        %5616 = vmatprep.subr.mxu0 0.0
        %5617 = vmatpush1.msra.mxu0 0.0
        %5618 = vmatprep.subr.mxu0 0.0
        %5619 = vmatpush1.msra.mxu0 0.0
        %5620 = vmatprep.subr.mxu0 0.0
        %5621 = vmatpush1.msra.mxu0 0.0
        %5622 = vmatprep.subr.mxu0 0.0
        %5623 = vmatpush1.msra.mxu0 0.0
        %5624 = vmatprep.subr.mxu0 0.0
        %5625 = vmatpush1.msra.mxu0 0.0
        %5626 = vmatprep.subr.mxu0 0.0
        %5627 = vmatpush1.msra.mxu0 0.0
        %5628 = vmatprep.subr.mxu0 0.0
        %5629 = vmatpush1.msra.mxu0 0.0
        %5630 = vmatprep.subr.mxu0 0.0
        %5631 = vmatpush1.msra.mxu0 0.0
        %5632 = vmatprep.subr.mxu0 0.0
        %5633 = vmatpush1.msra.mxu0 0.0
        %5634 = vmatprep.subr.mxu0 0.0
        %5635 = vmatpush1.msra.mxu0 0.0
        %5636 = vmatprep.subr.mxu0 0.0
        %5637 = vmatpush1.msra.mxu0 0.0
        %5638 = vmatprep.subr.mxu0 0.0
        %5639 = vmatpush1.msra.mxu0 0.0
        %5640 = vmatprep.subr.mxu0 0.0
        %5641 = vmatpush1.msra.mxu0 0.0
        %5642 = vmatprep.subr.mxu0 0.0
        %5643 = vmatpush1.msra.mxu0 0.0
        %5644 = vmatprep.subr.mxu0 0.0
        %5645 = vmatpush1.msra.mxu0 0.0
        %5646 = vmatprep.subr.mxu0 0.0
        %5647 = vmatpush1.msra.mxu0 0.0
        %5648 = vmatprep.subr.mxu0 0.0
        %5649 = vmatpush1.msra.mxu0 0.0
        %5650 = vmatprep.subr.mxu0 0.0
        %5651 = vmatpush1.msra.mxu0 0.0
        %5652 = vmatprep.subr.mxu0 0.0
        %5653 = vmatpush1.msra.mxu0 0.0
        %5654 = vmatprep.subr.mxu0 0.0
        %5655 = vmatpush1.msra.mxu0 0.0
        %5656 = vmatprep.subr.mxu0 0.0
        %5657 = vmatpush1.msra.mxu0 0.0
        %5658 = vmatprep.subr.mxu0 0.0
        %5659 = vmatpush1.msra.mxu0 0.0
        %5660 = vmatprep.subr.mxu0 0.0
        %5661 = vmatpush1.msra.mxu0 0.0
        %5662 = vmatprep.subr.mxu0 0.0
        %5663 = vmatpush1.msra.mxu0 0.0
        %5664 = vmatprep.mubr.f32.mxu0 0.0
        %5665 = vmatmul.mubr.f32.gmra.mrb[0].mxu0 %v5595
        %v5666 = vpop.f32.mrb[0].mxu0
        %v5667 = vadd.f32 0.0, %v5666
        %v5668 = vpop.f32.mrb[0].mxu0
        %5669 = vmatprep.mubr.f32.mxu0 0.0
        %5670 = vmatmul.mubr.f32.gmra.mrb[0].mxu0 %v5598
        %v5671 = vpop.f32.mrb[0].mxu0
        %v5672 = vadd.f32 0.0, %v5671
        %v5673 = vpop.f32.mrb[0].mxu0
        %5674 = vdwg.mxu0
        %5675 = vrot.lane.b32.xlu0 %v938, 80
        %v5676 = vpop.permute.xlu0 %5675
        %5677 = vrot.lane.b32.xlu0 %v941, 80
        %v5678 = vpop.permute.xlu0 %5677
        %v5682 = vsel %vm1657, %v5064, 0
        %v5685 = vsel %vm1657, %v5065, 0
        %5687 = vmatprep.subr.mxu0 0.0
        %5688 = vmatpush1.msra.mxu0 %v5676
        %5689 = vmatprep.subr.mxu0 0.0
        %5690 = vmatpush1.msra.mxu0 %v5678
        %5691 = vmatprep.subr.mxu0 0.0
        %5692 = vmatpush1.msra.mxu0 0.0
        %5693 = vmatprep.subr.mxu0 0.0
        %5694 = vmatpush1.msra.mxu0 0.0
        %5695 = vmatprep.subr.mxu0 0.0
        %5696 = vmatpush1.msra.mxu0 0.0
        %5697 = vmatprep.subr.mxu0 0.0
        %5698 = vmatpush1.msra.mxu0 0.0
        %5699 = vmatprep.subr.mxu0 0.0
        %5700 = vmatpush1.msra.mxu0 0.0
        %5701 = vmatprep.subr.mxu0 0.0
        %5702 = vmatpush1.msra.mxu0 0.0
        %5703 = vmatprep.subr.mxu0 0.0
        %5704 = vmatpush1.msra.mxu0 0.0
        %5705 = vmatprep.subr.mxu0 0.0
        %5706 = vmatpush1.msra.mxu0 0.0
        %5707 = vmatprep.subr.mxu0 0.0
        %5708 = vmatpush1.msra.mxu0 0.0
        %5709 = vmatprep.subr.mxu0 0.0
        %5710 = vmatpush1.msra.mxu0 0.0
        %5711 = vmatprep.subr.mxu0 0.0
        %5712 = vmatpush1.msra.mxu0 0.0
        %5713 = vmatprep.subr.mxu0 0.0
        %5714 = vmatpush1.msra.mxu0 0.0
        %5715 = vmatprep.subr.mxu0 0.0
        %5716 = vmatpush1.msra.mxu0 0.0
        %5717 = vmatprep.subr.mxu0 0.0
        %5718 = vmatpush1.msra.mxu0 0.0
        %5719 = vmatprep.subr.mxu0 0.0
        %5720 = vmatpush1.msra.mxu0 0.0
        %5721 = vmatprep.subr.mxu0 0.0
        %5722 = vmatpush1.msra.mxu0 0.0
        %5723 = vmatprep.subr.mxu0 0.0
        %5724 = vmatpush1.msra.mxu0 0.0
        %5725 = vmatprep.subr.mxu0 0.0
        %5726 = vmatpush1.msra.mxu0 0.0
        %5727 = vmatprep.subr.mxu0 0.0
        %5728 = vmatpush1.msra.mxu0 0.0
        %5729 = vmatprep.subr.mxu0 0.0
        %5730 = vmatpush1.msra.mxu0 0.0
        %5731 = vmatprep.subr.mxu0 0.0
        %5732 = vmatpush1.msra.mxu0 0.0
        %5733 = vmatprep.subr.mxu0 0.0
        %5734 = vmatpush1.msra.mxu0 0.0
        %5735 = vmatprep.subr.mxu0 0.0
        %5736 = vmatpush1.msra.mxu0 0.0
        %5737 = vmatprep.subr.mxu0 0.0
        %5738 = vmatpush1.msra.mxu0 0.0
        %5739 = vmatprep.subr.mxu0 0.0
        %5740 = vmatpush1.msra.mxu0 0.0
        %5741 = vmatprep.subr.mxu0 0.0
        %5742 = vmatpush1.msra.mxu0 0.0
        %5743 = vmatprep.subr.mxu0 0.0
        %5744 = vmatpush1.msra.mxu0 0.0
        %5745 = vmatprep.subr.mxu0 0.0
        %5746 = vmatpush1.msra.mxu0 0.0
        %5747 = vmatprep.subr.mxu0 0.0
        %5748 = vmatpush1.msra.mxu0 0.0
        %5749 = vmatprep.subr.mxu0 0.0
        %5750 = vmatpush1.msra.mxu0 0.0
        %5751 = vmatprep.mubr.f32.mxu0 0.0
        %5752 = vmatmul.mubr.f32.gmra.mrb[0].mxu0 %v5682
        %v5753 = vpop.f32.mrb[0].mxu0
        %v5754 = vadd.f32 0.0, %v5753
        %v5755 = vpop.f32.mrb[0].mxu0
        %5756 = vmatprep.mubr.f32.mxu0 0.0
        %5757 = vmatmul.mubr.f32.gmra.mrb[0].mxu0 %v5685
        %v5758 = vpop.f32.mrb[0].mxu0
        %v5759 = vadd.f32 0.0, %v5758
        %v5760 = vpop.f32.mrb[0].mxu0
        %5761 = vdwg.mxu0
        %5762 = vrot.lane.b32.xlu0 %v737, 104
        %v5763 = vpop.permute.xlu0 %5762
        %5764 = vrot.lane.b32.xlu0 %v740, 104
        %v5765 = vpop.permute.xlu0 %5764
        %5766 = vrot.lane.b32.xlu0 %v882, 104
        %v5767 = vpop.permute.xlu0 %5766
        %5768 = vrot.lane.b32.xlu0 %v885, 104
        %v5769 = vpop.permute.xlu0 %5768
        %v5770 = vsel %vm944, %v5763, 0
        %v5772 = vsel %vm944, %v5765, 0
        %v5774 = vsel %vm944, %v5767, 0
        %v5776 = vsel %vm944, %v5769, 0
        %5778 = vmatprep.subr.mxu0 0.0
        %5779 = vmatpush1.xpose.msra.mxu0 %v5774
        %5780 = vmatprep.subr.mxu0 0.0
        %5781 = vmatpush1.xpose.msra.mxu0 %v5776
        %5782 = vmatprep.subr.mxu0 0.0
        %5783 = vmatpush1.xpose.msra.mxu0 0.0
        %5784 = vmatprep.subr.mxu0 0.0
        %5785 = vmatpush1.xpose.msra.mxu0 0.0
        %5786 = vmatprep.subr.mxu0 0.0
        %5787 = vmatpush1.xpose.msra.mxu0 0.0
        %5788 = vmatprep.subr.mxu0 0.0
        %5789 = vmatpush1.xpose.msra.mxu0 0.0
        %5790 = vmatprep.subr.mxu0 0.0
        %5791 = vmatpush1.xpose.msra.mxu0 0.0
        %5792 = vmatprep.subr.mxu0 0.0
        %5793 = vmatpush1.xpose.msra.mxu0 0.0
        %5794 = vmatprep.subr.mxu0 0.0
        %5795 = vmatpush1.xpose.msra.mxu0 0.0
        %5796 = vmatprep.subr.mxu0 0.0
        %5797 = vmatpush1.xpose.msra.mxu0 0.0
        %5798 = vmatprep.subr.mxu0 0.0
        %5799 = vmatpush1.xpose.msra.mxu0 0.0
        %5800 = vmatprep.subr.mxu0 0.0
        %5801 = vmatpush1.xpose.msra.mxu0 0.0
        %5802 = vmatprep.subr.mxu0 0.0
        %5803 = vmatpush1.xpose.msra.mxu0 0.0
        %5804 = vmatprep.subr.mxu0 0.0
        %5805 = vmatpush1.xpose.msra.mxu0 0.0
        %5806 = vmatprep.subr.mxu0 0.0
        %5807 = vmatpush1.xpose.msra.mxu0 0.0
        %5808 = vmatprep.subr.mxu0 0.0
        %5809 = vmatpush1.xpose.msra.mxu0 0.0
        %5810 = vmatprep.subr.mxu0 0.0
        %5811 = vmatpush1.xpose.msra.mxu0 0.0
        %5812 = vmatprep.subr.mxu0 0.0
        %5813 = vmatpush1.xpose.msra.mxu0 0.0
        %5814 = vmatprep.subr.mxu0 0.0
        %5815 = vmatpush1.xpose.msra.mxu0 0.0
        %5816 = vmatprep.subr.mxu0 0.0
        %5817 = vmatpush1.xpose.msra.mxu0 0.0
        %5818 = vmatprep.subr.mxu0 0.0
        %5819 = vmatpush1.xpose.msra.mxu0 0.0
        %5820 = vmatprep.subr.mxu0 0.0
        %5821 = vmatpush1.xpose.msra.mxu0 0.0
        %5822 = vmatprep.subr.mxu0 0.0
        %5823 = vmatpush1.xpose.msra.mxu0 0.0
        %5824 = vmatprep.subr.mxu0 0.0
        %5825 = vmatpush1.xpose.msra.mxu0 0.0
        %5826 = vmatprep.subr.mxu0 0.0
        %5827 = vmatpush1.xpose.msra.mxu0 0.0
        %5828 = vmatprep.subr.mxu0 0.0
        %5829 = vmatpush1.xpose.msra.mxu0 0.0
        %5830 = vmatprep.subr.mxu0 0.0
        %5831 = vmatpush1.xpose.msra.mxu0 0.0
        %5832 = vmatprep.subr.mxu0 0.0
        %5833 = vmatpush1.xpose.msra.mxu0 0.0
        %5834 = vmatprep.subr.mxu0 0.0
        %5835 = vmatpush1.xpose.msra.mxu0 0.0
        %5836 = vmatprep.subr.mxu0 0.0
        %5837 = vmatpush1.xpose.msra.mxu0 0.0
        %5838 = vmatprep.subr.mxu0 0.0
        %5839 = vmatpush1.xpose.msra.mxu0 0.0
        %5840 = vmatprep.subr.mxu0 0.0
        %5841 = vmatpush1.xpose.msra.mxu0 0.0
        %5842 = vmatprep.mubr.f32.mxu0 0.0
        %5843 = vmatmul.mubr.f32.gmra.mrb[0].mxu0 %v5770
        %v5844 = vpop.f32.mrb[0].mxu0
        %v5845 = vadd.f32 0.0, %v5844
        %v5846 = vpop.f32.mrb[0].mxu0
        %5847 = vmatprep.mubr.f32.mxu0 0.0
        %5848 = vmatmul.mubr.f32.gmra.mrb[0].mxu0 %v5772
        %v5849 = vpop.f32.mrb[0].mxu0
        %v5850 = vadd.f32 0.0, %v5849
        %v5851 = vpop.f32.mrb[0].mxu0
        %5852 = vdwg.mxu0
        %5853 = vrot.lane.b32.xlu0 %v745, 104
        %v5854 = vpop.permute.xlu0 %5853
        %5855 = vrot.lane.b32.xlu0 %v748, 104
        %v5856 = vpop.permute.xlu0 %5855
        %5857 = vrot.lane.b32.xlu0 %v890, 104
        %v5858 = vpop.permute.xlu0 %5857
        %5859 = vrot.lane.b32.xlu0 %v893, 104
        %v5860 = vpop.permute.xlu0 %5859
        %v5861 = vsel %vm944, %v5854, 0
        %v5863 = vsel %vm944, %v5856, 0
        %v5865 = vsel %vm944, %v5858, 0
        %v5867 = vsel %vm944, %v5860, 0
        %5869 = vmatprep.subr.mxu0 0.0
        %5870 = vmatpush1.xpose.msra.mxu0 %v5865
        %5871 = vmatprep.subr.mxu0 0.0
        %5872 = vmatpush1.xpose.msra.mxu0 %v5867
        %5873 = vmatprep.subr.mxu0 0.0
        %5874 = vmatpush1.xpose.msra.mxu0 0.0
        %5875 = vmatprep.subr.mxu0 0.0
        %5876 = vmatpush1.xpose.msra.mxu0 0.0
        %5877 = vmatprep.subr.mxu0 0.0
        %5878 = vmatpush1.xpose.msra.mxu0 0.0
        %5879 = vmatprep.subr.mxu0 0.0
        %5880 = vmatpush1.xpose.msra.mxu0 0.0
        %5881 = vmatprep.subr.mxu0 0.0
        %5882 = vmatpush1.xpose.msra.mxu0 0.0
        %5883 = vmatprep.subr.mxu0 0.0
        %5884 = vmatpush1.xpose.msra.mxu0 0.0
        %5885 = vmatprep.subr.mxu0 0.0
        %5886 = vmatpush1.xpose.msra.mxu0 0.0
        %5887 = vmatprep.subr.mxu0 0.0
        %5888 = vmatpush1.xpose.msra.mxu0 0.0
        %5889 = vmatprep.subr.mxu0 0.0
        %5890 = vmatpush1.xpose.msra.mxu0 0.0
        %5891 = vmatprep.subr.mxu0 0.0
        %5892 = vmatpush1.xpose.msra.mxu0 0.0
        %5893 = vmatprep.subr.mxu0 0.0
        %5894 = vmatpush1.xpose.msra.mxu0 0.0
        %5895 = vmatprep.subr.mxu0 0.0
        %5896 = vmatpush1.xpose.msra.mxu0 0.0
        %5897 = vmatprep.subr.mxu0 0.0
        %5898 = vmatpush1.xpose.msra.mxu0 0.0
        %5899 = vmatprep.subr.mxu0 0.0
        %5900 = vmatpush1.xpose.msra.mxu0 0.0
        %5901 = vmatprep.subr.mxu0 0.0
        %5902 = vmatpush1.xpose.msra.mxu0 0.0
        %5903 = vmatprep.subr.mxu0 0.0
        %5904 = vmatpush1.xpose.msra.mxu0 0.0
        %5905 = vmatprep.subr.mxu0 0.0
        %5906 = vmatpush1.xpose.msra.mxu0 0.0
        %5907 = vmatprep.subr.mxu0 0.0
        %5908 = vmatpush1.xpose.msra.mxu0 0.0
        %5909 = vmatprep.subr.mxu0 0.0
        %5910 = vmatpush1.xpose.msra.mxu0 0.0
        %5911 = vmatprep.subr.mxu0 0.0
        %5912 = vmatpush1.xpose.msra.mxu0 0.0
        %5913 = vmatprep.subr.mxu0 0.0
        %5914 = vmatpush1.xpose.msra.mxu0 0.0
        %5915 = vmatprep.subr.mxu0 0.0
        %5916 = vmatpush1.xpose.msra.mxu0 0.0
        %5917 = vmatprep.subr.mxu0 0.0
        %5918 = vmatpush1.xpose.msra.mxu0 0.0
        %5919 = vmatprep.subr.mxu0 0.0
        %5920 = vmatpush1.xpose.msra.mxu0 0.0
        %5921 = vmatprep.subr.mxu0 0.0
        %5922 = vmatpush1.xpose.msra.mxu0 0.0
        %5923 = vmatprep.subr.mxu0 0.0
        %5924 = vmatpush1.xpose.msra.mxu0 0.0
        %5925 = vmatprep.subr.mxu0 0.0
        %5926 = vmatpush1.xpose.msra.mxu0 0.0
        %5927 = vmatprep.subr.mxu0 0.0
        %5928 = vmatpush1.xpose.msra.mxu0 0.0
        %5929 = vmatprep.subr.mxu0 0.0
        %5930 = vmatpush1.xpose.msra.mxu0 0.0
        %5931 = vmatprep.subr.mxu0 0.0
        %5932 = vmatpush1.xpose.msra.mxu0 0.0
        %5933 = vmatprep.mubr.f32.mxu0 0.0
        %5934 = vmatmul.mubr.f32.gmra.mrb[0].mxu0 %v5861
        %v5935 = vpop.f32.mrb[0].mxu0
        %v5936 = vadd.f32 0.0, %v5935
        %v5937 = vpop.f32.mrb[0].mxu0
        %5938 = vmatprep.mubr.f32.mxu0 0.0
        %5939 = vmatmul.mubr.f32.gmra.mrb[0].mxu0 %v5863
        %v5940 = vpop.f32.mrb[0].mxu0
        %v5941 = vadd.f32 0.0, %v5940
        %v5942 = vpop.f32.mrb[0].mxu0
        %5943 = vdwg.mxu0
        %5944 = vrot.lane.b32.xlu0 %v753, 104
        %v5945 = vpop.permute.xlu0 %5944
        %5946 = vrot.lane.b32.xlu0 %v756, 104
        %v5947 = vpop.permute.xlu0 %5946
        %5948 = vrot.lane.b32.xlu0 %v898, 104
        %v5949 = vpop.permute.xlu0 %5948
        %5950 = vrot.lane.b32.xlu0 %v901, 104
        %v5951 = vpop.permute.xlu0 %5950
        %v5952 = vsel %vm944, %v5945, 0
        %v5954 = vsel %vm944, %v5947, 0
        %v5956 = vsel %vm944, %v5949, 0
        %v5958 = vsel %vm944, %v5951, 0
        %5960 = vmatprep.subr.mxu0 0.0
        %5961 = vmatpush1.xpose.msra.mxu0 %v5956
        %5962 = vmatprep.subr.mxu0 0.0
        %5963 = vmatpush1.xpose.msra.mxu0 %v5958
        %5964 = vmatprep.subr.mxu0 0.0
        %5965 = vmatpush1.xpose.msra.mxu0 0.0
        %5966 = vmatprep.subr.mxu0 0.0
        %5967 = vmatpush1.xpose.msra.mxu0 0.0
        %5968 = vmatprep.subr.mxu0 0.0
        %5969 = vmatpush1.xpose.msra.mxu0 0.0
        %5970 = vmatprep.subr.mxu0 0.0
        %5971 = vmatpush1.xpose.msra.mxu0 0.0
        %5972 = vmatprep.subr.mxu0 0.0
        %5973 = vmatpush1.xpose.msra.mxu0 0.0
        %5974 = vmatprep.subr.mxu0 0.0
        %5975 = vmatpush1.xpose.msra.mxu0 0.0
        %5976 = vmatprep.subr.mxu0 0.0
        %5977 = vmatpush1.xpose.msra.mxu0 0.0
        %5978 = vmatprep.subr.mxu0 0.0
        %5979 = vmatpush1.xpose.msra.mxu0 0.0
        %5980 = vmatprep.subr.mxu0 0.0
        %5981 = vmatpush1.xpose.msra.mxu0 0.0
        %5982 = vmatprep.subr.mxu0 0.0
        %5983 = vmatpush1.xpose.msra.mxu0 0.0
        %5984 = vmatprep.subr.mxu0 0.0
        %5985 = vmatpush1.xpose.msra.mxu0 0.0
        %5986 = vmatprep.subr.mxu0 0.0
        %5987 = vmatpush1.xpose.msra.mxu0 0.0
        %5988 = vmatprep.subr.mxu0 0.0
        %5989 = vmatpush1.xpose.msra.mxu0 0.0
        %5990 = vmatprep.subr.mxu0 0.0
        %5991 = vmatpush1.xpose.msra.mxu0 0.0
        %5992 = vmatprep.subr.mxu0 0.0
        %5993 = vmatpush1.xpose.msra.mxu0 0.0
        %5994 = vmatprep.subr.mxu0 0.0
        %5995 = vmatpush1.xpose.msra.mxu0 0.0
        %5996 = vmatprep.subr.mxu0 0.0
        %5997 = vmatpush1.xpose.msra.mxu0 0.0
        %5998 = vmatprep.subr.mxu0 0.0
        %5999 = vmatpush1.xpose.msra.mxu0 0.0
        %6000 = vmatprep.subr.mxu0 0.0
        %6001 = vmatpush1.xpose.msra.mxu0 0.0
        %6002 = vmatprep.subr.mxu0 0.0
        %6003 = vmatpush1.xpose.msra.mxu0 0.0
        %6004 = vmatprep.subr.mxu0 0.0
        %6005 = vmatpush1.xpose.msra.mxu0 0.0
        %6006 = vmatprep.subr.mxu0 0.0
        %6007 = vmatpush1.xpose.msra.mxu0 0.0
        %6008 = vmatprep.subr.mxu0 0.0
        %6009 = vmatpush1.xpose.msra.mxu0 0.0
        %6010 = vmatprep.subr.mxu0 0.0
        %6011 = vmatpush1.xpose.msra.mxu0 0.0
        %6012 = vmatprep.subr.mxu0 0.0
        %6013 = vmatpush1.xpose.msra.mxu0 0.0
        %6014 = vmatprep.subr.mxu0 0.0
        %6015 = vmatpush1.xpose.msra.mxu0 0.0
        %6016 = vmatprep.subr.mxu0 0.0
        %6017 = vmatpush1.xpose.msra.mxu0 0.0
        %6018 = vmatprep.subr.mxu0 0.0
        %6019 = vmatpush1.xpose.msra.mxu0 0.0
        %6020 = vmatprep.subr.mxu0 0.0
        %6021 = vmatpush1.xpose.msra.mxu0 0.0
        %6022 = vmatprep.subr.mxu0 0.0
        %6023 = vmatpush1.xpose.msra.mxu0 0.0
        %6024 = vmatprep.mubr.f32.mxu0 0.0
        %6025 = vmatmul.mubr.f32.gmra.mrb[0].mxu0 %v5952
        %v6026 = vpop.f32.mrb[0].mxu0
        %v6027 = vadd.f32 0.0, %v6026
        %v6028 = vpop.f32.mrb[0].mxu0
        %6029 = vmatprep.mubr.f32.mxu0 0.0
        %6030 = vmatmul.mubr.f32.gmra.mrb[0].mxu0 %v5954
        %v6031 = vpop.f32.mrb[0].mxu0
        %v6032 = vadd.f32 0.0, %v6031
        %v6033 = vpop.f32.mrb[0].mxu0
        %6034 = vdwg.mxu0
        %6035 = vrot.lane.b32.xlu0 %v761, 104
        %v6036 = vpop.permute.xlu0 %6035
        %6037 = vrot.lane.b32.xlu0 %v764, 104
        %v6038 = vpop.permute.xlu0 %6037
        %6039 = vrot.lane.b32.xlu0 %v906, 104
        %v6040 = vpop.permute.xlu0 %6039
        %6041 = vrot.lane.b32.xlu0 %v909, 104
        %v6042 = vpop.permute.xlu0 %6041
        %v6043 = vsel %vm944, %v6036, 0
        %v6045 = vsel %vm944, %v6038, 0
        %v6047 = vsel %vm944, %v6040, 0
        %v6049 = vsel %vm944, %v6042, 0
        %6051 = vmatprep.subr.mxu0 0.0
        %6052 = vmatpush1.xpose.msra.mxu0 %v6047
        %6053 = vmatprep.subr.mxu0 0.0
        %6054 = vmatpush1.xpose.msra.mxu0 %v6049
        %6055 = vmatprep.subr.mxu0 0.0
        %6056 = vmatpush1.xpose.msra.mxu0 0.0
        %6057 = vmatprep.subr.mxu0 0.0
        %6058 = vmatpush1.xpose.msra.mxu0 0.0
        %6059 = vmatprep.subr.mxu0 0.0
        %6060 = vmatpush1.xpose.msra.mxu0 0.0
        %6061 = vmatprep.subr.mxu0 0.0
        %6062 = vmatpush1.xpose.msra.mxu0 0.0
        %6063 = vmatprep.subr.mxu0 0.0
        %6064 = vmatpush1.xpose.msra.mxu0 0.0
        %6065 = vmatprep.subr.mxu0 0.0
        %6066 = vmatpush1.xpose.msra.mxu0 0.0
        %6067 = vmatprep.subr.mxu0 0.0
        %6068 = vmatpush1.xpose.msra.mxu0 0.0
        %6069 = vmatprep.subr.mxu0 0.0
        %6070 = vmatpush1.xpose.msra.mxu0 0.0
        %6071 = vmatprep.subr.mxu0 0.0
        %6072 = vmatpush1.xpose.msra.mxu0 0.0
        %6073 = vmatprep.subr.mxu0 0.0
        %6074 = vmatpush1.xpose.msra.mxu0 0.0
        %6075 = vmatprep.subr.mxu0 0.0
        %6076 = vmatpush1.xpose.msra.mxu0 0.0
        %6077 = vmatprep.subr.mxu0 0.0
        %6078 = vmatpush1.xpose.msra.mxu0 0.0
        %6079 = vmatprep.subr.mxu0 0.0
        %6080 = vmatpush1.xpose.msra.mxu0 0.0
        %6081 = vmatprep.subr.mxu0 0.0
        %6082 = vmatpush1.xpose.msra.mxu0 0.0
        %6083 = vmatprep.subr.mxu0 0.0
        %6084 = vmatpush1.xpose.msra.mxu0 0.0
        %6085 = vmatprep.subr.mxu0 0.0
        %6086 = vmatpush1.xpose.msra.mxu0 0.0
        %6087 = vmatprep.subr.mxu0 0.0
        %6088 = vmatpush1.xpose.msra.mxu0 0.0
        %6089 = vmatprep.subr.mxu0 0.0
        %6090 = vmatpush1.xpose.msra.mxu0 0.0
        %6091 = vmatprep.subr.mxu0 0.0
        %6092 = vmatpush1.xpose.msra.mxu0 0.0
        %6093 = vmatprep.subr.mxu0 0.0
        %6094 = vmatpush1.xpose.msra.mxu0 0.0
        %6095 = vmatprep.subr.mxu0 0.0
        %6096 = vmatpush1.xpose.msra.mxu0 0.0
        %6097 = vmatprep.subr.mxu0 0.0
        %6098 = vmatpush1.xpose.msra.mxu0 0.0
        %6099 = vmatprep.subr.mxu0 0.0
        %6100 = vmatpush1.xpose.msra.mxu0 0.0
        %6101 = vmatprep.subr.mxu0 0.0
        %6102 = vmatpush1.xpose.msra.mxu0 0.0
        %6103 = vmatprep.subr.mxu0 0.0
        %6104 = vmatpush1.xpose.msra.mxu0 0.0
        %6105 = vmatprep.subr.mxu0 0.0
        %6106 = vmatpush1.xpose.msra.mxu0 0.0
        %6107 = vmatprep.subr.mxu0 0.0
        %6108 = vmatpush1.xpose.msra.mxu0 0.0
        %6109 = vmatprep.subr.mxu0 0.0
        %6110 = vmatpush1.xpose.msra.mxu0 0.0
        %6111 = vmatprep.subr.mxu0 0.0
        %6112 = vmatpush1.xpose.msra.mxu0 0.0
        %6113 = vmatprep.subr.mxu0 0.0
        %6114 = vmatpush1.xpose.msra.mxu0 0.0
        %6115 = vmatprep.mubr.f32.mxu0 0.0
        %6116 = vmatmul.mubr.f32.gmra.mrb[0].mxu0 %v6043
        %v6117 = vpop.f32.mrb[0].mxu0
        %v6118 = vadd.f32 0.0, %v6117
        %v6119 = vpop.f32.mrb[0].mxu0
        %6120 = vmatprep.mubr.f32.mxu0 0.0
        %6121 = vmatmul.mubr.f32.gmra.mrb[0].mxu0 %v6045
        %v6122 = vpop.f32.mrb[0].mxu0
        %v6123 = vadd.f32 0.0, %v6122
        %v6124 = vpop.f32.mrb[0].mxu0
        %6125 = vdwg.mxu0
        %6126 = vrot.lane.b32.xlu0 %v769, 104
        %v6127 = vpop.permute.xlu0 %6126
        %6128 = vrot.lane.b32.xlu0 %v772, 104
        %v6129 = vpop.permute.xlu0 %6128
        %6130 = vrot.lane.b32.xlu0 %v914, 104
        %v6131 = vpop.permute.xlu0 %6130
        %6132 = vrot.lane.b32.xlu0 %v917, 104
        %v6133 = vpop.permute.xlu0 %6132
        %v6134 = vsel %vm944, %v6127, 0
        %v6136 = vsel %vm944, %v6129, 0
        %v6138 = vsel %vm944, %v6131, 0
        %v6140 = vsel %vm944, %v6133, 0
        %6142 = vmatprep.subr.mxu0 0.0
        %6143 = vmatpush1.xpose.msra.mxu0 %v6138
        %6144 = vmatprep.subr.mxu0 0.0
        %6145 = vmatpush1.xpose.msra.mxu0 %v6140
        %6146 = vmatprep.subr.mxu0 0.0
        %6147 = vmatpush1.xpose.msra.mxu0 0.0
        %6148 = vmatprep.subr.mxu0 0.0
        %6149 = vmatpush1.xpose.msra.mxu0 0.0
        %6150 = vmatprep.subr.mxu0 0.0
        %6151 = vmatpush1.xpose.msra.mxu0 0.0
        %6152 = vmatprep.subr.mxu0 0.0
        %6153 = vmatpush1.xpose.msra.mxu0 0.0
        %6154 = vmatprep.subr.mxu0 0.0
        %6155 = vmatpush1.xpose.msra.mxu0 0.0
        %6156 = vmatprep.subr.mxu0 0.0
        %6157 = vmatpush1.xpose.msra.mxu0 0.0
        %6158 = vmatprep.subr.mxu0 0.0
        %6159 = vmatpush1.xpose.msra.mxu0 0.0
        %6160 = vmatprep.subr.mxu0 0.0
        %6161 = vmatpush1.xpose.msra.mxu0 0.0
        %6162 = vmatprep.subr.mxu0 0.0
        %6163 = vmatpush1.xpose.msra.mxu0 0.0
        %6164 = vmatprep.subr.mxu0 0.0
        %6165 = vmatpush1.xpose.msra.mxu0 0.0
        %6166 = vmatprep.subr.mxu0 0.0
        %6167 = vmatpush1.xpose.msra.mxu0 0.0
        %6168 = vmatprep.subr.mxu0 0.0
        %6169 = vmatpush1.xpose.msra.mxu0 0.0
        %6170 = vmatprep.subr.mxu0 0.0
        %6171 = vmatpush1.xpose.msra.mxu0 0.0
        %6172 = vmatprep.subr.mxu0 0.0
        %6173 = vmatpush1.xpose.msra.mxu0 0.0
        %6174 = vmatprep.subr.mxu0 0.0
        %6175 = vmatpush1.xpose.msra.mxu0 0.0
        %6176 = vmatprep.subr.mxu0 0.0
        %6177 = vmatpush1.xpose.msra.mxu0 0.0
        %6178 = vmatprep.subr.mxu0 0.0
        %6179 = vmatpush1.xpose.msra.mxu0 0.0
        %6180 = vmatprep.subr.mxu0 0.0
        %6181 = vmatpush1.xpose.msra.mxu0 0.0
        %6182 = vmatprep.subr.mxu0 0.0
        %6183 = vmatpush1.xpose.msra.mxu0 0.0
        %6184 = vmatprep.subr.mxu0 0.0
        %6185 = vmatpush1.xpose.msra.mxu0 0.0
        %6186 = vmatprep.subr.mxu0 0.0
        %6187 = vmatpush1.xpose.msra.mxu0 0.0
        %6188 = vmatprep.subr.mxu0 0.0
        %6189 = vmatpush1.xpose.msra.mxu0 0.0
        %6190 = vmatprep.subr.mxu0 0.0
        %6191 = vmatpush1.xpose.msra.mxu0 0.0
        %6192 = vmatprep.subr.mxu0 0.0
        %6193 = vmatpush1.xpose.msra.mxu0 0.0
        %6194 = vmatprep.subr.mxu0 0.0
        %6195 = vmatpush1.xpose.msra.mxu0 0.0
        %6196 = vmatprep.subr.mxu0 0.0
        %6197 = vmatpush1.xpose.msra.mxu0 0.0
        %6198 = vmatprep.subr.mxu0 0.0
        %6199 = vmatpush1.xpose.msra.mxu0 0.0
        %6200 = vmatprep.subr.mxu0 0.0
        %6201 = vmatpush1.xpose.msra.mxu0 0.0
        %6202 = vmatprep.subr.mxu0 0.0
        %6203 = vmatpush1.xpose.msra.mxu0 0.0
        %6204 = vmatprep.subr.mxu0 0.0
        %6205 = vmatpush1.xpose.msra.mxu0 0.0
        %6206 = vmatprep.mubr.f32.mxu0 0.0
        %6207 = vmatmul.mubr.f32.gmra.mrb[0].mxu0 %v6134
        %v6208 = vpop.f32.mrb[0].mxu0
        %v6209 = vadd.f32 0.0, %v6208
        %v6210 = vpop.f32.mrb[0].mxu0
        %6211 = vmatprep.mubr.f32.mxu0 0.0
        %6212 = vmatmul.mubr.f32.gmra.mrb[0].mxu0 %v6136
        %v6213 = vpop.f32.mrb[0].mxu0
        %v6214 = vadd.f32 0.0, %v6213
        %v6215 = vpop.f32.mrb[0].mxu0
        %6216 = vdwg.mxu0
        %6217 = vrot.lane.b32.xlu0 %v777, 104
        %v6218 = vpop.permute.xlu0 %6217
        %6219 = vrot.lane.b32.xlu0 %v780, 104
        %v6220 = vpop.permute.xlu0 %6219
        %6221 = vrot.lane.b32.xlu0 %v922, 104
        %v6222 = vpop.permute.xlu0 %6221
        %6223 = vrot.lane.b32.xlu0 %v925, 104
        %v6224 = vpop.permute.xlu0 %6223
        %v6225 = vsel %vm944, %v6218, 0
        %v6227 = vsel %vm944, %v6220, 0
        %v6229 = vsel %vm944, %v6222, 0
        %v6231 = vsel %vm944, %v6224, 0
        %6233 = vmatprep.subr.mxu0 0.0
        %6234 = vmatpush1.xpose.msra.mxu0 %v6229
        %6235 = vmatprep.subr.mxu0 0.0
        %6236 = vmatpush1.xpose.msra.mxu0 %v6231
        %6237 = vmatprep.subr.mxu0 0.0
        %6238 = vmatpush1.xpose.msra.mxu0 0.0
        %6239 = vmatprep.subr.mxu0 0.0
        %6240 = vmatpush1.xpose.msra.mxu0 0.0
        %6241 = vmatprep.subr.mxu0 0.0
        %6242 = vmatpush1.xpose.msra.mxu0 0.0
        %6243 = vmatprep.subr.mxu0 0.0
        %6244 = vmatpush1.xpose.msra.mxu0 0.0
        %6245 = vmatprep.subr.mxu0 0.0
        %6246 = vmatpush1.xpose.msra.mxu0 0.0
        %6247 = vmatprep.subr.mxu0 0.0
        %6248 = vmatpush1.xpose.msra.mxu0 0.0
        %6249 = vmatprep.subr.mxu0 0.0
        %6250 = vmatpush1.xpose.msra.mxu0 0.0
        %6251 = vmatprep.subr.mxu0 0.0
        %6252 = vmatpush1.xpose.msra.mxu0 0.0
        %6253 = vmatprep.subr.mxu0 0.0
        %6254 = vmatpush1.xpose.msra.mxu0 0.0
        %6255 = vmatprep.subr.mxu0 0.0
        %6256 = vmatpush1.xpose.msra.mxu0 0.0
        %6257 = vmatprep.subr.mxu0 0.0
        %6258 = vmatpush1.xpose.msra.mxu0 0.0
        %6259 = vmatprep.subr.mxu0 0.0
        %6260 = vmatpush1.xpose.msra.mxu0 0.0
        %6261 = vmatprep.subr.mxu0 0.0
        %6262 = vmatpush1.xpose.msra.mxu0 0.0
        %6263 = vmatprep.subr.mxu0 0.0
        %6264 = vmatpush1.xpose.msra.mxu0 0.0
        %6265 = vmatprep.subr.mxu0 0.0
        %6266 = vmatpush1.xpose.msra.mxu0 0.0
        %6267 = vmatprep.subr.mxu0 0.0
        %6268 = vmatpush1.xpose.msra.mxu0 0.0
        %6269 = vmatprep.subr.mxu0 0.0
        %6270 = vmatpush1.xpose.msra.mxu0 0.0
        %6271 = vmatprep.subr.mxu0 0.0
        %6272 = vmatpush1.xpose.msra.mxu0 0.0
        %6273 = vmatprep.subr.mxu0 0.0
        %6274 = vmatpush1.xpose.msra.mxu0 0.0
        %6275 = vmatprep.subr.mxu0 0.0
        %6276 = vmatpush1.xpose.msra.mxu0 0.0
        %6277 = vmatprep.subr.mxu0 0.0
        %6278 = vmatpush1.xpose.msra.mxu0 0.0
        %6279 = vmatprep.subr.mxu0 0.0
        %6280 = vmatpush1.xpose.msra.mxu0 0.0
        %6281 = vmatprep.subr.mxu0 0.0
        %6282 = vmatpush1.xpose.msra.mxu0 0.0
        %6283 = vmatprep.subr.mxu0 0.0
        %6284 = vmatpush1.xpose.msra.mxu0 0.0
        %6285 = vmatprep.subr.mxu0 0.0
        %6286 = vmatpush1.xpose.msra.mxu0 0.0
        %6287 = vmatprep.subr.mxu0 0.0
        %6288 = vmatpush1.xpose.msra.mxu0 0.0
        %6289 = vmatprep.subr.mxu0 0.0
        %6290 = vmatpush1.xpose.msra.mxu0 0.0
        %6291 = vmatprep.subr.mxu0 0.0
        %6292 = vmatpush1.xpose.msra.mxu0 0.0
        %6293 = vmatprep.subr.mxu0 0.0
        %6294 = vmatpush1.xpose.msra.mxu0 0.0
        %6295 = vmatprep.subr.mxu0 0.0
        %6296 = vmatpush1.xpose.msra.mxu0 0.0
        %6297 = vmatprep.mubr.f32.mxu0 0.0
        %6298 = vmatmul.mubr.f32.gmra.mrb[0].mxu0 %v6225
        %v6299 = vpop.f32.mrb[0].mxu0
        %v6300 = vadd.f32 0.0, %v6299
        %v6301 = vpop.f32.mrb[0].mxu0
        %6302 = vmatprep.mubr.f32.mxu0 0.0
        %6303 = vmatmul.mubr.f32.gmra.mrb[0].mxu0 %v6227
        %v6304 = vpop.f32.mrb[0].mxu0
        %v6305 = vadd.f32 0.0, %v6304
        %v6306 = vpop.f32.mrb[0].mxu0
        %6307 = vdwg.mxu0
        %6308 = vrot.lane.b32.xlu0 %v785, 104
        %v6309 = vpop.permute.xlu0 %6308
        %6310 = vrot.lane.b32.xlu0 %v788, 104
        %v6311 = vpop.permute.xlu0 %6310
        %6312 = vrot.lane.b32.xlu0 %v930, 104
        %v6313 = vpop.permute.xlu0 %6312
        %6314 = vrot.lane.b32.xlu0 %v933, 104
        %v6315 = vpop.permute.xlu0 %6314
        %v6316 = vsel %vm944, %v6309, 0
        %v6318 = vsel %vm944, %v6311, 0
        %v6320 = vsel %vm944, %v6313, 0
        %v6322 = vsel %vm944, %v6315, 0
        %6324 = vmatprep.subr.mxu0 0.0
        %6325 = vmatpush1.xpose.msra.mxu0 %v6320
        %6326 = vmatprep.subr.mxu0 0.0
        %6327 = vmatpush1.xpose.msra.mxu0 %v6322
        %6328 = vmatprep.subr.mxu0 0.0
        %6329 = vmatpush1.xpose.msra.mxu0 0.0
        %6330 = vmatprep.subr.mxu0 0.0
        %6331 = vmatpush1.xpose.msra.mxu0 0.0
        %6332 = vmatprep.subr.mxu0 0.0
        %6333 = vmatpush1.xpose.msra.mxu0 0.0
        %6334 = vmatprep.subr.mxu0 0.0
        %6335 = vmatpush1.xpose.msra.mxu0 0.0
        %6336 = vmatprep.subr.mxu0 0.0
        %6337 = vmatpush1.xpose.msra.mxu0 0.0
        %6338 = vmatprep.subr.mxu0 0.0
        %6339 = vmatpush1.xpose.msra.mxu0 0.0
        %6340 = vmatprep.subr.mxu0 0.0
        %6341 = vmatpush1.xpose.msra.mxu0 0.0
        %6342 = vmatprep.subr.mxu0 0.0
        %6343 = vmatpush1.xpose.msra.mxu0 0.0
        %6344 = vmatprep.subr.mxu0 0.0
        %6345 = vmatpush1.xpose.msra.mxu0 0.0
        %6346 = vmatprep.subr.mxu0 0.0
        %6347 = vmatpush1.xpose.msra.mxu0 0.0
        %6348 = vmatprep.subr.mxu0 0.0
        %6349 = vmatpush1.xpose.msra.mxu0 0.0
        %6350 = vmatprep.subr.mxu0 0.0
        %6351 = vmatpush1.xpose.msra.mxu0 0.0
        %6352 = vmatprep.subr.mxu0 0.0
        %6353 = vmatpush1.xpose.msra.mxu0 0.0
        %6354 = vmatprep.subr.mxu0 0.0
        %6355 = vmatpush1.xpose.msra.mxu0 0.0
        %6356 = vmatprep.subr.mxu0 0.0
        %6357 = vmatpush1.xpose.msra.mxu0 0.0
        %6358 = vmatprep.subr.mxu0 0.0
        %6359 = vmatpush1.xpose.msra.mxu0 0.0
        %6360 = vmatprep.subr.mxu0 0.0
        %6361 = vmatpush1.xpose.msra.mxu0 0.0
        %6362 = vmatprep.subr.mxu0 0.0
        %6363 = vmatpush1.xpose.msra.mxu0 0.0
        %6364 = vmatprep.subr.mxu0 0.0
        %6365 = vmatpush1.xpose.msra.mxu0 0.0
        %6366 = vmatprep.subr.mxu0 0.0
        %6367 = vmatpush1.xpose.msra.mxu0 0.0
        %6368 = vmatprep.subr.mxu0 0.0
        %6369 = vmatpush1.xpose.msra.mxu0 0.0
        %6370 = vmatprep.subr.mxu0 0.0
        %6371 = vmatpush1.xpose.msra.mxu0 0.0
        %6372 = vmatprep.subr.mxu0 0.0
        %6373 = vmatpush1.xpose.msra.mxu0 0.0
        %6374 = vmatprep.subr.mxu0 0.0
        %6375 = vmatpush1.xpose.msra.mxu0 0.0
        %6376 = vmatprep.subr.mxu0 0.0
        %6377 = vmatpush1.xpose.msra.mxu0 0.0
        %6378 = vmatprep.subr.mxu0 0.0
        %6379 = vmatpush1.xpose.msra.mxu0 0.0
        %6380 = vmatprep.subr.mxu0 0.0
        %6381 = vmatpush1.xpose.msra.mxu0 0.0
        %6382 = vmatprep.subr.mxu0 0.0
        %6383 = vmatpush1.xpose.msra.mxu0 0.0
        %6384 = vmatprep.subr.mxu0 0.0
        %6385 = vmatpush1.xpose.msra.mxu0 0.0
        %6386 = vmatprep.subr.mxu0 0.0
        %6387 = vmatpush1.xpose.msra.mxu0 0.0
        %6388 = vmatprep.mubr.f32.mxu0 0.0
        %6389 = vmatmul.mubr.f32.gmra.mrb[0].mxu0 %v6316
        %v6390 = vpop.f32.mrb[0].mxu0
        %v6391 = vadd.f32 0.0, %v6390
        %v6392 = vpop.f32.mrb[0].mxu0
        %6393 = vmatprep.mubr.f32.mxu0 0.0
        %6394 = vmatmul.mubr.f32.gmra.mrb[0].mxu0 %v6318
        %v6395 = vpop.f32.mrb[0].mxu0
        %v6396 = vadd.f32 0.0, %v6395
        %v6397 = vpop.f32.mrb[0].mxu0
        %6398 = vdwg.mxu0
        %6399 = vrot.lane.b32.xlu0 %v793, 104
        %v6400 = vpop.permute.xlu0 %6399
        %6401 = vrot.lane.b32.xlu0 %v796, 104
        %v6402 = vpop.permute.xlu0 %6401
        %6403 = vrot.lane.b32.xlu0 %v938, 104
        %v6404 = vpop.permute.xlu0 %6403
        %6405 = vrot.lane.b32.xlu0 %v941, 104
        %v6406 = vpop.permute.xlu0 %6405
        %v6407 = vsel %vm944, %v6400, 0
        %v6409 = vsel %vm944, %v6402, 0
        %v6411 = vsel %vm944, %v6404, 0
        %v6413 = vsel %vm944, %v6406, 0
        %6415 = vmatprep.subr.mxu0 0.0
        %6416 = vmatpush1.xpose.msra.mxu0 %v6411
        %6417 = vmatprep.subr.mxu0 0.0
        %6418 = vmatpush1.xpose.msra.mxu0 %v6413
        %6419 = vmatprep.subr.mxu0 0.0
        %6420 = vmatpush1.xpose.msra.mxu0 0.0
        %6421 = vmatprep.subr.mxu0 0.0
        %6422 = vmatpush1.xpose.msra.mxu0 0.0
        %6423 = vmatprep.subr.mxu0 0.0
        %6424 = vmatpush1.xpose.msra.mxu0 0.0
        %6425 = vmatprep.subr.mxu0 0.0
        %6426 = vmatpush1.xpose.msra.mxu0 0.0
        %6427 = vmatprep.subr.mxu0 0.0
        %6428 = vmatpush1.xpose.msra.mxu0 0.0
        %6429 = vmatprep.subr.mxu0 0.0
        %6430 = vmatpush1.xpose.msra.mxu0 0.0
        %6431 = vmatprep.subr.mxu0 0.0
        %6432 = vmatpush1.xpose.msra.mxu0 0.0
        %6433 = vmatprep.subr.mxu0 0.0
        %6434 = vmatpush1.xpose.msra.mxu0 0.0
        %6435 = vmatprep.subr.mxu0 0.0
        %6436 = vmatpush1.xpose.msra.mxu0 0.0
        %6437 = vmatprep.subr.mxu0 0.0
        %6438 = vmatpush1.xpose.msra.mxu0 0.0
        %6439 = vmatprep.subr.mxu0 0.0
        %6440 = vmatpush1.xpose.msra.mxu0 0.0
        %6441 = vmatprep.subr.mxu0 0.0
        %6442 = vmatpush1.xpose.msra.mxu0 0.0
        %6443 = vmatprep.subr.mxu0 0.0
        %6444 = vmatpush1.xpose.msra.mxu0 0.0
        %6445 = vmatprep.subr.mxu0 0.0
        %6446 = vmatpush1.xpose.msra.mxu0 0.0
        %6447 = vmatprep.subr.mxu0 0.0
        %6448 = vmatpush1.xpose.msra.mxu0 0.0
        %6449 = vmatprep.subr.mxu0 0.0
        %6450 = vmatpush1.xpose.msra.mxu0 0.0
        %6451 = vmatprep.subr.mxu0 0.0
        %6452 = vmatpush1.xpose.msra.mxu0 0.0
        %6453 = vmatprep.subr.mxu0 0.0
        %6454 = vmatpush1.xpose.msra.mxu0 0.0
        %6455 = vmatprep.subr.mxu0 0.0
        %6456 = vmatpush1.xpose.msra.mxu0 0.0
        %6457 = vmatprep.subr.mxu0 0.0
        %6458 = vmatpush1.xpose.msra.mxu0 0.0
        %6459 = vmatprep.subr.mxu0 0.0
        %6460 = vmatpush1.xpose.msra.mxu0 0.0
        %6461 = vmatprep.subr.mxu0 0.0
        %6462 = vmatpush1.xpose.msra.mxu0 0.0
        %6463 = vmatprep.subr.mxu0 0.0
        %6464 = vmatpush1.xpose.msra.mxu0 0.0
        %6465 = vmatprep.subr.mxu0 0.0
        %6466 = vmatpush1.xpose.msra.mxu0 0.0
        %6467 = vmatprep.subr.mxu0 0.0
        %6468 = vmatpush1.xpose.msra.mxu0 0.0
        %6469 = vmatprep.subr.mxu0 0.0
        %6470 = vmatpush1.xpose.msra.mxu0 0.0
        %6471 = vmatprep.subr.mxu0 0.0
        %6472 = vmatpush1.xpose.msra.mxu0 0.0
        %6473 = vmatprep.subr.mxu0 0.0
        %6474 = vmatpush1.xpose.msra.mxu0 0.0
        %6475 = vmatprep.subr.mxu0 0.0
        %6476 = vmatpush1.xpose.msra.mxu0 0.0
        %6477 = vmatprep.subr.mxu0 0.0
        %6478 = vmatpush1.xpose.msra.mxu0 0.0
        %6479 = vmatprep.mubr.f32.mxu0 0.0
        %6480 = vmatmul.mubr.f32.gmra.mrb[0].mxu0 %v6407
        %v6481 = vpop.f32.mrb[0].mxu0
        %v6482 = vadd.f32 0.0, %v6481
        %v6483 = vpop.f32.mrb[0].mxu0
        %6484 = vmatprep.mubr.f32.mxu0 0.0
        %6485 = vmatmul.mubr.f32.gmra.mrb[0].mxu0 %v6409
        %v6486 = vpop.f32.mrb[0].mxu0
        %v6487 = vadd.f32 0.0, %v6486
        %v6488 = vpop.f32.mrb[0].mxu0
        %6489 = vdwg.mxu0
        %v6490 = vmul.f32 %v5845, 0.35355338
        %v6491 = vmul.f32 %v5850, 0.35355338
        %v6492 = vmul.f32 %v5936, 0.35355338
        %v6493 = vmul.f32 %v5941, 0.35355338
        %v6494 = vmul.f32 %v6027, 0.35355338
        %v6495 = vmul.f32 %v6032, 0.35355338
        %v6496 = vmul.f32 %v6118, 0.35355338
        %v6497 = vmul.f32 %v6123, 0.35355338
        %v6498 = vmul.f32 %v6209, 0.35355338
        %v6499 = vmul.f32 %v6214, 0.35355338
        %v6500 = vmul.f32 %v6300, 0.35355338
        %v6501 = vmul.f32 %v6305, 0.35355338
        %v6502 = vmul.f32 %v6391, 0.35355338
        %v6503 = vmul.f32 %v6396, 0.35355338
        %v6504 = vmul.f32 %v6482, 0.35355338
        %v6505 = vmul.f32 %v6487, 0.35355338
        %v6506 = vsel %vm1657, %v6490, -inf
        %6507 = vmax.xlane.f32.xlu0 %v6506
        %v6508 = vpop.xlane.xlu0 %6507
        %v6509 = vsel %vm1657, %v6491, -inf
        %6510 = vmax.xlane.f32.xlu0 %v6509
        %v6511 = vpop.xlane.xlu0 %6510
        %v6512 = vsel %vm1657, %v6492, -inf
        %6513 = vmax.xlane.f32.xlu0 %v6512
        %v6514 = vpop.xlane.xlu0 %6513
        %v6515 = vsel %vm1657, %v6493, -inf
        %6516 = vmax.xlane.f32.xlu0 %v6515
        %v6517 = vpop.xlane.xlu0 %6516
        %v6518 = vsel %vm1657, %v6494, -inf
        %6519 = vmax.xlane.f32.xlu0 %v6518
        %v6520 = vpop.xlane.xlu0 %6519
        %v6521 = vsel %vm1657, %v6495, -inf
        %6522 = vmax.xlane.f32.xlu0 %v6521
        %v6523 = vpop.xlane.xlu0 %6522
        %v6524 = vsel %vm1657, %v6496, -inf
        %6525 = vmax.xlane.f32.xlu0 %v6524
        %v6526 = vpop.xlane.xlu0 %6525
        %v6527 = vsel %vm1657, %v6497, -inf
        %6528 = vmax.xlane.f32.xlu0 %v6527
        %v6529 = vpop.xlane.xlu0 %6528
        %v6530 = vsel %vm1657, %v6498, -inf
        %6531 = vmax.xlane.f32.xlu0 %v6530
        %v6532 = vpop.xlane.xlu0 %6531
        %v6533 = vsel %vm1657, %v6499, -inf
        %6534 = vmax.xlane.f32.xlu0 %v6533
        %v6535 = vpop.xlane.xlu0 %6534
        %v6536 = vsel %vm1657, %v6500, -inf
        %6537 = vmax.xlane.f32.xlu0 %v6536
        %v6538 = vpop.xlane.xlu0 %6537
        %v6539 = vsel %vm1657, %v6501, -inf
        %6540 = vmax.xlane.f32.xlu0 %v6539
        %v6541 = vpop.xlane.xlu0 %6540
        %v6542 = vsel %vm1657, %v6502, -inf
        %6543 = vmax.xlane.f32.xlu0 %v6542
        %v6544 = vpop.xlane.xlu0 %6543
        %v6545 = vsel %vm1657, %v6503, -inf
        %6546 = vmax.xlane.f32.xlu0 %v6545
        %v6547 = vpop.xlane.xlu0 %6546
        %v6548 = vsel %vm1657, %v6504, -inf
        %6549 = vmax.xlane.f32.xlu0 %v6548
        %v6550 = vpop.xlane.xlu0 %6549
        %v6551 = vsel %vm1657, %v6505, -inf
        %6552 = vmax.xlane.f32.xlu0 %v6551
        %v6553 = vpop.xlane.xlu0 %6552
        %v6554 = vsub.f32 %v6490, %v6508
        %v6555 = vsub.f32 %v6491, %v6511
        %v6556 = vsub.f32 %v6492, %v6514
        %v6557 = vsub.f32 %v6493, %v6517
        %v6558 = vsub.f32 %v6494, %v6520
        %v6559 = vsub.f32 %v6495, %v6523
        %v6560 = vsub.f32 %v6496, %v6526
        %v6561 = vsub.f32 %v6497, %v6529
        %v6562 = vsub.f32 %v6498, %v6532
        %v6563 = vsub.f32 %v6499, %v6535
        %v6564 = vsub.f32 %v6500, %v6538
        %v6565 = vsub.f32 %v6501, %v6541
        %v6566 = vsub.f32 %v6502, %v6544
        %v6567 = vsub.f32 %v6503, %v6547
        %v6568 = vsub.f32 %v6504, %v6550
        %v6569 = vsub.f32 %v6505, %v6553
        %v6570 = vmul.f32 %v6554, 1.442695
        %v6571 = vpow.pop %v6570
        %v6572 = vmul.f32 %v6555, 1.442695
        %v6573 = vpow.pop %v6572
        %v6574 = vmul.f32 %v6556, 1.442695
        %v6575 = vpow.pop %v6574
        %v6576 = vmul.f32 %v6557, 1.442695
        %v6577 = vpow.pop %v6576
        %v6578 = vmul.f32 %v6558, 1.442695
        %v6579 = vpow.pop %v6578
        %v6580 = vmul.f32 %v6559, 1.442695
        %v6581 = vpow.pop %v6580
        %v6582 = vmul.f32 %v6560, 1.442695
        %v6583 = vpow.pop %v6582
        %v6584 = vmul.f32 %v6561, 1.442695
        %v6585 = vpow.pop %v6584
        %v6586 = vmul.f32 %v6562, 1.442695
        %v6587 = vpow.pop %v6586
        %v6588 = vmul.f32 %v6563, 1.442695
        %v6589 = vpow.pop %v6588
        %v6590 = vmul.f32 %v6564, 1.442695
        %v6591 = vpow.pop %v6590
        %v6592 = vmul.f32 %v6565, 1.442695
        %v6593 = vpow.pop %v6592
        %v6594 = vmul.f32 %v6566, 1.442695
        %v6595 = vpow.pop %v6594
        %v6596 = vmul.f32 %v6567, 1.442695
        %v6597 = vpow.pop %v6596
        %v6598 = vmul.f32 %v6568, 1.442695
        %v6599 = vpow.pop %v6598
        %v6600 = vmul.f32 %v6569, 1.442695
        %v6601 = vpow.pop %v6600
        %v6602 = vsel %vm1657, %v6571, 0.0
        %6603 = vadd.xlane.f32.xlu0 %v6602
        %v6604 = vpop.xlane.xlu0 %6603
        %v6605 = vsel %vm1657, %v6573, 0.0
        %6606 = vadd.xlane.f32.xlu0 %v6605
        %v6607 = vpop.xlane.xlu0 %6606
        %v6608 = vsel %vm1657, %v6575, 0.0
        %6609 = vadd.xlane.f32.xlu0 %v6608
        %v6610 = vpop.xlane.xlu0 %6609
        %v6611 = vsel %vm1657, %v6577, 0.0
        %6612 = vadd.xlane.f32.xlu0 %v6611
        %v6613 = vpop.xlane.xlu0 %6612
        %v6614 = vsel %vm1657, %v6579, 0.0
        %6615 = vadd.xlane.f32.xlu0 %v6614
        %v6616 = vpop.xlane.xlu0 %6615
        %v6617 = vsel %vm1657, %v6581, 0.0
        %6618 = vadd.xlane.f32.xlu0 %v6617
        %v6619 = vpop.xlane.xlu0 %6618
        %v6620 = vsel %vm1657, %v6583, 0.0
        %6621 = vadd.xlane.f32.xlu0 %v6620
        %v6622 = vpop.xlane.xlu0 %6621
        %v6623 = vsel %vm1657, %v6585, 0.0
        %6624 = vadd.xlane.f32.xlu0 %v6623
        %v6625 = vpop.xlane.xlu0 %6624
        %v6626 = vsel %vm1657, %v6587, 0.0
        %6627 = vadd.xlane.f32.xlu0 %v6626
        %v6628 = vpop.xlane.xlu0 %6627
        %v6629 = vsel %vm1657, %v6589, 0.0
        %6630 = vadd.xlane.f32.xlu0 %v6629
        %v6631 = vpop.xlane.xlu0 %6630
        %v6632 = vsel %vm1657, %v6591, 0.0
        %6633 = vadd.xlane.f32.xlu0 %v6632
        %v6634 = vpop.xlane.xlu0 %6633
        %v6635 = vsel %vm1657, %v6593, 0.0
        %6636 = vadd.xlane.f32.xlu0 %v6635
        %v6637 = vpop.xlane.xlu0 %6636
        %v6638 = vsel %vm1657, %v6595, 0.0
        %6639 = vadd.xlane.f32.xlu0 %v6638
        %v6640 = vpop.xlane.xlu0 %6639
        %v6641 = vsel %vm1657, %v6597, 0.0
        %6642 = vadd.xlane.f32.xlu0 %v6641
        %v6643 = vpop.xlane.xlu0 %6642
        %v6644 = vsel %vm1657, %v6599, 0.0
        %6645 = vadd.xlane.f32.xlu0 %v6644
        %v6646 = vpop.xlane.xlu0 %6645
        %v6647 = vsel %vm1657, %v6601, 0.0
        %6648 = vadd.xlane.f32.xlu0 %v6647
        %v6649 = vpop.xlane.xlu0 %6648
        %v6650 = vrcp.pop %v6604
        %v6651 = vrcp.pop %v6607
        %v6652 = vrcp.pop %v6610
        %v6653 = vrcp.pop %v6613
        %v6654 = vrcp.pop %v6616
        %v6655 = vrcp.pop %v6619
        %v6656 = vrcp.pop %v6622
        %v6657 = vrcp.pop %v6625
        %v6658 = vrcp.pop %v6628
        %v6659 = vrcp.pop %v6631
        %v6660 = vrcp.pop %v6634
        %v6661 = vrcp.pop %v6637
        %v6662 = vrcp.pop %v6640
        %v6663 = vrcp.pop %v6643
        %v6664 = vrcp.pop %v6646
        %v6665 = vrcp.pop %v6649
        %v6666 = vmul.f32 %v6571, %v6650
        %v6667 = vmul.f32 %v6573, %v6651
        %v6668 = vmul.f32 %v6575, %v6652
        %v6669 = vmul.f32 %v6577, %v6653
        %v6670 = vmul.f32 %v6579, %v6654
        %v6671 = vmul.f32 %v6581, %v6655
        %v6672 = vmul.f32 %v6583, %v6656
        %v6673 = vmul.f32 %v6585, %v6657
        %v6674 = vmul.f32 %v6587, %v6658
        %v6675 = vmul.f32 %v6589, %v6659
        %v6676 = vmul.f32 %v6591, %v6660
        %v6677 = vmul.f32 %v6593, %v6661
        %v6678 = vmul.f32 %v6595, %v6662
        %v6679 = vmul.f32 %v6597, %v6663
        %v6680 = vmul.f32 %v6599, %v6664
        %v6681 = vmul.f32 %v6601, %v6665
        %6682 = vrot.lane.b32.xlu0 %v882, 72
        %v6683 = vpop.permute.xlu0 %6682
        %6684 = vrot.lane.b32.xlu0 %v885, 72
        %v6685 = vpop.permute.xlu0 %6684
        %v6689 = vsel %vm1657, %v6666, 0
        %v6692 = vsel %vm1657, %v6667, 0
        %6694 = vmatprep.subr.mxu0 0.0
        %6695 = vmatpush1.msra.mxu0 %v6683
        %6696 = vmatprep.subr.mxu0 0.0
        %6697 = vmatpush1.msra.mxu0 %v6685
        %6698 = vmatprep.subr.mxu0 0.0
        %6699 = vmatpush1.msra.mxu0 0.0
        %6700 = vmatprep.subr.mxu0 0.0
        %6701 = vmatpush1.msra.mxu0 0.0
        %6702 = vmatprep.subr.mxu0 0.0
        %6703 = vmatpush1.msra.mxu0 0.0
        %6704 = vmatprep.subr.mxu0 0.0
        %6705 = vmatpush1.msra.mxu0 0.0
        %6706 = vmatprep.subr.mxu0 0.0
        %6707 = vmatpush1.msra.mxu0 0.0
        %6708 = vmatprep.subr.mxu0 0.0
        %6709 = vmatpush1.msra.mxu0 0.0
        %6710 = vmatprep.subr.mxu0 0.0
        %6711 = vmatpush1.msra.mxu0 0.0
        %6712 = vmatprep.subr.mxu0 0.0
        %6713 = vmatpush1.msra.mxu0 0.0
        %6714 = vmatprep.subr.mxu0 0.0
        %6715 = vmatpush1.msra.mxu0 0.0
        %6716 = vmatprep.subr.mxu0 0.0
        %6717 = vmatpush1.msra.mxu0 0.0
        %6718 = vmatprep.subr.mxu0 0.0
        %6719 = vmatpush1.msra.mxu0 0.0
        %6720 = vmatprep.subr.mxu0 0.0
        %6721 = vmatpush1.msra.mxu0 0.0
        %6722 = vmatprep.subr.mxu0 0.0
        %6723 = vmatpush1.msra.mxu0 0.0
        %6724 = vmatprep.subr.mxu0 0.0
        %6725 = vmatpush1.msra.mxu0 0.0
        %6726 = vmatprep.subr.mxu0 0.0
        %6727 = vmatpush1.msra.mxu0 0.0
        %6728 = vmatprep.subr.mxu0 0.0
        %6729 = vmatpush1.msra.mxu0 0.0
        %6730 = vmatprep.subr.mxu0 0.0
        %6731 = vmatpush1.msra.mxu0 0.0
        %6732 = vmatprep.subr.mxu0 0.0
        %6733 = vmatpush1.msra.mxu0 0.0
        %6734 = vmatprep.subr.mxu0 0.0
        %6735 = vmatpush1.msra.mxu0 0.0
        %6736 = vmatprep.subr.mxu0 0.0
        %6737 = vmatpush1.msra.mxu0 0.0
        %6738 = vmatprep.subr.mxu0 0.0
        %6739 = vmatpush1.msra.mxu0 0.0
        %6740 = vmatprep.subr.mxu0 0.0
        %6741 = vmatpush1.msra.mxu0 0.0
        %6742 = vmatprep.subr.mxu0 0.0
        %6743 = vmatpush1.msra.mxu0 0.0
        %6744 = vmatprep.subr.mxu0 0.0
        %6745 = vmatpush1.msra.mxu0 0.0
        %6746 = vmatprep.subr.mxu0 0.0
        %6747 = vmatpush1.msra.mxu0 0.0
        %6748 = vmatprep.subr.mxu0 0.0
        %6749 = vmatpush1.msra.mxu0 0.0
        %6750 = vmatprep.subr.mxu0 0.0
        %6751 = vmatpush1.msra.mxu0 0.0
        %6752 = vmatprep.subr.mxu0 0.0
        %6753 = vmatpush1.msra.mxu0 0.0
        %6754 = vmatprep.subr.mxu0 0.0
        %6755 = vmatpush1.msra.mxu0 0.0
        %6756 = vmatprep.subr.mxu0 0.0
        %6757 = vmatpush1.msra.mxu0 0.0
        %6758 = vmatprep.mubr.f32.mxu0 0.0
        %6759 = vmatmul.mubr.f32.gmra.mrb[0].mxu0 %v6689
        %v6760 = vpop.f32.mrb[0].mxu0
        %v6761 = vadd.f32 0.0, %v6760
        %v6762 = vpop.f32.mrb[0].mxu0
        %6763 = vmatprep.mubr.f32.mxu0 0.0
        %6764 = vmatmul.mubr.f32.gmra.mrb[0].mxu0 %v6692
        %v6765 = vpop.f32.mrb[0].mxu0
        %v6766 = vadd.f32 0.0, %v6765
        %v6767 = vpop.f32.mrb[0].mxu0
        %6768 = vdwg.mxu0
        %6769 = vrot.lane.b32.xlu0 %v890, 72
        %v6770 = vpop.permute.xlu0 %6769
        %6771 = vrot.lane.b32.xlu0 %v893, 72
        %v6772 = vpop.permute.xlu0 %6771
        %v6776 = vsel %vm1657, %v6668, 0
        %v6779 = vsel %vm1657, %v6669, 0
        %6781 = vmatprep.subr.mxu0 0.0
        %6782 = vmatpush1.msra.mxu0 %v6770
        %6783 = vmatprep.subr.mxu0 0.0
        %6784 = vmatpush1.msra.mxu0 %v6772
        %6785 = vmatprep.subr.mxu0 0.0
        %6786 = vmatpush1.msra.mxu0 0.0
        %6787 = vmatprep.subr.mxu0 0.0
        %6788 = vmatpush1.msra.mxu0 0.0
        %6789 = vmatprep.subr.mxu0 0.0
        %6790 = vmatpush1.msra.mxu0 0.0
        %6791 = vmatprep.subr.mxu0 0.0
        %6792 = vmatpush1.msra.mxu0 0.0
        %6793 = vmatprep.subr.mxu0 0.0
        %6794 = vmatpush1.msra.mxu0 0.0
        %6795 = vmatprep.subr.mxu0 0.0
        %6796 = vmatpush1.msra.mxu0 0.0
        %6797 = vmatprep.subr.mxu0 0.0
        %6798 = vmatpush1.msra.mxu0 0.0
        %6799 = vmatprep.subr.mxu0 0.0
        %6800 = vmatpush1.msra.mxu0 0.0
        %6801 = vmatprep.subr.mxu0 0.0
        %6802 = vmatpush1.msra.mxu0 0.0
        %6803 = vmatprep.subr.mxu0 0.0
        %6804 = vmatpush1.msra.mxu0 0.0
        %6805 = vmatprep.subr.mxu0 0.0
        %6806 = vmatpush1.msra.mxu0 0.0
        %6807 = vmatprep.subr.mxu0 0.0
        %6808 = vmatpush1.msra.mxu0 0.0
        %6809 = vmatprep.subr.mxu0 0.0
        %6810 = vmatpush1.msra.mxu0 0.0
        %6811 = vmatprep.subr.mxu0 0.0
        %6812 = vmatpush1.msra.mxu0 0.0
        %6813 = vmatprep.subr.mxu0 0.0
        %6814 = vmatpush1.msra.mxu0 0.0
        %6815 = vmatprep.subr.mxu0 0.0
        %6816 = vmatpush1.msra.mxu0 0.0
        %6817 = vmatprep.subr.mxu0 0.0
        %6818 = vmatpush1.msra.mxu0 0.0
        %6819 = vmatprep.subr.mxu0 0.0
        %6820 = vmatpush1.msra.mxu0 0.0
        %6821 = vmatprep.subr.mxu0 0.0
        %6822 = vmatpush1.msra.mxu0 0.0
        %6823 = vmatprep.subr.mxu0 0.0
        %6824 = vmatpush1.msra.mxu0 0.0
        %6825 = vmatprep.subr.mxu0 0.0
        %6826 = vmatpush1.msra.mxu0 0.0
        %6827 = vmatprep.subr.mxu0 0.0
        %6828 = vmatpush1.msra.mxu0 0.0
        %6829 = vmatprep.subr.mxu0 0.0
        %6830 = vmatpush1.msra.mxu0 0.0
        %6831 = vmatprep.subr.mxu0 0.0
        %6832 = vmatpush1.msra.mxu0 0.0
        %6833 = vmatprep.subr.mxu0 0.0
        %6834 = vmatpush1.msra.mxu0 0.0
        %6835 = vmatprep.subr.mxu0 0.0
        %6836 = vmatpush1.msra.mxu0 0.0
        %6837 = vmatprep.subr.mxu0 0.0
        %6838 = vmatpush1.msra.mxu0 0.0
        %6839 = vmatprep.subr.mxu0 0.0
        %6840 = vmatpush1.msra.mxu0 0.0
        %6841 = vmatprep.subr.mxu0 0.0
        %6842 = vmatpush1.msra.mxu0 0.0
        %6843 = vmatprep.subr.mxu0 0.0
        %6844 = vmatpush1.msra.mxu0 0.0
        %6845 = vmatprep.mubr.f32.mxu0 0.0
        %6846 = vmatmul.mubr.f32.gmra.mrb[0].mxu0 %v6776
        %v6847 = vpop.f32.mrb[0].mxu0
        %v6848 = vadd.f32 0.0, %v6847
        %v6849 = vpop.f32.mrb[0].mxu0
        %6850 = vmatprep.mubr.f32.mxu0 0.0
        %6851 = vmatmul.mubr.f32.gmra.mrb[0].mxu0 %v6779
        %v6852 = vpop.f32.mrb[0].mxu0
        %v6853 = vadd.f32 0.0, %v6852
        %v6854 = vpop.f32.mrb[0].mxu0
        %6855 = vdwg.mxu0
        %6856 = vrot.lane.b32.xlu0 %v898, 72
        %v6857 = vpop.permute.xlu0 %6856
        %6858 = vrot.lane.b32.xlu0 %v901, 72
        %v6859 = vpop.permute.xlu0 %6858
        %v6863 = vsel %vm1657, %v6670, 0
        %v6866 = vsel %vm1657, %v6671, 0
        %6868 = vmatprep.subr.mxu0 0.0
        %6869 = vmatpush1.msra.mxu0 %v6857
        %6870 = vmatprep.subr.mxu0 0.0
        %6871 = vmatpush1.msra.mxu0 %v6859
        %6872 = vmatprep.subr.mxu0 0.0
        %6873 = vmatpush1.msra.mxu0 0.0
        %6874 = vmatprep.subr.mxu0 0.0
        %6875 = vmatpush1.msra.mxu0 0.0
        %6876 = vmatprep.subr.mxu0 0.0
        %6877 = vmatpush1.msra.mxu0 0.0
        %6878 = vmatprep.subr.mxu0 0.0
        %6879 = vmatpush1.msra.mxu0 0.0
        %6880 = vmatprep.subr.mxu0 0.0
        %6881 = vmatpush1.msra.mxu0 0.0
        %6882 = vmatprep.subr.mxu0 0.0
        %6883 = vmatpush1.msra.mxu0 0.0
        %6884 = vmatprep.subr.mxu0 0.0
        %6885 = vmatpush1.msra.mxu0 0.0
        %6886 = vmatprep.subr.mxu0 0.0
        %6887 = vmatpush1.msra.mxu0 0.0
        %6888 = vmatprep.subr.mxu0 0.0
        %6889 = vmatpush1.msra.mxu0 0.0
        %6890 = vmatprep.subr.mxu0 0.0
        %6891 = vmatpush1.msra.mxu0 0.0
        %6892 = vmatprep.subr.mxu0 0.0
        %6893 = vmatpush1.msra.mxu0 0.0
        %6894 = vmatprep.subr.mxu0 0.0
        %6895 = vmatpush1.msra.mxu0 0.0
        %6896 = vmatprep.subr.mxu0 0.0
        %6897 = vmatpush1.msra.mxu0 0.0
        %6898 = vmatprep.subr.mxu0 0.0
        %6899 = vmatpush1.msra.mxu0 0.0
        %6900 = vmatprep.subr.mxu0 0.0
        %6901 = vmatpush1.msra.mxu0 0.0
        %6902 = vmatprep.subr.mxu0 0.0
        %6903 = vmatpush1.msra.mxu0 0.0
        %6904 = vmatprep.subr.mxu0 0.0
        %6905 = vmatpush1.msra.mxu0 0.0
        %6906 = vmatprep.subr.mxu0 0.0
        %6907 = vmatpush1.msra.mxu0 0.0
        %6908 = vmatprep.subr.mxu0 0.0
        %6909 = vmatpush1.msra.mxu0 0.0
        %6910 = vmatprep.subr.mxu0 0.0
        %6911 = vmatpush1.msra.mxu0 0.0
        %6912 = vmatprep.subr.mxu0 0.0
        %6913 = vmatpush1.msra.mxu0 0.0
        %6914 = vmatprep.subr.mxu0 0.0
        %6915 = vmatpush1.msra.mxu0 0.0
        %6916 = vmatprep.subr.mxu0 0.0
        %6917 = vmatpush1.msra.mxu0 0.0
        %6918 = vmatprep.subr.mxu0 0.0
        %6919 = vmatpush1.msra.mxu0 0.0
        %6920 = vmatprep.subr.mxu0 0.0
        %6921 = vmatpush1.msra.mxu0 0.0
        %6922 = vmatprep.subr.mxu0 0.0
        %6923 = vmatpush1.msra.mxu0 0.0
        %6924 = vmatprep.subr.mxu0 0.0
        %6925 = vmatpush1.msra.mxu0 0.0
        %6926 = vmatprep.subr.mxu0 0.0
        %6927 = vmatpush1.msra.mxu0 0.0
        %6928 = vmatprep.subr.mxu0 0.0
        %6929 = vmatpush1.msra.mxu0 0.0
        %6930 = vmatprep.subr.mxu0 0.0
        %6931 = vmatpush1.msra.mxu0 0.0
        %6932 = vmatprep.mubr.f32.mxu0 0.0
        %6933 = vmatmul.mubr.f32.gmra.mrb[0].mxu0 %v6863
        %v6934 = vpop.f32.mrb[0].mxu0
        %v6935 = vadd.f32 0.0, %v6934
        %v6936 = vpop.f32.mrb[0].mxu0
        %6937 = vmatprep.mubr.f32.mxu0 0.0
        %6938 = vmatmul.mubr.f32.gmra.mrb[0].mxu0 %v6866
        %v6939 = vpop.f32.mrb[0].mxu0
        %v6940 = vadd.f32 0.0, %v6939
        %v6941 = vpop.f32.mrb[0].mxu0
        %6942 = vdwg.mxu0
        %6943 = vrot.lane.b32.xlu0 %v906, 72
        %v6944 = vpop.permute.xlu0 %6943
        %6945 = vrot.lane.b32.xlu0 %v909, 72
        %v6946 = vpop.permute.xlu0 %6945
        %v6950 = vsel %vm1657, %v6672, 0
        %v6953 = vsel %vm1657, %v6673, 0
        %6955 = vmatprep.subr.mxu0 0.0
        %6956 = vmatpush1.msra.mxu0 %v6944
        %6957 = vmatprep.subr.mxu0 0.0
        %6958 = vmatpush1.msra.mxu0 %v6946
        %6959 = vmatprep.subr.mxu0 0.0
        %6960 = vmatpush1.msra.mxu0 0.0
        %6961 = vmatprep.subr.mxu0 0.0
        %6962 = vmatpush1.msra.mxu0 0.0
        %6963 = vmatprep.subr.mxu0 0.0
        %6964 = vmatpush1.msra.mxu0 0.0
        %6965 = vmatprep.subr.mxu0 0.0
        %6966 = vmatpush1.msra.mxu0 0.0
        %6967 = vmatprep.subr.mxu0 0.0
        %6968 = vmatpush1.msra.mxu0 0.0
        %6969 = vmatprep.subr.mxu0 0.0
        %6970 = vmatpush1.msra.mxu0 0.0
        %6971 = vmatprep.subr.mxu0 0.0
        %6972 = vmatpush1.msra.mxu0 0.0
        %6973 = vmatprep.subr.mxu0 0.0
        %6974 = vmatpush1.msra.mxu0 0.0
        %6975 = vmatprep.subr.mxu0 0.0
        %6976 = vmatpush1.msra.mxu0 0.0
        %6977 = vmatprep.subr.mxu0 0.0
        %6978 = vmatpush1.msra.mxu0 0.0
        %6979 = vmatprep.subr.mxu0 0.0
        %6980 = vmatpush1.msra.mxu0 0.0
        %6981 = vmatprep.subr.mxu0 0.0
        %6982 = vmatpush1.msra.mxu0 0.0
        %6983 = vmatprep.subr.mxu0 0.0
        %6984 = vmatpush1.msra.mxu0 0.0
        %6985 = vmatprep.subr.mxu0 0.0
        %6986 = vmatpush1.msra.mxu0 0.0
        %6987 = vmatprep.subr.mxu0 0.0
        %6988 = vmatpush1.msra.mxu0 0.0
        %6989 = vmatprep.subr.mxu0 0.0
        %6990 = vmatpush1.msra.mxu0 0.0
        %6991 = vmatprep.subr.mxu0 0.0
        %6992 = vmatpush1.msra.mxu0 0.0
        %6993 = vmatprep.subr.mxu0 0.0
        %6994 = vmatpush1.msra.mxu0 0.0
        %6995 = vmatprep.subr.mxu0 0.0
        %6996 = vmatpush1.msra.mxu0 0.0
        %6997 = vmatprep.subr.mxu0 0.0
        %6998 = vmatpush1.msra.mxu0 0.0
        %6999 = vmatprep.subr.mxu0 0.0
        %7000 = vmatpush1.msra.mxu0 0.0
        %7001 = vmatprep.subr.mxu0 0.0
        %7002 = vmatpush1.msra.mxu0 0.0
        %7003 = vmatprep.subr.mxu0 0.0
        %7004 = vmatpush1.msra.mxu0 0.0
        %7005 = vmatprep.subr.mxu0 0.0
        %7006 = vmatpush1.msra.mxu0 0.0
        %7007 = vmatprep.subr.mxu0 0.0
        %7008 = vmatpush1.msra.mxu0 0.0
        %7009 = vmatprep.subr.mxu0 0.0
        %7010 = vmatpush1.msra.mxu0 0.0
        %7011 = vmatprep.subr.mxu0 0.0
        %7012 = vmatpush1.msra.mxu0 0.0
        %7013 = vmatprep.subr.mxu0 0.0
        %7014 = vmatpush1.msra.mxu0 0.0
        %7015 = vmatprep.subr.mxu0 0.0
        %7016 = vmatpush1.msra.mxu0 0.0
        %7017 = vmatprep.subr.mxu0 0.0
        %7018 = vmatpush1.msra.mxu0 0.0
        %7019 = vmatprep.mubr.f32.mxu0 0.0
        %7020 = vmatmul.mubr.f32.gmra.mrb[0].mxu0 %v6950
        %v7021 = vpop.f32.mrb[0].mxu0
        %v7022 = vadd.f32 0.0, %v7021
        %v7023 = vpop.f32.mrb[0].mxu0
        %7024 = vmatprep.mubr.f32.mxu0 0.0
        %7025 = vmatmul.mubr.f32.gmra.mrb[0].mxu0 %v6953
        %v7026 = vpop.f32.mrb[0].mxu0
        %v7027 = vadd.f32 0.0, %v7026
        %v7028 = vpop.f32.mrb[0].mxu0
        %7029 = vdwg.mxu0
        %7030 = vrot.lane.b32.xlu0 %v914, 72
        %v7031 = vpop.permute.xlu0 %7030
        %7032 = vrot.lane.b32.xlu0 %v917, 72
        %v7033 = vpop.permute.xlu0 %7032
        %v7037 = vsel %vm1657, %v6674, 0
        %v7040 = vsel %vm1657, %v6675, 0
        %7042 = vmatprep.subr.mxu0 0.0
        %7043 = vmatpush1.msra.mxu0 %v7031
        %7044 = vmatprep.subr.mxu0 0.0
        %7045 = vmatpush1.msra.mxu0 %v7033
        %7046 = vmatprep.subr.mxu0 0.0
        %7047 = vmatpush1.msra.mxu0 0.0
        %7048 = vmatprep.subr.mxu0 0.0
        %7049 = vmatpush1.msra.mxu0 0.0
        %7050 = vmatprep.subr.mxu0 0.0
        %7051 = vmatpush1.msra.mxu0 0.0
        %7052 = vmatprep.subr.mxu0 0.0
        %7053 = vmatpush1.msra.mxu0 0.0
        %7054 = vmatprep.subr.mxu0 0.0
        %7055 = vmatpush1.msra.mxu0 0.0
        %7056 = vmatprep.subr.mxu0 0.0
        %7057 = vmatpush1.msra.mxu0 0.0
        %7058 = vmatprep.subr.mxu0 0.0
        %7059 = vmatpush1.msra.mxu0 0.0
        %7060 = vmatprep.subr.mxu0 0.0
        %7061 = vmatpush1.msra.mxu0 0.0
        %7062 = vmatprep.subr.mxu0 0.0
        %7063 = vmatpush1.msra.mxu0 0.0
        %7064 = vmatprep.subr.mxu0 0.0
        %7065 = vmatpush1.msra.mxu0 0.0
        %7066 = vmatprep.subr.mxu0 0.0
        %7067 = vmatpush1.msra.mxu0 0.0
        %7068 = vmatprep.subr.mxu0 0.0
        %7069 = vmatpush1.msra.mxu0 0.0
        %7070 = vmatprep.subr.mxu0 0.0
        %7071 = vmatpush1.msra.mxu0 0.0
        %7072 = vmatprep.subr.mxu0 0.0
        %7073 = vmatpush1.msra.mxu0 0.0
        %7074 = vmatprep.subr.mxu0 0.0
        %7075 = vmatpush1.msra.mxu0 0.0
        %7076 = vmatprep.subr.mxu0 0.0
        %7077 = vmatpush1.msra.mxu0 0.0
        %7078 = vmatprep.subr.mxu0 0.0
        %7079 = vmatpush1.msra.mxu0 0.0
        %7080 = vmatprep.subr.mxu0 0.0
        %7081 = vmatpush1.msra.mxu0 0.0
        %7082 = vmatprep.subr.mxu0 0.0
        %7083 = vmatpush1.msra.mxu0 0.0
        %7084 = vmatprep.subr.mxu0 0.0
        %7085 = vmatpush1.msra.mxu0 0.0
        %7086 = vmatprep.subr.mxu0 0.0
        %7087 = vmatpush1.msra.mxu0 0.0
        %7088 = vmatprep.subr.mxu0 0.0
        %7089 = vmatpush1.msra.mxu0 0.0
        %7090 = vmatprep.subr.mxu0 0.0
        %7091 = vmatpush1.msra.mxu0 0.0
        %7092 = vmatprep.subr.mxu0 0.0
        %7093 = vmatpush1.msra.mxu0 0.0
        %7094 = vmatprep.subr.mxu0 0.0
        %7095 = vmatpush1.msra.mxu0 0.0
        %7096 = vmatprep.subr.mxu0 0.0
        %7097 = vmatpush1.msra.mxu0 0.0
        %7098 = vmatprep.subr.mxu0 0.0
        %7099 = vmatpush1.msra.mxu0 0.0
        %7100 = vmatprep.subr.mxu0 0.0
        %7101 = vmatpush1.msra.mxu0 0.0
        %7102 = vmatprep.subr.mxu0 0.0
        %7103 = vmatpush1.msra.mxu0 0.0
        %7104 = vmatprep.subr.mxu0 0.0
        %7105 = vmatpush1.msra.mxu0 0.0
        %7106 = vmatprep.mubr.f32.mxu0 0.0
        %7107 = vmatmul.mubr.f32.gmra.mrb[0].mxu0 %v7037
        %v7108 = vpop.f32.mrb[0].mxu0
        %v7109 = vadd.f32 0.0, %v7108
        %v7110 = vpop.f32.mrb[0].mxu0
        %7111 = vmatprep.mubr.f32.mxu0 0.0
        %7112 = vmatmul.mubr.f32.gmra.mrb[0].mxu0 %v7040
        %v7113 = vpop.f32.mrb[0].mxu0
        %v7114 = vadd.f32 0.0, %v7113
        %v7115 = vpop.f32.mrb[0].mxu0
        %7116 = vdwg.mxu0
        %7117 = vrot.lane.b32.xlu0 %v922, 72
        %v7118 = vpop.permute.xlu0 %7117
        %7119 = vrot.lane.b32.xlu0 %v925, 72
        %v7120 = vpop.permute.xlu0 %7119
        %v7124 = vsel %vm1657, %v6676, 0
        %v7127 = vsel %vm1657, %v6677, 0
        %7129 = vmatprep.subr.mxu0 0.0
        %7130 = vmatpush1.msra.mxu0 %v7118
        %7131 = vmatprep.subr.mxu0 0.0
        %7132 = vmatpush1.msra.mxu0 %v7120
        %7133 = vmatprep.subr.mxu0 0.0
        %7134 = vmatpush1.msra.mxu0 0.0
        %7135 = vmatprep.subr.mxu0 0.0
        %7136 = vmatpush1.msra.mxu0 0.0
        %7137 = vmatprep.subr.mxu0 0.0
        %7138 = vmatpush1.msra.mxu0 0.0
        %7139 = vmatprep.subr.mxu0 0.0
        %7140 = vmatpush1.msra.mxu0 0.0
        %7141 = vmatprep.subr.mxu0 0.0
        %7142 = vmatpush1.msra.mxu0 0.0
        %7143 = vmatprep.subr.mxu0 0.0
        %7144 = vmatpush1.msra.mxu0 0.0
        %7145 = vmatprep.subr.mxu0 0.0
        %7146 = vmatpush1.msra.mxu0 0.0
        %7147 = vmatprep.subr.mxu0 0.0
        %7148 = vmatpush1.msra.mxu0 0.0
        %7149 = vmatprep.subr.mxu0 0.0
        %7150 = vmatpush1.msra.mxu0 0.0
        %7151 = vmatprep.subr.mxu0 0.0
        %7152 = vmatpush1.msra.mxu0 0.0
        %7153 = vmatprep.subr.mxu0 0.0
        %7154 = vmatpush1.msra.mxu0 0.0
        %7155 = vmatprep.subr.mxu0 0.0
        %7156 = vmatpush1.msra.mxu0 0.0
        %7157 = vmatprep.subr.mxu0 0.0
        %7158 = vmatpush1.msra.mxu0 0.0
        %7159 = vmatprep.subr.mxu0 0.0
        %7160 = vmatpush1.msra.mxu0 0.0
        %7161 = vmatprep.subr.mxu0 0.0
        %7162 = vmatpush1.msra.mxu0 0.0
        %7163 = vmatprep.subr.mxu0 0.0
        %7164 = vmatpush1.msra.mxu0 0.0
        %7165 = vmatprep.subr.mxu0 0.0
        %7166 = vmatpush1.msra.mxu0 0.0
        %7167 = vmatprep.subr.mxu0 0.0
        %7168 = vmatpush1.msra.mxu0 0.0
        %7169 = vmatprep.subr.mxu0 0.0
        %7170 = vmatpush1.msra.mxu0 0.0
        %7171 = vmatprep.subr.mxu0 0.0
        %7172 = vmatpush1.msra.mxu0 0.0
        %7173 = vmatprep.subr.mxu0 0.0
        %7174 = vmatpush1.msra.mxu0 0.0
        %7175 = vmatprep.subr.mxu0 0.0
        %7176 = vmatpush1.msra.mxu0 0.0
        %7177 = vmatprep.subr.mxu0 0.0
        %7178 = vmatpush1.msra.mxu0 0.0
        %7179 = vmatprep.subr.mxu0 0.0
        %7180 = vmatpush1.msra.mxu0 0.0
        %7181 = vmatprep.subr.mxu0 0.0
        %7182 = vmatpush1.msra.mxu0 0.0
        %7183 = vmatprep.subr.mxu0 0.0
        %7184 = vmatpush1.msra.mxu0 0.0
        %7185 = vmatprep.subr.mxu0 0.0
        %7186 = vmatpush1.msra.mxu0 0.0
        %7187 = vmatprep.subr.mxu0 0.0
        %7188 = vmatpush1.msra.mxu0 0.0
        %7189 = vmatprep.subr.mxu0 0.0
        %7190 = vmatpush1.msra.mxu0 0.0
        %7191 = vmatprep.subr.mxu0 0.0
        %7192 = vmatpush1.msra.mxu0 0.0
        %7193 = vmatprep.mubr.f32.mxu0 0.0
        %7194 = vmatmul.mubr.f32.gmra.mrb[0].mxu0 %v7124
        %v7195 = vpop.f32.mrb[0].mxu0
        %v7196 = vadd.f32 0.0, %v7195
        %v7197 = vpop.f32.mrb[0].mxu0
        %7198 = vmatprep.mubr.f32.mxu0 0.0
        %7199 = vmatmul.mubr.f32.gmra.mrb[0].mxu0 %v7127
        %v7200 = vpop.f32.mrb[0].mxu0
        %v7201 = vadd.f32 0.0, %v7200
        %v7202 = vpop.f32.mrb[0].mxu0
        %7203 = vdwg.mxu0
        %7204 = vrot.lane.b32.xlu0 %v930, 72
        %v7205 = vpop.permute.xlu0 %7204
        %7206 = vrot.lane.b32.xlu0 %v933, 72
        %v7207 = vpop.permute.xlu0 %7206
        %v7211 = vsel %vm1657, %v6678, 0
        %v7214 = vsel %vm1657, %v6679, 0
        %7216 = vmatprep.subr.mxu0 0.0
        %7217 = vmatpush1.msra.mxu0 %v7205
        %7218 = vmatprep.subr.mxu0 0.0
        %7219 = vmatpush1.msra.mxu0 %v7207
        %7220 = vmatprep.subr.mxu0 0.0
        %7221 = vmatpush1.msra.mxu0 0.0
        %7222 = vmatprep.subr.mxu0 0.0
        %7223 = vmatpush1.msra.mxu0 0.0
        %7224 = vmatprep.subr.mxu0 0.0
        %7225 = vmatpush1.msra.mxu0 0.0
        %7226 = vmatprep.subr.mxu0 0.0
        %7227 = vmatpush1.msra.mxu0 0.0
        %7228 = vmatprep.subr.mxu0 0.0
        %7229 = vmatpush1.msra.mxu0 0.0
        %7230 = vmatprep.subr.mxu0 0.0
        %7231 = vmatpush1.msra.mxu0 0.0
        %7232 = vmatprep.subr.mxu0 0.0
        %7233 = vmatpush1.msra.mxu0 0.0
        %7234 = vmatprep.subr.mxu0 0.0
        %7235 = vmatpush1.msra.mxu0 0.0
        %7236 = vmatprep.subr.mxu0 0.0
        %7237 = vmatpush1.msra.mxu0 0.0
        %7238 = vmatprep.subr.mxu0 0.0
        %7239 = vmatpush1.msra.mxu0 0.0
        %7240 = vmatprep.subr.mxu0 0.0
        %7241 = vmatpush1.msra.mxu0 0.0
        %7242 = vmatprep.subr.mxu0 0.0
        %7243 = vmatpush1.msra.mxu0 0.0
        %7244 = vmatprep.subr.mxu0 0.0
        %7245 = vmatpush1.msra.mxu0 0.0
        %7246 = vmatprep.subr.mxu0 0.0
        %7247 = vmatpush1.msra.mxu0 0.0
        %7248 = vmatprep.subr.mxu0 0.0
        %7249 = vmatpush1.msra.mxu0 0.0
        %7250 = vmatprep.subr.mxu0 0.0
        %7251 = vmatpush1.msra.mxu0 0.0
        %7252 = vmatprep.subr.mxu0 0.0
        %7253 = vmatpush1.msra.mxu0 0.0
        %7254 = vmatprep.subr.mxu0 0.0
        %7255 = vmatpush1.msra.mxu0 0.0
        %7256 = vmatprep.subr.mxu0 0.0
        %7257 = vmatpush1.msra.mxu0 0.0
        %7258 = vmatprep.subr.mxu0 0.0
        %7259 = vmatpush1.msra.mxu0 0.0
        %7260 = vmatprep.subr.mxu0 0.0
        %7261 = vmatpush1.msra.mxu0 0.0
        %7262 = vmatprep.subr.mxu0 0.0
        %7263 = vmatpush1.msra.mxu0 0.0
        %7264 = vmatprep.subr.mxu0 0.0
        %7265 = vmatpush1.msra.mxu0 0.0
        %7266 = vmatprep.subr.mxu0 0.0
        %7267 = vmatpush1.msra.mxu0 0.0
        %7268 = vmatprep.subr.mxu0 0.0
        %7269 = vmatpush1.msra.mxu0 0.0
        %7270 = vmatprep.subr.mxu0 0.0
        %7271 = vmatpush1.msra.mxu0 0.0
        %7272 = vmatprep.subr.mxu0 0.0
        %7273 = vmatpush1.msra.mxu0 0.0
        %7274 = vmatprep.subr.mxu0 0.0
        %7275 = vmatpush1.msra.mxu0 0.0
        %7276 = vmatprep.subr.mxu0 0.0
        %7277 = vmatpush1.msra.mxu0 0.0
        %7278 = vmatprep.subr.mxu0 0.0
        %7279 = vmatpush1.msra.mxu0 0.0
        %7280 = vmatprep.mubr.f32.mxu0 0.0
        %7281 = vmatmul.mubr.f32.gmra.mrb[0].mxu0 %v7211
        %v7282 = vpop.f32.mrb[0].mxu0
        %v7283 = vadd.f32 0.0, %v7282
        %v7284 = vpop.f32.mrb[0].mxu0
        %7285 = vmatprep.mubr.f32.mxu0 0.0
        %7286 = vmatmul.mubr.f32.gmra.mrb[0].mxu0 %v7214
        %v7287 = vpop.f32.mrb[0].mxu0
        %v7288 = vadd.f32 0.0, %v7287
        %v7289 = vpop.f32.mrb[0].mxu0
        %7290 = vdwg.mxu0
        %7291 = vrot.lane.b32.xlu0 %v938, 72
        %v7292 = vpop.permute.xlu0 %7291
        %7293 = vrot.lane.b32.xlu0 %v941, 72
        %v7294 = vpop.permute.xlu0 %7293
        %v7298 = vsel %vm1657, %v6680, 0
        %v7301 = vsel %vm1657, %v6681, 0
        %7303 = vmatprep.subr.mxu0 0.0
        %7304 = vmatpush1.msra.mxu0 %v7292
        %7305 = vmatprep.subr.mxu0 0.0
        %7306 = vmatpush1.msra.mxu0 %v7294
        %7307 = vmatprep.subr.mxu0 0.0
        %7308 = vmatpush1.msra.mxu0 0.0
        %7309 = vmatprep.subr.mxu0 0.0
        %7310 = vmatpush1.msra.mxu0 0.0
        %7311 = vmatprep.subr.mxu0 0.0
        %7312 = vmatpush1.msra.mxu0 0.0
        %7313 = vmatprep.subr.mxu0 0.0
        %7314 = vmatpush1.msra.mxu0 0.0
        %7315 = vmatprep.subr.mxu0 0.0
        %7316 = vmatpush1.msra.mxu0 0.0
        %7317 = vmatprep.subr.mxu0 0.0
        %7318 = vmatpush1.msra.mxu0 0.0
        %7319 = vmatprep.subr.mxu0 0.0
        %7320 = vmatpush1.msra.mxu0 0.0
        %7321 = vmatprep.subr.mxu0 0.0
        %7322 = vmatpush1.msra.mxu0 0.0
        %7323 = vmatprep.subr.mxu0 0.0
        %7324 = vmatpush1.msra.mxu0 0.0
        %7325 = vmatprep.subr.mxu0 0.0
        %7326 = vmatpush1.msra.mxu0 0.0
        %7327 = vmatprep.subr.mxu0 0.0
        %7328 = vmatpush1.msra.mxu0 0.0
        %7329 = vmatprep.subr.mxu0 0.0
        %7330 = vmatpush1.msra.mxu0 0.0
        %7331 = vmatprep.subr.mxu0 0.0
        %7332 = vmatpush1.msra.mxu0 0.0
        %7333 = vmatprep.subr.mxu0 0.0
        %7334 = vmatpush1.msra.mxu0 0.0
        %7335 = vmatprep.subr.mxu0 0.0
        %7336 = vmatpush1.msra.mxu0 0.0
        %7337 = vmatprep.subr.mxu0 0.0
        %7338 = vmatpush1.msra.mxu0 0.0
        %7339 = vmatprep.subr.mxu0 0.0
        %7340 = vmatpush1.msra.mxu0 0.0
        %7341 = vmatprep.subr.mxu0 0.0
        %7342 = vmatpush1.msra.mxu0 0.0
        %7343 = vmatprep.subr.mxu0 0.0
        %7344 = vmatpush1.msra.mxu0 0.0
        %7345 = vmatprep.subr.mxu0 0.0
        %7346 = vmatpush1.msra.mxu0 0.0
        %7347 = vmatprep.subr.mxu0 0.0
        %7348 = vmatpush1.msra.mxu0 0.0
        %7349 = vmatprep.subr.mxu0 0.0
        %7350 = vmatpush1.msra.mxu0 0.0
        %7351 = vmatprep.subr.mxu0 0.0
        %7352 = vmatpush1.msra.mxu0 0.0
        %7353 = vmatprep.subr.mxu0 0.0
        %7354 = vmatpush1.msra.mxu0 0.0
        %7355 = vmatprep.subr.mxu0 0.0
        %7356 = vmatpush1.msra.mxu0 0.0
        %7357 = vmatprep.subr.mxu0 0.0
        %7358 = vmatpush1.msra.mxu0 0.0
        %7359 = vmatprep.subr.mxu0 0.0
        %7360 = vmatpush1.msra.mxu0 0.0
        %7361 = vmatprep.subr.mxu0 0.0
        %7362 = vmatpush1.msra.mxu0 0.0
        %7363 = vmatprep.subr.mxu0 0.0
        %7364 = vmatpush1.msra.mxu0 0.0
        %7365 = vmatprep.subr.mxu0 0.0
        %7366 = vmatpush1.msra.mxu0 0.0
        %7367 = vmatprep.mubr.f32.mxu0 0.0
        %7368 = vmatmul.mubr.f32.gmra.mrb[0].mxu0 %v7298
        %v7369 = vpop.f32.mrb[0].mxu0
        %v7370 = vadd.f32 0.0, %v7369
        %v7371 = vpop.f32.mrb[0].mxu0
        %7372 = vmatprep.mubr.f32.mxu0 0.0
        %7373 = vmatmul.mubr.f32.gmra.mrb[0].mxu0 %v7301
        %v7374 = vpop.f32.mrb[0].mxu0
        %v7375 = vadd.f32 0.0, %v7374
        %v7376 = vpop.f32.mrb[0].mxu0
        %7377 = vdwg.mxu0
        %7394 = vrot.lane.b32.xlu0 %v3529, 8
        %v7395 = vpop.permute.xlu0 %7394
        %7396 = vrot.lane.b32.xlu0 %v3534, 8
        %v7397 = vpop.permute.xlu0 %7396
        %7398 = vrot.lane.b32.xlu0 %v3616, 8
        %v7399 = vpop.permute.xlu0 %7398
        %7400 = vrot.lane.b32.xlu0 %v3621, 8
        %v7401 = vpop.permute.xlu0 %7400
        %7402 = vrot.lane.b32.xlu0 %v3703, 8
        %v7403 = vpop.permute.xlu0 %7402
        %7404 = vrot.lane.b32.xlu0 %v3708, 8
        %v7405 = vpop.permute.xlu0 %7404
        %7406 = vrot.lane.b32.xlu0 %v3790, 8
        %v7407 = vpop.permute.xlu0 %7406
        %7408 = vrot.lane.b32.xlu0 %v3795, 8
        %v7409 = vpop.permute.xlu0 %7408
        %7410 = vrot.lane.b32.xlu0 %v3877, 8
        %v7411 = vpop.permute.xlu0 %7410
        %7412 = vrot.lane.b32.xlu0 %v3882, 8
        %v7413 = vpop.permute.xlu0 %7412
        %7414 = vrot.lane.b32.xlu0 %v3964, 8
        %v7415 = vpop.permute.xlu0 %7414
        %7416 = vrot.lane.b32.xlu0 %v3969, 8
        %v7417 = vpop.permute.xlu0 %7416
        %7418 = vrot.lane.b32.xlu0 %v4051, 8
        %v7419 = vpop.permute.xlu0 %7418
        %7420 = vrot.lane.b32.xlu0 %v4056, 8
        %v7421 = vpop.permute.xlu0 %7420
        %7422 = vrot.lane.b32.xlu0 %v4138, 8
        %v7423 = vpop.permute.xlu0 %7422
        %7424 = vrot.lane.b32.xlu0 %v4143, 8
        %v7425 = vpop.permute.xlu0 %7424
        %7458 = vrot.lane.b32.xlu0 %v5145, 16
        %v7459 = vpop.permute.xlu0 %7458
        %7460 = vrot.lane.b32.xlu0 %v5150, 16
        %v7461 = vpop.permute.xlu0 %7460
        %7462 = vrot.lane.b32.xlu0 %v5232, 16
        %v7463 = vpop.permute.xlu0 %7462
        %7464 = vrot.lane.b32.xlu0 %v5237, 16
        %v7465 = vpop.permute.xlu0 %7464
        %7466 = vrot.lane.b32.xlu0 %v5319, 16
        %v7467 = vpop.permute.xlu0 %7466
        %7468 = vrot.lane.b32.xlu0 %v5324, 16
        %v7469 = vpop.permute.xlu0 %7468
        %7470 = vrot.lane.b32.xlu0 %v5406, 16
        %v7471 = vpop.permute.xlu0 %7470
        %7472 = vrot.lane.b32.xlu0 %v5411, 16
        %v7473 = vpop.permute.xlu0 %7472
        %7474 = vrot.lane.b32.xlu0 %v5493, 16
        %v7475 = vpop.permute.xlu0 %7474
        %7476 = vrot.lane.b32.xlu0 %v5498, 16
        %v7477 = vpop.permute.xlu0 %7476
        %7478 = vrot.lane.b32.xlu0 %v5580, 16
        %v7479 = vpop.permute.xlu0 %7478
        %7480 = vrot.lane.b32.xlu0 %v5585, 16
        %v7481 = vpop.permute.xlu0 %7480
        %7482 = vrot.lane.b32.xlu0 %v5667, 16
        %v7483 = vpop.permute.xlu0 %7482
        %7484 = vrot.lane.b32.xlu0 %v5672, 16
        %v7485 = vpop.permute.xlu0 %7484
        %7486 = vrot.lane.b32.xlu0 %v5754, 16
        %v7487 = vpop.permute.xlu0 %7486
        %7488 = vrot.lane.b32.xlu0 %v5759, 16
        %v7489 = vpop.permute.xlu0 %7488
        %7522 = vrot.lane.b32.xlu0 %v6761, 24
        %v7523 = vpop.permute.xlu0 %7522
        %7524 = vrot.lane.b32.xlu0 %v6766, 24
        %v7525 = vpop.permute.xlu0 %7524
        %7526 = vrot.lane.b32.xlu0 %v6848, 24
        %v7527 = vpop.permute.xlu0 %7526
        %7528 = vrot.lane.b32.xlu0 %v6853, 24
        %v7529 = vpop.permute.xlu0 %7528
        %7530 = vrot.lane.b32.xlu0 %v6935, 24
        %v7531 = vpop.permute.xlu0 %7530
        %7532 = vrot.lane.b32.xlu0 %v6940, 24
        %v7533 = vpop.permute.xlu0 %7532
        %7534 = vrot.lane.b32.xlu0 %v7022, 24
        %v7535 = vpop.permute.xlu0 %7534
        %7536 = vrot.lane.b32.xlu0 %v7027, 24
        %v7537 = vpop.permute.xlu0 %7536
        %7538 = vrot.lane.b32.xlu0 %v7109, 24
        %v7539 = vpop.permute.xlu0 %7538
        %7540 = vrot.lane.b32.xlu0 %v7114, 24
        %v7541 = vpop.permute.xlu0 %7540
        %7542 = vrot.lane.b32.xlu0 %v7196, 24
        %v7543 = vpop.permute.xlu0 %7542
        %7544 = vrot.lane.b32.xlu0 %v7201, 24
        %v7545 = vpop.permute.xlu0 %7544
        %7546 = vrot.lane.b32.xlu0 %v7283, 24
        %v7547 = vpop.permute.xlu0 %7546
        %7548 = vrot.lane.b32.xlu0 %v7288, 24
        %v7549 = vpop.permute.xlu0 %7548
        %7550 = vrot.lane.b32.xlu0 %v7370, 24
        %v7551 = vpop.permute.xlu0 %7550
        %7552 = vrot.lane.b32.xlu0 %v7375, 24
        %v7553 = vpop.permute.xlu0 %7552
        %v7570 = vsel %vm944, %v1913, %v7395
        %v7571 = vsel %vm944, %v1918, %v7397
        %v7572 = vsel %vm944, %v2000, %v7399
        %v7573 = vsel %vm944, %v2005, %v7401
        %v7574 = vsel %vm944, %v2087, %v7403
        %v7575 = vsel %vm944, %v2092, %v7405
        %v7576 = vsel %vm944, %v2174, %v7407
        %v7577 = vsel %vm944, %v2179, %v7409
        %v7578 = vsel %vm944, %v2261, %v7411
        %v7579 = vsel %vm944, %v2266, %v7413
        %v7580 = vsel %vm944, %v2348, %v7415
        %v7581 = vsel %vm944, %v2353, %v7417
        %v7582 = vsel %vm944, %v2435, %v7419
        %v7583 = vsel %vm944, %v2440, %v7421
        %v7584 = vsel %vm944, %v2522, %v7423
        %v7585 = vsel %vm944, %v2527, %v7425
        %v7586 = vsel %vm1657, %v7570, %v7459
        %v7587 = vsel %vm1657, %v7571, %v7461
        %v7588 = vsel %vm1657, %v7572, %v7463
        %v7589 = vsel %vm1657, %v7573, %v7465
        %v7590 = vsel %vm1657, %v7574, %v7467
        %v7591 = vsel %vm1657, %v7575, %v7469
        %v7592 = vsel %vm1657, %v7576, %v7471
        %v7593 = vsel %vm1657, %v7577, %v7473
        %v7594 = vsel %vm1657, %v7578, %v7475
        %v7595 = vsel %vm1657, %v7579, %v7477
        %v7596 = vsel %vm1657, %v7580, %v7479
        %v7597 = vsel %vm1657, %v7581, %v7481
        %v7598 = vsel %vm1657, %v7582, %v7483
        %v7599 = vsel %vm1657, %v7583, %v7485
        %v7600 = vsel %vm1657, %v7584, %v7487
        %v7601 = vsel %vm1657, %v7585, %v7489
        %vm7602 = vcmask 195584
        %v7603 = vsel %vm7602, %v7586, %v7523
        %v7604 = vsel %vm7602, %v7587, %v7525
        %v7605 = vsel %vm7602, %v7588, %v7527
        %v7606 = vsel %vm7602, %v7589, %v7529
        %v7607 = vsel %vm7602, %v7590, %v7531
        %v7608 = vsel %vm7602, %v7591, %v7533
        %v7609 = vsel %vm7602, %v7592, %v7535
        %v7610 = vsel %vm7602, %v7593, %v7537
        %v7611 = vsel %vm7602, %v7594, %v7539
        %v7612 = vsel %vm7602, %v7595, %v7541
        %v7613 = vsel %vm7602, %v7596, %v7543
        %v7614 = vsel %vm7602, %v7597, %v7545
        %v7615 = vsel %vm7602, %v7598, %v7547
        %v7616 = vsel %vm7602, %v7599, %v7549
        %v7617 = vsel %vm7602, %v7600, %v7551
        %v7618 = vsel %vm7602, %v7601, %v7553
        %v7619 = vpack.c.bf16 %v7604, %v7603
        %v7620 = vpack.c.bf16 %v7606, %v7605
        %v7621 = vpack.c.bf16 %v7608, %v7607
        %v7622 = vpack.c.bf16 %v7610, %v7609
        %v7623 = vpack.c.bf16 %v7612, %v7611
        %v7624 = vpack.c.bf16 %v7614, %v7613
        %v7625 = vpack.c.bf16 %v7616, %v7615
        %v7626 = vpack.c.bf16 %v7618, %v7617
        %v7627 = vld [vmem:[%s4] sm:$0xf]
        %v7628 = vld [vmem:[%s4 + $0x4] sm:$0xf]
        %v7629 = vld [vmem:[%s4 + $0x8] sm:$0xf]
        %v7630 = vld [vmem:[%s4 + $0xc] sm:$0xf]
        %v7631 = vld [vmem:[%s5] sm:$0x1]
        %v7633 = vlaneseq
        %v7634 = vshrl.u32 %v7633, 7
        %v7635 = vsub.s32 0, %v7634
        %v7636 = vrot.slane %v7631, %v7635
        %v7642 = vunpack.c.l.b16 %v7627
        %v7643 = vunpack.c.l.b16 %v7628
        %v7644 = vunpack.c.l.b16 %v7629
        %v7645 = vunpack.c.l.b16 %v7630
        %v7646 = vpack.c.b16 %v7643, %v7642
        %v7647 = vpack.c.b16 %v7645, %v7644
        %v7651 = vsel %vm540, %v7619, 0
        %v7654 = vsel %vm540, %v7620, 0
        %v7657 = vsel %vm540, %v7621, 0
        %v7660 = vsel %vm540, %v7622, 0
        %v7663 = vsel %vm540, %v7623, 0
        %v7666 = vsel %vm540, %v7624, 0
        %v7669 = vsel %vm540, %v7625, 0
        %v7672 = vsel %vm540, %v7626, 0
        %7674 = vmatprep.subr.bf16.mxu0 0
        %7675 = vmatpush1.bf16.msra.mxu0 %v7646
        %7676 = vmatprep.subr.bf16.mxu0 0
        %7677 = vmatpush1.bf16.msra.mxu0 %v7647
        %7678 = vmatprep.subr.bf16.mxu0 0
        %7679 = vmatpush1.bf16.msra.mxu0 0
        %7680 = vmatprep.subr.bf16.mxu0 0
        %7681 = vmatpush1.bf16.msra.mxu0 0
        %7682 = vmatprep.subr.bf16.mxu0 0
        %7683 = vmatpush1.bf16.msra.mxu0 0
        %7684 = vmatprep.subr.bf16.mxu0 0
        %7685 = vmatpush1.bf16.msra.mxu0 0
        %7686 = vmatprep.subr.bf16.mxu0 0
        %7687 = vmatpush1.bf16.msra.mxu0 0
        %7688 = vmatprep.subr.bf16.mxu0 0
        %7689 = vmatpush1.bf16.msra.mxu0 0
        %7690 = vmatprep.subr.bf16.mxu0 0
        %7691 = vmatpush1.bf16.msra.mxu0 0
        %7692 = vmatprep.subr.bf16.mxu0 0
        %7693 = vmatpush1.bf16.msra.mxu0 0
        %7694 = vmatprep.subr.bf16.mxu0 0
        %7695 = vmatpush1.bf16.msra.mxu0 0
        %7696 = vmatprep.subr.bf16.mxu0 0
        %7697 = vmatpush1.bf16.msra.mxu0 0
        %7698 = vmatprep.subr.bf16.mxu0 0
        %7699 = vmatpush1.bf16.msra.mxu0 0
        %7700 = vmatprep.subr.bf16.mxu0 0
        %7701 = vmatpush1.bf16.msra.mxu0 0
        %7702 = vmatprep.subr.bf16.mxu0 0
        %7703 = vmatpush1.bf16.msra.mxu0 0
        %7704 = vmatprep.subr.bf16.mxu0 0
        %7705 = vmatpush1.bf16.msra.mxu0 0
        %7706 = vmatprep.mubr.bf16.mxu0 0
        %7707 = vmatmul.mubr.bf16.gmra.mrb[0].mxu0 %v7651
        %v7708 = vpop.f32.mrb[0].mxu0
        %v7709 = vadd.f32 %v7636, %v7708
        %v7710 = vpop.f32.mrb[0].mxu0
        %v7711 = vpop.f32.mrb[0].mxu0
        %v7712 = vadd.f32 %v7636, %v7711
        %v7713 = vpop.f32.mrb[0].mxu0
        %7714 = vmatprep.mubr.bf16.mxu0 0
        %7715 = vmatmul.mubr.bf16.gmra.mrb[0].mxu0 %v7654
        %v7716 = vpop.f32.mrb[0].mxu0
        %v7717 = vadd.f32 %v7636, %v7716
        %v7718 = vpop.f32.mrb[0].mxu0
        %v7719 = vpop.f32.mrb[0].mxu0
        %v7720 = vadd.f32 %v7636, %v7719
        %v7721 = vpop.f32.mrb[0].mxu0
        %7722 = vmatprep.mubr.bf16.mxu0 0
        %7723 = vmatmul.mubr.bf16.gmra.mrb[0].mxu0 %v7657
        %v7724 = vpop.f32.mrb[0].mxu0
        %v7725 = vadd.f32 %v7636, %v7724
        %v7726 = vpop.f32.mrb[0].mxu0
        %v7727 = vpop.f32.mrb[0].mxu0
        %v7728 = vadd.f32 %v7636, %v7727
        %v7729 = vpop.f32.mrb[0].mxu0
        %7730 = vmatprep.mubr.bf16.mxu0 0
        %7731 = vmatmul.mubr.bf16.gmra.mrb[0].mxu0 %v7660
        %v7732 = vpop.f32.mrb[0].mxu0
        %v7733 = vadd.f32 %v7636, %v7732
        %v7734 = vpop.f32.mrb[0].mxu0
        %v7735 = vpop.f32.mrb[0].mxu0
        %v7736 = vadd.f32 %v7636, %v7735
        %v7737 = vpop.f32.mrb[0].mxu0
        %7738 = vmatprep.mubr.bf16.mxu0 0
        %7739 = vmatmul.mubr.bf16.gmra.mrb[0].mxu0 %v7663
        %v7740 = vpop.f32.mrb[0].mxu0
        %v7741 = vadd.f32 %v7636, %v7740
        %v7742 = vpop.f32.mrb[0].mxu0
        %v7743 = vpop.f32.mrb[0].mxu0
        %v7744 = vadd.f32 %v7636, %v7743
        %v7745 = vpop.f32.mrb[0].mxu0
        %7746 = vmatprep.mubr.bf16.mxu0 0
        %7747 = vmatmul.mubr.bf16.gmra.mrb[0].mxu0 %v7666
        %v7748 = vpop.f32.mrb[0].mxu0
        %v7749 = vadd.f32 %v7636, %v7748
        %v7750 = vpop.f32.mrb[0].mxu0
        %v7751 = vpop.f32.mrb[0].mxu0
        %v7752 = vadd.f32 %v7636, %v7751
        %v7753 = vpop.f32.mrb[0].mxu0
        %7754 = vmatprep.mubr.bf16.mxu0 0
        %7755 = vmatmul.mubr.bf16.gmra.mrb[0].mxu0 %v7669
        %v7756 = vpop.f32.mrb[0].mxu0
        %v7757 = vadd.f32 %v7636, %v7756
        %v7758 = vpop.f32.mrb[0].mxu0
        %v7759 = vpop.f32.mrb[0].mxu0
        %v7760 = vadd.f32 %v7636, %v7759
        %v7761 = vpop.f32.mrb[0].mxu0
        %7762 = vmatprep.mubr.bf16.mxu0 0
        %7763 = vmatmul.mubr.bf16.gmra.mrb[0].mxu0 %v7672
        %v7764 = vpop.f32.mrb[0].mxu0
        %v7765 = vadd.f32 %v7636, %v7764
        %v7766 = vpop.f32.mrb[0].mxu0
        %v7767 = vpop.f32.mrb[0].mxu0
        %v7768 = vadd.f32 %v7636, %v7767
        %v7769 = vpop.f32.mrb[0].mxu0
        %7770 = vdwg.mxu0
        %v7771 = vld [vmem:[%s6] sm:$0x1]
        %v7773 = vlaneseq
        %v7774 = vshrl.u32 %v7773, 7
        %v7775 = vsub.s32 0, %v7774
        %v7776 = vrot.slane %v7771, %v7775
        %v7778 = vmul.f32 %v7709, %v7776
        %v7779 = vmul.f32 %v7712, %v7776
        %v7780 = vmul.f32 %v7717, %v7776
        %v7781 = vmul.f32 %v7720, %v7776
        %v7782 = vmul.f32 %v7725, %v7776
        %v7783 = vmul.f32 %v7728, %v7776
        %v7784 = vmul.f32 %v7733, %v7776
        %v7785 = vmul.f32 %v7736, %v7776
        %v7786 = vmul.f32 %v7741, %v7776
        %v7787 = vmul.f32 %v7744, %v7776
        %v7788 = vmul.f32 %v7749, %v7776
        %v7789 = vmul.f32 %v7752, %v7776
        %v7790 = vmul.f32 %v7757, %v7776
        %v7791 = vmul.f32 %v7760, %v7776
        %v7792 = vmul.f32 %v7765, %v7776
        %v7793 = vmul.f32 %v7768, %v7776
        %v7794 = vadd.f32 %v492, %v7778
        %v7795 = vadd.f32 %v493, %v7779
        %v7796 = vadd.f32 %v494, %v7780
        %v7797 = vadd.f32 %v495, %v7781
        %v7798 = vadd.f32 %v496, %v7782
        %v7799 = vadd.f32 %v497, %v7783
        %v7800 = vadd.f32 %v498, %v7784
        %v7801 = vadd.f32 %v499, %v7785
        %v7802 = vadd.f32 %v500, %v7786
        %v7803 = vadd.f32 %v501, %v7787
        %v7804 = vadd.f32 %v502, %v7788
        %v7805 = vadd.f32 %v503, %v7789
        %v7806 = vadd.f32 %v504, %v7790
        %v7807 = vadd.f32 %v505, %v7791
        %v7808 = vadd.f32 %v506, %v7792
        %v7809 = vadd.f32 %v507, %v7793
        %v7810 = vmul.f32 %v7794, %v7794
        %v7811 = vmul.f32 %v7795, %v7795
        %v7812 = vmul.f32 %v7796, %v7796
        %v7813 = vmul.f32 %v7797, %v7797
        %v7814 = vmul.f32 %v7798, %v7798
        %v7815 = vmul.f32 %v7799, %v7799
        %v7816 = vmul.f32 %v7800, %v7800
        %v7817 = vmul.f32 %v7801, %v7801
        %v7818 = vmul.f32 %v7802, %v7802
        %v7819 = vmul.f32 %v7803, %v7803
        %v7820 = vmul.f32 %v7804, %v7804
        %v7821 = vmul.f32 %v7805, %v7805
        %v7822 = vmul.f32 %v7806, %v7806
        %v7823 = vmul.f32 %v7807, %v7807
        %v7824 = vmul.f32 %v7808, %v7808
        %v7825 = vmul.f32 %v7809, %v7809
        %v7826 = vsel %vm540, %v7810, 0.0
        %7827 = vadd.xlane.f32.xlu0 %v7826
        %v7828 = vpop.xlane.xlu0 %7827
        %v7829 = vsel %vm540, %v7811, 0.0
        %7830 = vadd.xlane.f32.xlu0 %v7829
        %v7831 = vpop.xlane.xlu0 %7830
        %v7832 = vsel %vm540, %v7812, 0.0
        %7833 = vadd.xlane.f32.xlu0 %v7832
        %v7834 = vpop.xlane.xlu0 %7833
        %v7835 = vsel %vm540, %v7813, 0.0
        %7836 = vadd.xlane.f32.xlu0 %v7835
        %v7837 = vpop.xlane.xlu0 %7836
        %v7838 = vsel %vm540, %v7814, 0.0
        %7839 = vadd.xlane.f32.xlu0 %v7838
        %v7840 = vpop.xlane.xlu0 %7839
        %v7841 = vsel %vm540, %v7815, 0.0
        %7842 = vadd.xlane.f32.xlu0 %v7841
        %v7843 = vpop.xlane.xlu0 %7842
        %v7844 = vsel %vm540, %v7816, 0.0
        %7845 = vadd.xlane.f32.xlu0 %v7844
        %v7846 = vpop.xlane.xlu0 %7845
        %v7847 = vsel %vm540, %v7817, 0.0
        %7848 = vadd.xlane.f32.xlu0 %v7847
        %v7849 = vpop.xlane.xlu0 %7848
        %v7850 = vsel %vm540, %v7818, 0.0
        %7851 = vadd.xlane.f32.xlu0 %v7850
        %v7852 = vpop.xlane.xlu0 %7851
        %v7853 = vsel %vm540, %v7819, 0.0
        %7854 = vadd.xlane.f32.xlu0 %v7853
        %v7855 = vpop.xlane.xlu0 %7854
        %v7856 = vsel %vm540, %v7820, 0.0
        %7857 = vadd.xlane.f32.xlu0 %v7856
        %v7858 = vpop.xlane.xlu0 %7857
        %v7859 = vsel %vm540, %v7821, 0.0
        %7860 = vadd.xlane.f32.xlu0 %v7859
        %v7861 = vpop.xlane.xlu0 %7860
        %v7862 = vsel %vm540, %v7822, 0.0
        %7863 = vadd.xlane.f32.xlu0 %v7862
        %v7864 = vpop.xlane.xlu0 %7863
        %v7865 = vsel %vm540, %v7823, 0.0
        %7866 = vadd.xlane.f32.xlu0 %v7865
        %v7867 = vpop.xlane.xlu0 %7866
        %v7868 = vsel %vm540, %v7824, 0.0
        %7869 = vadd.xlane.f32.xlu0 %v7868
        %v7870 = vpop.xlane.xlu0 %7869
        %v7871 = vsel %vm540, %v7825, 0.0
        %7872 = vadd.xlane.f32.xlu0 %v7871
        %v7873 = vpop.xlane.xlu0 %7872
        %v7874 = vmul.f32 %v7828, %v589
        %v7875 = vmul.f32 %v7831, %v589
        %v7876 = vmul.f32 %v7834, %v589
        %v7877 = vmul.f32 %v7837, %v589
        %v7878 = vmul.f32 %v7840, %v589
        %v7879 = vmul.f32 %v7843, %v589
        %v7880 = vmul.f32 %v7846, %v589
        %v7881 = vmul.f32 %v7849, %v589
        %v7882 = vmul.f32 %v7852, %v589
        %v7883 = vmul.f32 %v7855, %v589
        %v7884 = vmul.f32 %v7858, %v589
        %v7885 = vmul.f32 %v7861, %v589
        %v7886 = vmul.f32 %v7864, %v589
        %v7887 = vmul.f32 %v7867, %v589
        %v7888 = vmul.f32 %v7870, %v589
        %v7889 = vmul.f32 %v7873, %v589
        %v7890 = vadd.f32 %v7874, 1e-06
        %v7891 = vadd.f32 %v7875, 1e-06
        %v7892 = vadd.f32 %v7876, 1e-06
        %v7893 = vadd.f32 %v7877, 1e-06
        %v7894 = vadd.f32 %v7878, 1e-06
        %v7895 = vadd.f32 %v7879, 1e-06
        %v7896 = vadd.f32 %v7880, 1e-06
        %v7897 = vadd.f32 %v7881, 1e-06
        %v7898 = vadd.f32 %v7882, 1e-06
        %v7899 = vadd.f32 %v7883, 1e-06
        %v7900 = vadd.f32 %v7884, 1e-06
        %v7901 = vadd.f32 %v7885, 1e-06
        %v7902 = vadd.f32 %v7886, 1e-06
        %v7903 = vadd.f32 %v7887, 1e-06
        %v7904 = vadd.f32 %v7888, 1e-06
        %v7905 = vadd.f32 %v7889, 1e-06
        %v7906 = vrsqrt.pop %v7890
        %v7907 = vrsqrt.pop %v7891
        %v7908 = vrsqrt.pop %v7892
        %v7909 = vrsqrt.pop %v7893
        %v7910 = vrsqrt.pop %v7894
        %v7911 = vrsqrt.pop %v7895
        %v7912 = vrsqrt.pop %v7896
        %v7913 = vrsqrt.pop %v7897
        %v7914 = vrsqrt.pop %v7898
        %v7915 = vrsqrt.pop %v7899
        %v7916 = vrsqrt.pop %v7900
        %v7917 = vrsqrt.pop %v7901
        %v7918 = vrsqrt.pop %v7902
        %v7919 = vrsqrt.pop %v7903
        %v7920 = vrsqrt.pop %v7904
        %v7921 = vrsqrt.pop %v7905
        %v7922 = vmul.f32 %v7794, %v7906
        %v7923 = vmul.f32 %v7795, %v7907
        %v7924 = vmul.f32 %v7796, %v7908
        %v7925 = vmul.f32 %v7797, %v7909
        %v7926 = vmul.f32 %v7798, %v7910
        %v7927 = vmul.f32 %v7799, %v7911
        %v7928 = vmul.f32 %v7800, %v7912
        %v7929 = vmul.f32 %v7801, %v7913
        %v7930 = vmul.f32 %v7802, %v7914
        %v7931 = vmul.f32 %v7803, %v7915
        %v7932 = vmul.f32 %v7804, %v7916
        %v7933 = vmul.f32 %v7805, %v7917
        %v7934 = vmul.f32 %v7806, %v7918
        %v7935 = vmul.f32 %v7807, %v7919
        %v7936 = vmul.f32 %v7808, %v7920
        %v7937 = vmul.f32 %v7809, %v7921
        %v7938 = vpack.c.bf16 %v7923, %v7922
        %v7939 = vpack.c.bf16 %v7925, %v7924
        %v7940 = vpack.c.bf16 %v7927, %v7926
        %v7941 = vpack.c.bf16 %v7929, %v7928
        %v7942 = vpack.c.bf16 %v7931, %v7930
        %v7943 = vpack.c.bf16 %v7933, %v7932
        %v7944 = vpack.c.bf16 %v7935, %v7934
        %v7945 = vpack.c.bf16 %v7937, %v7936
        %v7946 = vld [vmem:[#allocation7] sm:$0xf]
        %v7947 = vld [vmem:[#allocation7 + $0x4] sm:$0xf]
        %v7948 = vld [vmem:[#allocation7 + $0x8] sm:$0xf]
        %v7949 = vld [vmem:[#allocation7 + $0xc] sm:$0xf]
        %v7950 = vld [vmem:[%s8] sm:$0x1]
        %v7952 = vlaneseq
        %v7953 = vshrl.u32 %v7952, 7
        %v7954 = vsub.s32 0, %v7953
        %v7955 = vrot.slane %v7950, %v7954
        %v7961 = vunpack.c.l.b16 %v7946
        %v7962 = vunpack.c.l.b16 %v7947
        %v7963 = vunpack.c.l.b16 %v7948
        %v7964 = vunpack.c.l.b16 %v7949
        %v7965 = vpack.c.b16 %v7962, %v7961
        %v7966 = vpack.c.b16 %v7964, %v7963
        %v7970 = vsel %vm540, %v7938, 0
        %v7973 = vsel %vm540, %v7939, 0
        %v7976 = vsel %vm540, %v7940, 0
        %v7979 = vsel %vm540, %v7941, 0
        %v7982 = vsel %vm540, %v7942, 0
        %v7985 = vsel %vm540, %v7943, 0
        %v7988 = vsel %vm540, %v7944, 0
        %v7991 = vsel %vm540, %v7945, 0
        %7993 = vmatprep.subr.bf16.mxu0 0
        %7994 = vmatpush1.bf16.msra.mxu0 %v7965
        %7995 = vmatprep.subr.bf16.mxu0 0
        %7996 = vmatpush1.bf16.msra.mxu0 %v7966
        %7997 = vmatprep.subr.bf16.mxu0 0
        %7998 = vmatpush1.bf16.msra.mxu0 0
        %7999 = vmatprep.subr.bf16.mxu0 0
        %8000 = vmatpush1.bf16.msra.mxu0 0
        %8001 = vmatprep.subr.bf16.mxu0 0
        %8002 = vmatpush1.bf16.msra.mxu0 0
        %8003 = vmatprep.subr.bf16.mxu0 0
        %8004 = vmatpush1.bf16.msra.mxu0 0
        %8005 = vmatprep.subr.bf16.mxu0 0
        %8006 = vmatpush1.bf16.msra.mxu0 0
        %8007 = vmatprep.subr.bf16.mxu0 0
        %8008 = vmatpush1.bf16.msra.mxu0 0
        %8009 = vmatprep.subr.bf16.mxu0 0
        %8010 = vmatpush1.bf16.msra.mxu0 0
        %8011 = vmatprep.subr.bf16.mxu0 0
        %8012 = vmatpush1.bf16.msra.mxu0 0
        %8013 = vmatprep.subr.bf16.mxu0 0
        %8014 = vmatpush1.bf16.msra.mxu0 0
        %8015 = vmatprep.subr.bf16.mxu0 0
        %8016 = vmatpush1.bf16.msra.mxu0 0
        %8017 = vmatprep.subr.bf16.mxu0 0
        %8018 = vmatpush1.bf16.msra.mxu0 0
        %8019 = vmatprep.subr.bf16.mxu0 0
        %8020 = vmatpush1.bf16.msra.mxu0 0
        %8021 = vmatprep.subr.bf16.mxu0 0
        %8022 = vmatpush1.bf16.msra.mxu0 0
        %8023 = vmatprep.subr.bf16.mxu0 0
        %8024 = vmatpush1.bf16.msra.mxu0 0
        %8025 = vmatprep.mubr.bf16.mxu0 0
        %8026 = vmatmul.mubr.bf16.gmra.mrb[0].mxu0 %v7970
        %v8027 = vpop.f32.mrb[0].mxu0
        %v8028 = vadd.f32 %v7955, %v8027
        %v8029 = vpop.f32.mrb[0].mxu0
        %v8030 = vpop.f32.mrb[0].mxu0
        %v8031 = vadd.f32 %v7955, %v8030
        %v8032 = vpop.f32.mrb[0].mxu0
        %8033 = vmatprep.mubr.bf16.mxu0 0
        %8034 = vmatmul.mubr.bf16.gmra.mrb[0].mxu0 %v7973
        %v8035 = vpop.f32.mrb[0].mxu0
        %v8036 = vadd.f32 %v7955, %v8035
        %v8037 = vpop.f32.mrb[0].mxu0
        %v8038 = vpop.f32.mrb[0].mxu0
        %v8039 = vadd.f32 %v7955, %v8038
        %v8040 = vpop.f32.mrb[0].mxu0
        %8041 = vmatprep.mubr.bf16.mxu0 0
        %8042 = vmatmul.mubr.bf16.gmra.mrb[0].mxu0 %v7976
        %v8043 = vpop.f32.mrb[0].mxu0
        %v8044 = vadd.f32 %v7955, %v8043
        %v8045 = vpop.f32.mrb[0].mxu0
        %v8046 = vpop.f32.mrb[0].mxu0
        %v8047 = vadd.f32 %v7955, %v8046
        %v8048 = vpop.f32.mrb[0].mxu0
        %8049 = vmatprep.mubr.bf16.mxu0 0
        %8050 = vmatmul.mubr.bf16.gmra.mrb[0].mxu0 %v7979
        %v8051 = vpop.f32.mrb[0].mxu0
        %v8052 = vadd.f32 %v7955, %v8051
        %v8053 = vpop.f32.mrb[0].mxu0
        %v8054 = vpop.f32.mrb[0].mxu0
        %v8055 = vadd.f32 %v7955, %v8054
        %v8056 = vpop.f32.mrb[0].mxu0
        %8057 = vmatprep.mubr.bf16.mxu0 0
        %8058 = vmatmul.mubr.bf16.gmra.mrb[0].mxu0 %v7982
        %v8059 = vpop.f32.mrb[0].mxu0
        %v8060 = vadd.f32 %v7955, %v8059
        %v8061 = vpop.f32.mrb[0].mxu0
        %v8062 = vpop.f32.mrb[0].mxu0
        %v8063 = vadd.f32 %v7955, %v8062
        %v8064 = vpop.f32.mrb[0].mxu0
        %8065 = vmatprep.mubr.bf16.mxu0 0
        %8066 = vmatmul.mubr.bf16.gmra.mrb[0].mxu0 %v7985
        %v8067 = vpop.f32.mrb[0].mxu0
        %v8068 = vadd.f32 %v7955, %v8067
        %v8069 = vpop.f32.mrb[0].mxu0
        %v8070 = vpop.f32.mrb[0].mxu0
        %v8071 = vadd.f32 %v7955, %v8070
        %v8072 = vpop.f32.mrb[0].mxu0
        %8073 = vmatprep.mubr.bf16.mxu0 0
        %8074 = vmatmul.mubr.bf16.gmra.mrb[0].mxu0 %v7988
        %v8075 = vpop.f32.mrb[0].mxu0
        %v8076 = vadd.f32 %v7955, %v8075
        %v8077 = vpop.f32.mrb[0].mxu0
        %v8078 = vpop.f32.mrb[0].mxu0
        %v8079 = vadd.f32 %v7955, %v8078
        %v8080 = vpop.f32.mrb[0].mxu0
        %8081 = vmatprep.mubr.bf16.mxu0 0
        %8082 = vmatmul.mubr.bf16.gmra.mrb[0].mxu0 %v7991
        %v8083 = vpop.f32.mrb[0].mxu0
        %v8084 = vadd.f32 %v7955, %v8083
        %v8085 = vpop.f32.mrb[0].mxu0
        %v8086 = vpop.f32.mrb[0].mxu0
        %v8087 = vadd.f32 %v7955, %v8086
        %v8088 = vpop.f32.mrb[0].mxu0
        %8089 = vdwg.mxu0
        %v8090 = vmul.f32 %v8028, 0.5
        %v8091 = vmul.f32 %v8031, 0.5
        %v8092 = vmul.f32 %v8036, 0.5
        %v8093 = vmul.f32 %v8039, 0.5
        %v8094 = vmul.f32 %v8044, 0.5
        %v8095 = vmul.f32 %v8047, 0.5
        %v8096 = vmul.f32 %v8052, 0.5
        %v8097 = vmul.f32 %v8055, 0.5
        %v8098 = vmul.f32 %v8060, 0.5
        %v8099 = vmul.f32 %v8063, 0.5
        %v8100 = vmul.f32 %v8068, 0.5
        %v8101 = vmul.f32 %v8071, 0.5
        %v8102 = vmul.f32 %v8076, 0.5
        %v8103 = vmul.f32 %v8079, 0.5
        %v8104 = vmul.f32 %v8084, 0.5
        %v8105 = vmul.f32 %v8087, 0.5
        %v8106 = vmul.f32 %v8028, 0.70710677
        %v8107 = vmul.f32 %v8031, 0.70710677
        %v8108 = vmul.f32 %v8036, 0.70710677
        %v8109 = vmul.f32 %v8039, 0.70710677
        %v8110 = vmul.f32 %v8044, 0.70710677
        %v8111 = vmul.f32 %v8047, 0.70710677
        %v8112 = vmul.f32 %v8052, 0.70710677
        %v8113 = vmul.f32 %v8055, 0.70710677
        %v8114 = vmul.f32 %v8060, 0.70710677
        %v8115 = vmul.f32 %v8063, 0.70710677
        %v8116 = vmul.f32 %v8068, 0.70710677
        %v8117 = vmul.f32 %v8071, 0.70710677
        %v8118 = vmul.f32 %v8076, 0.70710677
        %v8119 = vmul.f32 %v8079, 0.70710677
        %v8120 = vmul.f32 %v8084, 0.70710677
        %v8121 = vmul.f32 %v8087, 0.70710677
        %v8122 = verf.f32.pop %v8106
        %v8123 = verf.f32.pop %v8107
        %v8124 = verf.f32.pop %v8108
        %v8125 = verf.f32.pop %v8109
        %v8126 = verf.f32.pop %v8110
        %v8127 = verf.f32.pop %v8111
        %v8128 = verf.f32.pop %v8112
        %v8129 = verf.f32.pop %v8113
        %v8130 = verf.f32.pop %v8114
        %v8131 = verf.f32.pop %v8115
        %v8132 = verf.f32.pop %v8116
        %v8133 = verf.f32.pop %v8117
        %v8134 = verf.f32.pop %v8118
        %v8135 = verf.f32.pop %v8119
        %v8136 = verf.f32.pop %v8120
        %v8137 = verf.f32.pop %v8121
        %v8138 = vadd.f32 %v8122, 1.0
        %v8139 = vadd.f32 %v8123, 1.0
        %v8140 = vadd.f32 %v8124, 1.0
        %v8141 = vadd.f32 %v8125, 1.0
        %v8142 = vadd.f32 %v8126, 1.0
        %v8143 = vadd.f32 %v8127, 1.0
        %v8144 = vadd.f32 %v8128, 1.0
        %v8145 = vadd.f32 %v8129, 1.0
        %v8146 = vadd.f32 %v8130, 1.0
        %v8147 = vadd.f32 %v8131, 1.0
        %v8148 = vadd.f32 %v8132, 1.0
        %v8149 = vadd.f32 %v8133, 1.0
        %v8150 = vadd.f32 %v8134, 1.0
        %v8151 = vadd.f32 %v8135, 1.0
        %v8152 = vadd.f32 %v8136, 1.0
        %v8153 = vadd.f32 %v8137, 1.0
        %v8154 = vmul.f32 %v8090, %v8138
        %v8155 = vmul.f32 %v8091, %v8139
        %v8156 = vmul.f32 %v8092, %v8140
        %v8157 = vmul.f32 %v8093, %v8141
        %v8158 = vmul.f32 %v8094, %v8142
        %v8159 = vmul.f32 %v8095, %v8143
        %v8160 = vmul.f32 %v8096, %v8144
        %v8161 = vmul.f32 %v8097, %v8145
        %v8162 = vmul.f32 %v8098, %v8146
        %v8163 = vmul.f32 %v8099, %v8147
        %v8164 = vmul.f32 %v8100, %v8148
        %v8165 = vmul.f32 %v8101, %v8149
        %v8166 = vmul.f32 %v8102, %v8150
        %v8167 = vmul.f32 %v8103, %v8151
        %v8168 = vmul.f32 %v8104, %v8152
        %v8169 = vmul.f32 %v8105, %v8153
        %v8170 = vpack.c.bf16 %v8155, %v8154
        %v8171 = vpack.c.bf16 %v8157, %v8156
        %v8172 = vpack.c.bf16 %v8159, %v8158
        %v8173 = vpack.c.bf16 %v8161, %v8160
        %v8174 = vpack.c.bf16 %v8163, %v8162
        %v8175 = vpack.c.bf16 %v8165, %v8164
        %v8176 = vpack.c.bf16 %v8167, %v8166
        %v8177 = vpack.c.bf16 %v8169, %v8168
        %v8178 = vld [vmem:[%s9] sm:$0xf]
        %v8179 = vld [vmem:[%s9 + $0x4] sm:$0xf]
        %v8180 = vld [vmem:[%s9 + $0x8] sm:$0xf]
        %v8181 = vld [vmem:[%s9 + $0xc] sm:$0xf]
        %v8182 = vld [vmem:[%s9 + $0x10] sm:$0xf]
        %v8183 = vld [vmem:[%s9 + $0x14] sm:$0xf]
        %v8184 = vld [vmem:[%s9 + $0x18] sm:$0xf]
        %v8185 = vld [vmem:[%s9 + $0x1c] sm:$0xf]
        %v8186 = vld [vmem:[%s10] sm:$0x1]
        %v8188 = vlaneseq
        %v8189 = vshrl.u32 %v8188, 7
        %v8190 = vsub.s32 0, %v8189
        %v8191 = vrot.slane %v8186, %v8190
        %v8201 = vunpack.c.l.b16 %v8178
        %v8202 = vunpack.c.l.b16 %v8179
        %v8203 = vunpack.c.l.b16 %v8180
        %v8204 = vunpack.c.l.b16 %v8181
        %v8205 = vunpack.c.l.b16 %v8182
        %v8206 = vunpack.c.l.b16 %v8183
        %v8207 = vunpack.c.l.b16 %v8184
        %v8208 = vunpack.c.l.b16 %v8185
        %v8209 = vpack.c.b16 %v8202, %v8201
        %v8210 = vpack.c.b16 %v8204, %v8203
        %v8211 = vpack.c.b16 %v8206, %v8205
        %v8212 = vpack.c.b16 %v8208, %v8207
        %vm8217 = vcmask 523264
        %v8219 = vsel %vm8217, %v8170, 0
        %v8222 = vsel %vm8217, %v8171, 0
        %v8225 = vsel %vm8217, %v8172, 0
        %v8228 = vsel %vm8217, %v8173, 0
        %v8231 = vsel %vm8217, %v8174, 0
        %v8234 = vsel %vm8217, %v8175, 0
        %v8237 = vsel %vm8217, %v8176, 0
        %v8240 = vsel %vm8217, %v8177, 0
        %8242 = vmatprep.subr.bf16.mxu0 0
        %8243 = vmatpush1.bf16.msra.mxu0 %v8209
        %8244 = vmatprep.subr.bf16.mxu0 0
        %8245 = vmatpush1.bf16.msra.mxu0 %v8210
        %8246 = vmatprep.subr.bf16.mxu0 0
        %8247 = vmatpush1.bf16.msra.mxu0 %v8211
        %8248 = vmatprep.subr.bf16.mxu0 0
        %8249 = vmatpush1.bf16.msra.mxu0 %v8212
        %8250 = vmatprep.subr.bf16.mxu0 0
        %8251 = vmatpush1.bf16.msra.mxu0 0
        %8252 = vmatprep.subr.bf16.mxu0 0
        %8253 = vmatpush1.bf16.msra.mxu0 0
        %8254 = vmatprep.subr.bf16.mxu0 0
        %8255 = vmatpush1.bf16.msra.mxu0 0
        %8256 = vmatprep.subr.bf16.mxu0 0
        %8257 = vmatpush1.bf16.msra.mxu0 0
        %8258 = vmatprep.subr.bf16.mxu0 0
        %8259 = vmatpush1.bf16.msra.mxu0 0
        %8260 = vmatprep.subr.bf16.mxu0 0
        %8261 = vmatpush1.bf16.msra.mxu0 0
        %8262 = vmatprep.subr.bf16.mxu0 0
        %8263 = vmatpush1.bf16.msra.mxu0 0
        %8264 = vmatprep.subr.bf16.mxu0 0
        %8265 = vmatpush1.bf16.msra.mxu0 0
        %8266 = vmatprep.subr.bf16.mxu0 0
        %8267 = vmatpush1.bf16.msra.mxu0 0
        %8268 = vmatprep.subr.bf16.mxu0 0
        %8269 = vmatpush1.bf16.msra.mxu0 0
        %8270 = vmatprep.subr.bf16.mxu0 0
        %8271 = vmatpush1.bf16.msra.mxu0 0
        %8272 = vmatprep.subr.bf16.mxu0 0
        %8273 = vmatpush1.bf16.msra.mxu0 0
        %8274 = vmatprep.mubr.bf16.mxu0 0
        %8275 = vmatmul.mubr.bf16.gmra.mrb[0].mxu0 %v8219
        %v8276 = vpop.f32.mrb[0].mxu0
        %v8277 = vadd.f32 %v8191, %v8276
        %v8278 = vpop.f32.mrb[0].mxu0
        %v8279 = vpop.f32.mrb[0].mxu0
        %v8280 = vadd.f32 %v8191, %v8279
        %v8281 = vpop.f32.mrb[0].mxu0
        %8282 = vmatprep.mubr.bf16.mxu0 0
        %8283 = vmatmul.mubr.bf16.gmra.mrb[0].mxu0 %v8222
        %v8284 = vpop.f32.mrb[0].mxu0
        %v8285 = vadd.f32 %v8191, %v8284
        %v8286 = vpop.f32.mrb[0].mxu0
        %v8287 = vpop.f32.mrb[0].mxu0
        %v8288 = vadd.f32 %v8191, %v8287
        %v8289 = vpop.f32.mrb[0].mxu0
        %8290 = vmatprep.mubr.bf16.mxu0 0
        %8291 = vmatmul.mubr.bf16.gmra.mrb[0].mxu0 %v8225
        %v8292 = vpop.f32.mrb[0].mxu0
        %v8293 = vadd.f32 %v8191, %v8292
        %v8294 = vpop.f32.mrb[0].mxu0
        %v8295 = vpop.f32.mrb[0].mxu0
        %v8296 = vadd.f32 %v8191, %v8295
        %v8297 = vpop.f32.mrb[0].mxu0
        %8298 = vmatprep.mubr.bf16.mxu0 0
        %8299 = vmatmul.mubr.bf16.gmra.mrb[0].mxu0 %v8228
        %v8300 = vpop.f32.mrb[0].mxu0
        %v8301 = vadd.f32 %v8191, %v8300
        %v8302 = vpop.f32.mrb[0].mxu0
        %v8303 = vpop.f32.mrb[0].mxu0
        %v8304 = vadd.f32 %v8191, %v8303
        %v8305 = vpop.f32.mrb[0].mxu0
        %8306 = vmatprep.mubr.bf16.mxu0 0
        %8307 = vmatmul.mubr.bf16.gmra.mrb[0].mxu0 %v8231
        %v8308 = vpop.f32.mrb[0].mxu0
        %v8309 = vadd.f32 %v8191, %v8308
        %v8310 = vpop.f32.mrb[0].mxu0
        %v8311 = vpop.f32.mrb[0].mxu0
        %v8312 = vadd.f32 %v8191, %v8311
        %v8313 = vpop.f32.mrb[0].mxu0
        %8314 = vmatprep.mubr.bf16.mxu0 0
        %8315 = vmatmul.mubr.bf16.gmra.mrb[0].mxu0 %v8234
        %v8316 = vpop.f32.mrb[0].mxu0
        %v8317 = vadd.f32 %v8191, %v8316
        %v8318 = vpop.f32.mrb[0].mxu0
        %v8319 = vpop.f32.mrb[0].mxu0
        %v8320 = vadd.f32 %v8191, %v8319
        %v8321 = vpop.f32.mrb[0].mxu0
        %8322 = vmatprep.mubr.bf16.mxu0 0
        %8323 = vmatmul.mubr.bf16.gmra.mrb[0].mxu0 %v8237
        %v8324 = vpop.f32.mrb[0].mxu0
        %v8325 = vadd.f32 %v8191, %v8324
        %v8326 = vpop.f32.mrb[0].mxu0
        %v8327 = vpop.f32.mrb[0].mxu0
        %v8328 = vadd.f32 %v8191, %v8327
        %v8329 = vpop.f32.mrb[0].mxu0
        %8330 = vmatprep.mubr.bf16.mxu0 0
        %8331 = vmatmul.mubr.bf16.gmra.mrb[0].mxu0 %v8240
        %v8332 = vpop.f32.mrb[0].mxu0
        %v8333 = vadd.f32 %v8191, %v8332
        %v8334 = vpop.f32.mrb[0].mxu0
        %v8335 = vpop.f32.mrb[0].mxu0
        %v8336 = vadd.f32 %v8191, %v8335
        %v8337 = vpop.f32.mrb[0].mxu0
        %8338 = vdwg.mxu0
        %v8339 = vld [vmem:[%s11] sm:$0x1]
        %v8341 = vlaneseq
        %v8342 = vshrl.u32 %v8341, 7
        %v8343 = vsub.s32 0, %v8342
        %v8344 = vrot.slane %v8339, %v8343
        %v8346 = vmul.f32 %v8277, %v8344
        %v8347 = vmul.f32 %v8280, %v8344
        %v8348 = vmul.f32 %v8285, %v8344
        %v8349 = vmul.f32 %v8288, %v8344
        %v8350 = vmul.f32 %v8293, %v8344
        %v8351 = vmul.f32 %v8296, %v8344
        %v8352 = vmul.f32 %v8301, %v8344
        %v8353 = vmul.f32 %v8304, %v8344
        %v8354 = vmul.f32 %v8309, %v8344
        %v8355 = vmul.f32 %v8312, %v8344
        %v8356 = vmul.f32 %v8317, %v8344
        %v8357 = vmul.f32 %v8320, %v8344
        %v8358 = vmul.f32 %v8325, %v8344
        %v8359 = vmul.f32 %v8328, %v8344
        %v8360 = vmul.f32 %v8333, %v8344
        %v8361 = vmul.f32 %v8336, %v8344
        %v8362 = vadd.f32 %v7794, %v8346
        %v8363 = vadd.f32 %v7795, %v8347
        %v8364 = vadd.f32 %v7796, %v8348
        %v8365 = vadd.f32 %v7797, %v8349
        %v8366 = vadd.f32 %v7798, %v8350
        %v8367 = vadd.f32 %v7799, %v8351
        %v8368 = vadd.f32 %v7800, %v8352
        %v8369 = vadd.f32 %v7801, %v8353
        %v8370 = vadd.f32 %v7802, %v8354
        %v8371 = vadd.f32 %v7803, %v8355
        %v8372 = vadd.f32 %v7804, %v8356
        %v8373 = vadd.f32 %v7805, %v8357
        %v8374 = vadd.f32 %v7806, %v8358
        %v8375 = vadd.f32 %v7807, %v8359
        %v8376 = vadd.f32 %v7808, %v8360
        %v8377 = vadd.f32 %v7809, %v8361
        %8378 = vst.msk [vmem:[%s487] sm:$0xff] %vm540, %v8362
        %8379 = vst.msk [vmem:[%s487 + $0x8] sm:$0xff] %vm540, %v8363
        %8380 = vst.msk [vmem:[%s487 + $0x10] sm:$0xff] %vm540, %v8364
        %8381 = vst.msk [vmem:[%s487 + $0x18] sm:$0xff] %vm540, %v8365
        %8382 = vst.msk [vmem:[%s487 + $0x20] sm:$0xff] %vm540, %v8366
        %8383 = vst.msk [vmem:[%s487 + $0x28] sm:$0xff] %vm540, %v8367
        %8384 = vst.msk [vmem:[%s487 + $0x30] sm:$0xff] %vm540, %v8368
        %8385 = vst.msk [vmem:[%s487 + $0x38] sm:$0xff] %vm540, %v8369
        %8386 = vst.msk [vmem:[%s487 + $0x40] sm:$0xff] %vm540, %v8370
        %8387 = vst.msk [vmem:[%s487 + $0x48] sm:$0xff] %vm540, %v8371
        %8388 = vst.msk [vmem:[%s487 + $0x50] sm:$0xff] %vm540, %v8372
        %8389 = vst.msk [vmem:[%s487 + $0x58] sm:$0xff] %vm540, %v8373
        %8390 = vst.msk [vmem:[%s487 + $0x60] sm:$0xff] %vm540, %v8374
        %8391 = vst.msk [vmem:[%s487 + $0x68] sm:$0xff] %vm540, %v8375
        %8392 = vst.msk [vmem:[%s487 + $0x70] sm:$0xff] %vm540, %v8376
        %8393 = vst.msk [vmem:[%s487 + $0x78] sm:$0xff] %vm540, %v8377
        %s8394 = sand.u32 %s302, 1
        %s8395 = scalar_lea.sflag [#allocation4], %s8394
        %s8396 = sand.u32 %s302, 1
        %s8397 = smul.addr %s8396, 128
        %s8398 = scalar_lea.vmem [#allocation8], %s8397
        // Predicated region
        $region81: #{tpu_custom_call.1} parent=67 // pred_check
          %p8399 = pneg %p312
        $region82: #{tpu_custom_call.1} parent=67 // pred_check_branch
          %8401 = sbr.rel (%p8399) target = $region84
        $region83: #{tpu_custom_call.1} parent=67 // pred_region
          %s8402 = smul.u32 8, %s32
          %s8404 = ssub.s32 2048, 2048
          %8405 = vsyncadd %s8395, %s8404
          %s8406 = smul.addr %s8402, 2
          %s8407 = smul.addr %s8406, 128
          %s8408 = scalar_lea.hbm %s12, %s8407
          %s8409 = sshll.u32 %s8398, 4
          %s8410 = int_to_ptr.vmem [resolvable:$true] %s8409
          %8415 = dma.vmem_to_hbm [thread:$0]  %s8410, 2048, %s8408, %s8395, 128, 128, 8
        $region84: #{tpu_custom_call.1} parent=67 // pred_fallthru
          _
      $region68: #{tpu_custom_call.1} parent=5 // pred_fallthru
        _
      %p8416 = scmp.le.s32.totalorder 2, %s27
      // Predicated region
      $region85: #{tpu_custom_call.1} parent=5 // pred_check
        %p8417 = pneg %p8416
      $region86: #{tpu_custom_call.1} parent=5 // pred_check_branch
        %8419 = sbr.rel (%p8417) target = $region88
      $region87: #{tpu_custom_call.1} parent=5 // pred_region
        %s8420 = ssub.s32 %s27, 2
        // Predicated region
        $region89: #{tpu_custom_call.1} parent=87 // pred_check
          %p8421 = pneg %p318
        $region90: #{tpu_custom_call.1} parent=87 // pred_check_branch
          %8423 = sbr.rel (%p8421) target = $region92
        $region91: #{tpu_custom_call.1} parent=87 // pred_region
          %s8424 = sand.u32 %s303, 1
          %s8425 = scalar_lea.sflag [#allocation4], %s8424
          %s8426 = sand.u32 %s303, 1
          %s8427 = smul.addr %s8426, 128
          %s8428 = scalar_lea.vmem [#allocation8], %s8427
          %8429 = dma.done %s8425, 2048
        $region92: #{tpu_custom_call.1} parent=87 // pred_fallthru
          _
      $region88: #{tpu_custom_call.1} parent=5 // pred_fallthru
        _
    $region6: #{tpu_custom_call.1} parent=1 // loop_footer
      %s31 = sadd.s32 1, %s27
    $region7: #{tpu_custom_call.1} parent=1 // loop_footer_branch
      %26 = sbr.rel target = $region3
    $region8: #{tpu_custom_call.1} parent=1 // loop_exit
      _
    %8430 = vsyncpa [#allocation3], 1
    %s8431 = scalar_lea.sflag [#allocation3], 1
    %8432 = vsyncpa %s8431, 1
    %8433 = vsyncpa [#allocation6], 1
    %s8434 = scalar_lea.sflag [#allocation6], 1
    %8435 = vsyncpa %s8434, 1
    %8436 = vsyncpa [#allocation4], 1
    %s8437 = scalar_lea.sflag [#allocation4], 1
    %8438 = vsyncpa %s8437, 1

</llo_original>
